<compile_context>
chip_gen: v6e
topology: v6e:2x2x1
jax: 0.10.0
libtpu: 0.0.40
codegen_flags: <defaults>
</compile_context>

<pallas_src>
import math
import functools

import jax
import jax.numpy as jnp
from jax.experimental import pallas as pl
from jax.experimental.pallas import tpu as pltpu

EPS = 1e-5           # torch nn.LayerNorm default eps
MASK_VALUE = -1e30   # folded causal mask value (f32; exp(mask - rowmax) -> 0)


# ----------------------------------------------------------------------------
# In-kernel helpers
# ----------------------------------------------------------------------------
def _layernorm(x, w, b):
    mu = jnp.mean(x, axis=-1, keepdims=True)
    var = jnp.mean((x - mu) ** 2, axis=-1, keepdims=True)
    return (x - mu) * jax.lax.rsqrt(var + EPS) * w + b


def _erf(x):
    """Abramowitz & Stegun 7.1.26 erf approximation (max abs err ~1.5e-7).

    Uses only abs/exp/where, which lower cleanly in Mosaic (an exact lax.erf
    lowering is not guaranteed on TPU Pallas)."""
    a1, a2, a3, a4, a5 = 0.254829592, -0.284496736, 1.421413741, -1.453152027, 1.061405429
    p = 0.3275911
    ax = jnp.abs(x)
    t = 1.0 / (1.0 + p * ax)
    poly = ((((a5 * t + a4) * t + a3) * t + a2) * t + a1) * t
    y = 1.0 - poly * jnp.exp(-ax * ax)
    return jnp.where(x < 0.0, -y, y)


# ----------------------------------------------------------------------------
# One grid-free kernel = whole forward (depth x (attn + FF) + final LN + head).
# ----------------------------------------------------------------------------
def lamda_kernel(x_ref, vecs_ref, wq_ref, wk_ref, wv_ref, wo_ref, bias_ref,
                 w1_ref, b1_ref, w2_ref, hln_ref, hw_ref, hb_ref, o_ref,
                 *, depth, heads, dim_head, batch, seq, inner_ff):
    f32 = jnp.float32
    x = x_ref[...]                                   # (B*N, D) resident activation
    dim = x.shape[-1]

    for l in range(depth):                           # static unroll (depth is small)
        # ---- Residual(PreNorm(Attention)), multi-query K/V -------------------
        xn = _layernorm(x, vecs_ref[l, 0:1, :], vecs_ref[l, 1:2, :])
        k = jnp.dot(xn, wk_ref[l], preferred_element_type=f32)   # (B*N, Dh)
        v = jnp.dot(xn, wv_ref[l], preferred_element_type=f32)   # (B*N, Dh)
        wq3 = wq_ref[l]                              # (H, D, Dh), q-scale folded host-side
        wo3 = wo_ref[l]                              # (H, Dh, D)
        bias = bias_ref[l]                           # (H, N, N): rel-pos bias + causal mask
        outs = []
        for b in range(batch):                       # static unroll: attention per sequence
            r0 = b * seq
            xn3 = jnp.broadcast_to(xn[r0:r0 + seq][None], (heads, seq, dim))
            k3 = jnp.broadcast_to(k[r0:r0 + seq][None], (heads, seq, dim_head))
            v3 = jnp.broadcast_to(v[r0:r0 + seq][None], (heads, seq, dim_head))
            q3 = jnp.einsum('hnd,hde->hne', xn3, wq3, preferred_element_type=f32)
            sim = jnp.einsum('hid,hjd->hij', q3, k3, preferred_element_type=f32) + bias
            sim = sim - jnp.max(sim, axis=-1, keepdims=True)
            pexp = jnp.exp(sim)
            attn = pexp / jnp.sum(pexp, axis=-1, keepdims=True)   # exact normalization
            o3 = jnp.einsum('hij,hjd->hid', attn, v3, preferred_element_type=f32)
            proj = jnp.einsum('hid,hdo->hio', o3, wo3, preferred_element_type=f32)  # (H,N,D)
            acc = proj[0]                            # sum over heads == Wo applied to '(h d)'
            for hh in range(1, heads):
                acc = acc + proj[hh]
            outs.append(acc)                         # (N, D)
        attn_out = outs[0] if batch == 1 else jnp.concatenate(outs, axis=0)
        x = x + attn_out + vecs_ref[l, 2:3, :]       # + to_out bias, + residual

        # ---- Residual(PreNorm(FeedForward, GEGLU)) ---------------------------
        xn = _layernorm(x, vecs_ref[l, 3:4, :], vecs_ref[l, 4:5, :])
        h = jnp.dot(xn, w1_ref[l], preferred_element_type=f32) + b1_ref[l]  # (B*N, 2*inner)
        a = h[:, :inner_ff]
        g = h[:, inner_ff:]
        gelu_g = 0.5 * g * (1.0 + _erf(g * (1.0 / math.sqrt(2.0))))          # exact GELU
        x = x + jnp.dot(a * gelu_g, w2_ref[l],
                        preferred_element_type=f32) + vecs_ref[l, 5:6, :]

    # ---- Final LayerNorm + LM head (fused: x never round-trips HBM) ---------
    xn = _layernorm(x, hln_ref[0:1, :], hln_ref[1:2, :])
    o_ref[...] = jnp.dot(xn, hw_ref[...], preferred_element_type=f32) + hb_ref[...]


# ----------------------------------------------------------------------------
# Host-side: fold T5 relative-position bias + causal mask + bias scale
# ----------------------------------------------------------------------------
def _fused_bias(rel_emb, n, rel_scale, num_buckets=32, max_distance=128):
    """rel_emb: (depth, num_buckets, heads) -> (depth, heads, n, n) additive bias."""
    pos = jnp.arange(n)
    rel = pos[None, :] - pos[:, None]                       # k_pos - q_pos
    neg = jnp.maximum(-rel, 0)
    max_exact = num_buckets // 2
    is_small = neg < max_exact
    safe = jnp.maximum(neg, 1).astype(jnp.float32)          # clamp >=1: no log(0)->inf->int
    val_large = max_exact + (jnp.log(safe / max_exact)
                             / math.log(max_distance / max_exact)
                             * (num_buckets - max_exact)).astype(jnp.int32)
    val_large = jnp.minimum(val_large, num_buckets - 1)
    bucket = jnp.where(is_small, neg, val_large)             # (n, n)
    values = rel_emb[:, bucket, :]                           # (depth, n, n, heads)
    bias = jnp.transpose(values, (0, 3, 1, 2)) * rel_scale   # (depth, h, i, j)
    causal = pos[None, :] > pos[:, None]                     # triu offset 1
    return jnp.where(causal[None, None], MASK_VALUE, bias)


def _t5_bias(rel_emb_l, n, rel_scale, num_buckets=32, max_distance=128):
    """(heads, n, n) unmasked bias for the plain-JAX reference."""
    pos = jnp.arange(n)
    rel = pos[None, :] - pos[:, None]
    neg = jnp.maximum(-rel, 0)
    max_exact = num_buckets // 2
    is_small = neg < max_exact
    safe = jnp.maximum(neg, 1).astype(jnp.float32)
    val_large = max_exact + (jnp.log(safe / max_exact)
                             / math.log(max_distance / max_exact)
                             * (num_buckets - max_exact)).astype(jnp.int32)
    val_large = jnp.minimum(val_large, num_buckets - 1)
    bucket = jnp.where(is_small, neg, val_large)
    values = rel_emb_l[bucket]                               # (n, n, heads)
    return jnp.transpose(values, (2, 0, 1)) * rel_scale


# ----------------------------------------------------------------------------
# pallas_call wrapper
# ----------------------------------------------------------------------------
def lamda_forward(params, token_ids, heads, dim_head):
    B, N = token_ids.shape
    D = params['token_emb'].shape[1]
    depth = params['wq'].shape[0]
    inner_ff = params['w2'].shape[1]
    V = params['head_w'].shape[1]
    scale = dim_head ** -0.5
    rel_scale = dim_head ** 0.5

    # TODO(synk): token-embedding gather stays in plain JAX (dynamic row gather).
    x = params['token_emb'][token_ids].reshape(B * N, D).astype(jnp.float32)

    # Host-side weight prep: fold q scale, pre-reshape Wq/Wo per head (no in-kernel
    # lane-relayout reshapes), split Wkv, pack the tiny per-layer vectors into one slab.
    wq3 = (params['wq'] * scale).reshape(depth, D, heads, dim_head).transpose(0, 2, 1, 3)
    wk = params['wkv'][:, :, :dim_head]
    wv = params['wkv'][:, :, dim_head:]
    wo3 = params['wo'].reshape(depth, heads, dim_head, D)
    bias = _fused_bias(params['rel_emb'], N, rel_scale)       # (depth, H, N, N), f32
    vecs = jnp.concatenate([params['a_ln_w'], params['a_ln_b'], params['bo'],
                            params['f_ln_w'], params['f_ln_b'], params['b2']], axis=1)
    hln = jnp.concatenate([params['head_ln_w'], params['head_ln_b']], axis=0)

    kernel = functools.partial(lamda_kernel, depth=depth, heads=heads, dim_head=dim_head,
                               batch=B, seq=N, inner_ff=inner_ff)
    vmem = pl.BlockSpec(memory_space=pltpu.MemorySpace.VMEM)  # whole operand resident in VMEM
    out = pl.pallas_call(
        kernel,
        out_shape=jax.ShapeDtypeStruct((B * N, V), jnp.float32),
        in_specs=[vmem] * 13,
        out_specs=vmem,
    )(x, vecs, wq3, wk, wv, wo3, bias,
      params['w1'], params['b1'], params['w2'], hln, params['head_w'], params['head_b'])
    return out.reshape(B, N, V)


# ----------------------------------------------------------------------------
# Parameters (deterministic synthetic init, stacked over depth)
# ----------------------------------------------------------------------------
def init_params(key, *, num_tokens, dim, depth, lamda_dim_head, lamda_heads):
    # Reproduce LaMDA's positional-arg swap: Transformer(dim, depth, dim_head, heads)
    attn_heads = lamda_dim_head
    attn_dim_head = lamda_heads
    inner_attn = attn_heads * attn_dim_head
    inner_ff = int(dim * 4)

    def nrm(k, shape):
        return jax.random.normal(k, shape, jnp.float32) * 0.02

    ks = jax.random.split(key, 12)
    params = dict(
        token_emb=nrm(ks[0], (num_tokens, dim)),
        a_ln_w=jnp.ones((depth, 1, dim), jnp.float32),
        a_ln_b=jnp.zeros((depth, 1, dim), jnp.float32),
        wq=nrm(ks[1], (depth, dim, inner_attn)),
        wkv=nrm(ks[2], (depth, dim, 2 * attn_dim_head)),
        wo=nrm(ks[3], (depth, inner_attn, dim)),
        bo=nrm(ks[4], (depth, 1, dim)),
        rel_emb=nrm(ks[5], (depth, 32, attn_heads)),    # num_buckets=32
        f_ln_w=jnp.ones((depth, 1, dim), jnp.float32),
        f_ln_b=jnp.zeros((depth, 1, dim), jnp.float32),
        w1=nrm(ks[6], (depth, dim, 2 * inner_ff)),
        b1=nrm(ks[7], (depth, 1, 2 * inner_ff)),
        w2=nrm(ks[8], (depth, inner_ff, dim)),
        b2=nrm(ks[9], (depth, 1, dim)),
        head_ln_w=jnp.ones((1, dim), jnp.float32),
        head_ln_b=jnp.zeros((1, dim), jnp.float32),
        head_w=nrm(ks[10], (dim, num_tokens)),
        head_b=jnp.zeros((1, num_tokens), jnp.float32),
    )
    return params, attn_heads, attn_dim_head


# ----------------------------------------------------------------------------
# Plain-JAX reference mirroring the PyTorch forward semantics
# ----------------------------------------------------------------------------
def ref_forward(params, token_ids, heads, dim_head):
    x = params['token_emb'][token_ids]
    B, N, D = x.shape
    depth = params['wq'].shape[0]
    inner = params['w2'].shape[1]
    scale = dim_head ** -0.5
    rel_scale = dim_head ** 0.5
    neg = -jnp.finfo(jnp.float32).max
    causal = jnp.triu(jnp.ones((N, N), bool), 1)

    def ln(z, w, b):
        mu = jnp.mean(z, -1, keepdims=True)
        var = jnp.mean((z - mu) ** 2, -1, keepdims=True)
        return (z - mu) * jax.lax.rsqrt(var + EPS) * w + b

    for li in range(depth):
        xn = ln(x, params['a_ln_w'][li], params['a_ln_b'][li])
        q = xn @ params['wq'][li]
        kv = xn @ params['wkv'][li]
        k, v = kv[..., :dim_head], kv[..., dim_head:]
        q = q.reshape(B, N, heads, dim_head).transpose(0, 2, 1, 3) * scale
        sim = jnp.einsum('bhid,bjd->bhij', q, k)
        sim = sim + _t5_bias(params['rel_emb'][li], N, rel_scale)[None]
        sim = jnp.where(causal, neg, sim)
        sim = sim - sim.max(-1, keepdims=True)
        p = jnp.exp(sim)
        attn = p / p.sum(-1, keepdims=True)
        out = jnp.einsum('bhij,bjd->bhid', attn, v)
        out = out.transpose(0, 2, 1, 3).reshape(B, N, heads * dim_head)
        x = out @ params['wo'][li] + params['bo'][li] + x

        xn = ln(x, params['f_ln_w'][li], params['f_ln_b'][li])
        h = xn @ params['w1'][li] + params['b1'][li]
        aa, g = h[..., :inner], h[..., inner:]
        gelu_g = 0.5 * g * (1.0 + jax.lax.erf(g / math.sqrt(2.0)))
        x = (aa * gelu_g) @ params['w2'][li] + params['b2'][li] + x

    xn = ln(x, params['head_ln_w'], params['head_ln_b'])
    return xn @ params['head_w'] + params['head_b']


# ----------------------------------------------------------------------------
if __name__ == "__main__":
    # LaMDA(num_tokens=256, dim=32, depth=2, dim_head=4, heads=8)
    num_tokens, dim, depth = 256, 32, 2
    lamda_dim_head, lamda_heads = 4, 8
    B, N = 2, 8

    key = jax.random.PRNGKey(0)
    pkey, dkey = jax.random.split(key)
    params, attn_heads, attn_dim_head = init_params(
        pkey, num_tokens=num_tokens, dim=dim, depth=depth,
        lamda_dim_head=lamda_dim_head, lamda_heads=lamda_heads)

    token_ids = jax.random.randint(dkey, (B, N), 0, num_tokens, dtype=jnp.int32)

    logits = lamda_forward(params, token_ids, attn_heads, attn_dim_head)
    logits = jax.block_until_ready(logits)

    ref = ref_forward(params, token_ids, attn_heads, attn_dim_head)

    assert logits.shape == (B, N, num_tokens), logits.shape
    assert bool(jnp.all(jnp.isfinite(logits)))
    assert bool(jnp.allclose(logits, ref, atol=2e-3, rtol=2e-3))
    print("KERNEL_OK")
</pallas_src>

<mosaic_0001>
module attributes {stable_mosaic.version = 11 : i64} {
  func.func @lamda_kernel(%arg0: memref<16x32xf32, #tpu.memory_space<vmem>>, %arg1: memref<2x6x32xf32, #tpu.memory_space<vmem>>, %arg2: memref<2x4x32x8xf32, #tpu.memory_space<vmem>>, %arg3: memref<2x32x8xf32, #tpu.memory_space<vmem>>, %arg4: memref<2x32x8xf32, #tpu.memory_space<vmem>>, %arg5: memref<2x4x8x32xf32, #tpu.memory_space<vmem>>, %arg6: memref<2x4x8x8xf32, #tpu.memory_space<vmem>>, %arg7: memref<2x32x256xf32, #tpu.memory_space<vmem>>, %arg8: memref<2x1x256xf32, #tpu.memory_space<vmem>>, %arg9: memref<2x128x32xf32, #tpu.memory_space<vmem>>, %arg10: memref<2x32xf32, #tpu.memory_space<vmem>>, %arg11: memref<32x256xf32, #tpu.memory_space<vmem>>, %arg12: memref<1x256xf32, #tpu.memory_space<vmem>>, %arg13: memref<16x256xf32, #tpu.memory_space<vmem>>) attributes {dimension_semantics = [], scalar_prefetch = 0 : i64, scratch_operands = 0 : i64, tpu.core_type = #tpu.core_type<tc>} {
    %c0 = arith.constant 0 : index
    %c0_0 = arith.constant 0 : index
    %0 = vector.load %arg0[%c0, %c0_0] : memref<16x32xf32, #tpu.memory_space<vmem>>, vector<16x32xf32>
    %c0_1 = arith.constant 0 : index
    %c0_2 = arith.constant 0 : index
    %c0_3 = arith.constant 0 : index
    %1 = vector.load %arg1[%c0_1, %c0_2, %c0_3] : memref<2x6x32xf32, #tpu.memory_space<vmem>>, vector<1x1x32xf32>
    %2 = vector.shape_cast %1 : vector<1x1x32xf32> to vector<1x32xf32>
    %c0_4 = arith.constant 0 : index
    %c1 = arith.constant 1 : index
    %c0_5 = arith.constant 0 : index
    %3 = vector.load %arg1[%c0_4, %c1, %c0_5] : memref<2x6x32xf32, #tpu.memory_space<vmem>>, vector<1x1x32xf32>
    %4 = vector.shape_cast %3 : vector<1x1x32xf32> to vector<1x32xf32>
    %cst = arith.constant dense<0.000000e+00> : vector<16xf32>
    %5 = vector.multi_reduction <add>, %0, %cst [1] : vector<16x32xf32> to vector<16xf32>
    %6 = vector.shape_cast %5 : vector<16xf32> to vector<16x1xf32>
    %cst_6 = arith.constant 3.200000e+01 : f32
    %7 = vector.broadcast %cst_6 : f32 to vector<16x1xf32>
    %8 = arith.divf %6, %7 : vector<16x1xf32>
    %9 = vector.broadcast %8 : vector<16x1xf32> to vector<16x32xf32>
    %10 = arith.subf %0, %9 : vector<16x32xf32>
    %11 = arith.mulf %10, %10 : vector<16x32xf32>
    %cst_7 = arith.constant dense<0.000000e+00> : vector<16xf32>
    %12 = vector.multi_reduction <add>, %11, %cst_7 [1] : vector<16x32xf32> to vector<16xf32>
    %13 = vector.shape_cast %12 : vector<16xf32> to vector<16x1xf32>
    %cst_8 = arith.constant 3.200000e+01 : f32
    %14 = vector.broadcast %cst_8 : f32 to vector<16x1xf32>
    %15 = arith.divf %13, %14 : vector<16x1xf32>
    %16 = vector.broadcast %8 : vector<16x1xf32> to vector<16x32xf32>
    %17 = arith.subf %0, %16 : vector<16x32xf32>
    %cst_9 = arith.constant 9.99999974E-6 : f32
    %18 = vector.broadcast %cst_9 : f32 to vector<16x1xf32>
    %19 = arith.addf %15, %18 : vector<16x1xf32>
    %20 = math.rsqrt %19 : vector<16x1xf32>
    %21 = vector.broadcast %20 : vector<16x1xf32> to vector<16x32xf32>
    %22 = arith.mulf %17, %21 : vector<16x32xf32>
    %23 = vector.broadcast %2 : vector<1x32xf32> to vector<16x32xf32>
    %24 = arith.mulf %22, %23 : vector<16x32xf32>
    %25 = vector.broadcast %4 : vector<1x32xf32> to vector<16x32xf32>
    %26 = arith.addf %24, %25 : vector<16x32xf32>
    %c0_10 = arith.constant 0 : index
    %c0_11 = arith.constant 0 : index
    %c0_12 = arith.constant 0 : index
    %27 = vector.load %arg3[%c0_10, %c0_11, %c0_12] : memref<2x32x8xf32, #tpu.memory_space<vmem>>, vector<1x32x8xf32>
    %28 = vector.shape_cast %27 : vector<1x32x8xf32> to vector<32x8xf32>
    %cst_13 = arith.constant dense<0.000000e+00> : vector<16x8xf32>
    %29 = tpu.matmul %26, %28, %cst_13 {dimension_numbers = #tpu.dot_dimension_numbers<[1], [0], [0], [1], [0, 0, 1, 1], [], []>} : vector<16x32xf32>, vector<32x8xf32>, vector<16x8xf32> -> vector<16x8xf32>
    %c0_14 = arith.constant 0 : index
    %c0_15 = arith.constant 0 : index
    %c0_16 = arith.constant 0 : index
    %30 = vector.load %arg4[%c0_14, %c0_15, %c0_16] : memref<2x32x8xf32, #tpu.memory_space<vmem>>, vector<1x32x8xf32>
    %31 = vector.shape_cast %30 : vector<1x32x8xf32> to vector<32x8xf32>
    %cst_17 = arith.constant dense<0.000000e+00> : vector<16x8xf32>
    %32 = tpu.matmul %26, %31, %cst_17 {dimension_numbers = #tpu.dot_dimension_numbers<[1], [0], [0], [1], [0, 0, 1, 1], [], []>} : vector<16x32xf32>, vector<32x8xf32>, vector<16x8xf32> -> vector<16x8xf32>
    %c0_18 = arith.constant 0 : index
    %c0_19 = arith.constant 0 : index
    %c0_20 = arith.constant 0 : index
    %c0_21 = arith.constant 0 : index
    %33 = vector.load %arg2[%c0_18, %c0_19, %c0_20, %c0_21] : memref<2x4x32x8xf32, #tpu.memory_space<vmem>>, vector<1x4x32x8xf32>
    %34 = vector.shape_cast %33 : vector<1x4x32x8xf32> to vector<4x32x8xf32>
    %c0_22 = arith.constant 0 : index
    %c0_23 = arith.constant 0 : index
    %c0_24 = arith.constant 0 : index
    %c0_25 = arith.constant 0 : index
    %35 = vector.load %arg5[%c0_22, %c0_23, %c0_24, %c0_25] : memref<2x4x8x32xf32, #tpu.memory_space<vmem>>, vector<1x4x8x32xf32>
    %36 = vector.shape_cast %35 : vector<1x4x8x32xf32> to vector<4x8x32xf32>
    %c0_26 = arith.constant 0 : index
    %c0_27 = arith.constant 0 : index
    %c0_28 = arith.constant 0 : index
    %c0_29 = arith.constant 0 : index
    %37 = vector.load %arg6[%c0_26, %c0_27, %c0_28, %c0_29] : memref<2x4x8x8xf32, #tpu.memory_space<vmem>>, vector<1x4x8x8xf32>
    %38 = vector.shape_cast %37 : vector<1x4x8x8xf32> to vector<4x8x8xf32>
    %39 = vector.extract_strided_slice %26 {offsets = [0, 0], sizes = [8, 32], strides = [1, 1]} : vector<16x32xf32> to vector<8x32xf32>
    %40 = vector.shape_cast %39 : vector<8x32xf32> to vector<1x8x32xf32>
    %41 = vector.shape_cast %40 : vector<1x8x32xf32> to vector<1x8x32xf32>
    %42 = vector.broadcast %41 : vector<1x8x32xf32> to vector<4x8x32xf32>
    %43 = vector.extract_strided_slice %29 {offsets = [0, 0], sizes = [8, 8], strides = [1, 1]} : vector<16x8xf32> to vector<8x8xf32>
    %44 = vector.shape_cast %43 : vector<8x8xf32> to vector<1x8x8xf32>
    %45 = vector.shape_cast %44 : vector<1x8x8xf32> to vector<1x8x8xf32>
    %46 = vector.broadcast %45 : vector<1x8x8xf32> to vector<4x8x8xf32>
    %47 = vector.extract_strided_slice %32 {offsets = [0, 0], sizes = [8, 8], strides = [1, 1]} : vector<16x8xf32> to vector<8x8xf32>
    %48 = vector.shape_cast %47 : vector<8x8xf32> to vector<1x8x8xf32>
    %49 = vector.shape_cast %48 : vector<1x8x8xf32> to vector<1x8x8xf32>
    %50 = vector.broadcast %49 : vector<1x8x8xf32> to vector<4x8x8xf32>
    "tpu.trace_start"() <{level = 10 : i32, message = "hnd,hde->hne"}> : () -> ()
    %cst_30 = arith.constant dense<0.000000e+00> : vector<4x8x8xf32>
    %51 = tpu.matmul %42, %34, %cst_30 {dimension_numbers = #tpu.dot_dimension_numbers<[2], [1], [1], [2], [0, 0, 0, 1, 1, 2], [0], [0]>} : vector<4x8x32xf32>, vector<4x32x8xf32>, vector<4x8x8xf32> -> vector<4x8x8xf32>
    "tpu.trace_stop"() : () -> ()
    "tpu.trace_start"() <{level = 10 : i32, message = "hid,hjd->hij"}> : () -> ()
    %cst_31 = arith.constant dense<0.000000e+00> : vector<4x8x8xf32>
    %52 = tpu.matmul %51, %46, %cst_31 {dimension_numbers = #tpu.dot_dimension_numbers<[2], [2], [1], [1], [0, 0, 0, 1, 1, 1], [0], [0]>} : vector<4x8x8xf32>, vector<4x8x8xf32>, vector<4x8x8xf32> -> vector<4x8x8xf32>
    "tpu.trace_stop"() : () -> ()
    %53 = arith.addf %52, %38 : vector<4x8x8xf32>
    %cst_32 = arith.constant dense<0xFF800000> : vector<4x8xf32>
    %54 = vector.multi_reduction <maximumf>, %53, %cst_32 [2] : vector<4x8x8xf32> to vector<4x8xf32>
    %55 = vector.shape_cast %54 : vector<4x8xf32> to vector<4x8x1xf32>
    %56 = vector.broadcast %55 : vector<4x8x1xf32> to vector<4x8x8xf32>
    %57 = arith.subf %53, %56 : vector<4x8x8xf32>
    %58 = math.exp %57 : vector<4x8x8xf32>
    %cst_33 = arith.constant dense<0.000000e+00> : vector<4x8xf32>
    %59 = vector.multi_reduction <add>, %58, %cst_33 [2] : vector<4x8x8xf32> to vector<4x8xf32>
    %60 = vector.shape_cast %59 : vector<4x8xf32> to vector<4x8x1xf32>
    %61 = vector.broadcast %60 : vector<4x8x1xf32> to vector<4x8x8xf32>
    %62 = arith.divf %58, %61 : vector<4x8x8xf32>
    "tpu.trace_start"() <{level = 10 : i32, message = "hij,hjd->hid"}> : () -> ()
    %cst_34 = arith.constant dense<0.000000e+00> : vector<4x8x8xf32>
    %63 = tpu.matmul %62, %50, %cst_34 {dimension_numbers = #tpu.dot_dimension_numbers<[2], [1], [1], [2], [0, 0, 0, 1, 1, 2], [0], [0]>} : vector<4x8x8xf32>, vector<4x8x8xf32>, vector<4x8x8xf32> -> vector<4x8x8xf32>
    "tpu.trace_stop"() : () -> ()
    "tpu.trace_start"() <{level = 10 : i32, message = "hid,hdo->hio"}> : () -> ()
    %cst_35 = arith.constant dense<0.000000e+00> : vector<4x8x32xf32>
    %64 = tpu.matmul %63, %36, %cst_35 {dimension_numbers = #tpu.dot_dimension_numbers<[2], [1], [1], [2], [0, 0, 0, 1, 1, 2], [0], [0]>} : vector<4x8x8xf32>, vector<4x8x32xf32>, vector<4x8x32xf32> -> vector<4x8x32xf32>
    "tpu.trace_stop"() : () -> ()
    %65 = vector.extract_strided_slice %64 {offsets = [0, 0, 0], sizes = [1, 8, 32], strides = [1, 1, 1]} : vector<4x8x32xf32> to vector<1x8x32xf32>
    %66 = vector.shape_cast %65 : vector<1x8x32xf32> to vector<8x32xf32>
    %67 = vector.extract_strided_slice %64 {offsets = [1, 0, 0], sizes = [1, 8, 32], strides = [1, 1, 1]} : vector<4x8x32xf32> to vector<1x8x32xf32>
    %68 = vector.shape_cast %67 : vector<1x8x32xf32> to vector<8x32xf32>
    %69 = arith.addf %66, %68 : vector<8x32xf32>
    %70 = vector.extract_strided_slice %64 {offsets = [2, 0, 0], sizes = [1, 8, 32], strides = [1, 1, 1]} : vector<4x8x32xf32> to vector<1x8x32xf32>
    %71 = vector.shape_cast %70 : vector<1x8x32xf32> to vector<8x32xf32>
    %72 = arith.addf %69, %71 : vector<8x32xf32>
    %73 = vector.extract_strided_slice %64 {offsets = [3, 0, 0], sizes = [1, 8, 32], strides = [1, 1, 1]} : vector<4x8x32xf32> to vector<1x8x32xf32>
    %74 = vector.shape_cast %73 : vector<1x8x32xf32> to vector<8x32xf32>
    %75 = arith.addf %72, %74 : vector<8x32xf32>
    %76 = vector.extract_strided_slice %26 {offsets = [8, 0], sizes = [8, 32], strides = [1, 1]} : vector<16x32xf32> to vector<8x32xf32>
    %77 = vector.shape_cast %76 : vector<8x32xf32> to vector<1x8x32xf32>
    %78 = vector.shape_cast %77 : vector<1x8x32xf32> to vector<1x8x32xf32>
    %79 = vector.broadcast %78 : vector<1x8x32xf32> to vector<4x8x32xf32>
    %80 = vector.extract_strided_slice %29 {offsets = [8, 0], sizes = [8, 8], strides = [1, 1]} : vector<16x8xf32> to vector<8x8xf32>
    %81 = vector.shape_cast %80 : vector<8x8xf32> to vector<1x8x8xf32>
    %82 = vector.shape_cast %81 : vector<1x8x8xf32> to vector<1x8x8xf32>
    %83 = vector.broadcast %82 : vector<1x8x8xf32> to vector<4x8x8xf32>
    %84 = vector.extract_strided_slice %32 {offsets = [8, 0], sizes = [8, 8], strides = [1, 1]} : vector<16x8xf32> to vector<8x8xf32>
    %85 = vector.shape_cast %84 : vector<8x8xf32> to vector<1x8x8xf32>
    %86 = vector.shape_cast %85 : vector<1x8x8xf32> to vector<1x8x8xf32>
    %87 = vector.broadcast %86 : vector<1x8x8xf32> to vector<4x8x8xf32>
    "tpu.trace_start"() <{level = 10 : i32, message = "hnd,hde->hne"}> : () -> ()
    %cst_36 = arith.constant dense<0.000000e+00> : vector<4x8x8xf32>
    %88 = tpu.matmul %79, %34, %cst_36 {dimension_numbers = #tpu.dot_dimension_numbers<[2], [1], [1], [2], [0, 0, 0, 1, 1, 2], [0], [0]>} : vector<4x8x32xf32>, vector<4x32x8xf32>, vector<4x8x8xf32> -> vector<4x8x8xf32>
    "tpu.trace_stop"() : () -> ()
    "tpu.trace_start"() <{level = 10 : i32, message = "hid,hjd->hij"}> : () -> ()
    %cst_37 = arith.constant dense<0.000000e+00> : vector<4x8x8xf32>
    %89 = tpu.matmul %88, %83, %cst_37 {dimension_numbers = #tpu.dot_dimension_numbers<[2], [2], [1], [1], [0, 0, 0, 1, 1, 1], [0], [0]>} : vector<4x8x8xf32>, vector<4x8x8xf32>, vector<4x8x8xf32> -> vector<4x8x8xf32>
    "tpu.trace_stop"() : () -> ()
    %90 = arith.addf %89, %38 : vector<4x8x8xf32>
    %cst_38 = arith.constant dense<0xFF800000> : vector<4x8xf32>
    %91 = vector.multi_reduction <maximumf>, %90, %cst_38 [2] : vector<4x8x8xf32> to vector<4x8xf32>
    %92 = vector.shape_cast %91 : vector<4x8xf32> to vector<4x8x1xf32>
    %93 = vector.broadcast %92 : vector<4x8x1xf32> to vector<4x8x8xf32>
    %94 = arith.subf %90, %93 : vector<4x8x8xf32>
    %95 = math.exp %94 : vector<4x8x8xf32>
    %cst_39 = arith.constant dense<0.000000e+00> : vector<4x8xf32>
    %96 = vector.multi_reduction <add>, %95, %cst_39 [2] : vector<4x8x8xf32> to vector<4x8xf32>
    %97 = vector.shape_cast %96 : vector<4x8xf32> to vector<4x8x1xf32>
    %98 = vector.broadcast %97 : vector<4x8x1xf32> to vector<4x8x8xf32>
    %99 = arith.divf %95, %98 : vector<4x8x8xf32>
    "tpu.trace_start"() <{level = 10 : i32, message = "hij,hjd->hid"}> : () -> ()
    %cst_40 = arith.constant dense<0.000000e+00> : vector<4x8x8xf32>
    %100 = tpu.matmul %99, %87, %cst_40 {dimension_numbers = #tpu.dot_dimension_numbers<[2], [1], [1], [2], [0, 0, 0, 1, 1, 2], [0], [0]>} : vector<4x8x8xf32>, vector<4x8x8xf32>, vector<4x8x8xf32> -> vector<4x8x8xf32>
    "tpu.trace_stop"() : () -> ()
    "tpu.trace_start"() <{level = 10 : i32, message = "hid,hdo->hio"}> : () -> ()
    %cst_41 = arith.constant dense<0.000000e+00> : vector<4x8x32xf32>
    %101 = tpu.matmul %100, %36, %cst_41 {dimension_numbers = #tpu.dot_dimension_numbers<[2], [1], [1], [2], [0, 0, 0, 1, 1, 2], [0], [0]>} : vector<4x8x8xf32>, vector<4x8x32xf32>, vector<4x8x32xf32> -> vector<4x8x32xf32>
    "tpu.trace_stop"() : () -> ()
    %102 = vector.extract_strided_slice %101 {offsets = [0, 0, 0], sizes = [1, 8, 32], strides = [1, 1, 1]} : vector<4x8x32xf32> to vector<1x8x32xf32>
    %103 = vector.shape_cast %102 : vector<1x8x32xf32> to vector<8x32xf32>
    %104 = vector.extract_strided_slice %101 {offsets = [1, 0, 0], sizes = [1, 8, 32], strides = [1, 1, 1]} : vector<4x8x32xf32> to vector<1x8x32xf32>
    %105 = vector.shape_cast %104 : vector<1x8x32xf32> to vector<8x32xf32>
    %106 = arith.addf %103, %105 : vector<8x32xf32>
    %107 = vector.extract_strided_slice %101 {offsets = [2, 0, 0], sizes = [1, 8, 32], strides = [1, 1, 1]} : vector<4x8x32xf32> to vector<1x8x32xf32>
    %108 = vector.shape_cast %107 : vector<1x8x32xf32> to vector<8x32xf32>
    %109 = arith.addf %106, %108 : vector<8x32xf32>
    %110 = vector.extract_strided_slice %101 {offsets = [3, 0, 0], sizes = [1, 8, 32], strides = [1, 1, 1]} : vector<4x8x32xf32> to vector<1x8x32xf32>
    %111 = vector.shape_cast %110 : vector<1x8x32xf32> to vector<8x32xf32>
    %112 = arith.addf %109, %111 : vector<8x32xf32>
    %113 = tpu.concatenate %75, %112 in 0 : vector<8x32xf32>, vector<8x32xf32> -> vector<16x32xf32>
    %114 = arith.addf %0, %113 : vector<16x32xf32>
    %c0_42 = arith.constant 0 : index
    %c2 = arith.constant 2 : index
    %c0_43 = arith.constant 0 : index
    %115 = vector.load %arg1[%c0_42, %c2, %c0_43] : memref<2x6x32xf32, #tpu.memory_space<vmem>>, vector<1x1x32xf32>
    %116 = vector.shape_cast %115 : vector<1x1x32xf32> to vector<1x32xf32>
    %117 = vector.broadcast %116 : vector<1x32xf32> to vector<16x32xf32>
    %118 = arith.addf %114, %117 : vector<16x32xf32>
    %c0_44 = arith.constant 0 : index
    %c3 = arith.constant 3 : index
    %c0_45 = arith.constant 0 : index
    %119 = vector.load %arg1[%c0_44, %c3, %c0_45] : memref<2x6x32xf32, #tpu.memory_space<vmem>>, vector<1x1x32xf32>
    %120 = vector.shape_cast %119 : vector<1x1x32xf32> to vector<1x32xf32>
    %c0_46 = arith.constant 0 : index
    %c4 = arith.constant 4 : index
    %c0_47 = arith.constant 0 : index
    %121 = vector.load %arg1[%c0_46, %c4, %c0_47] : memref<2x6x32xf32, #tpu.memory_space<vmem>>, vector<1x1x32xf32>
    %122 = vector.shape_cast %121 : vector<1x1x32xf32> to vector<1x32xf32>
    %cst_48 = arith.constant dense<0.000000e+00> : vector<16xf32>
    %123 = vector.multi_reduction <add>, %118, %cst_48 [1] : vector<16x32xf32> to vector<16xf32>
    %124 = vector.shape_cast %123 : vector<16xf32> to vector<16x1xf32>
    %cst_49 = arith.constant 3.200000e+01 : f32
    %125 = vector.broadcast %cst_49 : f32 to vector<16x1xf32>
    %126 = arith.divf %124, %125 : vector<16x1xf32>
    %127 = vector.broadcast %126 : vector<16x1xf32> to vector<16x32xf32>
    %128 = arith.subf %118, %127 : vector<16x32xf32>
    %129 = arith.mulf %128, %128 : vector<16x32xf32>
    %cst_50 = arith.constant dense<0.000000e+00> : vector<16xf32>
    %130 = vector.multi_reduction <add>, %129, %cst_50 [1] : vector<16x32xf32> to vector<16xf32>
    %131 = vector.shape_cast %130 : vector<16xf32> to vector<16x1xf32>
    %cst_51 = arith.constant 3.200000e+01 : f32
    %132 = vector.broadcast %cst_51 : f32 to vector<16x1xf32>
    %133 = arith.divf %131, %132 : vector<16x1xf32>
    %134 = vector.broadcast %126 : vector<16x1xf32> to vector<16x32xf32>
    %135 = arith.subf %118, %134 : vector<16x32xf32>
    %cst_52 = arith.constant 9.99999974E-6 : f32
    %136 = vector.broadcast %cst_52 : f32 to vector<16x1xf32>
    %137 = arith.addf %133, %136 : vector<16x1xf32>
    %138 = math.rsqrt %137 : vector<16x1xf32>
    %139 = vector.broadcast %138 : vector<16x1xf32> to vector<16x32xf32>
    %140 = arith.mulf %135, %139 : vector<16x32xf32>
    %141 = vector.broadcast %120 : vector<1x32xf32> to vector<16x32xf32>
    %142 = arith.mulf %140, %141 : vector<16x32xf32>
    %143 = vector.broadcast %122 : vector<1x32xf32> to vector<16x32xf32>
    %144 = arith.addf %142, %143 : vector<16x32xf32>
    %c0_53 = arith.constant 0 : index
    %c0_54 = arith.constant 0 : index
    %c0_55 = arith.constant 0 : index
    %145 = vector.load %arg7[%c0_53, %c0_54, %c0_55] : memref<2x32x256xf32, #tpu.memory_space<vmem>>, vector<1x32x256xf32>
    %146 = vector.shape_cast %145 : vector<1x32x256xf32> to vector<32x256xf32>
    %cst_56 = arith.constant dense<0.000000e+00> : vector<16x256xf32>
    %147 = tpu.matmul %144, %146, %cst_56 {dimension_numbers = #tpu.dot_dimension_numbers<[1], [0], [0], [1], [0, 0, 1, 1], [], []>} : vector<16x32xf32>, vector<32x256xf32>, vector<16x256xf32> -> vector<16x256xf32>
    %c0_57 = arith.constant 0 : index
    %c0_58 = arith.constant 0 : index
    %c0_59 = arith.constant 0 : index
    %148 = vector.load %arg8[%c0_57, %c0_58, %c0_59] : memref<2x1x256xf32, #tpu.memory_space<vmem>>, vector<1x1x256xf32>
    %149 = vector.shape_cast %148 : vector<1x1x256xf32> to vector<1x256xf32>
    %150 = vector.broadcast %149 : vector<1x256xf32> to vector<16x256xf32>
    %151 = arith.addf %147, %150 : vector<16x256xf32>
    %152 = vector.extract_strided_slice %151 {offsets = [0, 0], sizes = [16, 128], strides = [1, 1]} : vector<16x256xf32> to vector<16x128xf32>
    %153 = vector.extract_strided_slice %151 {offsets = [0, 128], sizes = [16, 128], strides = [1, 1]} : vector<16x256xf32> to vector<16x128xf32>
    %cst_60 = arith.constant 5.000000e-01 : f32
    %154 = vector.broadcast %cst_60 : f32 to vector<16x128xf32>
    %155 = arith.mulf %154, %153 : vector<16x128xf32>
    %cst_61 = arith.constant 0.707106769 : f32
    %156 = vector.broadcast %cst_61 : f32 to vector<16x128xf32>
    %157 = arith.mulf %153, %156 : vector<16x128xf32>
    %158 = math.absf %157 : vector<16x128xf32>
    %cst_62 = arith.constant 0.327591091 : f32
    %159 = vector.broadcast %cst_62 : f32 to vector<16x128xf32>
    %160 = arith.mulf %159, %158 : vector<16x128xf32>
    %cst_63 = arith.constant 1.000000e+00 : f32
    %161 = vector.broadcast %cst_63 : f32 to vector<16x128xf32>
    %162 = arith.addf %161, %160 : vector<16x128xf32>
    %cst_64 = arith.constant 1.000000e+00 : f32
    %163 = vector.broadcast %cst_64 : f32 to vector<16x128xf32>
    %164 = arith.divf %163, %162 : vector<16x128xf32>
    %cst_65 = arith.constant 1.06140542 : f32
    %165 = vector.broadcast %cst_65 : f32 to vector<16x128xf32>
    %166 = arith.mulf %165, %164 : vector<16x128xf32>
    %cst_66 = arith.constant -1.45315206 : f32
    %167 = vector.broadcast %cst_66 : f32 to vector<16x128xf32>
    %168 = arith.addf %166, %167 : vector<16x128xf32>
    %169 = arith.mulf %168, %164 : vector<16x128xf32>
    %cst_67 = arith.constant 1.42141378 : f32
    %170 = vector.broadcast %cst_67 : f32 to vector<16x128xf32>
    %171 = arith.addf %169, %170 : vector<16x128xf32>
    %172 = arith.mulf %171, %164 : vector<16x128xf32>
    %cst_68 = arith.constant -0.284496725 : f32
    %173 = vector.broadcast %cst_68 : f32 to vector<16x128xf32>
    %174 = arith.addf %172, %173 : vector<16x128xf32>
    %175 = arith.mulf %174, %164 : vector<16x128xf32>
    %cst_69 = arith.constant 0.254829586 : f32
    %176 = vector.broadcast %cst_69 : f32 to vector<16x128xf32>
    %177 = arith.addf %175, %176 : vector<16x128xf32>
    %178 = arith.mulf %177, %164 : vector<16x128xf32>
    %cst_70 = arith.constant 0.000000e+00 : f32
    %179 = vector.broadcast %cst_70 : f32 to vector<16x128xf32>
    %180 = arith.subf %179, %158 : vector<16x128xf32>
    %181 = arith.mulf %180, %158 : vector<16x128xf32>
    %182 = math.exp %181 : vector<16x128xf32>
    %183 = arith.mulf %178, %182 : vector<16x128xf32>
    %cst_71 = arith.constant 1.000000e+00 : f32
    %184 = vector.broadcast %cst_71 : f32 to vector<16x128xf32>
    %185 = arith.subf %184, %183 : vector<16x128xf32>
    %cst_72 = arith.constant 0.000000e+00 : f32
    %186 = vector.broadcast %cst_72 : f32 to vector<16x128xf32>
    %187 = arith.cmpf olt, %157, %186 : vector<16x128xf32>
    %cst_73 = arith.constant 0.000000e+00 : f32
    %188 = vector.broadcast %cst_73 : f32 to vector<16x128xf32>
    %189 = arith.subf %188, %185 : vector<16x128xf32>
    %190 = arith.select %187, %189, %185 : vector<16x128xi1>, vector<16x128xf32>
    %cst_74 = arith.constant 1.000000e+00 : f32
    %191 = vector.broadcast %cst_74 : f32 to vector<16x128xf32>
    %192 = arith.addf %191, %190 : vector<16x128xf32>
    %193 = arith.mulf %155, %192 : vector<16x128xf32>
    %194 = arith.mulf %152, %193 : vector<16x128xf32>
    %c0_75 = arith.constant 0 : index
    %c0_76 = arith.constant 0 : index
    %c0_77 = arith.constant 0 : index
    %195 = vector.load %arg9[%c0_75, %c0_76, %c0_77] : memref<2x128x32xf32, #tpu.memory_space<vmem>>, vector<1x128x32xf32>
    %196 = vector.shape_cast %195 : vector<1x128x32xf32> to vector<128x32xf32>
    %cst_78 = arith.constant dense<0.000000e+00> : vector<16x32xf32>
    %197 = tpu.matmul %194, %196, %cst_78 {dimension_numbers = #tpu.dot_dimension_numbers<[1], [0], [0], [1], [0, 0, 1, 1], [], []>} : vector<16x128xf32>, vector<128x32xf32>, vector<16x32xf32> -> vector<16x32xf32>
    %198 = arith.addf %118, %197 : vector<16x32xf32>
    %c0_79 = arith.constant 0 : index
    %c5 = arith.constant 5 : index
    %c0_80 = arith.constant 0 : index
    %199 = vector.load %arg1[%c0_79, %c5, %c0_80] : memref<2x6x32xf32, #tpu.memory_space<vmem>>, vector<1x1x32xf32>
    %200 = vector.shape_cast %199 : vector<1x1x32xf32> to vector<1x32xf32>
    %201 = vector.broadcast %200 : vector<1x32xf32> to vector<16x32xf32>
    %202 = arith.addf %198, %201 : vector<16x32xf32>
    %c1_81 = arith.constant 1 : index
    %c0_82 = arith.constant 0 : index
    %c0_83 = arith.constant 0 : index
    %203 = vector.load %arg1[%c1_81, %c0_82, %c0_83] : memref<2x6x32xf32, #tpu.memory_space<vmem>>, vector<1x1x32xf32>
    %204 = vector.shape_cast %203 : vector<1x1x32xf32> to vector<1x32xf32>
    %c1_84 = arith.constant 1 : index
    %c1_85 = arith.constant 1 : index
    %c0_86 = arith.constant 0 : index
    %205 = vector.load %arg1[%c1_84, %c1_85, %c0_86] : memref<2x6x32xf32, #tpu.memory_space<vmem>>, vector<1x1x32xf32>
    %206 = vector.shape_cast %205 : vector<1x1x32xf32> to vector<1x32xf32>
    %cst_87 = arith.constant dense<0.000000e+00> : vector<16xf32>
    %207 = vector.multi_reduction <add>, %202, %cst_87 [1] : vector<16x32xf32> to vector<16xf32>
    %208 = vector.shape_cast %207 : vector<16xf32> to vector<16x1xf32>
    %cst_88 = arith.constant 3.200000e+01 : f32
    %209 = vector.broadcast %cst_88 : f32 to vector<16x1xf32>
    %210 = arith.divf %208, %209 : vector<16x1xf32>
    %211 = vector.broadcast %210 : vector<16x1xf32> to vector<16x32xf32>
    %212 = arith.subf %202, %211 : vector<16x32xf32>
    %213 = arith.mulf %212, %212 : vector<16x32xf32>
    %cst_89 = arith.constant dense<0.000000e+00> : vector<16xf32>
    %214 = vector.multi_reduction <add>, %213, %cst_89 [1] : vector<16x32xf32> to vector<16xf32>
    %215 = vector.shape_cast %214 : vector<16xf32> to vector<16x1xf32>
    %cst_90 = arith.constant 3.200000e+01 : f32
    %216 = vector.broadcast %cst_90 : f32 to vector<16x1xf32>
    %217 = arith.divf %215, %216 : vector<16x1xf32>
    %218 = vector.broadcast %210 : vector<16x1xf32> to vector<16x32xf32>
    %219 = arith.subf %202, %218 : vector<16x32xf32>
    %cst_91 = arith.constant 9.99999974E-6 : f32
    %220 = vector.broadcast %cst_91 : f32 to vector<16x1xf32>
    %221 = arith.addf %217, %220 : vector<16x1xf32>
    %222 = math.rsqrt %221 : vector<16x1xf32>
    %223 = vector.broadcast %222 : vector<16x1xf32> to vector<16x32xf32>
    %224 = arith.mulf %219, %223 : vector<16x32xf32>
    %225 = vector.broadcast %204 : vector<1x32xf32> to vector<16x32xf32>
    %226 = arith.mulf %224, %225 : vector<16x32xf32>
    %227 = vector.broadcast %206 : vector<1x32xf32> to vector<16x32xf32>
    %228 = arith.addf %226, %227 : vector<16x32xf32>
    %c1_92 = arith.constant 1 : index
    %c0_93 = arith.constant 0 : index
    %c0_94 = arith.constant 0 : index
    %229 = vector.load %arg3[%c1_92, %c0_93, %c0_94] : memref<2x32x8xf32, #tpu.memory_space<vmem>>, vector<1x32x8xf32>
    %230 = vector.shape_cast %229 : vector<1x32x8xf32> to vector<32x8xf32>
    %cst_95 = arith.constant dense<0.000000e+00> : vector<16x8xf32>
    %231 = tpu.matmul %228, %230, %cst_95 {dimension_numbers = #tpu.dot_dimension_numbers<[1], [0], [0], [1], [0, 0, 1, 1], [], []>} : vector<16x32xf32>, vector<32x8xf32>, vector<16x8xf32> -> vector<16x8xf32>
    %c1_96 = arith.constant 1 : index
    %c0_97 = arith.constant 0 : index
    %c0_98 = arith.constant 0 : index
    %232 = vector.load %arg4[%c1_96, %c0_97, %c0_98] : memref<2x32x8xf32, #tpu.memory_space<vmem>>, vector<1x32x8xf32>
    %233 = vector.shape_cast %232 : vector<1x32x8xf32> to vector<32x8xf32>
    %cst_99 = arith.constant dense<0.000000e+00> : vector<16x8xf32>
    %234 = tpu.matmul %228, %233, %cst_99 {dimension_numbers = #tpu.dot_dimension_numbers<[1], [0], [0], [1], [0, 0, 1, 1], [], []>} : vector<16x32xf32>, vector<32x8xf32>, vector<16x8xf32> -> vector<16x8xf32>
    %c1_100 = arith.constant 1 : index
    %c0_101 = arith.constant 0 : index
    %c0_102 = arith.constant 0 : index
    %c0_103 = arith.constant 0 : index
    %235 = vector.load %arg2[%c1_100, %c0_101, %c0_102, %c0_103] : memref<2x4x32x8xf32, #tpu.memory_space<vmem>>, vector<1x4x32x8xf32>
    %236 = vector.shape_cast %235 : vector<1x4x32x8xf32> to vector<4x32x8xf32>
    %c1_104 = arith.constant 1 : index
    %c0_105 = arith.constant 0 : index
    %c0_106 = arith.constant 0 : index
    %c0_107 = arith.constant 0 : index
    %237 = vector.load %arg5[%c1_104, %c0_105, %c0_106, %c0_107] : memref<2x4x8x32xf32, #tpu.memory_space<vmem>>, vector<1x4x8x32xf32>
    %238 = vector.shape_cast %237 : vector<1x4x8x32xf32> to vector<4x8x32xf32>
    %c1_108 = arith.constant 1 : index
    %c0_109 = arith.constant 0 : index
    %c0_110 = arith.constant 0 : index
    %c0_111 = arith.constant 0 : index
    %239 = vector.load %arg6[%c1_108, %c0_109, %c0_110, %c0_111] : memref<2x4x8x8xf32, #tpu.memory_space<vmem>>, vector<1x4x8x8xf32>
    %240 = vector.shape_cast %239 : vector<1x4x8x8xf32> to vector<4x8x8xf32>
    %241 = vector.extract_strided_slice %228 {offsets = [0, 0], sizes = [8, 32], strides = [1, 1]} : vector<16x32xf32> to vector<8x32xf32>
    %242 = vector.shape_cast %241 : vector<8x32xf32> to vector<1x8x32xf32>
    %243 = vector.shape_cast %242 : vector<1x8x32xf32> to vector<1x8x32xf32>
    %244 = vector.broadcast %243 : vector<1x8x32xf32> to vector<4x8x32xf32>
    %245 = vector.extract_strided_slice %231 {offsets = [0, 0], sizes = [8, 8], strides = [1, 1]} : vector<16x8xf32> to vector<8x8xf32>
    %246 = vector.shape_cast %245 : vector<8x8xf32> to vector<1x8x8xf32>
    %247 = vector.shape_cast %246 : vector<1x8x8xf32> to vector<1x8x8xf32>
    %248 = vector.broadcast %247 : vector<1x8x8xf32> to vector<4x8x8xf32>
    %249 = vector.extract_strided_slice %234 {offsets = [0, 0], sizes = [8, 8], strides = [1, 1]} : vector<16x8xf32> to vector<8x8xf32>
    %250 = vector.shape_cast %249 : vector<8x8xf32> to vector<1x8x8xf32>
    %251 = vector.shape_cast %250 : vector<1x8x8xf32> to vector<1x8x8xf32>
    %252 = vector.broadcast %251 : vector<1x8x8xf32> to vector<4x8x8xf32>
    "tpu.trace_start"() <{level = 10 : i32, message = "hnd,hde->hne"}> : () -> ()
    %cst_112 = arith.constant dense<0.000000e+00> : vector<4x8x8xf32>
    %253 = tpu.matmul %244, %236, %cst_112 {dimension_numbers = #tpu.dot_dimension_numbers<[2], [1], [1], [2], [0, 0, 0, 1, 1, 2], [0], [0]>} : vector<4x8x32xf32>, vector<4x32x8xf32>, vector<4x8x8xf32> -> vector<4x8x8xf32>
    "tpu.trace_stop"() : () -> ()
    "tpu.trace_start"() <{level = 10 : i32, message = "hid,hjd->hij"}> : () -> ()
    %cst_113 = arith.constant dense<0.000000e+00> : vector<4x8x8xf32>
    %254 = tpu.matmul %253, %248, %cst_113 {dimension_numbers = #tpu.dot_dimension_numbers<[2], [2], [1], [1], [0, 0, 0, 1, 1, 1], [0], [0]>} : vector<4x8x8xf32>, vector<4x8x8xf32>, vector<4x8x8xf32> -> vector<4x8x8xf32>
    "tpu.trace_stop"() : () -> ()
    %255 = arith.addf %254, %240 : vector<4x8x8xf32>
    %cst_114 = arith.constant dense<0xFF800000> : vector<4x8xf32>
    %256 = vector.multi_reduction <maximumf>, %255, %cst_114 [2] : vector<4x8x8xf32> to vector<4x8xf32>
    %257 = vector.shape_cast %256 : vector<4x8xf32> to vector<4x8x1xf32>
    %258 = vector.broadcast %257 : vector<4x8x1xf32> to vector<4x8x8xf32>
    %259 = arith.subf %255, %258 : vector<4x8x8xf32>
    %260 = math.exp %259 : vector<4x8x8xf32>
    %cst_115 = arith.constant dense<0.000000e+00> : vector<4x8xf32>
    %261 = vector.multi_reduction <add>, %260, %cst_115 [2] : vector<4x8x8xf32> to vector<4x8xf32>
    %262 = vector.shape_cast %261 : vector<4x8xf32> to vector<4x8x1xf32>
    %263 = vector.broadcast %262 : vector<4x8x1xf32> to vector<4x8x8xf32>
    %264 = arith.divf %260, %263 : vector<4x8x8xf32>
    "tpu.trace_start"() <{level = 10 : i32, message = "hij,hjd->hid"}> : () -> ()
    %cst_116 = arith.constant dense<0.000000e+00> : vector<4x8x8xf32>
    %265 = tpu.matmul %264, %252, %cst_116 {dimension_numbers = #tpu.dot_dimension_numbers<[2], [1], [1], [2], [0, 0, 0, 1, 1, 2], [0], [0]>} : vector<4x8x8xf32>, vector<4x8x8xf32>, vector<4x8x8xf32> -> vector<4x8x8xf32>
    "tpu.trace_stop"() : () -> ()
    "tpu.trace_start"() <{level = 10 : i32, message = "hid,hdo->hio"}> : () -> ()
    %cst_117 = arith.constant dense<0.000000e+00> : vector<4x8x32xf32>
    %266 = tpu.matmul %265, %238, %cst_117 {dimension_numbers = #tpu.dot_dimension_numbers<[2], [1], [1], [2], [0, 0, 0, 1, 1, 2], [0], [0]>} : vector<4x8x8xf32>, vector<4x8x32xf32>, vector<4x8x32xf32> -> vector<4x8x32xf32>
    "tpu.trace_stop"() : () -> ()
    %267 = vector.extract_strided_slice %266 {offsets = [0, 0, 0], sizes = [1, 8, 32], strides = [1, 1, 1]} : vector<4x8x32xf32> to vector<1x8x32xf32>
    %268 = vector.shape_cast %267 : vector<1x8x32xf32> to vector<8x32xf32>
    %269 = vector.extract_strided_slice %266 {offsets = [1, 0, 0], sizes = [1, 8, 32], strides = [1, 1, 1]} : vector<4x8x32xf32> to vector<1x8x32xf32>
    %270 = vector.shape_cast %269 : vector<1x8x32xf32> to vector<8x32xf32>
    %271 = arith.addf %268, %270 : vector<8x32xf32>
    %272 = vector.extract_strided_slice %266 {offsets = [2, 0, 0], sizes = [1, 8, 32], strides = [1, 1, 1]} : vector<4x8x32xf32> to vector<1x8x32xf32>
    %273 = vector.shape_cast %272 : vector<1x8x32xf32> to vector<8x32xf32>
    %274 = arith.addf %271, %273 : vector<8x32xf32>
    %275 = vector.extract_strided_slice %266 {offsets = [3, 0, 0], sizes = [1, 8, 32], strides = [1, 1, 1]} : vector<4x8x32xf32> to vector<1x8x32xf32>
    %276 = vector.shape_cast %275 : vector<1x8x32xf32> to vector<8x32xf32>
    %277 = arith.addf %274, %276 : vector<8x32xf32>
    %278 = vector.extract_strided_slice %228 {offsets = [8, 0], sizes = [8, 32], strides = [1, 1]} : vector<16x32xf32> to vector<8x32xf32>
    %279 = vector.shape_cast %278 : vector<8x32xf32> to vector<1x8x32xf32>
    %280 = vector.shape_cast %279 : vector<1x8x32xf32> to vector<1x8x32xf32>
    %281 = vector.broadcast %280 : vector<1x8x32xf32> to vector<4x8x32xf32>
    %282 = vector.extract_strided_slice %231 {offsets = [8, 0], sizes = [8, 8], strides = [1, 1]} : vector<16x8xf32> to vector<8x8xf32>
    %283 = vector.shape_cast %282 : vector<8x8xf32> to vector<1x8x8xf32>
    %284 = vector.shape_cast %283 : vector<1x8x8xf32> to vector<1x8x8xf32>
    %285 = vector.broadcast %284 : vector<1x8x8xf32> to vector<4x8x8xf32>
    %286 = vector.extract_strided_slice %234 {offsets = [8, 0], sizes = [8, 8], strides = [1, 1]} : vector<16x8xf32> to vector<8x8xf32>
    %287 = vector.shape_cast %286 : vector<8x8xf32> to vector<1x8x8xf32>
    %288 = vector.shape_cast %287 : vector<1x8x8xf32> to vector<1x8x8xf32>
    %289 = vector.broadcast %288 : vector<1x8x8xf32> to vector<4x8x8xf32>
    "tpu.trace_start"() <{level = 10 : i32, message = "hnd,hde->hne"}> : () -> ()
    %cst_118 = arith.constant dense<0.000000e+00> : vector<4x8x8xf32>
    %290 = tpu.matmul %281, %236, %cst_118 {dimension_numbers = #tpu.dot_dimension_numbers<[2], [1], [1], [2], [0, 0, 0, 1, 1, 2], [0], [0]>} : vector<4x8x32xf32>, vector<4x32x8xf32>, vector<4x8x8xf32> -> vector<4x8x8xf32>
    "tpu.trace_stop"() : () -> ()
    "tpu.trace_start"() <{level = 10 : i32, message = "hid,hjd->hij"}> : () -> ()
    %cst_119 = arith.constant dense<0.000000e+00> : vector<4x8x8xf32>
    %291 = tpu.matmul %290, %285, %cst_119 {dimension_numbers = #tpu.dot_dimension_numbers<[2], [2], [1], [1], [0, 0, 0, 1, 1, 1], [0], [0]>} : vector<4x8x8xf32>, vector<4x8x8xf32>, vector<4x8x8xf32> -> vector<4x8x8xf32>
    "tpu.trace_stop"() : () -> ()
    %292 = arith.addf %291, %240 : vector<4x8x8xf32>
    %cst_120 = arith.constant dense<0xFF800000> : vector<4x8xf32>
    %293 = vector.multi_reduction <maximumf>, %292, %cst_120 [2] : vector<4x8x8xf32> to vector<4x8xf32>
    %294 = vector.shape_cast %293 : vector<4x8xf32> to vector<4x8x1xf32>
    %295 = vector.broadcast %294 : vector<4x8x1xf32> to vector<4x8x8xf32>
    %296 = arith.subf %292, %295 : vector<4x8x8xf32>
    %297 = math.exp %296 : vector<4x8x8xf32>
    %cst_121 = arith.constant dense<0.000000e+00> : vector<4x8xf32>
    %298 = vector.multi_reduction <add>, %297, %cst_121 [2] : vector<4x8x8xf32> to vector<4x8xf32>
    %299 = vector.shape_cast %298 : vector<4x8xf32> to vector<4x8x1xf32>
    %300 = vector.broadcast %299 : vector<4x8x1xf32> to vector<4x8x8xf32>
    %301 = arith.divf %297, %300 : vector<4x8x8xf32>
    "tpu.trace_start"() <{level = 10 : i32, message = "hij,hjd->hid"}> : () -> ()
    %cst_122 = arith.constant dense<0.000000e+00> : vector<4x8x8xf32>
    %302 = tpu.matmul %301, %289, %cst_122 {dimension_numbers = #tpu.dot_dimension_numbers<[2], [1], [1], [2], [0, 0, 0, 1, 1, 2], [0], [0]>} : vector<4x8x8xf32>, vector<4x8x8xf32>, vector<4x8x8xf32> -> vector<4x8x8xf32>
    "tpu.trace_stop"() : () -> ()
    "tpu.trace_start"() <{level = 10 : i32, message = "hid,hdo->hio"}> : () -> ()
    %cst_123 = arith.constant dense<0.000000e+00> : vector<4x8x32xf32>
    %303 = tpu.matmul %302, %238, %cst_123 {dimension_numbers = #tpu.dot_dimension_numbers<[2], [1], [1], [2], [0, 0, 0, 1, 1, 2], [0], [0]>} : vector<4x8x8xf32>, vector<4x8x32xf32>, vector<4x8x32xf32> -> vector<4x8x32xf32>
    "tpu.trace_stop"() : () -> ()
    %304 = vector.extract_strided_slice %303 {offsets = [0, 0, 0], sizes = [1, 8, 32], strides = [1, 1, 1]} : vector<4x8x32xf32> to vector<1x8x32xf32>
    %305 = vector.shape_cast %304 : vector<1x8x32xf32> to vector<8x32xf32>
    %306 = vector.extract_strided_slice %303 {offsets = [1, 0, 0], sizes = [1, 8, 32], strides = [1, 1, 1]} : vector<4x8x32xf32> to vector<1x8x32xf32>
    %307 = vector.shape_cast %306 : vector<1x8x32xf32> to vector<8x32xf32>
    %308 = arith.addf %305, %307 : vector<8x32xf32>
    %309 = vector.extract_strided_slice %303 {offsets = [2, 0, 0], sizes = [1, 8, 32], strides = [1, 1, 1]} : vector<4x8x32xf32> to vector<1x8x32xf32>
    %310 = vector.shape_cast %309 : vector<1x8x32xf32> to vector<8x32xf32>
    %311 = arith.addf %308, %310 : vector<8x32xf32>
    %312 = vector.extract_strided_slice %303 {offsets = [3, 0, 0], sizes = [1, 8, 32], strides = [1, 1, 1]} : vector<4x8x32xf32> to vector<1x8x32xf32>
    %313 = vector.shape_cast %312 : vector<1x8x32xf32> to vector<8x32xf32>
    %314 = arith.addf %311, %313 : vector<8x32xf32>
    %315 = tpu.concatenate %277, %314 in 0 : vector<8x32xf32>, vector<8x32xf32> -> vector<16x32xf32>
    %316 = arith.addf %202, %315 : vector<16x32xf32>
    %c1_124 = arith.constant 1 : index
    %c2_125 = arith.constant 2 : index
    %c0_126 = arith.constant 0 : index
    %317 = vector.load %arg1[%c1_124, %c2_125, %c0_126] : memref<2x6x32xf32, #tpu.memory_space<vmem>>, vector<1x1x32xf32>
    %318 = vector.shape_cast %317 : vector<1x1x32xf32> to vector<1x32xf32>
    %319 = vector.broadcast %318 : vector<1x32xf32> to vector<16x32xf32>
    %320 = arith.addf %316, %319 : vector<16x32xf32>
    %c1_127 = arith.constant 1 : index
    %c3_128 = arith.constant 3 : index
    %c0_129 = arith.constant 0 : index
    %321 = vector.load %arg1[%c1_127, %c3_128, %c0_129] : memref<2x6x32xf32, #tpu.memory_space<vmem>>, vector<1x1x32xf32>
    %322 = vector.shape_cast %321 : vector<1x1x32xf32> to vector<1x32xf32>
    %c1_130 = arith.constant 1 : index
    %c4_131 = arith.constant 4 : index
    %c0_132 = arith.constant 0 : index
    %323 = vector.load %arg1[%c1_130, %c4_131, %c0_132] : memref<2x6x32xf32, #tpu.memory_space<vmem>>, vector<1x1x32xf32>
    %324 = vector.shape_cast %323 : vector<1x1x32xf32> to vector<1x32xf32>
    %cst_133 = arith.constant dense<0.000000e+00> : vector<16xf32>
    %325 = vector.multi_reduction <add>, %320, %cst_133 [1] : vector<16x32xf32> to vector<16xf32>
    %326 = vector.shape_cast %325 : vector<16xf32> to vector<16x1xf32>
    %cst_134 = arith.constant 3.200000e+01 : f32
    %327 = vector.broadcast %cst_134 : f32 to vector<16x1xf32>
    %328 = arith.divf %326, %327 : vector<16x1xf32>
    %329 = vector.broadcast %328 : vector<16x1xf32> to vector<16x32xf32>
    %330 = arith.subf %320, %329 : vector<16x32xf32>
    %331 = arith.mulf %330, %330 : vector<16x32xf32>
    %cst_135 = arith.constant dense<0.000000e+00> : vector<16xf32>
    %332 = vector.multi_reduction <add>, %331, %cst_135 [1] : vector<16x32xf32> to vector<16xf32>
    %333 = vector.shape_cast %332 : vector<16xf32> to vector<16x1xf32>
    %cst_136 = arith.constant 3.200000e+01 : f32
    %334 = vector.broadcast %cst_136 : f32 to vector<16x1xf32>
    %335 = arith.divf %333, %334 : vector<16x1xf32>
    %336 = vector.broadcast %328 : vector<16x1xf32> to vector<16x32xf32>
    %337 = arith.subf %320, %336 : vector<16x32xf32>
    %cst_137 = arith.constant 9.99999974E-6 : f32
    %338 = vector.broadcast %cst_137 : f32 to vector<16x1xf32>
    %339 = arith.addf %335, %338 : vector<16x1xf32>
    %340 = math.rsqrt %339 : vector<16x1xf32>
    %341 = vector.broadcast %340 : vector<16x1xf32> to vector<16x32xf32>
    %342 = arith.mulf %337, %341 : vector<16x32xf32>
    %343 = vector.broadcast %322 : vector<1x32xf32> to vector<16x32xf32>
    %344 = arith.mulf %342, %343 : vector<16x32xf32>
    %345 = vector.broadcast %324 : vector<1x32xf32> to vector<16x32xf32>
    %346 = arith.addf %344, %345 : vector<16x32xf32>
    %c1_138 = arith.constant 1 : index
    %c0_139 = arith.constant 0 : index
    %c0_140 = arith.constant 0 : index
    %347 = vector.load %arg7[%c1_138, %c0_139, %c0_140] : memref<2x32x256xf32, #tpu.memory_space<vmem>>, vector<1x32x256xf32>
    %348 = vector.shape_cast %347 : vector<1x32x256xf32> to vector<32x256xf32>
    %cst_141 = arith.constant dense<0.000000e+00> : vector<16x256xf32>
    %349 = tpu.matmul %346, %348, %cst_141 {dimension_numbers = #tpu.dot_dimension_numbers<[1], [0], [0], [1], [0, 0, 1, 1], [], []>} : vector<16x32xf32>, vector<32x256xf32>, vector<16x256xf32> -> vector<16x256xf32>
    %c1_142 = arith.constant 1 : index
    %c0_143 = arith.constant 0 : index
    %c0_144 = arith.constant 0 : index
    %350 = vector.load %arg8[%c1_142, %c0_143, %c0_144] : memref<2x1x256xf32, #tpu.memory_space<vmem>>, vector<1x1x256xf32>
    %351 = vector.shape_cast %350 : vector<1x1x256xf32> to vector<1x256xf32>
    %352 = vector.broadcast %351 : vector<1x256xf32> to vector<16x256xf32>
    %353 = arith.addf %349, %352 : vector<16x256xf32>
    %354 = vector.extract_strided_slice %353 {offsets = [0, 0], sizes = [16, 128], strides = [1, 1]} : vector<16x256xf32> to vector<16x128xf32>
    %355 = vector.extract_strided_slice %353 {offsets = [0, 128], sizes = [16, 128], strides = [1, 1]} : vector<16x256xf32> to vector<16x128xf32>
    %cst_145 = arith.constant 5.000000e-01 : f32
    %356 = vector.broadcast %cst_145 : f32 to vector<16x128xf32>
    %357 = arith.mulf %356, %355 : vector<16x128xf32>
    %cst_146 = arith.constant 0.707106769 : f32
    %358 = vector.broadcast %cst_146 : f32 to vector<16x128xf32>
    %359 = arith.mulf %355, %358 : vector<16x128xf32>
    %360 = math.absf %359 : vector<16x128xf32>
    %cst_147 = arith.constant 0.327591091 : f32
    %361 = vector.broadcast %cst_147 : f32 to vector<16x128xf32>
    %362 = arith.mulf %361, %360 : vector<16x128xf32>
    %cst_148 = arith.constant 1.000000e+00 : f32
    %363 = vector.broadcast %cst_148 : f32 to vector<16x128xf32>
    %364 = arith.addf %363, %362 : vector<16x128xf32>
    %cst_149 = arith.constant 1.000000e+00 : f32
    %365 = vector.broadcast %cst_149 : f32 to vector<16x128xf32>
    %366 = arith.divf %365, %364 : vector<16x128xf32>
    %cst_150 = arith.constant 1.06140542 : f32
    %367 = vector.broadcast %cst_150 : f32 to vector<16x128xf32>
    %368 = arith.mulf %367, %366 : vector<16x128xf32>
    %cst_151 = arith.constant -1.45315206 : f32
    %369 = vector.broadcast %cst_151 : f32 to vector<16x128xf32>
    %370 = arith.addf %368, %369 : vector<16x128xf32>
    %371 = arith.mulf %370, %366 : vector<16x128xf32>
    %cst_152 = arith.constant 1.42141378 : f32
    %372 = vector.broadcast %cst_152 : f32 to vector<16x128xf32>
    %373 = arith.addf %371, %372 : vector<16x128xf32>
    %374 = arith.mulf %373, %366 : vector<16x128xf32>
    %cst_153 = arith.constant -0.284496725 : f32
    %375 = vector.broadcast %cst_153 : f32 to vector<16x128xf32>
    %376 = arith.addf %374, %375 : vector<16x128xf32>
    %377 = arith.mulf %376, %366 : vector<16x128xf32>
    %cst_154 = arith.constant 0.254829586 : f32
    %378 = vector.broadcast %cst_154 : f32 to vector<16x128xf32>
    %379 = arith.addf %377, %378 : vector<16x128xf32>
    %380 = arith.mulf %379, %366 : vector<16x128xf32>
    %cst_155 = arith.constant 0.000000e+00 : f32
    %381 = vector.broadcast %cst_155 : f32 to vector<16x128xf32>
    %382 = arith.subf %381, %360 : vector<16x128xf32>
    %383 = arith.mulf %382, %360 : vector<16x128xf32>
    %384 = math.exp %383 : vector<16x128xf32>
    %385 = arith.mulf %380, %384 : vector<16x128xf32>
    %cst_156 = arith.constant 1.000000e+00 : f32
    %386 = vector.broadcast %cst_156 : f32 to vector<16x128xf32>
    %387 = arith.subf %386, %385 : vector<16x128xf32>
    %cst_157 = arith.constant 0.000000e+00 : f32
    %388 = vector.broadcast %cst_157 : f32 to vector<16x128xf32>
    %389 = arith.cmpf olt, %359, %388 : vector<16x128xf32>
    %cst_158 = arith.constant 0.000000e+00 : f32
    %390 = vector.broadcast %cst_158 : f32 to vector<16x128xf32>
    %391 = arith.subf %390, %387 : vector<16x128xf32>
    %392 = arith.select %389, %391, %387 : vector<16x128xi1>, vector<16x128xf32>
    %cst_159 = arith.constant 1.000000e+00 : f32
    %393 = vector.broadcast %cst_159 : f32 to vector<16x128xf32>
    %394 = arith.addf %393, %392 : vector<16x128xf32>
    %395 = arith.mulf %357, %394 : vector<16x128xf32>
    %396 = arith.mulf %354, %395 : vector<16x128xf32>
    %c1_160 = arith.constant 1 : index
    %c0_161 = arith.constant 0 : index
    %c0_162 = arith.constant 0 : index
    %397 = vector.load %arg9[%c1_160, %c0_161, %c0_162] : memref<2x128x32xf32, #tpu.memory_space<vmem>>, vector<1x128x32xf32>
    %398 = vector.shape_cast %397 : vector<1x128x32xf32> to vector<128x32xf32>
    %cst_163 = arith.constant dense<0.000000e+00> : vector<16x32xf32>
    %399 = tpu.matmul %396, %398, %cst_163 {dimension_numbers = #tpu.dot_dimension_numbers<[1], [0], [0], [1], [0, 0, 1, 1], [], []>} : vector<16x128xf32>, vector<128x32xf32>, vector<16x32xf32> -> vector<16x32xf32>
    %400 = arith.addf %320, %399 : vector<16x32xf32>
    %c1_164 = arith.constant 1 : index
    %c5_165 = arith.constant 5 : index
    %c0_166 = arith.constant 0 : index
    %401 = vector.load %arg1[%c1_164, %c5_165, %c0_166] : memref<2x6x32xf32, #tpu.memory_space<vmem>>, vector<1x1x32xf32>
    %402 = vector.shape_cast %401 : vector<1x1x32xf32> to vector<1x32xf32>
    %403 = vector.broadcast %402 : vector<1x32xf32> to vector<16x32xf32>
    %404 = arith.addf %400, %403 : vector<16x32xf32>
    %c0_167 = arith.constant 0 : index
    %c0_168 = arith.constant 0 : index
    %405 = vector.load %arg10[%c0_167, %c0_168] : memref<2x32xf32, #tpu.memory_space<vmem>>, vector<1x32xf32>
    %c1_169 = arith.constant 1 : index
    %c0_170 = arith.constant 0 : index
    %406 = vector.load %arg10[%c1_169, %c0_170] : memref<2x32xf32, #tpu.memory_space<vmem>>, vector<1x32xf32>
    %cst_171 = arith.constant dense<0.000000e+00> : vector<16xf32>
    %407 = vector.multi_reduction <add>, %404, %cst_171 [1] : vector<16x32xf32> to vector<16xf32>
    %408 = vector.shape_cast %407 : vector<16xf32> to vector<16x1xf32>
    %cst_172 = arith.constant 3.200000e+01 : f32
    %409 = vector.broadcast %cst_172 : f32 to vector<16x1xf32>
    %410 = arith.divf %408, %409 : vector<16x1xf32>
    %411 = vector.broadcast %410 : vector<16x1xf32> to vector<16x32xf32>
    %412 = arith.subf %404, %411 : vector<16x32xf32>
    %413 = arith.mulf %412, %412 : vector<16x32xf32>
    %cst_173 = arith.constant dense<0.000000e+00> : vector<16xf32>
    %414 = vector.multi_reduction <add>, %413, %cst_173 [1] : vector<16x32xf32> to vector<16xf32>
    %415 = vector.shape_cast %414 : vector<16xf32> to vector<16x1xf32>
    %cst_174 = arith.constant 3.200000e+01 : f32
    %416 = vector.broadcast %cst_174 : f32 to vector<16x1xf32>
    %417 = arith.divf %415, %416 : vector<16x1xf32>
    %418 = vector.broadcast %410 : vector<16x1xf32> to vector<16x32xf32>
    %419 = arith.subf %404, %418 : vector<16x32xf32>
    %cst_175 = arith.constant 9.99999974E-6 : f32
    %420 = vector.broadcast %cst_175 : f32 to vector<16x1xf32>
    %421 = arith.addf %417, %420 : vector<16x1xf32>
    %422 = math.rsqrt %421 : vector<16x1xf32>
    %423 = vector.broadcast %422 : vector<16x1xf32> to vector<16x32xf32>
    %424 = arith.mulf %419, %423 : vector<16x32xf32>
    %425 = vector.broadcast %405 : vector<1x32xf32> to vector<16x32xf32>
    %426 = arith.mulf %424, %425 : vector<16x32xf32>
    %427 = vector.broadcast %406 : vector<1x32xf32> to vector<16x32xf32>
    %428 = arith.addf %426, %427 : vector<16x32xf32>
    %c0_176 = arith.constant 0 : index
    %c0_177 = arith.constant 0 : index
    %429 = vector.load %arg11[%c0_176, %c0_177] : memref<32x256xf32, #tpu.memory_space<vmem>>, vector<32x256xf32>
    %cst_178 = arith.constant dense<0.000000e+00> : vector<16x256xf32>
    %430 = tpu.matmul %428, %429, %cst_178 {dimension_numbers = #tpu.dot_dimension_numbers<[1], [0], [0], [1], [0, 0, 1, 1], [], []>} : vector<16x32xf32>, vector<32x256xf32>, vector<16x256xf32> -> vector<16x256xf32>
    %c0_179 = arith.constant 0 : index
    %c0_180 = arith.constant 0 : index
    %431 = vector.load %arg12[%c0_179, %c0_180] : memref<1x256xf32, #tpu.memory_space<vmem>>, vector<1x256xf32>
    %432 = vector.broadcast %431 : vector<1x256xf32> to vector<16x256xf32>
    %433 = arith.addf %430, %432 : vector<16x256xf32>
    %c0_181 = arith.constant 0 : index
    %c0_182 = arith.constant 0 : index
    %434 = vector.load %arg13[%c0_181, %c0_182] : memref<16x256xf32, #tpu.memory_space<vmem>>, vector<16x256xf32>
    tpu.vector_store %arg13[%c0_181, %c0_182], %433 {strides = array<i32>} : memref<16x256xf32, #tpu.memory_space<vmem>>, vector<16x256xf32>,
    return
  }
}

</mosaic_0001>

<llo_original>
// kernel: tpu_custom_call.1
$region0: #{tpu_custom_call.1}
  #allocation0 [shape = 'u32[]', space=smem, size = 0x4, offset = 0x4, fixed_abs, tag = 'smem constant byte address 0x4 - core index']
  #allocation1 [shape = 'u32[144,128]{1,0:T(1,128)}', space=vmem, size = 0x12000, scoped, tag = 'internal scratch']
  %s0 = inlined_call_operand.vmem [shape: f32[16,32], index: 0, kind: input, shape index: {}]
  %s1 = inlined_call_operand.vmem [shape: f32[2,6,32], index: 1, kind: input, shape index: {}]
  %s2 = inlined_call_operand.vmem [shape: f32[2,4,32,8], index: 2, kind: input, shape index: {}]
  %s3 = inlined_call_operand.vmem [shape: f32[2,32,8], index: 3, kind: input, shape index: {}]
  %s4 = inlined_call_operand.vmem [shape: f32[2,32,8], index: 4, kind: input, shape index: {}]
  %s5 = inlined_call_operand.vmem [shape: f32[2,4,8,32], index: 5, kind: input, shape index: {}]
  %s6 = inlined_call_operand.vmem [shape: f32[2,4,8,8], index: 6, kind: input, shape index: {}]
  %s7 = inlined_call_operand.vmem [shape: f32[2,32,256], index: 7, kind: input, shape index: {}]
  %s8 = inlined_call_operand.vmem [shape: f32[2,1,256], index: 8, kind: input, shape index: {}]
  %s9 = inlined_call_operand.vmem [shape: f32[2,128,32], index: 9, kind: input, shape index: {}]
  %s10 = inlined_call_operand.vmem [shape: f32[2,32], index: 10, kind: input, shape index: {}]
  %s11 = inlined_call_operand.vmem [shape: f32[32,256], index: 11, kind: input, shape index: {}]
  %s12 = inlined_call_operand.vmem [shape: f32[1,256], index: 12, kind: input, shape index: {}]
  %s13 = inlined_call_operand.hbm [shape: f32[16,256], index: 13, kind: output, shape index: {}]
  %s14 = sld [smem:[#allocation0]]
  $region62: #{tpu_custom_call.1} parent=0
    _
  %s16 = ssub.s32 1, %s14
  %s17 = scalar_select 0, %s16, %s14
  $region1: #{tpu_custom_call.1} parent=0
    #allocation2 [shape = 'u8[16384]{0}', space=vmem, size = 0x4000, scoped, tag = 'output window, operand 0, single buffered']
    #allocation3 [shape = 's32[1]{0}', space=sflag, size = 0x4, scoped, tag = 'scoped memory for tpu_custom_call.1']
    %18 = vsyncpa [#allocation3], 0
    // Predicated region
    $region2: #{tpu_custom_call.1} parent=1 // pred_check
      _
    $region3: #{tpu_custom_call.1} parent=1 // pred_check_branch
      %20 = sbr.rel (0) target = $region5
    $region4: #{tpu_custom_call.1} parent=1 // pred_region
      _
    $region5: #{tpu_custom_call.1} parent=1 // pred_fallthru
      _
    // Predicated region
    $region6: #{tpu_custom_call.1} parent=1 // pred_check
      _
    $region7: #{tpu_custom_call.1} parent=1 // pred_check_branch
      %22 = sbr.rel (0) target = $region9
    $region8: #{tpu_custom_call.1} parent=1 // pred_region
      _
    $region9: #{tpu_custom_call.1} parent=1 // pred_fallthru
      _
    // Predicated region
    $region10: #{tpu_custom_call.1} parent=1 // pred_check
      _
    $region11: #{tpu_custom_call.1} parent=1 // pred_check_branch
      %24 = sbr.rel (0) target = $region13
    $region12: #{tpu_custom_call.1} parent=1 // pred_region
      _
    $region13: #{tpu_custom_call.1} parent=1 // pred_fallthru
      _
    // Predicated region
    $region14: #{tpu_custom_call.1} parent=1 // pred_check
      _
    $region15: #{tpu_custom_call.1} parent=1 // pred_check_branch
      %26 = sbr.rel (0) target = $region17
    $region16: #{tpu_custom_call.1} parent=1 // pred_region
      _
    $region17: #{tpu_custom_call.1} parent=1 // pred_fallthru
      _
    // Predicated region
    $region18: #{tpu_custom_call.1} parent=1 // pred_check
      _
    $region19: #{tpu_custom_call.1} parent=1 // pred_check_branch
      %28 = sbr.rel (0) target = $region21
    $region20: #{tpu_custom_call.1} parent=1 // pred_region
      _
    $region21: #{tpu_custom_call.1} parent=1 // pred_fallthru
      _
    // Predicated region
    $region22: #{tpu_custom_call.1} parent=1 // pred_check
      _
    $region23: #{tpu_custom_call.1} parent=1 // pred_check_branch
      %30 = sbr.rel (0) target = $region25
    $region24: #{tpu_custom_call.1} parent=1 // pred_region
      _
    $region25: #{tpu_custom_call.1} parent=1 // pred_fallthru
      _
    // Predicated region
    $region26: #{tpu_custom_call.1} parent=1 // pred_check
      _
    $region27: #{tpu_custom_call.1} parent=1 // pred_check_branch
      %32 = sbr.rel (0) target = $region29
    $region28: #{tpu_custom_call.1} parent=1 // pred_region
      _
    $region29: #{tpu_custom_call.1} parent=1 // pred_fallthru
      _
    // Predicated region
    $region30: #{tpu_custom_call.1} parent=1 // pred_check
      _
    $region31: #{tpu_custom_call.1} parent=1 // pred_check_branch
      %34 = sbr.rel (0) target = $region33
    $region32: #{tpu_custom_call.1} parent=1 // pred_region
      _
    $region33: #{tpu_custom_call.1} parent=1 // pred_fallthru
      _
    // Predicated region
    $region34: #{tpu_custom_call.1} parent=1 // pred_check
      _
    $region35: #{tpu_custom_call.1} parent=1 // pred_check_branch
      %36 = sbr.rel (0) target = $region37
    $region36: #{tpu_custom_call.1} parent=1 // pred_region
      _
    $region37: #{tpu_custom_call.1} parent=1 // pred_fallthru
      _
    // Predicated region
    $region38: #{tpu_custom_call.1} parent=1 // pred_check
      _
    $region39: #{tpu_custom_call.1} parent=1 // pred_check_branch
      %38 = sbr.rel (0) target = $region41
    $region40: #{tpu_custom_call.1} parent=1 // pred_region
      _
    $region41: #{tpu_custom_call.1} parent=1 // pred_fallthru
      _
    // Predicated region
    $region42: #{tpu_custom_call.1} parent=1 // pred_check
      _
    $region43: #{tpu_custom_call.1} parent=1 // pred_check_branch
      %40 = sbr.rel (0) target = $region45
    $region44: #{tpu_custom_call.1} parent=1 // pred_region
      _
    $region45: #{tpu_custom_call.1} parent=1 // pred_fallthru
      _
    // Predicated region
    $region46: #{tpu_custom_call.1} parent=1 // pred_check
      _
    $region47: #{tpu_custom_call.1} parent=1 // pred_check_branch
      %42 = sbr.rel (0) target = $region49
    $region48: #{tpu_custom_call.1} parent=1 // pred_region
      _
    $region49: #{tpu_custom_call.1} parent=1 // pred_fallthru
      _
    // Predicated region
    $region50: #{tpu_custom_call.1} parent=1 // pred_check
      _
    $region51: #{tpu_custom_call.1} parent=1 // pred_check_branch
      %44 = sbr.rel (0) target = $region53
    $region52: #{tpu_custom_call.1} parent=1 // pred_region
      _
    $region53: #{tpu_custom_call.1} parent=1 // pred_fallthru
      _
    %v45 = vld [vmem:[%s0] sm:$0xff]
    %v46 = vld [vmem:[%s0 + $0x8] sm:$0xff]
    %v47 = vld [vmem:[%s1] sm:$0x1]
    %v48 = vld [vmem:[%s1 + $0x1] sm:$0x1]
    %vm49 = vcmask 261120
    %v50 = vsel %vm49, %v45, 0.0
    %51 = vadd.xlane.f32.xlu0 %v50
    %v52 = vpop.xlane.xlu0 %51
    %v53 = vsel %vm49, %v46, 0.0
    %54 = vadd.xlane.f32.xlu0 %v53
    %v55 = vpop.xlane.xlu0 %54
    %v56 = vrcp.pop 32.0
    %v57 = vmul.f32 %v52, %v56
    %v58 = vmul.f32 %v55, %v56
    %v59 = vsub.f32 %v45, %v57
    %v60 = vsub.f32 %v46, %v58
    %v61 = vmul.f32 %v59, %v59
    %v62 = vmul.f32 %v60, %v60
    %v63 = vsel %vm49, %v61, 0.0
    %64 = vadd.xlane.f32.xlu0 %v63
    %v65 = vpop.xlane.xlu0 %64
    %v66 = vsel %vm49, %v62, 0.0
    %67 = vadd.xlane.f32.xlu0 %v66
    %v68 = vpop.xlane.xlu0 %67
    %v69 = vmul.f32 %v65, %v56
    %v70 = vmul.f32 %v68, %v56
    %v71 = vadd.f32 %v69, 1e-05
    %v72 = vadd.f32 %v70, 1e-05
    %v73 = vrsqrt.pop %v71
    %v74 = vrsqrt.pop %v72
    %v75 = vmul.f32 %v59, %v73
    %v76 = vmul.f32 %v60, %v74
    %v77 = vlaneseq
    %v78 = vshrl.u32 %v77, 7
    %v79 = vsub.s32 0, %v78
    %v80 = vrot.slane %v47, %v79
    %v81 = vmul.f32 %v75, %v80
    %v82 = vmul.f32 %v76, %v80
    %v83 = vlaneseq
    %v84 = vshrl.u32 %v83, 7
    %v85 = vsub.s32 0, %v84
    %v86 = vrot.slane %v48, %v85
    %v87 = vadd.f32 %v81, %v86
    %v88 = vadd.f32 %v82, %v86
    %v89 = vld [vmem:[%s3] sm:$0xff]
    %v90 = vld [vmem:[%s3 + $0x8] sm:$0xff]
    %v91 = vld [vmem:[%s3 + $0x10] sm:$0xff]
    %v92 = vld [vmem:[%s3 + $0x18] sm:$0xff]
    %v94 = vsel %vm49, %v87, 0
    %v97 = vsel %vm49, %v88, 0
    %99 = vmatprep.subr.mxu0 0.0
    %100 = vmatpush1.msra.mxu0 0.0
    %101 = vmatprep.subr.mxu0 0.0
    %102 = vmatpush1.msra.mxu0 0.0
    %103 = vmatprep.subr.mxu0 0.0
    %104 = vmatpush1.msra.mxu0 0.0
    %105 = vmatprep.subr.mxu0 0.0
    %106 = vmatpush1.msra.mxu0 0.0
    %107 = vmatprep.subr.mxu0 0.0
    %108 = vmatpush1.msra.mxu0 0.0
    %109 = vmatprep.subr.mxu0 0.0
    %110 = vmatpush1.msra.mxu0 0.0
    %111 = vmatprep.subr.mxu0 0.0
    %112 = vmatpush1.msra.mxu0 0.0
    %113 = vmatprep.subr.mxu0 0.0
    %114 = vmatpush1.msra.mxu0 0.0
    %115 = vmatprep.subr.mxu0 0.0
    %116 = vmatpush1.msra.mxu0 0.0
    %117 = vmatprep.subr.mxu0 0.0
    %118 = vmatpush1.msra.mxu0 0.0
    %119 = vmatprep.subr.mxu0 0.0
    %120 = vmatpush1.msra.mxu0 0.0
    %121 = vmatprep.subr.mxu0 0.0
    %122 = vmatpush1.msra.mxu0 0.0
    %123 = vmatprep.subr.mxu0 0.0
    %124 = vmatpush1.msra.mxu0 %v92
    %125 = vmatprep.subr.mxu0 0.0
    %126 = vmatpush1.msra.mxu0 %v91
    %127 = vmatprep.subr.mxu0 0.0
    %128 = vmatpush1.msra.mxu0 %v90
    %129 = vmatprep.subr.mxu0 0.0
    %130 = vmatpush1.msra.mxu0 %v89
    %131 = vmatprep.subr.mxu0 0.0
    %132 = vmatpush2.msra.mxu0 0.0
    %133 = vmatprep.subr.mxu0 0.0
    %134 = vmatpush2.msra.mxu0 0.0
    %135 = vmatprep.subr.mxu0 0.0
    %136 = vmatpush2.msra.mxu0 0.0
    %137 = vmatprep.subr.mxu0 0.0
    %138 = vmatpush2.msra.mxu0 0.0
    %139 = vmatprep.subr.mxu0 0.0
    %140 = vmatpush2.msra.mxu0 0.0
    %141 = vmatprep.subr.mxu0 0.0
    %142 = vmatpush2.msra.mxu0 0.0
    %143 = vmatprep.subr.mxu0 0.0
    %144 = vmatpush2.msra.mxu0 0.0
    %145 = vmatprep.subr.mxu0 0.0
    %146 = vmatpush2.msra.mxu0 0.0
    %147 = vmatprep.subr.mxu0 0.0
    %148 = vmatpush2.msra.mxu0 0.0
    %149 = vmatprep.subr.mxu0 0.0
    %150 = vmatpush2.msra.mxu0 0.0
    %151 = vmatprep.subr.mxu0 0.0
    %152 = vmatpush2.msra.mxu0 0.0
    %153 = vmatprep.subr.mxu0 0.0
    %154 = vmatpush2.msra.mxu0 0.0
    %155 = vmatprep.subr.mxu0 0.0
    %156 = vmatpush2.msra.mxu0 0.0
    %157 = vmatprep.subr.mxu0 0.0
    %158 = vmatpush2.msra.mxu0 0.0
    %159 = vmatprep.subr.mxu0 0.0
    %160 = vmatpush2.msra.mxu0 0.0
    %161 = vmatprep.subr.mxu0 0.0
    %162 = vmatpush2.msra.mxu0 0.0
    %163 = vmatprep.mubr.f32.mxu0 0.0
    %164 = vmatmul.mubr.f32.gmra.mxu0 %v94
    %v165 = vpop.f32.mrf.mxu0
    %v166 = vadd.f32 0.0, %v165
    %v167 = vpop.f32.mrf.mxu0
    %168 = vmatprep.mubr.f32.mxu0 0.0
    %169 = vmatmul.mubr.f32.gmra.mxu0 %v97
    %v170 = vpop.f32.mrf.mxu0
    %v171 = vadd.f32 0.0, %v170
    %v172 = vpop.f32.mrf.mxu0
    %173 = vdwg.mxu0
    %v174 = vld [vmem:[%s4] sm:$0xff]
    %v175 = vld [vmem:[%s4 + $0x8] sm:$0xff]
    %v176 = vld [vmem:[%s4 + $0x10] sm:$0xff]
    %v177 = vld [vmem:[%s4 + $0x18] sm:$0xff]
    %178 = vmatprep.subr.mxu0 0.0
    %179 = vmatpush1.msra.mxu0 0.0
    %180 = vmatprep.subr.mxu0 0.0
    %181 = vmatpush1.msra.mxu0 0.0
    %182 = vmatprep.subr.mxu0 0.0
    %183 = vmatpush1.msra.mxu0 0.0
    %184 = vmatprep.subr.mxu0 0.0
    %185 = vmatpush1.msra.mxu0 0.0
    %186 = vmatprep.subr.mxu0 0.0
    %187 = vmatpush1.msra.mxu0 0.0
    %188 = vmatprep.subr.mxu0 0.0
    %189 = vmatpush1.msra.mxu0 0.0
    %190 = vmatprep.subr.mxu0 0.0
    %191 = vmatpush1.msra.mxu0 0.0
    %192 = vmatprep.subr.mxu0 0.0
    %193 = vmatpush1.msra.mxu0 0.0
    %194 = vmatprep.subr.mxu0 0.0
    %195 = vmatpush1.msra.mxu0 0.0
    %196 = vmatprep.subr.mxu0 0.0
    %197 = vmatpush1.msra.mxu0 0.0
    %198 = vmatprep.subr.mxu0 0.0
    %199 = vmatpush1.msra.mxu0 0.0
    %200 = vmatprep.subr.mxu0 0.0
    %201 = vmatpush1.msra.mxu0 0.0
    %202 = vmatprep.subr.mxu0 0.0
    %203 = vmatpush1.msra.mxu0 %v177
    %204 = vmatprep.subr.mxu0 0.0
    %205 = vmatpush1.msra.mxu0 %v176
    %206 = vmatprep.subr.mxu0 0.0
    %207 = vmatpush1.msra.mxu0 %v175
    %208 = vmatprep.subr.mxu0 0.0
    %209 = vmatpush1.msra.mxu0 %v174
    %210 = vmatprep.subr.mxu0 0.0
    %211 = vmatpush2.msra.mxu0 0.0
    %212 = vmatprep.subr.mxu0 0.0
    %213 = vmatpush2.msra.mxu0 0.0
    %214 = vmatprep.subr.mxu0 0.0
    %215 = vmatpush2.msra.mxu0 0.0
    %216 = vmatprep.subr.mxu0 0.0
    %217 = vmatpush2.msra.mxu0 0.0
    %218 = vmatprep.subr.mxu0 0.0
    %219 = vmatpush2.msra.mxu0 0.0
    %220 = vmatprep.subr.mxu0 0.0
    %221 = vmatpush2.msra.mxu0 0.0
    %222 = vmatprep.subr.mxu0 0.0
    %223 = vmatpush2.msra.mxu0 0.0
    %224 = vmatprep.subr.mxu0 0.0
    %225 = vmatpush2.msra.mxu0 0.0
    %226 = vmatprep.subr.mxu0 0.0
    %227 = vmatpush2.msra.mxu0 0.0
    %228 = vmatprep.subr.mxu0 0.0
    %229 = vmatpush2.msra.mxu0 0.0
    %230 = vmatprep.subr.mxu0 0.0
    %231 = vmatpush2.msra.mxu0 0.0
    %232 = vmatprep.subr.mxu0 0.0
    %233 = vmatpush2.msra.mxu0 0.0
    %234 = vmatprep.subr.mxu0 0.0
    %235 = vmatpush2.msra.mxu0 0.0
    %236 = vmatprep.subr.mxu0 0.0
    %237 = vmatpush2.msra.mxu0 0.0
    %238 = vmatprep.subr.mxu0 0.0
    %239 = vmatpush2.msra.mxu0 0.0
    %240 = vmatprep.subr.mxu0 0.0
    %241 = vmatpush2.msra.mxu0 0.0
    %242 = vmatprep.mubr.f32.mxu0 0.0
    %243 = vmatmul.mubr.f32.gmra.mxu0 %v94
    %v244 = vpop.f32.mrf.mxu0
    %v245 = vadd.f32 0.0, %v244
    %v246 = vpop.f32.mrf.mxu0
    %247 = vmatprep.mubr.f32.mxu0 0.0
    %248 = vmatmul.mubr.f32.gmra.mxu0 %v97
    %v249 = vpop.f32.mrf.mxu0
    %v250 = vadd.f32 0.0, %v249
    %v251 = vpop.f32.mrf.mxu0
    %252 = vdwg.mxu0
    %v253 = vld [vmem:[%s2] sm:$0xff]
    %v254 = vld [vmem:[%s2 + $0x8] sm:$0xff]
    %v255 = vld [vmem:[%s2 + $0x10] sm:$0xff]
    %v256 = vld [vmem:[%s2 + $0x18] sm:$0xff]
    %v257 = vld [vmem:[%s2 + $0x20] sm:$0xff]
    %v258 = vld [vmem:[%s2 + $0x28] sm:$0xff]
    %v259 = vld [vmem:[%s2 + $0x30] sm:$0xff]
    %v260 = vld [vmem:[%s2 + $0x38] sm:$0xff]
    %v261 = vld [vmem:[%s2 + $0x40] sm:$0xff]
    %v262 = vld [vmem:[%s2 + $0x48] sm:$0xff]
    %v263 = vld [vmem:[%s2 + $0x50] sm:$0xff]
    %v264 = vld [vmem:[%s2 + $0x58] sm:$0xff]
    %v265 = vld [vmem:[%s2 + $0x60] sm:$0xff]
    %v266 = vld [vmem:[%s2 + $0x68] sm:$0xff]
    %v267 = vld [vmem:[%s2 + $0x70] sm:$0xff]
    %v268 = vld [vmem:[%s2 + $0x78] sm:$0xff]
    %v269 = vld [vmem:[%s5] sm:$0xff]
    %v270 = vld [vmem:[%s5 + $0x8] sm:$0xff]
    %v271 = vld [vmem:[%s5 + $0x10] sm:$0xff]
    %v272 = vld [vmem:[%s5 + $0x18] sm:$0xff]
    %v273 = vld [vmem:[%s6] sm:$0xff]
    %v274 = vld [vmem:[%s6 + $0x8] sm:$0xff]
    %v275 = vld [vmem:[%s6 + $0x10] sm:$0xff]
    %v276 = vld [vmem:[%s6 + $0x18] sm:$0xff]
    %277 = vmatprep.subr.mxu0 0.0
    %278 = vmatpush1.msra.mxu0 0.0
    %279 = vmatprep.subr.mxu0 0.0
    %280 = vmatpush1.msra.mxu0 0.0
    %281 = vmatprep.subr.mxu0 0.0
    %282 = vmatpush1.msra.mxu0 0.0
    %283 = vmatprep.subr.mxu0 0.0
    %284 = vmatpush1.msra.mxu0 0.0
    %285 = vmatprep.subr.mxu0 0.0
    %286 = vmatpush1.msra.mxu0 0.0
    %287 = vmatprep.subr.mxu0 0.0
    %288 = vmatpush1.msra.mxu0 0.0
    %289 = vmatprep.subr.mxu0 0.0
    %290 = vmatpush1.msra.mxu0 0.0
    %291 = vmatprep.subr.mxu0 0.0
    %292 = vmatpush1.msra.mxu0 0.0
    %293 = vmatprep.subr.mxu0 0.0
    %294 = vmatpush1.msra.mxu0 0.0
    %295 = vmatprep.subr.mxu0 0.0
    %296 = vmatpush1.msra.mxu0 0.0
    %297 = vmatprep.subr.mxu0 0.0
    %298 = vmatpush1.msra.mxu0 0.0
    %299 = vmatprep.subr.mxu0 0.0
    %300 = vmatpush1.msra.mxu0 0.0
    %301 = vmatprep.subr.mxu0 0.0
    %302 = vmatpush1.msra.mxu0 %v256
    %303 = vmatprep.subr.mxu0 0.0
    %304 = vmatpush1.msra.mxu0 %v255
    %305 = vmatprep.subr.mxu0 0.0
    %306 = vmatpush1.msra.mxu0 %v254
    %307 = vmatprep.subr.mxu0 0.0
    %308 = vmatpush1.msra.mxu0 %v253
    %309 = vmatprep.subr.mxu0 0.0
    %310 = vmatpush2.msra.mxu0 0.0
    %311 = vmatprep.subr.mxu0 0.0
    %312 = vmatpush2.msra.mxu0 0.0
    %313 = vmatprep.subr.mxu0 0.0
    %314 = vmatpush2.msra.mxu0 0.0
    %315 = vmatprep.subr.mxu0 0.0
    %316 = vmatpush2.msra.mxu0 0.0
    %317 = vmatprep.subr.mxu0 0.0
    %318 = vmatpush2.msra.mxu0 0.0
    %319 = vmatprep.subr.mxu0 0.0
    %320 = vmatpush2.msra.mxu0 0.0
    %321 = vmatprep.subr.mxu0 0.0
    %322 = vmatpush2.msra.mxu0 0.0
    %323 = vmatprep.subr.mxu0 0.0
    %324 = vmatpush2.msra.mxu0 0.0
    %325 = vmatprep.subr.mxu0 0.0
    %326 = vmatpush2.msra.mxu0 0.0
    %327 = vmatprep.subr.mxu0 0.0
    %328 = vmatpush2.msra.mxu0 0.0
    %329 = vmatprep.subr.mxu0 0.0
    %330 = vmatpush2.msra.mxu0 0.0
    %331 = vmatprep.subr.mxu0 0.0
    %332 = vmatpush2.msra.mxu0 0.0
    %333 = vmatprep.subr.mxu0 0.0
    %334 = vmatpush2.msra.mxu0 0.0
    %335 = vmatprep.subr.mxu0 0.0
    %336 = vmatpush2.msra.mxu0 0.0
    %337 = vmatprep.subr.mxu0 0.0
    %338 = vmatpush2.msra.mxu0 0.0
    %339 = vmatprep.subr.mxu0 0.0
    %340 = vmatpush2.msra.mxu0 0.0
    %341 = vmatprep.mubr.f32.mxu0 0.0
    %342 = vmatmul.mubr.f32.gmra.mxu0 %v94
    %v343 = vpop.f32.mrf.mxu0
    %v344 = vadd.f32 0.0, %v343
    %v345 = vpop.f32.mrf.mxu0
    %346 = vdwg.mxu0
    %347 = vmatprep.subr.mxu0 0.0
    %348 = vmatpush1.msra.mxu0 0.0
    %349 = vmatprep.subr.mxu0 0.0
    %350 = vmatpush1.msra.mxu0 0.0
    %351 = vmatprep.subr.mxu0 0.0
    %352 = vmatpush1.msra.mxu0 0.0
    %353 = vmatprep.subr.mxu0 0.0
    %354 = vmatpush1.msra.mxu0 0.0
    %355 = vmatprep.subr.mxu0 0.0
    %356 = vmatpush1.msra.mxu0 0.0
    %357 = vmatprep.subr.mxu0 0.0
    %358 = vmatpush1.msra.mxu0 0.0
    %359 = vmatprep.subr.mxu0 0.0
    %360 = vmatpush1.msra.mxu0 0.0
    %361 = vmatprep.subr.mxu0 0.0
    %362 = vmatpush1.msra.mxu0 0.0
    %363 = vmatprep.subr.mxu0 0.0
    %364 = vmatpush1.msra.mxu0 0.0
    %365 = vmatprep.subr.mxu0 0.0
    %366 = vmatpush1.msra.mxu0 0.0
    %367 = vmatprep.subr.mxu0 0.0
    %368 = vmatpush1.msra.mxu0 0.0
    %369 = vmatprep.subr.mxu0 0.0
    %370 = vmatpush1.msra.mxu0 0.0
    %371 = vmatprep.subr.mxu0 0.0
    %372 = vmatpush1.msra.mxu0 %v260
    %373 = vmatprep.subr.mxu0 0.0
    %374 = vmatpush1.msra.mxu0 %v259
    %375 = vmatprep.subr.mxu0 0.0
    %376 = vmatpush1.msra.mxu0 %v258
    %377 = vmatprep.subr.mxu0 0.0
    %378 = vmatpush1.msra.mxu0 %v257
    %379 = vmatprep.subr.mxu0 0.0
    %380 = vmatpush2.msra.mxu0 0.0
    %381 = vmatprep.subr.mxu0 0.0
    %382 = vmatpush2.msra.mxu0 0.0
    %383 = vmatprep.subr.mxu0 0.0
    %384 = vmatpush2.msra.mxu0 0.0
    %385 = vmatprep.subr.mxu0 0.0
    %386 = vmatpush2.msra.mxu0 0.0
    %387 = vmatprep.subr.mxu0 0.0
    %388 = vmatpush2.msra.mxu0 0.0
    %389 = vmatprep.subr.mxu0 0.0
    %390 = vmatpush2.msra.mxu0 0.0
    %391 = vmatprep.subr.mxu0 0.0
    %392 = vmatpush2.msra.mxu0 0.0
    %393 = vmatprep.subr.mxu0 0.0
    %394 = vmatpush2.msra.mxu0 0.0
    %395 = vmatprep.subr.mxu0 0.0
    %396 = vmatpush2.msra.mxu0 0.0
    %397 = vmatprep.subr.mxu0 0.0
    %398 = vmatpush2.msra.mxu0 0.0
    %399 = vmatprep.subr.mxu0 0.0
    %400 = vmatpush2.msra.mxu0 0.0
    %401 = vmatprep.subr.mxu0 0.0
    %402 = vmatpush2.msra.mxu0 0.0
    %403 = vmatprep.subr.mxu0 0.0
    %404 = vmatpush2.msra.mxu0 0.0
    %405 = vmatprep.subr.mxu0 0.0
    %406 = vmatpush2.msra.mxu0 0.0
    %407 = vmatprep.subr.mxu0 0.0
    %408 = vmatpush2.msra.mxu0 0.0
    %409 = vmatprep.subr.mxu0 0.0
    %410 = vmatpush2.msra.mxu0 0.0
    %411 = vmatprep.mubr.f32.mxu0 0.0
    %412 = vmatmul.mubr.f32.gmra.mxu0 %v94
    %v413 = vpop.f32.mrf.mxu0
    %v414 = vadd.f32 0.0, %v413
    %v415 = vpop.f32.mrf.mxu0
    %416 = vdwg.mxu0
    %417 = vmatprep.subr.mxu0 0.0
    %418 = vmatpush1.msra.mxu0 0.0
    %419 = vmatprep.subr.mxu0 0.0
    %420 = vmatpush1.msra.mxu0 0.0
    %421 = vmatprep.subr.mxu0 0.0
    %422 = vmatpush1.msra.mxu0 0.0
    %423 = vmatprep.subr.mxu0 0.0
    %424 = vmatpush1.msra.mxu0 0.0
    %425 = vmatprep.subr.mxu0 0.0
    %426 = vmatpush1.msra.mxu0 0.0
    %427 = vmatprep.subr.mxu0 0.0
    %428 = vmatpush1.msra.mxu0 0.0
    %429 = vmatprep.subr.mxu0 0.0
    %430 = vmatpush1.msra.mxu0 0.0
    %431 = vmatprep.subr.mxu0 0.0
    %432 = vmatpush1.msra.mxu0 0.0
    %433 = vmatprep.subr.mxu0 0.0
    %434 = vmatpush1.msra.mxu0 0.0
    %435 = vmatprep.subr.mxu0 0.0
    %436 = vmatpush1.msra.mxu0 0.0
    %437 = vmatprep.subr.mxu0 0.0
    %438 = vmatpush1.msra.mxu0 0.0
    %439 = vmatprep.subr.mxu0 0.0
    %440 = vmatpush1.msra.mxu0 0.0
    %441 = vmatprep.subr.mxu0 0.0
    %442 = vmatpush1.msra.mxu0 %v264
    %443 = vmatprep.subr.mxu0 0.0
    %444 = vmatpush1.msra.mxu0 %v263
    %445 = vmatprep.subr.mxu0 0.0
    %446 = vmatpush1.msra.mxu0 %v262
    %447 = vmatprep.subr.mxu0 0.0
    %448 = vmatpush1.msra.mxu0 %v261
    %449 = vmatprep.subr.mxu0 0.0
    %450 = vmatpush2.msra.mxu0 0.0
    %451 = vmatprep.subr.mxu0 0.0
    %452 = vmatpush2.msra.mxu0 0.0
    %453 = vmatprep.subr.mxu0 0.0
    %454 = vmatpush2.msra.mxu0 0.0
    %455 = vmatprep.subr.mxu0 0.0
    %456 = vmatpush2.msra.mxu0 0.0
    %457 = vmatprep.subr.mxu0 0.0
    %458 = vmatpush2.msra.mxu0 0.0
    %459 = vmatprep.subr.mxu0 0.0
    %460 = vmatpush2.msra.mxu0 0.0
    %461 = vmatprep.subr.mxu0 0.0
    %462 = vmatpush2.msra.mxu0 0.0
    %463 = vmatprep.subr.mxu0 0.0
    %464 = vmatpush2.msra.mxu0 0.0
    %465 = vmatprep.subr.mxu0 0.0
    %466 = vmatpush2.msra.mxu0 0.0
    %467 = vmatprep.subr.mxu0 0.0
    %468 = vmatpush2.msra.mxu0 0.0
    %469 = vmatprep.subr.mxu0 0.0
    %470 = vmatpush2.msra.mxu0 0.0
    %471 = vmatprep.subr.mxu0 0.0
    %472 = vmatpush2.msra.mxu0 0.0
    %473 = vmatprep.subr.mxu0 0.0
    %474 = vmatpush2.msra.mxu0 0.0
    %475 = vmatprep.subr.mxu0 0.0
    %476 = vmatpush2.msra.mxu0 0.0
    %477 = vmatprep.subr.mxu0 0.0
    %478 = vmatpush2.msra.mxu0 0.0
    %479 = vmatprep.subr.mxu0 0.0
    %480 = vmatpush2.msra.mxu0 0.0
    %481 = vmatprep.mubr.f32.mxu0 0.0
    %482 = vmatmul.mubr.f32.gmra.mxu0 %v94
    %v483 = vpop.f32.mrf.mxu0
    %v484 = vadd.f32 0.0, %v483
    %v485 = vpop.f32.mrf.mxu0
    %486 = vdwg.mxu0
    %487 = vmatprep.subr.mxu0 0.0
    %488 = vmatpush1.msra.mxu0 0.0
    %489 = vmatprep.subr.mxu0 0.0
    %490 = vmatpush1.msra.mxu0 0.0
    %491 = vmatprep.subr.mxu0 0.0
    %492 = vmatpush1.msra.mxu0 0.0
    %493 = vmatprep.subr.mxu0 0.0
    %494 = vmatpush1.msra.mxu0 0.0
    %495 = vmatprep.subr.mxu0 0.0
    %496 = vmatpush1.msra.mxu0 0.0
    %497 = vmatprep.subr.mxu0 0.0
    %498 = vmatpush1.msra.mxu0 0.0
    %499 = vmatprep.subr.mxu0 0.0
    %500 = vmatpush1.msra.mxu0 0.0
    %501 = vmatprep.subr.mxu0 0.0
    %502 = vmatpush1.msra.mxu0 0.0
    %503 = vmatprep.subr.mxu0 0.0
    %504 = vmatpush1.msra.mxu0 0.0
    %505 = vmatprep.subr.mxu0 0.0
    %506 = vmatpush1.msra.mxu0 0.0
    %507 = vmatprep.subr.mxu0 0.0
    %508 = vmatpush1.msra.mxu0 0.0
    %509 = vmatprep.subr.mxu0 0.0
    %510 = vmatpush1.msra.mxu0 0.0
    %511 = vmatprep.subr.mxu0 0.0
    %512 = vmatpush1.msra.mxu0 %v268
    %513 = vmatprep.subr.mxu0 0.0
    %514 = vmatpush1.msra.mxu0 %v267
    %515 = vmatprep.subr.mxu0 0.0
    %516 = vmatpush1.msra.mxu0 %v266
    %517 = vmatprep.subr.mxu0 0.0
    %518 = vmatpush1.msra.mxu0 %v265
    %519 = vmatprep.subr.mxu0 0.0
    %520 = vmatpush2.msra.mxu0 0.0
    %521 = vmatprep.subr.mxu0 0.0
    %522 = vmatpush2.msra.mxu0 0.0
    %523 = vmatprep.subr.mxu0 0.0
    %524 = vmatpush2.msra.mxu0 0.0
    %525 = vmatprep.subr.mxu0 0.0
    %526 = vmatpush2.msra.mxu0 0.0
    %527 = vmatprep.subr.mxu0 0.0
    %528 = vmatpush2.msra.mxu0 0.0
    %529 = vmatprep.subr.mxu0 0.0
    %530 = vmatpush2.msra.mxu0 0.0
    %531 = vmatprep.subr.mxu0 0.0
    %532 = vmatpush2.msra.mxu0 0.0
    %533 = vmatprep.subr.mxu0 0.0
    %534 = vmatpush2.msra.mxu0 0.0
    %535 = vmatprep.subr.mxu0 0.0
    %536 = vmatpush2.msra.mxu0 0.0
    %537 = vmatprep.subr.mxu0 0.0
    %538 = vmatpush2.msra.mxu0 0.0
    %539 = vmatprep.subr.mxu0 0.0
    %540 = vmatpush2.msra.mxu0 0.0
    %541 = vmatprep.subr.mxu0 0.0
    %542 = vmatpush2.msra.mxu0 0.0
    %543 = vmatprep.subr.mxu0 0.0
    %544 = vmatpush2.msra.mxu0 0.0
    %545 = vmatprep.subr.mxu0 0.0
    %546 = vmatpush2.msra.mxu0 0.0
    %547 = vmatprep.subr.mxu0 0.0
    %548 = vmatpush2.msra.mxu0 0.0
    %549 = vmatprep.subr.mxu0 0.0
    %550 = vmatpush2.msra.mxu0 0.0
    %551 = vmatprep.mubr.f32.mxu0 0.0
    %552 = vmatmul.mubr.f32.gmra.mxu0 %v94
    %v553 = vpop.f32.mrf.mxu0
    %v554 = vadd.f32 0.0, %v553
    %v555 = vpop.f32.mrf.mxu0
    %556 = vdwg.mxu0
    %vm557 = vcmask 64512
    %v559 = vsel %vm557, %v344, 0
    %v562 = vsel %vm557, %v166, 0
    %564 = vmatprep.subr.mxu0 0.0
    %565 = vmatpush1.xpose.msra.mxu0 0.0
    %566 = vmatprep.subr.mxu0 0.0
    %567 = vmatpush1.xpose.msra.mxu0 0.0
    %568 = vmatprep.subr.mxu0 0.0
    %569 = vmatpush1.xpose.msra.mxu0 0.0
    %570 = vmatprep.subr.mxu0 0.0
    %571 = vmatpush1.xpose.msra.mxu0 0.0
    %572 = vmatprep.subr.mxu0 0.0
    %573 = vmatpush1.xpose.msra.mxu0 0.0
    %574 = vmatprep.subr.mxu0 0.0
    %575 = vmatpush1.xpose.msra.mxu0 0.0
    %576 = vmatprep.subr.mxu0 0.0
    %577 = vmatpush1.xpose.msra.mxu0 0.0
    %578 = vmatprep.subr.mxu0 0.0
    %579 = vmatpush1.xpose.msra.mxu0 0.0
    %580 = vmatprep.subr.mxu0 0.0
    %581 = vmatpush1.xpose.msra.mxu0 0.0
    %582 = vmatprep.subr.mxu0 0.0
    %583 = vmatpush1.xpose.msra.mxu0 0.0
    %584 = vmatprep.subr.mxu0 0.0
    %585 = vmatpush1.xpose.msra.mxu0 0.0
    %586 = vmatprep.subr.mxu0 0.0
    %587 = vmatpush1.xpose.msra.mxu0 0.0
    %588 = vmatprep.subr.mxu0 0.0
    %589 = vmatpush1.xpose.msra.mxu0 0.0
    %590 = vmatprep.subr.mxu0 0.0
    %591 = vmatpush1.xpose.msra.mxu0 0.0
    %592 = vmatprep.subr.mxu0 0.0
    %593 = vmatpush1.xpose.msra.mxu0 0.0
    %594 = vmatprep.subr.mxu0 0.0
    %595 = vmatpush1.xpose.msra.mxu0 %v562
    %596 = vmatprep.subr.mxu0 0.0
    %597 = vmatpush2.xpose.msra.mxu0 0.0
    %598 = vmatprep.subr.mxu0 0.0
    %599 = vmatpush2.xpose.msra.mxu0 0.0
    %600 = vmatprep.subr.mxu0 0.0
    %601 = vmatpush2.xpose.msra.mxu0 0.0
    %602 = vmatprep.subr.mxu0 0.0
    %603 = vmatpush2.xpose.msra.mxu0 0.0
    %604 = vmatprep.subr.mxu0 0.0
    %605 = vmatpush2.xpose.msra.mxu0 0.0
    %606 = vmatprep.subr.mxu0 0.0
    %607 = vmatpush2.xpose.msra.mxu0 0.0
    %608 = vmatprep.subr.mxu0 0.0
    %609 = vmatpush2.xpose.msra.mxu0 0.0
    %610 = vmatprep.subr.mxu0 0.0
    %611 = vmatpush2.xpose.msra.mxu0 0.0
    %612 = vmatprep.subr.mxu0 0.0
    %613 = vmatpush2.xpose.msra.mxu0 0.0
    %614 = vmatprep.subr.mxu0 0.0
    %615 = vmatpush2.xpose.msra.mxu0 0.0
    %616 = vmatprep.subr.mxu0 0.0
    %617 = vmatpush2.xpose.msra.mxu0 0.0
    %618 = vmatprep.subr.mxu0 0.0
    %619 = vmatpush2.xpose.msra.mxu0 0.0
    %620 = vmatprep.subr.mxu0 0.0
    %621 = vmatpush2.xpose.msra.mxu0 0.0
    %622 = vmatprep.subr.mxu0 0.0
    %623 = vmatpush2.xpose.msra.mxu0 0.0
    %624 = vmatprep.subr.mxu0 0.0
    %625 = vmatpush2.xpose.msra.mxu0 0.0
    %626 = vmatprep.subr.mxu0 0.0
    %627 = vmatpush2.xpose.msra.mxu0 0.0
    %628 = vmatprep.mubr.f32.mxu0 0.0
    %629 = vmatmul.mubr.f32.gmra.mxu0 %v559
    %v630 = vpop.f32.mrf.mxu0
    %v631 = vadd.f32 %v273, %v630
    %v632 = vpop.f32.mrf.mxu0
    %633 = vdwg.mxu0
    %v635 = vsel %vm557, %v414, 0
    %637 = vmatprep.subr.mxu0 0.0
    %638 = vmatpush1.xpose.msra.mxu0 0.0
    %639 = vmatprep.subr.mxu0 0.0
    %640 = vmatpush1.xpose.msra.mxu0 0.0
    %641 = vmatprep.subr.mxu0 0.0
    %642 = vmatpush1.xpose.msra.mxu0 0.0
    %643 = vmatprep.subr.mxu0 0.0
    %644 = vmatpush1.xpose.msra.mxu0 0.0
    %645 = vmatprep.subr.mxu0 0.0
    %646 = vmatpush1.xpose.msra.mxu0 0.0
    %647 = vmatprep.subr.mxu0 0.0
    %648 = vmatpush1.xpose.msra.mxu0 0.0
    %649 = vmatprep.subr.mxu0 0.0
    %650 = vmatpush1.xpose.msra.mxu0 0.0
    %651 = vmatprep.subr.mxu0 0.0
    %652 = vmatpush1.xpose.msra.mxu0 0.0
    %653 = vmatprep.subr.mxu0 0.0
    %654 = vmatpush1.xpose.msra.mxu0 0.0
    %655 = vmatprep.subr.mxu0 0.0
    %656 = vmatpush1.xpose.msra.mxu0 0.0
    %657 = vmatprep.subr.mxu0 0.0
    %658 = vmatpush1.xpose.msra.mxu0 0.0
    %659 = vmatprep.subr.mxu0 0.0
    %660 = vmatpush1.xpose.msra.mxu0 0.0
    %661 = vmatprep.subr.mxu0 0.0
    %662 = vmatpush1.xpose.msra.mxu0 0.0
    %663 = vmatprep.subr.mxu0 0.0
    %664 = vmatpush1.xpose.msra.mxu0 0.0
    %665 = vmatprep.subr.mxu0 0.0
    %666 = vmatpush1.xpose.msra.mxu0 0.0
    %667 = vmatprep.subr.mxu0 0.0
    %668 = vmatpush1.xpose.msra.mxu0 %v562
    %669 = vmatprep.subr.mxu0 0.0
    %670 = vmatpush2.xpose.msra.mxu0 0.0
    %671 = vmatprep.subr.mxu0 0.0
    %672 = vmatpush2.xpose.msra.mxu0 0.0
    %673 = vmatprep.subr.mxu0 0.0
    %674 = vmatpush2.xpose.msra.mxu0 0.0
    %675 = vmatprep.subr.mxu0 0.0
    %676 = vmatpush2.xpose.msra.mxu0 0.0
    %677 = vmatprep.subr.mxu0 0.0
    %678 = vmatpush2.xpose.msra.mxu0 0.0
    %679 = vmatprep.subr.mxu0 0.0
    %680 = vmatpush2.xpose.msra.mxu0 0.0
    %681 = vmatprep.subr.mxu0 0.0
    %682 = vmatpush2.xpose.msra.mxu0 0.0
    %683 = vmatprep.subr.mxu0 0.0
    %684 = vmatpush2.xpose.msra.mxu0 0.0
    %685 = vmatprep.subr.mxu0 0.0
    %686 = vmatpush2.xpose.msra.mxu0 0.0
    %687 = vmatprep.subr.mxu0 0.0
    %688 = vmatpush2.xpose.msra.mxu0 0.0
    %689 = vmatprep.subr.mxu0 0.0
    %690 = vmatpush2.xpose.msra.mxu0 0.0
    %691 = vmatprep.subr.mxu0 0.0
    %692 = vmatpush2.xpose.msra.mxu0 0.0
    %693 = vmatprep.subr.mxu0 0.0
    %694 = vmatpush2.xpose.msra.mxu0 0.0
    %695 = vmatprep.subr.mxu0 0.0
    %696 = vmatpush2.xpose.msra.mxu0 0.0
    %697 = vmatprep.subr.mxu0 0.0
    %698 = vmatpush2.xpose.msra.mxu0 0.0
    %699 = vmatprep.subr.mxu0 0.0
    %700 = vmatpush2.xpose.msra.mxu0 0.0
    %701 = vmatprep.mubr.f32.mxu0 0.0
    %702 = vmatmul.mubr.f32.gmra.mxu0 %v635
    %v703 = vpop.f32.mrf.mxu0
    %v704 = vadd.f32 %v274, %v703
    %v705 = vpop.f32.mrf.mxu0
    %706 = vdwg.mxu0
    %v708 = vsel %vm557, %v484, 0
    %710 = vmatprep.subr.mxu0 0.0
    %711 = vmatpush1.xpose.msra.mxu0 0.0
    %712 = vmatprep.subr.mxu0 0.0
    %713 = vmatpush1.xpose.msra.mxu0 0.0
    %714 = vmatprep.subr.mxu0 0.0
    %715 = vmatpush1.xpose.msra.mxu0 0.0
    %716 = vmatprep.subr.mxu0 0.0
    %717 = vmatpush1.xpose.msra.mxu0 0.0
    %718 = vmatprep.subr.mxu0 0.0
    %719 = vmatpush1.xpose.msra.mxu0 0.0
    %720 = vmatprep.subr.mxu0 0.0
    %721 = vmatpush1.xpose.msra.mxu0 0.0
    %722 = vmatprep.subr.mxu0 0.0
    %723 = vmatpush1.xpose.msra.mxu0 0.0
    %724 = vmatprep.subr.mxu0 0.0
    %725 = vmatpush1.xpose.msra.mxu0 0.0
    %726 = vmatprep.subr.mxu0 0.0
    %727 = vmatpush1.xpose.msra.mxu0 0.0
    %728 = vmatprep.subr.mxu0 0.0
    %729 = vmatpush1.xpose.msra.mxu0 0.0
    %730 = vmatprep.subr.mxu0 0.0
    %731 = vmatpush1.xpose.msra.mxu0 0.0
    %732 = vmatprep.subr.mxu0 0.0
    %733 = vmatpush1.xpose.msra.mxu0 0.0
    %734 = vmatprep.subr.mxu0 0.0
    %735 = vmatpush1.xpose.msra.mxu0 0.0
    %736 = vmatprep.subr.mxu0 0.0
    %737 = vmatpush1.xpose.msra.mxu0 0.0
    %738 = vmatprep.subr.mxu0 0.0
    %739 = vmatpush1.xpose.msra.mxu0 0.0
    %740 = vmatprep.subr.mxu0 0.0
    %741 = vmatpush1.xpose.msra.mxu0 %v562
    %742 = vmatprep.subr.mxu0 0.0
    %743 = vmatpush2.xpose.msra.mxu0 0.0
    %744 = vmatprep.subr.mxu0 0.0
    %745 = vmatpush2.xpose.msra.mxu0 0.0
    %746 = vmatprep.subr.mxu0 0.0
    %747 = vmatpush2.xpose.msra.mxu0 0.0
    %748 = vmatprep.subr.mxu0 0.0
    %749 = vmatpush2.xpose.msra.mxu0 0.0
    %750 = vmatprep.subr.mxu0 0.0
    %751 = vmatpush2.xpose.msra.mxu0 0.0
    %752 = vmatprep.subr.mxu0 0.0
    %753 = vmatpush2.xpose.msra.mxu0 0.0
    %754 = vmatprep.subr.mxu0 0.0
    %755 = vmatpush2.xpose.msra.mxu0 0.0
    %756 = vmatprep.subr.mxu0 0.0
    %757 = vmatpush2.xpose.msra.mxu0 0.0
    %758 = vmatprep.subr.mxu0 0.0
    %759 = vmatpush2.xpose.msra.mxu0 0.0
    %760 = vmatprep.subr.mxu0 0.0
    %761 = vmatpush2.xpose.msra.mxu0 0.0
    %762 = vmatprep.subr.mxu0 0.0
    %763 = vmatpush2.xpose.msra.mxu0 0.0
    %764 = vmatprep.subr.mxu0 0.0
    %765 = vmatpush2.xpose.msra.mxu0 0.0
    %766 = vmatprep.subr.mxu0 0.0
    %767 = vmatpush2.xpose.msra.mxu0 0.0
    %768 = vmatprep.subr.mxu0 0.0
    %769 = vmatpush2.xpose.msra.mxu0 0.0
    %770 = vmatprep.subr.mxu0 0.0
    %771 = vmatpush2.xpose.msra.mxu0 0.0
    %772 = vmatprep.subr.mxu0 0.0
    %773 = vmatpush2.xpose.msra.mxu0 0.0
    %774 = vmatprep.mubr.f32.mxu0 0.0
    %775 = vmatmul.mubr.f32.gmra.mxu0 %v708
    %v776 = vpop.f32.mrf.mxu0
    %v777 = vadd.f32 %v275, %v776
    %v778 = vpop.f32.mrf.mxu0
    %779 = vdwg.mxu0
    %v781 = vsel %vm557, %v554, 0
    %783 = vmatprep.subr.mxu0 0.0
    %784 = vmatpush1.xpose.msra.mxu0 0.0
    %785 = vmatprep.subr.mxu0 0.0
    %786 = vmatpush1.xpose.msra.mxu0 0.0
    %787 = vmatprep.subr.mxu0 0.0
    %788 = vmatpush1.xpose.msra.mxu0 0.0
    %789 = vmatprep.subr.mxu0 0.0
    %790 = vmatpush1.xpose.msra.mxu0 0.0
    %791 = vmatprep.subr.mxu0 0.0
    %792 = vmatpush1.xpose.msra.mxu0 0.0
    %793 = vmatprep.subr.mxu0 0.0
    %794 = vmatpush1.xpose.msra.mxu0 0.0
    %795 = vmatprep.subr.mxu0 0.0
    %796 = vmatpush1.xpose.msra.mxu0 0.0
    %797 = vmatprep.subr.mxu0 0.0
    %798 = vmatpush1.xpose.msra.mxu0 0.0
    %799 = vmatprep.subr.mxu0 0.0
    %800 = vmatpush1.xpose.msra.mxu0 0.0
    %801 = vmatprep.subr.mxu0 0.0
    %802 = vmatpush1.xpose.msra.mxu0 0.0
    %803 = vmatprep.subr.mxu0 0.0
    %804 = vmatpush1.xpose.msra.mxu0 0.0
    %805 = vmatprep.subr.mxu0 0.0
    %806 = vmatpush1.xpose.msra.mxu0 0.0
    %807 = vmatprep.subr.mxu0 0.0
    %808 = vmatpush1.xpose.msra.mxu0 0.0
    %809 = vmatprep.subr.mxu0 0.0
    %810 = vmatpush1.xpose.msra.mxu0 0.0
    %811 = vmatprep.subr.mxu0 0.0
    %812 = vmatpush1.xpose.msra.mxu0 0.0
    %813 = vmatprep.subr.mxu0 0.0
    %814 = vmatpush1.xpose.msra.mxu0 %v562
    %815 = vmatprep.subr.mxu0 0.0
    %816 = vmatpush2.xpose.msra.mxu0 0.0
    %817 = vmatprep.subr.mxu0 0.0
    %818 = vmatpush2.xpose.msra.mxu0 0.0
    %819 = vmatprep.subr.mxu0 0.0
    %820 = vmatpush2.xpose.msra.mxu0 0.0
    %821 = vmatprep.subr.mxu0 0.0
    %822 = vmatpush2.xpose.msra.mxu0 0.0
    %823 = vmatprep.subr.mxu0 0.0
    %824 = vmatpush2.xpose.msra.mxu0 0.0
    %825 = vmatprep.subr.mxu0 0.0
    %826 = vmatpush2.xpose.msra.mxu0 0.0
    %827 = vmatprep.subr.mxu0 0.0
    %828 = vmatpush2.xpose.msra.mxu0 0.0
    %829 = vmatprep.subr.mxu0 0.0
    %830 = vmatpush2.xpose.msra.mxu0 0.0
    %831 = vmatprep.subr.mxu0 0.0
    %832 = vmatpush2.xpose.msra.mxu0 0.0
    %833 = vmatprep.subr.mxu0 0.0
    %834 = vmatpush2.xpose.msra.mxu0 0.0
    %835 = vmatprep.subr.mxu0 0.0
    %836 = vmatpush2.xpose.msra.mxu0 0.0
    %837 = vmatprep.subr.mxu0 0.0
    %838 = vmatpush2.xpose.msra.mxu0 0.0
    %839 = vmatprep.subr.mxu0 0.0
    %840 = vmatpush2.xpose.msra.mxu0 0.0
    %841 = vmatprep.subr.mxu0 0.0
    %842 = vmatpush2.xpose.msra.mxu0 0.0
    %843 = vmatprep.subr.mxu0 0.0
    %844 = vmatpush2.xpose.msra.mxu0 0.0
    %845 = vmatprep.subr.mxu0 0.0
    %846 = vmatpush2.xpose.msra.mxu0 0.0
    %847 = vmatprep.mubr.f32.mxu0 0.0
    %848 = vmatmul.mubr.f32.gmra.mxu0 %v781
    %v849 = vpop.f32.mrf.mxu0
    %v850 = vadd.f32 %v276, %v849
    %v851 = vpop.f32.mrf.mxu0
    %852 = vdwg.mxu0
    %v853 = vsel %vm557, %v631, -inf
    %854 = vmax.xlane.f32.xlu0 %v853
    %v855 = vpop.xlane.xlu0 %854
    %v856 = vsel %vm557, %v704, -inf
    %857 = vmax.xlane.f32.xlu0 %v856
    %v858 = vpop.xlane.xlu0 %857
    %v859 = vsel %vm557, %v777, -inf
    %860 = vmax.xlane.f32.xlu0 %v859
    %v861 = vpop.xlane.xlu0 %860
    %v862 = vsel %vm557, %v850, -inf
    %863 = vmax.xlane.f32.xlu0 %v862
    %v864 = vpop.xlane.xlu0 %863
    %v865 = vsub.f32 %v631, %v855
    %v866 = vsub.f32 %v704, %v858
    %v867 = vsub.f32 %v777, %v861
    %v868 = vsub.f32 %v850, %v864
    %v869 = vmul.f32 %v865, 1.442695
    %v870 = vpow.pop %v869
    %v871 = vmul.f32 %v866, 1.442695
    %v872 = vpow.pop %v871
    %v873 = vmul.f32 %v867, 1.442695
    %v874 = vpow.pop %v873
    %v875 = vmul.f32 %v868, 1.442695
    %v876 = vpow.pop %v875
    %v877 = vsel %vm557, %v870, 0.0
    %878 = vadd.xlane.f32.xlu0 %v877
    %v879 = vpop.xlane.xlu0 %878
    %v880 = vsel %vm557, %v872, 0.0
    %881 = vadd.xlane.f32.xlu0 %v880
    %v882 = vpop.xlane.xlu0 %881
    %v883 = vsel %vm557, %v874, 0.0
    %884 = vadd.xlane.f32.xlu0 %v883
    %v885 = vpop.xlane.xlu0 %884
    %v886 = vsel %vm557, %v876, 0.0
    %887 = vadd.xlane.f32.xlu0 %v886
    %v888 = vpop.xlane.xlu0 %887
    %v889 = vrcp.pop %v879
    %v890 = vmul.f32 %v870, %v889
    %v891 = vrcp.pop %v882
    %v892 = vmul.f32 %v872, %v891
    %v893 = vrcp.pop %v885
    %v894 = vmul.f32 %v874, %v893
    %v895 = vrcp.pop %v888
    %v896 = vmul.f32 %v876, %v895
    %v898 = vsel %vm557, %v890, 0
    %900 = vmatprep.subr.mxu0 0.0
    %901 = vmatpush1.msra.mxu0 0.0
    %902 = vmatprep.subr.mxu0 0.0
    %903 = vmatpush1.msra.mxu0 0.0
    %904 = vmatprep.subr.mxu0 0.0
    %905 = vmatpush1.msra.mxu0 0.0
    %906 = vmatprep.subr.mxu0 0.0
    %907 = vmatpush1.msra.mxu0 0.0
    %908 = vmatprep.subr.mxu0 0.0
    %909 = vmatpush1.msra.mxu0 0.0
    %910 = vmatprep.subr.mxu0 0.0
    %911 = vmatpush1.msra.mxu0 0.0
    %912 = vmatprep.subr.mxu0 0.0
    %913 = vmatpush1.msra.mxu0 0.0
    %914 = vmatprep.subr.mxu0 0.0
    %915 = vmatpush1.msra.mxu0 0.0
    %916 = vmatprep.subr.mxu0 0.0
    %917 = vmatpush1.msra.mxu0 0.0
    %918 = vmatprep.subr.mxu0 0.0
    %919 = vmatpush1.msra.mxu0 0.0
    %920 = vmatprep.subr.mxu0 0.0
    %921 = vmatpush1.msra.mxu0 0.0
    %922 = vmatprep.subr.mxu0 0.0
    %923 = vmatpush1.msra.mxu0 0.0
    %924 = vmatprep.subr.mxu0 0.0
    %925 = vmatpush1.msra.mxu0 0.0
    %926 = vmatprep.subr.mxu0 0.0
    %927 = vmatpush1.msra.mxu0 0.0
    %928 = vmatprep.subr.mxu0 0.0
    %929 = vmatpush1.msra.mxu0 0.0
    %930 = vmatprep.subr.mxu0 0.0
    %931 = vmatpush1.msra.mxu0 %v245
    %932 = vmatprep.subr.mxu0 0.0
    %933 = vmatpush2.msra.mxu0 0.0
    %934 = vmatprep.subr.mxu0 0.0
    %935 = vmatpush2.msra.mxu0 0.0
    %936 = vmatprep.subr.mxu0 0.0
    %937 = vmatpush2.msra.mxu0 0.0
    %938 = vmatprep.subr.mxu0 0.0
    %939 = vmatpush2.msra.mxu0 0.0
    %940 = vmatprep.subr.mxu0 0.0
    %941 = vmatpush2.msra.mxu0 0.0
    %942 = vmatprep.subr.mxu0 0.0
    %943 = vmatpush2.msra.mxu0 0.0
    %944 = vmatprep.subr.mxu0 0.0
    %945 = vmatpush2.msra.mxu0 0.0
    %946 = vmatprep.subr.mxu0 0.0
    %947 = vmatpush2.msra.mxu0 0.0
    %948 = vmatprep.subr.mxu0 0.0
    %949 = vmatpush2.msra.mxu0 0.0
    %950 = vmatprep.subr.mxu0 0.0
    %951 = vmatpush2.msra.mxu0 0.0
    %952 = vmatprep.subr.mxu0 0.0
    %953 = vmatpush2.msra.mxu0 0.0
    %954 = vmatprep.subr.mxu0 0.0
    %955 = vmatpush2.msra.mxu0 0.0
    %956 = vmatprep.subr.mxu0 0.0
    %957 = vmatpush2.msra.mxu0 0.0
    %958 = vmatprep.subr.mxu0 0.0
    %959 = vmatpush2.msra.mxu0 0.0
    %960 = vmatprep.subr.mxu0 0.0
    %961 = vmatpush2.msra.mxu0 0.0
    %962 = vmatprep.subr.mxu0 0.0
    %963 = vmatpush2.msra.mxu0 0.0
    %964 = vmatprep.mubr.f32.mxu0 0.0
    %965 = vmatmul.mubr.f32.gmra.mxu0 %v898
    %v966 = vpop.f32.mrf.mxu0
    %v967 = vadd.f32 0.0, %v966
    %v968 = vpop.f32.mrf.mxu0
    %969 = vdwg.mxu0
    %v971 = vsel %vm557, %v892, 0
    %973 = vmatprep.subr.mxu0 0.0
    %974 = vmatpush1.msra.mxu0 0.0
    %975 = vmatprep.subr.mxu0 0.0
    %976 = vmatpush1.msra.mxu0 0.0
    %977 = vmatprep.subr.mxu0 0.0
    %978 = vmatpush1.msra.mxu0 0.0
    %979 = vmatprep.subr.mxu0 0.0
    %980 = vmatpush1.msra.mxu0 0.0
    %981 = vmatprep.subr.mxu0 0.0
    %982 = vmatpush1.msra.mxu0 0.0
    %983 = vmatprep.subr.mxu0 0.0
    %984 = vmatpush1.msra.mxu0 0.0
    %985 = vmatprep.subr.mxu0 0.0
    %986 = vmatpush1.msra.mxu0 0.0
    %987 = vmatprep.subr.mxu0 0.0
    %988 = vmatpush1.msra.mxu0 0.0
    %989 = vmatprep.subr.mxu0 0.0
    %990 = vmatpush1.msra.mxu0 0.0
    %991 = vmatprep.subr.mxu0 0.0
    %992 = vmatpush1.msra.mxu0 0.0
    %993 = vmatprep.subr.mxu0 0.0
    %994 = vmatpush1.msra.mxu0 0.0
    %995 = vmatprep.subr.mxu0 0.0
    %996 = vmatpush1.msra.mxu0 0.0
    %997 = vmatprep.subr.mxu0 0.0
    %998 = vmatpush1.msra.mxu0 0.0
    %999 = vmatprep.subr.mxu0 0.0
    %1000 = vmatpush1.msra.mxu0 0.0
    %1001 = vmatprep.subr.mxu0 0.0
    %1002 = vmatpush1.msra.mxu0 0.0
    %1003 = vmatprep.subr.mxu0 0.0
    %1004 = vmatpush1.msra.mxu0 %v245
    %1005 = vmatprep.subr.mxu0 0.0
    %1006 = vmatpush2.msra.mxu0 0.0
    %1007 = vmatprep.subr.mxu0 0.0
    %1008 = vmatpush2.msra.mxu0 0.0
    %1009 = vmatprep.subr.mxu0 0.0
    %1010 = vmatpush2.msra.mxu0 0.0
    %1011 = vmatprep.subr.mxu0 0.0
    %1012 = vmatpush2.msra.mxu0 0.0
    %1013 = vmatprep.subr.mxu0 0.0
    %1014 = vmatpush2.msra.mxu0 0.0
    %1015 = vmatprep.subr.mxu0 0.0
    %1016 = vmatpush2.msra.mxu0 0.0
    %1017 = vmatprep.subr.mxu0 0.0
    %1018 = vmatpush2.msra.mxu0 0.0
    %1019 = vmatprep.subr.mxu0 0.0
    %1020 = vmatpush2.msra.mxu0 0.0
    %1021 = vmatprep.subr.mxu0 0.0
    %1022 = vmatpush2.msra.mxu0 0.0
    %1023 = vmatprep.subr.mxu0 0.0
    %1024 = vmatpush2.msra.mxu0 0.0
    %1025 = vmatprep.subr.mxu0 0.0
    %1026 = vmatpush2.msra.mxu0 0.0
    %1027 = vmatprep.subr.mxu0 0.0
    %1028 = vmatpush2.msra.mxu0 0.0
    %1029 = vmatprep.subr.mxu0 0.0
    %1030 = vmatpush2.msra.mxu0 0.0
    %1031 = vmatprep.subr.mxu0 0.0
    %1032 = vmatpush2.msra.mxu0 0.0
    %1033 = vmatprep.subr.mxu0 0.0
    %1034 = vmatpush2.msra.mxu0 0.0
    %1035 = vmatprep.subr.mxu0 0.0
    %1036 = vmatpush2.msra.mxu0 0.0
    %1037 = vmatprep.mubr.f32.mxu0 0.0
    %1038 = vmatmul.mubr.f32.gmra.mxu0 %v971
    %v1039 = vpop.f32.mrf.mxu0
    %v1040 = vadd.f32 0.0, %v1039
    %v1041 = vpop.f32.mrf.mxu0
    %1042 = vdwg.mxu0
    %v1044 = vsel %vm557, %v894, 0
    %1046 = vmatprep.subr.mxu0 0.0
    %1047 = vmatpush1.msra.mxu0 0.0
    %1048 = vmatprep.subr.mxu0 0.0
    %1049 = vmatpush1.msra.mxu0 0.0
    %1050 = vmatprep.subr.mxu0 0.0
    %1051 = vmatpush1.msra.mxu0 0.0
    %1052 = vmatprep.subr.mxu0 0.0
    %1053 = vmatpush1.msra.mxu0 0.0
    %1054 = vmatprep.subr.mxu0 0.0
    %1055 = vmatpush1.msra.mxu0 0.0
    %1056 = vmatprep.subr.mxu0 0.0
    %1057 = vmatpush1.msra.mxu0 0.0
    %1058 = vmatprep.subr.mxu0 0.0
    %1059 = vmatpush1.msra.mxu0 0.0
    %1060 = vmatprep.subr.mxu0 0.0
    %1061 = vmatpush1.msra.mxu0 0.0
    %1062 = vmatprep.subr.mxu0 0.0
    %1063 = vmatpush1.msra.mxu0 0.0
    %1064 = vmatprep.subr.mxu0 0.0
    %1065 = vmatpush1.msra.mxu0 0.0
    %1066 = vmatprep.subr.mxu0 0.0
    %1067 = vmatpush1.msra.mxu0 0.0
    %1068 = vmatprep.subr.mxu0 0.0
    %1069 = vmatpush1.msra.mxu0 0.0
    %1070 = vmatprep.subr.mxu0 0.0
    %1071 = vmatpush1.msra.mxu0 0.0
    %1072 = vmatprep.subr.mxu0 0.0
    %1073 = vmatpush1.msra.mxu0 0.0
    %1074 = vmatprep.subr.mxu0 0.0
    %1075 = vmatpush1.msra.mxu0 0.0
    %1076 = vmatprep.subr.mxu0 0.0
    %1077 = vmatpush1.msra.mxu0 %v245
    %1078 = vmatprep.subr.mxu0 0.0
    %1079 = vmatpush2.msra.mxu0 0.0
    %1080 = vmatprep.subr.mxu0 0.0
    %1081 = vmatpush2.msra.mxu0 0.0
    %1082 = vmatprep.subr.mxu0 0.0
    %1083 = vmatpush2.msra.mxu0 0.0
    %1084 = vmatprep.subr.mxu0 0.0
    %1085 = vmatpush2.msra.mxu0 0.0
    %1086 = vmatprep.subr.mxu0 0.0
    %1087 = vmatpush2.msra.mxu0 0.0
    %1088 = vmatprep.subr.mxu0 0.0
    %1089 = vmatpush2.msra.mxu0 0.0
    %1090 = vmatprep.subr.mxu0 0.0
    %1091 = vmatpush2.msra.mxu0 0.0
    %1092 = vmatprep.subr.mxu0 0.0
    %1093 = vmatpush2.msra.mxu0 0.0
    %1094 = vmatprep.subr.mxu0 0.0
    %1095 = vmatpush2.msra.mxu0 0.0
    %1096 = vmatprep.subr.mxu0 0.0
    %1097 = vmatpush2.msra.mxu0 0.0
    %1098 = vmatprep.subr.mxu0 0.0
    %1099 = vmatpush2.msra.mxu0 0.0
    %1100 = vmatprep.subr.mxu0 0.0
    %1101 = vmatpush2.msra.mxu0 0.0
    %1102 = vmatprep.subr.mxu0 0.0
    %1103 = vmatpush2.msra.mxu0 0.0
    %1104 = vmatprep.subr.mxu0 0.0
    %1105 = vmatpush2.msra.mxu0 0.0
    %1106 = vmatprep.subr.mxu0 0.0
    %1107 = vmatpush2.msra.mxu0 0.0
    %1108 = vmatprep.subr.mxu0 0.0
    %1109 = vmatpush2.msra.mxu0 0.0
    %1110 = vmatprep.mubr.f32.mxu0 0.0
    %1111 = vmatmul.mubr.f32.gmra.mxu0 %v1044
    %v1112 = vpop.f32.mrf.mxu0
    %v1113 = vadd.f32 0.0, %v1112
    %v1114 = vpop.f32.mrf.mxu0
    %1115 = vdwg.mxu0
    %v1117 = vsel %vm557, %v896, 0
    %1119 = vmatprep.subr.mxu0 0.0
    %1120 = vmatpush1.msra.mxu0 0.0
    %1121 = vmatprep.subr.mxu0 0.0
    %1122 = vmatpush1.msra.mxu0 0.0
    %1123 = vmatprep.subr.mxu0 0.0
    %1124 = vmatpush1.msra.mxu0 0.0
    %1125 = vmatprep.subr.mxu0 0.0
    %1126 = vmatpush1.msra.mxu0 0.0
    %1127 = vmatprep.subr.mxu0 0.0
    %1128 = vmatpush1.msra.mxu0 0.0
    %1129 = vmatprep.subr.mxu0 0.0
    %1130 = vmatpush1.msra.mxu0 0.0
    %1131 = vmatprep.subr.mxu0 0.0
    %1132 = vmatpush1.msra.mxu0 0.0
    %1133 = vmatprep.subr.mxu0 0.0
    %1134 = vmatpush1.msra.mxu0 0.0
    %1135 = vmatprep.subr.mxu0 0.0
    %1136 = vmatpush1.msra.mxu0 0.0
    %1137 = vmatprep.subr.mxu0 0.0
    %1138 = vmatpush1.msra.mxu0 0.0
    %1139 = vmatprep.subr.mxu0 0.0
    %1140 = vmatpush1.msra.mxu0 0.0
    %1141 = vmatprep.subr.mxu0 0.0
    %1142 = vmatpush1.msra.mxu0 0.0
    %1143 = vmatprep.subr.mxu0 0.0
    %1144 = vmatpush1.msra.mxu0 0.0
    %1145 = vmatprep.subr.mxu0 0.0
    %1146 = vmatpush1.msra.mxu0 0.0
    %1147 = vmatprep.subr.mxu0 0.0
    %1148 = vmatpush1.msra.mxu0 0.0
    %1149 = vmatprep.subr.mxu0 0.0
    %1150 = vmatpush1.msra.mxu0 %v245
    %1151 = vmatprep.subr.mxu0 0.0
    %1152 = vmatpush2.msra.mxu0 0.0
    %1153 = vmatprep.subr.mxu0 0.0
    %1154 = vmatpush2.msra.mxu0 0.0
    %1155 = vmatprep.subr.mxu0 0.0
    %1156 = vmatpush2.msra.mxu0 0.0
    %1157 = vmatprep.subr.mxu0 0.0
    %1158 = vmatpush2.msra.mxu0 0.0
    %1159 = vmatprep.subr.mxu0 0.0
    %1160 = vmatpush2.msra.mxu0 0.0
    %1161 = vmatprep.subr.mxu0 0.0
    %1162 = vmatpush2.msra.mxu0 0.0
    %1163 = vmatprep.subr.mxu0 0.0
    %1164 = vmatpush2.msra.mxu0 0.0
    %1165 = vmatprep.subr.mxu0 0.0
    %1166 = vmatpush2.msra.mxu0 0.0
    %1167 = vmatprep.subr.mxu0 0.0
    %1168 = vmatpush2.msra.mxu0 0.0
    %1169 = vmatprep.subr.mxu0 0.0
    %1170 = vmatpush2.msra.mxu0 0.0
    %1171 = vmatprep.subr.mxu0 0.0
    %1172 = vmatpush2.msra.mxu0 0.0
    %1173 = vmatprep.subr.mxu0 0.0
    %1174 = vmatpush2.msra.mxu0 0.0
    %1175 = vmatprep.subr.mxu0 0.0
    %1176 = vmatpush2.msra.mxu0 0.0
    %1177 = vmatprep.subr.mxu0 0.0
    %1178 = vmatpush2.msra.mxu0 0.0
    %1179 = vmatprep.subr.mxu0 0.0
    %1180 = vmatpush2.msra.mxu0 0.0
    %1181 = vmatprep.subr.mxu0 0.0
    %1182 = vmatpush2.msra.mxu0 0.0
    %1183 = vmatprep.mubr.f32.mxu0 0.0
    %1184 = vmatmul.mubr.f32.gmra.mxu0 %v1117
    %v1185 = vpop.f32.mrf.mxu0
    %v1186 = vadd.f32 0.0, %v1185
    %v1187 = vpop.f32.mrf.mxu0
    %1188 = vdwg.mxu0
    %v1190 = vsel %vm557, %v967, 0
    %1192 = vmatprep.subr.mxu0 0.0
    %1193 = vmatpush1.msra.mxu0 0.0
    %1194 = vmatprep.subr.mxu0 0.0
    %1195 = vmatpush1.msra.mxu0 0.0
    %1196 = vmatprep.subr.mxu0 0.0
    %1197 = vmatpush1.msra.mxu0 0.0
    %1198 = vmatprep.subr.mxu0 0.0
    %1199 = vmatpush1.msra.mxu0 0.0
    %1200 = vmatprep.subr.mxu0 0.0
    %1201 = vmatpush1.msra.mxu0 0.0
    %1202 = vmatprep.subr.mxu0 0.0
    %1203 = vmatpush1.msra.mxu0 0.0
    %1204 = vmatprep.subr.mxu0 0.0
    %1205 = vmatpush1.msra.mxu0 0.0
    %1206 = vmatprep.subr.mxu0 0.0
    %1207 = vmatpush1.msra.mxu0 0.0
    %1208 = vmatprep.subr.mxu0 0.0
    %1209 = vmatpush1.msra.mxu0 0.0
    %1210 = vmatprep.subr.mxu0 0.0
    %1211 = vmatpush1.msra.mxu0 0.0
    %1212 = vmatprep.subr.mxu0 0.0
    %1213 = vmatpush1.msra.mxu0 0.0
    %1214 = vmatprep.subr.mxu0 0.0
    %1215 = vmatpush1.msra.mxu0 0.0
    %1216 = vmatprep.subr.mxu0 0.0
    %1217 = vmatpush1.msra.mxu0 0.0
    %1218 = vmatprep.subr.mxu0 0.0
    %1219 = vmatpush1.msra.mxu0 0.0
    %1220 = vmatprep.subr.mxu0 0.0
    %1221 = vmatpush1.msra.mxu0 0.0
    %1222 = vmatprep.subr.mxu0 0.0
    %1223 = vmatpush1.msra.mxu0 %v269
    %1224 = vmatprep.subr.mxu0 0.0
    %1225 = vmatpush2.msra.mxu0 0.0
    %1226 = vmatprep.subr.mxu0 0.0
    %1227 = vmatpush2.msra.mxu0 0.0
    %1228 = vmatprep.subr.mxu0 0.0
    %1229 = vmatpush2.msra.mxu0 0.0
    %1230 = vmatprep.subr.mxu0 0.0
    %1231 = vmatpush2.msra.mxu0 0.0
    %1232 = vmatprep.subr.mxu0 0.0
    %1233 = vmatpush2.msra.mxu0 0.0
    %1234 = vmatprep.subr.mxu0 0.0
    %1235 = vmatpush2.msra.mxu0 0.0
    %1236 = vmatprep.subr.mxu0 0.0
    %1237 = vmatpush2.msra.mxu0 0.0
    %1238 = vmatprep.subr.mxu0 0.0
    %1239 = vmatpush2.msra.mxu0 0.0
    %1240 = vmatprep.subr.mxu0 0.0
    %1241 = vmatpush2.msra.mxu0 0.0
    %1242 = vmatprep.subr.mxu0 0.0
    %1243 = vmatpush2.msra.mxu0 0.0
    %1244 = vmatprep.subr.mxu0 0.0
    %1245 = vmatpush2.msra.mxu0 0.0
    %1246 = vmatprep.subr.mxu0 0.0
    %1247 = vmatpush2.msra.mxu0 0.0
    %1248 = vmatprep.subr.mxu0 0.0
    %1249 = vmatpush2.msra.mxu0 0.0
    %1250 = vmatprep.subr.mxu0 0.0
    %1251 = vmatpush2.msra.mxu0 0.0
    %1252 = vmatprep.subr.mxu0 0.0
    %1253 = vmatpush2.msra.mxu0 0.0
    %1254 = vmatprep.subr.mxu0 0.0
    %1255 = vmatpush2.msra.mxu0 0.0
    %1256 = vmatprep.mubr.f32.mxu0 0.0
    %1257 = vmatmul.mubr.f32.gmra.mxu0 %v1190
    %v1258 = vpop.f32.mrf.mxu0
    %v1259 = vadd.f32 0.0, %v1258
    %v1260 = vpop.f32.mrf.mxu0
    %1261 = vdwg.mxu0
    %v1263 = vsel %vm557, %v1040, 0
    %1265 = vmatprep.subr.mxu0 0.0
    %1266 = vmatpush1.msra.mxu0 0.0
    %1267 = vmatprep.subr.mxu0 0.0
    %1268 = vmatpush1.msra.mxu0 0.0
    %1269 = vmatprep.subr.mxu0 0.0
    %1270 = vmatpush1.msra.mxu0 0.0
    %1271 = vmatprep.subr.mxu0 0.0
    %1272 = vmatpush1.msra.mxu0 0.0
    %1273 = vmatprep.subr.mxu0 0.0
    %1274 = vmatpush1.msra.mxu0 0.0
    %1275 = vmatprep.subr.mxu0 0.0
    %1276 = vmatpush1.msra.mxu0 0.0
    %1277 = vmatprep.subr.mxu0 0.0
    %1278 = vmatpush1.msra.mxu0 0.0
    %1279 = vmatprep.subr.mxu0 0.0
    %1280 = vmatpush1.msra.mxu0 0.0
    %1281 = vmatprep.subr.mxu0 0.0
    %1282 = vmatpush1.msra.mxu0 0.0
    %1283 = vmatprep.subr.mxu0 0.0
    %1284 = vmatpush1.msra.mxu0 0.0
    %1285 = vmatprep.subr.mxu0 0.0
    %1286 = vmatpush1.msra.mxu0 0.0
    %1287 = vmatprep.subr.mxu0 0.0
    %1288 = vmatpush1.msra.mxu0 0.0
    %1289 = vmatprep.subr.mxu0 0.0
    %1290 = vmatpush1.msra.mxu0 0.0
    %1291 = vmatprep.subr.mxu0 0.0
    %1292 = vmatpush1.msra.mxu0 0.0
    %1293 = vmatprep.subr.mxu0 0.0
    %1294 = vmatpush1.msra.mxu0 0.0
    %1295 = vmatprep.subr.mxu0 0.0
    %1296 = vmatpush1.msra.mxu0 %v270
    %1297 = vmatprep.subr.mxu0 0.0
    %1298 = vmatpush2.msra.mxu0 0.0
    %1299 = vmatprep.subr.mxu0 0.0
    %1300 = vmatpush2.msra.mxu0 0.0
    %1301 = vmatprep.subr.mxu0 0.0
    %1302 = vmatpush2.msra.mxu0 0.0
    %1303 = vmatprep.subr.mxu0 0.0
    %1304 = vmatpush2.msra.mxu0 0.0
    %1305 = vmatprep.subr.mxu0 0.0
    %1306 = vmatpush2.msra.mxu0 0.0
    %1307 = vmatprep.subr.mxu0 0.0
    %1308 = vmatpush2.msra.mxu0 0.0
    %1309 = vmatprep.subr.mxu0 0.0
    %1310 = vmatpush2.msra.mxu0 0.0
    %1311 = vmatprep.subr.mxu0 0.0
    %1312 = vmatpush2.msra.mxu0 0.0
    %1313 = vmatprep.subr.mxu0 0.0
    %1314 = vmatpush2.msra.mxu0 0.0
    %1315 = vmatprep.subr.mxu0 0.0
    %1316 = vmatpush2.msra.mxu0 0.0
    %1317 = vmatprep.subr.mxu0 0.0
    %1318 = vmatpush2.msra.mxu0 0.0
    %1319 = vmatprep.subr.mxu0 0.0
    %1320 = vmatpush2.msra.mxu0 0.0
    %1321 = vmatprep.subr.mxu0 0.0
    %1322 = vmatpush2.msra.mxu0 0.0
    %1323 = vmatprep.subr.mxu0 0.0
    %1324 = vmatpush2.msra.mxu0 0.0
    %1325 = vmatprep.subr.mxu0 0.0
    %1326 = vmatpush2.msra.mxu0 0.0
    %1327 = vmatprep.subr.mxu0 0.0
    %1328 = vmatpush2.msra.mxu0 0.0
    %1329 = vmatprep.mubr.f32.mxu0 0.0
    %1330 = vmatmul.mubr.f32.gmra.mxu0 %v1263
    %v1331 = vpop.f32.mrf.mxu0
    %v1332 = vadd.f32 0.0, %v1331
    %v1333 = vpop.f32.mrf.mxu0
    %1334 = vdwg.mxu0
    %v1336 = vsel %vm557, %v1113, 0
    %1338 = vmatprep.subr.mxu0 0.0
    %1339 = vmatpush1.msra.mxu0 0.0
    %1340 = vmatprep.subr.mxu0 0.0
    %1341 = vmatpush1.msra.mxu0 0.0
    %1342 = vmatprep.subr.mxu0 0.0
    %1343 = vmatpush1.msra.mxu0 0.0
    %1344 = vmatprep.subr.mxu0 0.0
    %1345 = vmatpush1.msra.mxu0 0.0
    %1346 = vmatprep.subr.mxu0 0.0
    %1347 = vmatpush1.msra.mxu0 0.0
    %1348 = vmatprep.subr.mxu0 0.0
    %1349 = vmatpush1.msra.mxu0 0.0
    %1350 = vmatprep.subr.mxu0 0.0
    %1351 = vmatpush1.msra.mxu0 0.0
    %1352 = vmatprep.subr.mxu0 0.0
    %1353 = vmatpush1.msra.mxu0 0.0
    %1354 = vmatprep.subr.mxu0 0.0
    %1355 = vmatpush1.msra.mxu0 0.0
    %1356 = vmatprep.subr.mxu0 0.0
    %1357 = vmatpush1.msra.mxu0 0.0
    %1358 = vmatprep.subr.mxu0 0.0
    %1359 = vmatpush1.msra.mxu0 0.0
    %1360 = vmatprep.subr.mxu0 0.0
    %1361 = vmatpush1.msra.mxu0 0.0
    %1362 = vmatprep.subr.mxu0 0.0
    %1363 = vmatpush1.msra.mxu0 0.0
    %1364 = vmatprep.subr.mxu0 0.0
    %1365 = vmatpush1.msra.mxu0 0.0
    %1366 = vmatprep.subr.mxu0 0.0
    %1367 = vmatpush1.msra.mxu0 0.0
    %1368 = vmatprep.subr.mxu0 0.0
    %1369 = vmatpush1.msra.mxu0 %v271
    %1370 = vmatprep.subr.mxu0 0.0
    %1371 = vmatpush2.msra.mxu0 0.0
    %1372 = vmatprep.subr.mxu0 0.0
    %1373 = vmatpush2.msra.mxu0 0.0
    %1374 = vmatprep.subr.mxu0 0.0
    %1375 = vmatpush2.msra.mxu0 0.0
    %1376 = vmatprep.subr.mxu0 0.0
    %1377 = vmatpush2.msra.mxu0 0.0
    %1378 = vmatprep.subr.mxu0 0.0
    %1379 = vmatpush2.msra.mxu0 0.0
    %1380 = vmatprep.subr.mxu0 0.0
    %1381 = vmatpush2.msra.mxu0 0.0
    %1382 = vmatprep.subr.mxu0 0.0
    %1383 = vmatpush2.msra.mxu0 0.0
    %1384 = vmatprep.subr.mxu0 0.0
    %1385 = vmatpush2.msra.mxu0 0.0
    %1386 = vmatprep.subr.mxu0 0.0
    %1387 = vmatpush2.msra.mxu0 0.0
    %1388 = vmatprep.subr.mxu0 0.0
    %1389 = vmatpush2.msra.mxu0 0.0
    %1390 = vmatprep.subr.mxu0 0.0
    %1391 = vmatpush2.msra.mxu0 0.0
    %1392 = vmatprep.subr.mxu0 0.0
    %1393 = vmatpush2.msra.mxu0 0.0
    %1394 = vmatprep.subr.mxu0 0.0
    %1395 = vmatpush2.msra.mxu0 0.0
    %1396 = vmatprep.subr.mxu0 0.0
    %1397 = vmatpush2.msra.mxu0 0.0
    %1398 = vmatprep.subr.mxu0 0.0
    %1399 = vmatpush2.msra.mxu0 0.0
    %1400 = vmatprep.subr.mxu0 0.0
    %1401 = vmatpush2.msra.mxu0 0.0
    %1402 = vmatprep.mubr.f32.mxu0 0.0
    %1403 = vmatmul.mubr.f32.gmra.mxu0 %v1336
    %v1404 = vpop.f32.mrf.mxu0
    %v1405 = vadd.f32 0.0, %v1404
    %v1406 = vpop.f32.mrf.mxu0
    %1407 = vdwg.mxu0
    %v1409 = vsel %vm557, %v1186, 0
    %1411 = vmatprep.subr.mxu0 0.0
    %1412 = vmatpush1.msra.mxu0 0.0
    %1413 = vmatprep.subr.mxu0 0.0
    %1414 = vmatpush1.msra.mxu0 0.0
    %1415 = vmatprep.subr.mxu0 0.0
    %1416 = vmatpush1.msra.mxu0 0.0
    %1417 = vmatprep.subr.mxu0 0.0
    %1418 = vmatpush1.msra.mxu0 0.0
    %1419 = vmatprep.subr.mxu0 0.0
    %1420 = vmatpush1.msra.mxu0 0.0
    %1421 = vmatprep.subr.mxu0 0.0
    %1422 = vmatpush1.msra.mxu0 0.0
    %1423 = vmatprep.subr.mxu0 0.0
    %1424 = vmatpush1.msra.mxu0 0.0
    %1425 = vmatprep.subr.mxu0 0.0
    %1426 = vmatpush1.msra.mxu0 0.0
    %1427 = vmatprep.subr.mxu0 0.0
    %1428 = vmatpush1.msra.mxu0 0.0
    %1429 = vmatprep.subr.mxu0 0.0
    %1430 = vmatpush1.msra.mxu0 0.0
    %1431 = vmatprep.subr.mxu0 0.0
    %1432 = vmatpush1.msra.mxu0 0.0
    %1433 = vmatprep.subr.mxu0 0.0
    %1434 = vmatpush1.msra.mxu0 0.0
    %1435 = vmatprep.subr.mxu0 0.0
    %1436 = vmatpush1.msra.mxu0 0.0
    %1437 = vmatprep.subr.mxu0 0.0
    %1438 = vmatpush1.msra.mxu0 0.0
    %1439 = vmatprep.subr.mxu0 0.0
    %1440 = vmatpush1.msra.mxu0 0.0
    %1441 = vmatprep.subr.mxu0 0.0
    %1442 = vmatpush1.msra.mxu0 %v272
    %1443 = vmatprep.subr.mxu0 0.0
    %1444 = vmatpush2.msra.mxu0 0.0
    %1445 = vmatprep.subr.mxu0 0.0
    %1446 = vmatpush2.msra.mxu0 0.0
    %1447 = vmatprep.subr.mxu0 0.0
    %1448 = vmatpush2.msra.mxu0 0.0
    %1449 = vmatprep.subr.mxu0 0.0
    %1450 = vmatpush2.msra.mxu0 0.0
    %1451 = vmatprep.subr.mxu0 0.0
    %1452 = vmatpush2.msra.mxu0 0.0
    %1453 = vmatprep.subr.mxu0 0.0
    %1454 = vmatpush2.msra.mxu0 0.0
    %1455 = vmatprep.subr.mxu0 0.0
    %1456 = vmatpush2.msra.mxu0 0.0
    %1457 = vmatprep.subr.mxu0 0.0
    %1458 = vmatpush2.msra.mxu0 0.0
    %1459 = vmatprep.subr.mxu0 0.0
    %1460 = vmatpush2.msra.mxu0 0.0
    %1461 = vmatprep.subr.mxu0 0.0
    %1462 = vmatpush2.msra.mxu0 0.0
    %1463 = vmatprep.subr.mxu0 0.0
    %1464 = vmatpush2.msra.mxu0 0.0
    %1465 = vmatprep.subr.mxu0 0.0
    %1466 = vmatpush2.msra.mxu0 0.0
    %1467 = vmatprep.subr.mxu0 0.0
    %1468 = vmatpush2.msra.mxu0 0.0
    %1469 = vmatprep.subr.mxu0 0.0
    %1470 = vmatpush2.msra.mxu0 0.0
    %1471 = vmatprep.subr.mxu0 0.0
    %1472 = vmatpush2.msra.mxu0 0.0
    %1473 = vmatprep.subr.mxu0 0.0
    %1474 = vmatpush2.msra.mxu0 0.0
    %1475 = vmatprep.mubr.f32.mxu0 0.0
    %1476 = vmatmul.mubr.f32.gmra.mxu0 %v1409
    %v1477 = vpop.f32.mrf.mxu0
    %v1478 = vadd.f32 0.0, %v1477
    %v1479 = vpop.f32.mrf.mxu0
    %1480 = vdwg.mxu0
    %v1481 = vadd.f32 %v1259, %v1332
    %v1482 = vadd.f32 %v1481, %v1405
    %v1483 = vadd.f32 %v1482, %v1478
    %1484 = vmatprep.subr.mxu0 0.0
    %1485 = vmatpush1.msra.mxu0 0.0
    %1486 = vmatprep.subr.mxu0 0.0
    %1487 = vmatpush1.msra.mxu0 0.0
    %1488 = vmatprep.subr.mxu0 0.0
    %1489 = vmatpush1.msra.mxu0 0.0
    %1490 = vmatprep.subr.mxu0 0.0
    %1491 = vmatpush1.msra.mxu0 0.0
    %1492 = vmatprep.subr.mxu0 0.0
    %1493 = vmatpush1.msra.mxu0 0.0
    %1494 = vmatprep.subr.mxu0 0.0
    %1495 = vmatpush1.msra.mxu0 0.0
    %1496 = vmatprep.subr.mxu0 0.0
    %1497 = vmatpush1.msra.mxu0 0.0
    %1498 = vmatprep.subr.mxu0 0.0
    %1499 = vmatpush1.msra.mxu0 0.0
    %1500 = vmatprep.subr.mxu0 0.0
    %1501 = vmatpush1.msra.mxu0 0.0
    %1502 = vmatprep.subr.mxu0 0.0
    %1503 = vmatpush1.msra.mxu0 0.0
    %1504 = vmatprep.subr.mxu0 0.0
    %1505 = vmatpush1.msra.mxu0 0.0
    %1506 = vmatprep.subr.mxu0 0.0
    %1507 = vmatpush1.msra.mxu0 0.0
    %1508 = vmatprep.subr.mxu0 0.0
    %1509 = vmatpush1.msra.mxu0 %v256
    %1510 = vmatprep.subr.mxu0 0.0
    %1511 = vmatpush1.msra.mxu0 %v255
    %1512 = vmatprep.subr.mxu0 0.0
    %1513 = vmatpush1.msra.mxu0 %v254
    %1514 = vmatprep.subr.mxu0 0.0
    %1515 = vmatpush1.msra.mxu0 %v253
    %1516 = vmatprep.subr.mxu0 0.0
    %1517 = vmatpush2.msra.mxu0 0.0
    %1518 = vmatprep.subr.mxu0 0.0
    %1519 = vmatpush2.msra.mxu0 0.0
    %1520 = vmatprep.subr.mxu0 0.0
    %1521 = vmatpush2.msra.mxu0 0.0
    %1522 = vmatprep.subr.mxu0 0.0
    %1523 = vmatpush2.msra.mxu0 0.0
    %1524 = vmatprep.subr.mxu0 0.0
    %1525 = vmatpush2.msra.mxu0 0.0
    %1526 = vmatprep.subr.mxu0 0.0
    %1527 = vmatpush2.msra.mxu0 0.0
    %1528 = vmatprep.subr.mxu0 0.0
    %1529 = vmatpush2.msra.mxu0 0.0
    %1530 = vmatprep.subr.mxu0 0.0
    %1531 = vmatpush2.msra.mxu0 0.0
    %1532 = vmatprep.subr.mxu0 0.0
    %1533 = vmatpush2.msra.mxu0 0.0
    %1534 = vmatprep.subr.mxu0 0.0
    %1535 = vmatpush2.msra.mxu0 0.0
    %1536 = vmatprep.subr.mxu0 0.0
    %1537 = vmatpush2.msra.mxu0 0.0
    %1538 = vmatprep.subr.mxu0 0.0
    %1539 = vmatpush2.msra.mxu0 0.0
    %1540 = vmatprep.subr.mxu0 0.0
    %1541 = vmatpush2.msra.mxu0 0.0
    %1542 = vmatprep.subr.mxu0 0.0
    %1543 = vmatpush2.msra.mxu0 0.0
    %1544 = vmatprep.subr.mxu0 0.0
    %1545 = vmatpush2.msra.mxu0 0.0
    %1546 = vmatprep.subr.mxu0 0.0
    %1547 = vmatpush2.msra.mxu0 0.0
    %1548 = vmatprep.mubr.f32.mxu0 0.0
    %1549 = vmatmul.mubr.f32.gmra.mxu0 %v97
    %v1550 = vpop.f32.mrf.mxu0
    %v1551 = vadd.f32 0.0, %v1550
    %v1552 = vpop.f32.mrf.mxu0
    %1553 = vdwg.mxu0
    %1554 = vmatprep.subr.mxu0 0.0
    %1555 = vmatpush1.msra.mxu0 0.0
    %1556 = vmatprep.subr.mxu0 0.0
    %1557 = vmatpush1.msra.mxu0 0.0
    %1558 = vmatprep.subr.mxu0 0.0
    %1559 = vmatpush1.msra.mxu0 0.0
    %1560 = vmatprep.subr.mxu0 0.0
    %1561 = vmatpush1.msra.mxu0 0.0
    %1562 = vmatprep.subr.mxu0 0.0
    %1563 = vmatpush1.msra.mxu0 0.0
    %1564 = vmatprep.subr.mxu0 0.0
    %1565 = vmatpush1.msra.mxu0 0.0
    %1566 = vmatprep.subr.mxu0 0.0
    %1567 = vmatpush1.msra.mxu0 0.0
    %1568 = vmatprep.subr.mxu0 0.0
    %1569 = vmatpush1.msra.mxu0 0.0
    %1570 = vmatprep.subr.mxu0 0.0
    %1571 = vmatpush1.msra.mxu0 0.0
    %1572 = vmatprep.subr.mxu0 0.0
    %1573 = vmatpush1.msra.mxu0 0.0
    %1574 = vmatprep.subr.mxu0 0.0
    %1575 = vmatpush1.msra.mxu0 0.0
    %1576 = vmatprep.subr.mxu0 0.0
    %1577 = vmatpush1.msra.mxu0 0.0
    %1578 = vmatprep.subr.mxu0 0.0
    %1579 = vmatpush1.msra.mxu0 %v260
    %1580 = vmatprep.subr.mxu0 0.0
    %1581 = vmatpush1.msra.mxu0 %v259
    %1582 = vmatprep.subr.mxu0 0.0
    %1583 = vmatpush1.msra.mxu0 %v258
    %1584 = vmatprep.subr.mxu0 0.0
    %1585 = vmatpush1.msra.mxu0 %v257
    %1586 = vmatprep.subr.mxu0 0.0
    %1587 = vmatpush2.msra.mxu0 0.0
    %1588 = vmatprep.subr.mxu0 0.0
    %1589 = vmatpush2.msra.mxu0 0.0
    %1590 = vmatprep.subr.mxu0 0.0
    %1591 = vmatpush2.msra.mxu0 0.0
    %1592 = vmatprep.subr.mxu0 0.0
    %1593 = vmatpush2.msra.mxu0 0.0
    %1594 = vmatprep.subr.mxu0 0.0
    %1595 = vmatpush2.msra.mxu0 0.0
    %1596 = vmatprep.subr.mxu0 0.0
    %1597 = vmatpush2.msra.mxu0 0.0
    %1598 = vmatprep.subr.mxu0 0.0
    %1599 = vmatpush2.msra.mxu0 0.0
    %1600 = vmatprep.subr.mxu0 0.0
    %1601 = vmatpush2.msra.mxu0 0.0
    %1602 = vmatprep.subr.mxu0 0.0
    %1603 = vmatpush2.msra.mxu0 0.0
    %1604 = vmatprep.subr.mxu0 0.0
    %1605 = vmatpush2.msra.mxu0 0.0
    %1606 = vmatprep.subr.mxu0 0.0
    %1607 = vmatpush2.msra.mxu0 0.0
    %1608 = vmatprep.subr.mxu0 0.0
    %1609 = vmatpush2.msra.mxu0 0.0
    %1610 = vmatprep.subr.mxu0 0.0
    %1611 = vmatpush2.msra.mxu0 0.0
    %1612 = vmatprep.subr.mxu0 0.0
    %1613 = vmatpush2.msra.mxu0 0.0
    %1614 = vmatprep.subr.mxu0 0.0
    %1615 = vmatpush2.msra.mxu0 0.0
    %1616 = vmatprep.subr.mxu0 0.0
    %1617 = vmatpush2.msra.mxu0 0.0
    %1618 = vmatprep.mubr.f32.mxu0 0.0
    %1619 = vmatmul.mubr.f32.gmra.mxu0 %v97
    %v1620 = vpop.f32.mrf.mxu0
    %v1621 = vadd.f32 0.0, %v1620
    %v1622 = vpop.f32.mrf.mxu0
    %1623 = vdwg.mxu0
    %1624 = vmatprep.subr.mxu0 0.0
    %1625 = vmatpush1.msra.mxu0 0.0
    %1626 = vmatprep.subr.mxu0 0.0
    %1627 = vmatpush1.msra.mxu0 0.0
    %1628 = vmatprep.subr.mxu0 0.0
    %1629 = vmatpush1.msra.mxu0 0.0
    %1630 = vmatprep.subr.mxu0 0.0
    %1631 = vmatpush1.msra.mxu0 0.0
    %1632 = vmatprep.subr.mxu0 0.0
    %1633 = vmatpush1.msra.mxu0 0.0
    %1634 = vmatprep.subr.mxu0 0.0
    %1635 = vmatpush1.msra.mxu0 0.0
    %1636 = vmatprep.subr.mxu0 0.0
    %1637 = vmatpush1.msra.mxu0 0.0
    %1638 = vmatprep.subr.mxu0 0.0
    %1639 = vmatpush1.msra.mxu0 0.0
    %1640 = vmatprep.subr.mxu0 0.0
    %1641 = vmatpush1.msra.mxu0 0.0
    %1642 = vmatprep.subr.mxu0 0.0
    %1643 = vmatpush1.msra.mxu0 0.0
    %1644 = vmatprep.subr.mxu0 0.0
    %1645 = vmatpush1.msra.mxu0 0.0
    %1646 = vmatprep.subr.mxu0 0.0
    %1647 = vmatpush1.msra.mxu0 0.0
    %1648 = vmatprep.subr.mxu0 0.0
    %1649 = vmatpush1.msra.mxu0 %v264
    %1650 = vmatprep.subr.mxu0 0.0
    %1651 = vmatpush1.msra.mxu0 %v263
    %1652 = vmatprep.subr.mxu0 0.0
    %1653 = vmatpush1.msra.mxu0 %v262
    %1654 = vmatprep.subr.mxu0 0.0
    %1655 = vmatpush1.msra.mxu0 %v261
    %1656 = vmatprep.subr.mxu0 0.0
    %1657 = vmatpush2.msra.mxu0 0.0
    %1658 = vmatprep.subr.mxu0 0.0
    %1659 = vmatpush2.msra.mxu0 0.0
    %1660 = vmatprep.subr.mxu0 0.0
    %1661 = vmatpush2.msra.mxu0 0.0
    %1662 = vmatprep.subr.mxu0 0.0
    %1663 = vmatpush2.msra.mxu0 0.0
    %1664 = vmatprep.subr.mxu0 0.0
    %1665 = vmatpush2.msra.mxu0 0.0
    %1666 = vmatprep.subr.mxu0 0.0
    %1667 = vmatpush2.msra.mxu0 0.0
    %1668 = vmatprep.subr.mxu0 0.0
    %1669 = vmatpush2.msra.mxu0 0.0
    %1670 = vmatprep.subr.mxu0 0.0
    %1671 = vmatpush2.msra.mxu0 0.0
    %1672 = vmatprep.subr.mxu0 0.0
    %1673 = vmatpush2.msra.mxu0 0.0
    %1674 = vmatprep.subr.mxu0 0.0
    %1675 = vmatpush2.msra.mxu0 0.0
    %1676 = vmatprep.subr.mxu0 0.0
    %1677 = vmatpush2.msra.mxu0 0.0
    %1678 = vmatprep.subr.mxu0 0.0
    %1679 = vmatpush2.msra.mxu0 0.0
    %1680 = vmatprep.subr.mxu0 0.0
    %1681 = vmatpush2.msra.mxu0 0.0
    %1682 = vmatprep.subr.mxu0 0.0
    %1683 = vmatpush2.msra.mxu0 0.0
    %1684 = vmatprep.subr.mxu0 0.0
    %1685 = vmatpush2.msra.mxu0 0.0
    %1686 = vmatprep.subr.mxu0 0.0
    %1687 = vmatpush2.msra.mxu0 0.0
    %1688 = vmatprep.mubr.f32.mxu0 0.0
    %1689 = vmatmul.mubr.f32.gmra.mxu0 %v97
    %v1690 = vpop.f32.mrf.mxu0
    %v1691 = vadd.f32 0.0, %v1690
    %v1692 = vpop.f32.mrf.mxu0
    %1693 = vdwg.mxu0
    %1694 = vmatprep.subr.mxu0 0.0
    %1695 = vmatpush1.msra.mxu0 0.0
    %1696 = vmatprep.subr.mxu0 0.0
    %1697 = vmatpush1.msra.mxu0 0.0
    %1698 = vmatprep.subr.mxu0 0.0
    %1699 = vmatpush1.msra.mxu0 0.0
    %1700 = vmatprep.subr.mxu0 0.0
    %1701 = vmatpush1.msra.mxu0 0.0
    %1702 = vmatprep.subr.mxu0 0.0
    %1703 = vmatpush1.msra.mxu0 0.0
    %1704 = vmatprep.subr.mxu0 0.0
    %1705 = vmatpush1.msra.mxu0 0.0
    %1706 = vmatprep.subr.mxu0 0.0
    %1707 = vmatpush1.msra.mxu0 0.0
    %1708 = vmatprep.subr.mxu0 0.0
    %1709 = vmatpush1.msra.mxu0 0.0
    %1710 = vmatprep.subr.mxu0 0.0
    %1711 = vmatpush1.msra.mxu0 0.0
    %1712 = vmatprep.subr.mxu0 0.0
    %1713 = vmatpush1.msra.mxu0 0.0
    %1714 = vmatprep.subr.mxu0 0.0
    %1715 = vmatpush1.msra.mxu0 0.0
    %1716 = vmatprep.subr.mxu0 0.0
    %1717 = vmatpush1.msra.mxu0 0.0
    %1718 = vmatprep.subr.mxu0 0.0
    %1719 = vmatpush1.msra.mxu0 %v268
    %1720 = vmatprep.subr.mxu0 0.0
    %1721 = vmatpush1.msra.mxu0 %v267
    %1722 = vmatprep.subr.mxu0 0.0
    %1723 = vmatpush1.msra.mxu0 %v266
    %1724 = vmatprep.subr.mxu0 0.0
    %1725 = vmatpush1.msra.mxu0 %v265
    %1726 = vmatprep.subr.mxu0 0.0
    %1727 = vmatpush2.msra.mxu0 0.0
    %1728 = vmatprep.subr.mxu0 0.0
    %1729 = vmatpush2.msra.mxu0 0.0
    %1730 = vmatprep.subr.mxu0 0.0
    %1731 = vmatpush2.msra.mxu0 0.0
    %1732 = vmatprep.subr.mxu0 0.0
    %1733 = vmatpush2.msra.mxu0 0.0
    %1734 = vmatprep.subr.mxu0 0.0
    %1735 = vmatpush2.msra.mxu0 0.0
    %1736 = vmatprep.subr.mxu0 0.0
    %1737 = vmatpush2.msra.mxu0 0.0
    %1738 = vmatprep.subr.mxu0 0.0
    %1739 = vmatpush2.msra.mxu0 0.0
    %1740 = vmatprep.subr.mxu0 0.0
    %1741 = vmatpush2.msra.mxu0 0.0
    %1742 = vmatprep.subr.mxu0 0.0
    %1743 = vmatpush2.msra.mxu0 0.0
    %1744 = vmatprep.subr.mxu0 0.0
    %1745 = vmatpush2.msra.mxu0 0.0
    %1746 = vmatprep.subr.mxu0 0.0
    %1747 = vmatpush2.msra.mxu0 0.0
    %1748 = vmatprep.subr.mxu0 0.0
    %1749 = vmatpush2.msra.mxu0 0.0
    %1750 = vmatprep.subr.mxu0 0.0
    %1751 = vmatpush2.msra.mxu0 0.0
    %1752 = vmatprep.subr.mxu0 0.0
    %1753 = vmatpush2.msra.mxu0 0.0
    %1754 = vmatprep.subr.mxu0 0.0
    %1755 = vmatpush2.msra.mxu0 0.0
    %1756 = vmatprep.subr.mxu0 0.0
    %1757 = vmatpush2.msra.mxu0 0.0
    %1758 = vmatprep.mubr.f32.mxu0 0.0
    %1759 = vmatmul.mubr.f32.gmra.mxu0 %v97
    %v1760 = vpop.f32.mrf.mxu0
    %v1761 = vadd.f32 0.0, %v1760
    %v1762 = vpop.f32.mrf.mxu0
    %1763 = vdwg.mxu0
    %v1765 = vsel %vm557, %v1551, 0
    %v1768 = vsel %vm557, %v171, 0
    %1770 = vmatprep.subr.mxu0 0.0
    %1771 = vmatpush1.xpose.msra.mxu0 0.0
    %1772 = vmatprep.subr.mxu0 0.0
    %1773 = vmatpush1.xpose.msra.mxu0 0.0
    %1774 = vmatprep.subr.mxu0 0.0
    %1775 = vmatpush1.xpose.msra.mxu0 0.0
    %1776 = vmatprep.subr.mxu0 0.0
    %1777 = vmatpush1.xpose.msra.mxu0 0.0
    %1778 = vmatprep.subr.mxu0 0.0
    %1779 = vmatpush1.xpose.msra.mxu0 0.0
    %1780 = vmatprep.subr.mxu0 0.0
    %1781 = vmatpush1.xpose.msra.mxu0 0.0
    %1782 = vmatprep.subr.mxu0 0.0
    %1783 = vmatpush1.xpose.msra.mxu0 0.0
    %1784 = vmatprep.subr.mxu0 0.0
    %1785 = vmatpush1.xpose.msra.mxu0 0.0
    %1786 = vmatprep.subr.mxu0 0.0
    %1787 = vmatpush1.xpose.msra.mxu0 0.0
    %1788 = vmatprep.subr.mxu0 0.0
    %1789 = vmatpush1.xpose.msra.mxu0 0.0
    %1790 = vmatprep.subr.mxu0 0.0
    %1791 = vmatpush1.xpose.msra.mxu0 0.0
    %1792 = vmatprep.subr.mxu0 0.0
    %1793 = vmatpush1.xpose.msra.mxu0 0.0
    %1794 = vmatprep.subr.mxu0 0.0
    %1795 = vmatpush1.xpose.msra.mxu0 0.0
    %1796 = vmatprep.subr.mxu0 0.0
    %1797 = vmatpush1.xpose.msra.mxu0 0.0
    %1798 = vmatprep.subr.mxu0 0.0
    %1799 = vmatpush1.xpose.msra.mxu0 0.0
    %1800 = vmatprep.subr.mxu0 0.0
    %1801 = vmatpush1.xpose.msra.mxu0 %v1768
    %1802 = vmatprep.subr.mxu0 0.0
    %1803 = vmatpush2.xpose.msra.mxu0 0.0
    %1804 = vmatprep.subr.mxu0 0.0
    %1805 = vmatpush2.xpose.msra.mxu0 0.0
    %1806 = vmatprep.subr.mxu0 0.0
    %1807 = vmatpush2.xpose.msra.mxu0 0.0
    %1808 = vmatprep.subr.mxu0 0.0
    %1809 = vmatpush2.xpose.msra.mxu0 0.0
    %1810 = vmatprep.subr.mxu0 0.0
    %1811 = vmatpush2.xpose.msra.mxu0 0.0
    %1812 = vmatprep.subr.mxu0 0.0
    %1813 = vmatpush2.xpose.msra.mxu0 0.0
    %1814 = vmatprep.subr.mxu0 0.0
    %1815 = vmatpush2.xpose.msra.mxu0 0.0
    %1816 = vmatprep.subr.mxu0 0.0
    %1817 = vmatpush2.xpose.msra.mxu0 0.0
    %1818 = vmatprep.subr.mxu0 0.0
    %1819 = vmatpush2.xpose.msra.mxu0 0.0
    %1820 = vmatprep.subr.mxu0 0.0
    %1821 = vmatpush2.xpose.msra.mxu0 0.0
    %1822 = vmatprep.subr.mxu0 0.0
    %1823 = vmatpush2.xpose.msra.mxu0 0.0
    %1824 = vmatprep.subr.mxu0 0.0
    %1825 = vmatpush2.xpose.msra.mxu0 0.0
    %1826 = vmatprep.subr.mxu0 0.0
    %1827 = vmatpush2.xpose.msra.mxu0 0.0
    %1828 = vmatprep.subr.mxu0 0.0
    %1829 = vmatpush2.xpose.msra.mxu0 0.0
    %1830 = vmatprep.subr.mxu0 0.0
    %1831 = vmatpush2.xpose.msra.mxu0 0.0
    %1832 = vmatprep.subr.mxu0 0.0
    %1833 = vmatpush2.xpose.msra.mxu0 0.0
    %1834 = vmatprep.mubr.f32.mxu0 0.0
    %1835 = vmatmul.mubr.f32.gmra.mxu0 %v1765
    %v1836 = vpop.f32.mrf.mxu0
    %v1837 = vadd.f32 %v273, %v1836
    %v1838 = vpop.f32.mrf.mxu0
    %1839 = vdwg.mxu0
    %v1841 = vsel %vm557, %v1621, 0
    %1843 = vmatprep.subr.mxu0 0.0
    %1844 = vmatpush1.xpose.msra.mxu0 0.0
    %1845 = vmatprep.subr.mxu0 0.0
    %1846 = vmatpush1.xpose.msra.mxu0 0.0
    %1847 = vmatprep.subr.mxu0 0.0
    %1848 = vmatpush1.xpose.msra.mxu0 0.0
    %1849 = vmatprep.subr.mxu0 0.0
    %1850 = vmatpush1.xpose.msra.mxu0 0.0
    %1851 = vmatprep.subr.mxu0 0.0
    %1852 = vmatpush1.xpose.msra.mxu0 0.0
    %1853 = vmatprep.subr.mxu0 0.0
    %1854 = vmatpush1.xpose.msra.mxu0 0.0
    %1855 = vmatprep.subr.mxu0 0.0
    %1856 = vmatpush1.xpose.msra.mxu0 0.0
    %1857 = vmatprep.subr.mxu0 0.0
    %1858 = vmatpush1.xpose.msra.mxu0 0.0
    %1859 = vmatprep.subr.mxu0 0.0
    %1860 = vmatpush1.xpose.msra.mxu0 0.0
    %1861 = vmatprep.subr.mxu0 0.0
    %1862 = vmatpush1.xpose.msra.mxu0 0.0
    %1863 = vmatprep.subr.mxu0 0.0
    %1864 = vmatpush1.xpose.msra.mxu0 0.0
    %1865 = vmatprep.subr.mxu0 0.0
    %1866 = vmatpush1.xpose.msra.mxu0 0.0
    %1867 = vmatprep.subr.mxu0 0.0
    %1868 = vmatpush1.xpose.msra.mxu0 0.0
    %1869 = vmatprep.subr.mxu0 0.0
    %1870 = vmatpush1.xpose.msra.mxu0 0.0
    %1871 = vmatprep.subr.mxu0 0.0
    %1872 = vmatpush1.xpose.msra.mxu0 0.0
    %1873 = vmatprep.subr.mxu0 0.0
    %1874 = vmatpush1.xpose.msra.mxu0 %v1768
    %1875 = vmatprep.subr.mxu0 0.0
    %1876 = vmatpush2.xpose.msra.mxu0 0.0
    %1877 = vmatprep.subr.mxu0 0.0
    %1878 = vmatpush2.xpose.msra.mxu0 0.0
    %1879 = vmatprep.subr.mxu0 0.0
    %1880 = vmatpush2.xpose.msra.mxu0 0.0
    %1881 = vmatprep.subr.mxu0 0.0
    %1882 = vmatpush2.xpose.msra.mxu0 0.0
    %1883 = vmatprep.subr.mxu0 0.0
    %1884 = vmatpush2.xpose.msra.mxu0 0.0
    %1885 = vmatprep.subr.mxu0 0.0
    %1886 = vmatpush2.xpose.msra.mxu0 0.0
    %1887 = vmatprep.subr.mxu0 0.0
    %1888 = vmatpush2.xpose.msra.mxu0 0.0
    %1889 = vmatprep.subr.mxu0 0.0
    %1890 = vmatpush2.xpose.msra.mxu0 0.0
    %1891 = vmatprep.subr.mxu0 0.0
    %1892 = vmatpush2.xpose.msra.mxu0 0.0
    %1893 = vmatprep.subr.mxu0 0.0
    %1894 = vmatpush2.xpose.msra.mxu0 0.0
    %1895 = vmatprep.subr.mxu0 0.0
    %1896 = vmatpush2.xpose.msra.mxu0 0.0
    %1897 = vmatprep.subr.mxu0 0.0
    %1898 = vmatpush2.xpose.msra.mxu0 0.0
    %1899 = vmatprep.subr.mxu0 0.0
    %1900 = vmatpush2.xpose.msra.mxu0 0.0
    %1901 = vmatprep.subr.mxu0 0.0
    %1902 = vmatpush2.xpose.msra.mxu0 0.0
    %1903 = vmatprep.subr.mxu0 0.0
    %1904 = vmatpush2.xpose.msra.mxu0 0.0
    %1905 = vmatprep.subr.mxu0 0.0
    %1906 = vmatpush2.xpose.msra.mxu0 0.0
    %1907 = vmatprep.mubr.f32.mxu0 0.0
    %1908 = vmatmul.mubr.f32.gmra.mxu0 %v1841
    %v1909 = vpop.f32.mrf.mxu0
    %v1910 = vadd.f32 %v274, %v1909
    %v1911 = vpop.f32.mrf.mxu0
    %1912 = vdwg.mxu0
    %v1914 = vsel %vm557, %v1691, 0
    %1916 = vmatprep.subr.mxu0 0.0
    %1917 = vmatpush1.xpose.msra.mxu0 0.0
    %1918 = vmatprep.subr.mxu0 0.0
    %1919 = vmatpush1.xpose.msra.mxu0 0.0
    %1920 = vmatprep.subr.mxu0 0.0
    %1921 = vmatpush1.xpose.msra.mxu0 0.0
    %1922 = vmatprep.subr.mxu0 0.0
    %1923 = vmatpush1.xpose.msra.mxu0 0.0
    %1924 = vmatprep.subr.mxu0 0.0
    %1925 = vmatpush1.xpose.msra.mxu0 0.0
    %1926 = vmatprep.subr.mxu0 0.0
    %1927 = vmatpush1.xpose.msra.mxu0 0.0
    %1928 = vmatprep.subr.mxu0 0.0
    %1929 = vmatpush1.xpose.msra.mxu0 0.0
    %1930 = vmatprep.subr.mxu0 0.0
    %1931 = vmatpush1.xpose.msra.mxu0 0.0
    %1932 = vmatprep.subr.mxu0 0.0
    %1933 = vmatpush1.xpose.msra.mxu0 0.0
    %1934 = vmatprep.subr.mxu0 0.0
    %1935 = vmatpush1.xpose.msra.mxu0 0.0
    %1936 = vmatprep.subr.mxu0 0.0
    %1937 = vmatpush1.xpose.msra.mxu0 0.0
    %1938 = vmatprep.subr.mxu0 0.0
    %1939 = vmatpush1.xpose.msra.mxu0 0.0
    %1940 = vmatprep.subr.mxu0 0.0
    %1941 = vmatpush1.xpose.msra.mxu0 0.0
    %1942 = vmatprep.subr.mxu0 0.0
    %1943 = vmatpush1.xpose.msra.mxu0 0.0
    %1944 = vmatprep.subr.mxu0 0.0
    %1945 = vmatpush1.xpose.msra.mxu0 0.0
    %1946 = vmatprep.subr.mxu0 0.0
    %1947 = vmatpush1.xpose.msra.mxu0 %v1768
    %1948 = vmatprep.subr.mxu0 0.0
    %1949 = vmatpush2.xpose.msra.mxu0 0.0
    %1950 = vmatprep.subr.mxu0 0.0
    %1951 = vmatpush2.xpose.msra.mxu0 0.0
    %1952 = vmatprep.subr.mxu0 0.0
    %1953 = vmatpush2.xpose.msra.mxu0 0.0
    %1954 = vmatprep.subr.mxu0 0.0
    %1955 = vmatpush2.xpose.msra.mxu0 0.0
    %1956 = vmatprep.subr.mxu0 0.0
    %1957 = vmatpush2.xpose.msra.mxu0 0.0
    %1958 = vmatprep.subr.mxu0 0.0
    %1959 = vmatpush2.xpose.msra.mxu0 0.0
    %1960 = vmatprep.subr.mxu0 0.0
    %1961 = vmatpush2.xpose.msra.mxu0 0.0
    %1962 = vmatprep.subr.mxu0 0.0
    %1963 = vmatpush2.xpose.msra.mxu0 0.0
    %1964 = vmatprep.subr.mxu0 0.0
    %1965 = vmatpush2.xpose.msra.mxu0 0.0
    %1966 = vmatprep.subr.mxu0 0.0
    %1967 = vmatpush2.xpose.msra.mxu0 0.0
    %1968 = vmatprep.subr.mxu0 0.0
    %1969 = vmatpush2.xpose.msra.mxu0 0.0
    %1970 = vmatprep.subr.mxu0 0.0
    %1971 = vmatpush2.xpose.msra.mxu0 0.0
    %1972 = vmatprep.subr.mxu0 0.0
    %1973 = vmatpush2.xpose.msra.mxu0 0.0
    %1974 = vmatprep.subr.mxu0 0.0
    %1975 = vmatpush2.xpose.msra.mxu0 0.0
    %1976 = vmatprep.subr.mxu0 0.0
    %1977 = vmatpush2.xpose.msra.mxu0 0.0
    %1978 = vmatprep.subr.mxu0 0.0
    %1979 = vmatpush2.xpose.msra.mxu0 0.0
    %1980 = vmatprep.mubr.f32.mxu0 0.0
    %1981 = vmatmul.mubr.f32.gmra.mxu0 %v1914
    %v1982 = vpop.f32.mrf.mxu0
    %v1983 = vadd.f32 %v275, %v1982
    %v1984 = vpop.f32.mrf.mxu0
    %1985 = vdwg.mxu0
    %v1987 = vsel %vm557, %v1761, 0
    %1989 = vmatprep.subr.mxu0 0.0
    %1990 = vmatpush1.xpose.msra.mxu0 0.0
    %1991 = vmatprep.subr.mxu0 0.0
    %1992 = vmatpush1.xpose.msra.mxu0 0.0
    %1993 = vmatprep.subr.mxu0 0.0
    %1994 = vmatpush1.xpose.msra.mxu0 0.0
    %1995 = vmatprep.subr.mxu0 0.0
    %1996 = vmatpush1.xpose.msra.mxu0 0.0
    %1997 = vmatprep.subr.mxu0 0.0
    %1998 = vmatpush1.xpose.msra.mxu0 0.0
    %1999 = vmatprep.subr.mxu0 0.0
    %2000 = vmatpush1.xpose.msra.mxu0 0.0
    %2001 = vmatprep.subr.mxu0 0.0
    %2002 = vmatpush1.xpose.msra.mxu0 0.0
    %2003 = vmatprep.subr.mxu0 0.0
    %2004 = vmatpush1.xpose.msra.mxu0 0.0
    %2005 = vmatprep.subr.mxu0 0.0
    %2006 = vmatpush1.xpose.msra.mxu0 0.0
    %2007 = vmatprep.subr.mxu0 0.0
    %2008 = vmatpush1.xpose.msra.mxu0 0.0
    %2009 = vmatprep.subr.mxu0 0.0
    %2010 = vmatpush1.xpose.msra.mxu0 0.0
    %2011 = vmatprep.subr.mxu0 0.0
    %2012 = vmatpush1.xpose.msra.mxu0 0.0
    %2013 = vmatprep.subr.mxu0 0.0
    %2014 = vmatpush1.xpose.msra.mxu0 0.0
    %2015 = vmatprep.subr.mxu0 0.0
    %2016 = vmatpush1.xpose.msra.mxu0 0.0
    %2017 = vmatprep.subr.mxu0 0.0
    %2018 = vmatpush1.xpose.msra.mxu0 0.0
    %2019 = vmatprep.subr.mxu0 0.0
    %2020 = vmatpush1.xpose.msra.mxu0 %v1768
    %2021 = vmatprep.subr.mxu0 0.0
    %2022 = vmatpush2.xpose.msra.mxu0 0.0
    %2023 = vmatprep.subr.mxu0 0.0
    %2024 = vmatpush2.xpose.msra.mxu0 0.0
    %2025 = vmatprep.subr.mxu0 0.0
    %2026 = vmatpush2.xpose.msra.mxu0 0.0
    %2027 = vmatprep.subr.mxu0 0.0
    %2028 = vmatpush2.xpose.msra.mxu0 0.0
    %2029 = vmatprep.subr.mxu0 0.0
    %2030 = vmatpush2.xpose.msra.mxu0 0.0
    %2031 = vmatprep.subr.mxu0 0.0
    %2032 = vmatpush2.xpose.msra.mxu0 0.0
    %2033 = vmatprep.subr.mxu0 0.0
    %2034 = vmatpush2.xpose.msra.mxu0 0.0
    %2035 = vmatprep.subr.mxu0 0.0
    %2036 = vmatpush2.xpose.msra.mxu0 0.0
    %2037 = vmatprep.subr.mxu0 0.0
    %2038 = vmatpush2.xpose.msra.mxu0 0.0
    %2039 = vmatprep.subr.mxu0 0.0
    %2040 = vmatpush2.xpose.msra.mxu0 0.0
    %2041 = vmatprep.subr.mxu0 0.0
    %2042 = vmatpush2.xpose.msra.mxu0 0.0
    %2043 = vmatprep.subr.mxu0 0.0
    %2044 = vmatpush2.xpose.msra.mxu0 0.0
    %2045 = vmatprep.subr.mxu0 0.0
    %2046 = vmatpush2.xpose.msra.mxu0 0.0
    %2047 = vmatprep.subr.mxu0 0.0
    %2048 = vmatpush2.xpose.msra.mxu0 0.0
    %2049 = vmatprep.subr.mxu0 0.0
    %2050 = vmatpush2.xpose.msra.mxu0 0.0
    %2051 = vmatprep.subr.mxu0 0.0
    %2052 = vmatpush2.xpose.msra.mxu0 0.0
    %2053 = vmatprep.mubr.f32.mxu0 0.0
    %2054 = vmatmul.mubr.f32.gmra.mxu0 %v1987
    %v2055 = vpop.f32.mrf.mxu0
    %v2056 = vadd.f32 %v276, %v2055
    %v2057 = vpop.f32.mrf.mxu0
    %2058 = vdwg.mxu0
    %v2059 = vsel %vm557, %v1837, -inf
    %2060 = vmax.xlane.f32.xlu0 %v2059
    %v2061 = vpop.xlane.xlu0 %2060
    %v2062 = vsel %vm557, %v1910, -inf
    %2063 = vmax.xlane.f32.xlu0 %v2062
    %v2064 = vpop.xlane.xlu0 %2063
    %v2065 = vsel %vm557, %v1983, -inf
    %2066 = vmax.xlane.f32.xlu0 %v2065
    %v2067 = vpop.xlane.xlu0 %2066
    %v2068 = vsel %vm557, %v2056, -inf
    %2069 = vmax.xlane.f32.xlu0 %v2068
    %v2070 = vpop.xlane.xlu0 %2069
    %v2071 = vsub.f32 %v1837, %v2061
    %v2072 = vsub.f32 %v1910, %v2064
    %v2073 = vsub.f32 %v1983, %v2067
    %v2074 = vsub.f32 %v2056, %v2070
    %v2075 = vmul.f32 %v2071, 1.442695
    %v2076 = vpow.pop %v2075
    %v2077 = vmul.f32 %v2072, 1.442695
    %v2078 = vpow.pop %v2077
    %v2079 = vmul.f32 %v2073, 1.442695
    %v2080 = vpow.pop %v2079
    %v2081 = vmul.f32 %v2074, 1.442695
    %v2082 = vpow.pop %v2081
    %v2083 = vsel %vm557, %v2076, 0.0
    %2084 = vadd.xlane.f32.xlu0 %v2083
    %v2085 = vpop.xlane.xlu0 %2084
    %v2086 = vsel %vm557, %v2078, 0.0
    %2087 = vadd.xlane.f32.xlu0 %v2086
    %v2088 = vpop.xlane.xlu0 %2087
    %v2089 = vsel %vm557, %v2080, 0.0
    %2090 = vadd.xlane.f32.xlu0 %v2089
    %v2091 = vpop.xlane.xlu0 %2090
    %v2092 = vsel %vm557, %v2082, 0.0
    %2093 = vadd.xlane.f32.xlu0 %v2092
    %v2094 = vpop.xlane.xlu0 %2093
    %v2095 = vrcp.pop %v2085
    %v2096 = vmul.f32 %v2076, %v2095
    %v2097 = vrcp.pop %v2088
    %v2098 = vmul.f32 %v2078, %v2097
    %v2099 = vrcp.pop %v2091
    %v2100 = vmul.f32 %v2080, %v2099
    %v2101 = vrcp.pop %v2094
    %v2102 = vmul.f32 %v2082, %v2101
    %v2104 = vsel %vm557, %v2096, 0
    %2106 = vmatprep.subr.mxu0 0.0
    %2107 = vmatpush1.msra.mxu0 0.0
    %2108 = vmatprep.subr.mxu0 0.0
    %2109 = vmatpush1.msra.mxu0 0.0
    %2110 = vmatprep.subr.mxu0 0.0
    %2111 = vmatpush1.msra.mxu0 0.0
    %2112 = vmatprep.subr.mxu0 0.0
    %2113 = vmatpush1.msra.mxu0 0.0
    %2114 = vmatprep.subr.mxu0 0.0
    %2115 = vmatpush1.msra.mxu0 0.0
    %2116 = vmatprep.subr.mxu0 0.0
    %2117 = vmatpush1.msra.mxu0 0.0
    %2118 = vmatprep.subr.mxu0 0.0
    %2119 = vmatpush1.msra.mxu0 0.0
    %2120 = vmatprep.subr.mxu0 0.0
    %2121 = vmatpush1.msra.mxu0 0.0
    %2122 = vmatprep.subr.mxu0 0.0
    %2123 = vmatpush1.msra.mxu0 0.0
    %2124 = vmatprep.subr.mxu0 0.0
    %2125 = vmatpush1.msra.mxu0 0.0
    %2126 = vmatprep.subr.mxu0 0.0
    %2127 = vmatpush1.msra.mxu0 0.0
    %2128 = vmatprep.subr.mxu0 0.0
    %2129 = vmatpush1.msra.mxu0 0.0
    %2130 = vmatprep.subr.mxu0 0.0
    %2131 = vmatpush1.msra.mxu0 0.0
    %2132 = vmatprep.subr.mxu0 0.0
    %2133 = vmatpush1.msra.mxu0 0.0
    %2134 = vmatprep.subr.mxu0 0.0
    %2135 = vmatpush1.msra.mxu0 0.0
    %2136 = vmatprep.subr.mxu0 0.0
    %2137 = vmatpush1.msra.mxu0 %v250
    %2138 = vmatprep.subr.mxu0 0.0
    %2139 = vmatpush2.msra.mxu0 0.0
    %2140 = vmatprep.subr.mxu0 0.0
    %2141 = vmatpush2.msra.mxu0 0.0
    %2142 = vmatprep.subr.mxu0 0.0
    %2143 = vmatpush2.msra.mxu0 0.0
    %2144 = vmatprep.subr.mxu0 0.0
    %2145 = vmatpush2.msra.mxu0 0.0
    %2146 = vmatprep.subr.mxu0 0.0
    %2147 = vmatpush2.msra.mxu0 0.0
    %2148 = vmatprep.subr.mxu0 0.0
    %2149 = vmatpush2.msra.mxu0 0.0
    %2150 = vmatprep.subr.mxu0 0.0
    %2151 = vmatpush2.msra.mxu0 0.0
    %2152 = vmatprep.subr.mxu0 0.0
    %2153 = vmatpush2.msra.mxu0 0.0
    %2154 = vmatprep.subr.mxu0 0.0
    %2155 = vmatpush2.msra.mxu0 0.0
    %2156 = vmatprep.subr.mxu0 0.0
    %2157 = vmatpush2.msra.mxu0 0.0
    %2158 = vmatprep.subr.mxu0 0.0
    %2159 = vmatpush2.msra.mxu0 0.0
    %2160 = vmatprep.subr.mxu0 0.0
    %2161 = vmatpush2.msra.mxu0 0.0
    %2162 = vmatprep.subr.mxu0 0.0
    %2163 = vmatpush2.msra.mxu0 0.0
    %2164 = vmatprep.subr.mxu0 0.0
    %2165 = vmatpush2.msra.mxu0 0.0
    %2166 = vmatprep.subr.mxu0 0.0
    %2167 = vmatpush2.msra.mxu0 0.0
    %2168 = vmatprep.subr.mxu0 0.0
    %2169 = vmatpush2.msra.mxu0 0.0
    %2170 = vmatprep.mubr.f32.mxu0 0.0
    %2171 = vmatmul.mubr.f32.gmra.mxu0 %v2104
    %v2172 = vpop.f32.mrf.mxu0
    %v2173 = vadd.f32 0.0, %v2172
    %v2174 = vpop.f32.mrf.mxu0
    %2175 = vdwg.mxu0
    %v2177 = vsel %vm557, %v2098, 0
    %2179 = vmatprep.subr.mxu0 0.0
    %2180 = vmatpush1.msra.mxu0 0.0
    %2181 = vmatprep.subr.mxu0 0.0
    %2182 = vmatpush1.msra.mxu0 0.0
    %2183 = vmatprep.subr.mxu0 0.0
    %2184 = vmatpush1.msra.mxu0 0.0
    %2185 = vmatprep.subr.mxu0 0.0
    %2186 = vmatpush1.msra.mxu0 0.0
    %2187 = vmatprep.subr.mxu0 0.0
    %2188 = vmatpush1.msra.mxu0 0.0
    %2189 = vmatprep.subr.mxu0 0.0
    %2190 = vmatpush1.msra.mxu0 0.0
    %2191 = vmatprep.subr.mxu0 0.0
    %2192 = vmatpush1.msra.mxu0 0.0
    %2193 = vmatprep.subr.mxu0 0.0
    %2194 = vmatpush1.msra.mxu0 0.0
    %2195 = vmatprep.subr.mxu0 0.0
    %2196 = vmatpush1.msra.mxu0 0.0
    %2197 = vmatprep.subr.mxu0 0.0
    %2198 = vmatpush1.msra.mxu0 0.0
    %2199 = vmatprep.subr.mxu0 0.0
    %2200 = vmatpush1.msra.mxu0 0.0
    %2201 = vmatprep.subr.mxu0 0.0
    %2202 = vmatpush1.msra.mxu0 0.0
    %2203 = vmatprep.subr.mxu0 0.0
    %2204 = vmatpush1.msra.mxu0 0.0
    %2205 = vmatprep.subr.mxu0 0.0
    %2206 = vmatpush1.msra.mxu0 0.0
    %2207 = vmatprep.subr.mxu0 0.0
    %2208 = vmatpush1.msra.mxu0 0.0
    %2209 = vmatprep.subr.mxu0 0.0
    %2210 = vmatpush1.msra.mxu0 %v250
    %2211 = vmatprep.subr.mxu0 0.0
    %2212 = vmatpush2.msra.mxu0 0.0
    %2213 = vmatprep.subr.mxu0 0.0
    %2214 = vmatpush2.msra.mxu0 0.0
    %2215 = vmatprep.subr.mxu0 0.0
    %2216 = vmatpush2.msra.mxu0 0.0
    %2217 = vmatprep.subr.mxu0 0.0
    %2218 = vmatpush2.msra.mxu0 0.0
    %2219 = vmatprep.subr.mxu0 0.0
    %2220 = vmatpush2.msra.mxu0 0.0
    %2221 = vmatprep.subr.mxu0 0.0
    %2222 = vmatpush2.msra.mxu0 0.0
    %2223 = vmatprep.subr.mxu0 0.0
    %2224 = vmatpush2.msra.mxu0 0.0
    %2225 = vmatprep.subr.mxu0 0.0
    %2226 = vmatpush2.msra.mxu0 0.0
    %2227 = vmatprep.subr.mxu0 0.0
    %2228 = vmatpush2.msra.mxu0 0.0
    %2229 = vmatprep.subr.mxu0 0.0
    %2230 = vmatpush2.msra.mxu0 0.0
    %2231 = vmatprep.subr.mxu0 0.0
    %2232 = vmatpush2.msra.mxu0 0.0
    %2233 = vmatprep.subr.mxu0 0.0
    %2234 = vmatpush2.msra.mxu0 0.0
    %2235 = vmatprep.subr.mxu0 0.0
    %2236 = vmatpush2.msra.mxu0 0.0
    %2237 = vmatprep.subr.mxu0 0.0
    %2238 = vmatpush2.msra.mxu0 0.0
    %2239 = vmatprep.subr.mxu0 0.0
    %2240 = vmatpush2.msra.mxu0 0.0
    %2241 = vmatprep.subr.mxu0 0.0
    %2242 = vmatpush2.msra.mxu0 0.0
    %2243 = vmatprep.mubr.f32.mxu0 0.0
    %2244 = vmatmul.mubr.f32.gmra.mxu0 %v2177
    %v2245 = vpop.f32.mrf.mxu0
    %v2246 = vadd.f32 0.0, %v2245
    %v2247 = vpop.f32.mrf.mxu0
    %2248 = vdwg.mxu0
    %v2250 = vsel %vm557, %v2100, 0
    %2252 = vmatprep.subr.mxu0 0.0
    %2253 = vmatpush1.msra.mxu0 0.0
    %2254 = vmatprep.subr.mxu0 0.0
    %2255 = vmatpush1.msra.mxu0 0.0
    %2256 = vmatprep.subr.mxu0 0.0
    %2257 = vmatpush1.msra.mxu0 0.0
    %2258 = vmatprep.subr.mxu0 0.0
    %2259 = vmatpush1.msra.mxu0 0.0
    %2260 = vmatprep.subr.mxu0 0.0
    %2261 = vmatpush1.msra.mxu0 0.0
    %2262 = vmatprep.subr.mxu0 0.0
    %2263 = vmatpush1.msra.mxu0 0.0
    %2264 = vmatprep.subr.mxu0 0.0
    %2265 = vmatpush1.msra.mxu0 0.0
    %2266 = vmatprep.subr.mxu0 0.0
    %2267 = vmatpush1.msra.mxu0 0.0
    %2268 = vmatprep.subr.mxu0 0.0
    %2269 = vmatpush1.msra.mxu0 0.0
    %2270 = vmatprep.subr.mxu0 0.0
    %2271 = vmatpush1.msra.mxu0 0.0
    %2272 = vmatprep.subr.mxu0 0.0
    %2273 = vmatpush1.msra.mxu0 0.0
    %2274 = vmatprep.subr.mxu0 0.0
    %2275 = vmatpush1.msra.mxu0 0.0
    %2276 = vmatprep.subr.mxu0 0.0
    %2277 = vmatpush1.msra.mxu0 0.0
    %2278 = vmatprep.subr.mxu0 0.0
    %2279 = vmatpush1.msra.mxu0 0.0
    %2280 = vmatprep.subr.mxu0 0.0
    %2281 = vmatpush1.msra.mxu0 0.0
    %2282 = vmatprep.subr.mxu0 0.0
    %2283 = vmatpush1.msra.mxu0 %v250
    %2284 = vmatprep.subr.mxu0 0.0
    %2285 = vmatpush2.msra.mxu0 0.0
    %2286 = vmatprep.subr.mxu0 0.0
    %2287 = vmatpush2.msra.mxu0 0.0
    %2288 = vmatprep.subr.mxu0 0.0
    %2289 = vmatpush2.msra.mxu0 0.0
    %2290 = vmatprep.subr.mxu0 0.0
    %2291 = vmatpush2.msra.mxu0 0.0
    %2292 = vmatprep.subr.mxu0 0.0
    %2293 = vmatpush2.msra.mxu0 0.0
    %2294 = vmatprep.subr.mxu0 0.0
    %2295 = vmatpush2.msra.mxu0 0.0
    %2296 = vmatprep.subr.mxu0 0.0
    %2297 = vmatpush2.msra.mxu0 0.0
    %2298 = vmatprep.subr.mxu0 0.0
    %2299 = vmatpush2.msra.mxu0 0.0
    %2300 = vmatprep.subr.mxu0 0.0
    %2301 = vmatpush2.msra.mxu0 0.0
    %2302 = vmatprep.subr.mxu0 0.0
    %2303 = vmatpush2.msra.mxu0 0.0
    %2304 = vmatprep.subr.mxu0 0.0
    %2305 = vmatpush2.msra.mxu0 0.0
    %2306 = vmatprep.subr.mxu0 0.0
    %2307 = vmatpush2.msra.mxu0 0.0
    %2308 = vmatprep.subr.mxu0 0.0
    %2309 = vmatpush2.msra.mxu0 0.0
    %2310 = vmatprep.subr.mxu0 0.0
    %2311 = vmatpush2.msra.mxu0 0.0
    %2312 = vmatprep.subr.mxu0 0.0
    %2313 = vmatpush2.msra.mxu0 0.0
    %2314 = vmatprep.subr.mxu0 0.0
    %2315 = vmatpush2.msra.mxu0 0.0
    %2316 = vmatprep.mubr.f32.mxu0 0.0
    %2317 = vmatmul.mubr.f32.gmra.mxu0 %v2250
    %v2318 = vpop.f32.mrf.mxu0
    %v2319 = vadd.f32 0.0, %v2318
    %v2320 = vpop.f32.mrf.mxu0
    %2321 = vdwg.mxu0
    %v2323 = vsel %vm557, %v2102, 0
    %2325 = vmatprep.subr.mxu0 0.0
    %2326 = vmatpush1.msra.mxu0 0.0
    %2327 = vmatprep.subr.mxu0 0.0
    %2328 = vmatpush1.msra.mxu0 0.0
    %2329 = vmatprep.subr.mxu0 0.0
    %2330 = vmatpush1.msra.mxu0 0.0
    %2331 = vmatprep.subr.mxu0 0.0
    %2332 = vmatpush1.msra.mxu0 0.0
    %2333 = vmatprep.subr.mxu0 0.0
    %2334 = vmatpush1.msra.mxu0 0.0
    %2335 = vmatprep.subr.mxu0 0.0
    %2336 = vmatpush1.msra.mxu0 0.0
    %2337 = vmatprep.subr.mxu0 0.0
    %2338 = vmatpush1.msra.mxu0 0.0
    %2339 = vmatprep.subr.mxu0 0.0
    %2340 = vmatpush1.msra.mxu0 0.0
    %2341 = vmatprep.subr.mxu0 0.0
    %2342 = vmatpush1.msra.mxu0 0.0
    %2343 = vmatprep.subr.mxu0 0.0
    %2344 = vmatpush1.msra.mxu0 0.0
    %2345 = vmatprep.subr.mxu0 0.0
    %2346 = vmatpush1.msra.mxu0 0.0
    %2347 = vmatprep.subr.mxu0 0.0
    %2348 = vmatpush1.msra.mxu0 0.0
    %2349 = vmatprep.subr.mxu0 0.0
    %2350 = vmatpush1.msra.mxu0 0.0
    %2351 = vmatprep.subr.mxu0 0.0
    %2352 = vmatpush1.msra.mxu0 0.0
    %2353 = vmatprep.subr.mxu0 0.0
    %2354 = vmatpush1.msra.mxu0 0.0
    %2355 = vmatprep.subr.mxu0 0.0
    %2356 = vmatpush1.msra.mxu0 %v250
    %2357 = vmatprep.subr.mxu0 0.0
    %2358 = vmatpush2.msra.mxu0 0.0
    %2359 = vmatprep.subr.mxu0 0.0
    %2360 = vmatpush2.msra.mxu0 0.0
    %2361 = vmatprep.subr.mxu0 0.0
    %2362 = vmatpush2.msra.mxu0 0.0
    %2363 = vmatprep.subr.mxu0 0.0
    %2364 = vmatpush2.msra.mxu0 0.0
    %2365 = vmatprep.subr.mxu0 0.0
    %2366 = vmatpush2.msra.mxu0 0.0
    %2367 = vmatprep.subr.mxu0 0.0
    %2368 = vmatpush2.msra.mxu0 0.0
    %2369 = vmatprep.subr.mxu0 0.0
    %2370 = vmatpush2.msra.mxu0 0.0
    %2371 = vmatprep.subr.mxu0 0.0
    %2372 = vmatpush2.msra.mxu0 0.0
    %2373 = vmatprep.subr.mxu0 0.0
    %2374 = vmatpush2.msra.mxu0 0.0
    %2375 = vmatprep.subr.mxu0 0.0
    %2376 = vmatpush2.msra.mxu0 0.0
    %2377 = vmatprep.subr.mxu0 0.0
    %2378 = vmatpush2.msra.mxu0 0.0
    %2379 = vmatprep.subr.mxu0 0.0
    %2380 = vmatpush2.msra.mxu0 0.0
    %2381 = vmatprep.subr.mxu0 0.0
    %2382 = vmatpush2.msra.mxu0 0.0
    %2383 = vmatprep.subr.mxu0 0.0
    %2384 = vmatpush2.msra.mxu0 0.0
    %2385 = vmatprep.subr.mxu0 0.0
    %2386 = vmatpush2.msra.mxu0 0.0
    %2387 = vmatprep.subr.mxu0 0.0
    %2388 = vmatpush2.msra.mxu0 0.0
    %2389 = vmatprep.mubr.f32.mxu0 0.0
    %2390 = vmatmul.mubr.f32.gmra.mxu0 %v2323
    %v2391 = vpop.f32.mrf.mxu0
    %v2392 = vadd.f32 0.0, %v2391
    %v2393 = vpop.f32.mrf.mxu0
    %2394 = vdwg.mxu0
    %v2396 = vsel %vm557, %v2173, 0
    %2398 = vmatprep.subr.mxu0 0.0
    %2399 = vmatpush1.msra.mxu0 0.0
    %2400 = vmatprep.subr.mxu0 0.0
    %2401 = vmatpush1.msra.mxu0 0.0
    %2402 = vmatprep.subr.mxu0 0.0
    %2403 = vmatpush1.msra.mxu0 0.0
    %2404 = vmatprep.subr.mxu0 0.0
    %2405 = vmatpush1.msra.mxu0 0.0
    %2406 = vmatprep.subr.mxu0 0.0
    %2407 = vmatpush1.msra.mxu0 0.0
    %2408 = vmatprep.subr.mxu0 0.0
    %2409 = vmatpush1.msra.mxu0 0.0
    %2410 = vmatprep.subr.mxu0 0.0
    %2411 = vmatpush1.msra.mxu0 0.0
    %2412 = vmatprep.subr.mxu0 0.0
    %2413 = vmatpush1.msra.mxu0 0.0
    %2414 = vmatprep.subr.mxu0 0.0
    %2415 = vmatpush1.msra.mxu0 0.0
    %2416 = vmatprep.subr.mxu0 0.0
    %2417 = vmatpush1.msra.mxu0 0.0
    %2418 = vmatprep.subr.mxu0 0.0
    %2419 = vmatpush1.msra.mxu0 0.0
    %2420 = vmatprep.subr.mxu0 0.0
    %2421 = vmatpush1.msra.mxu0 0.0
    %2422 = vmatprep.subr.mxu0 0.0
    %2423 = vmatpush1.msra.mxu0 0.0
    %2424 = vmatprep.subr.mxu0 0.0
    %2425 = vmatpush1.msra.mxu0 0.0
    %2426 = vmatprep.subr.mxu0 0.0
    %2427 = vmatpush1.msra.mxu0 0.0
    %2428 = vmatprep.subr.mxu0 0.0
    %2429 = vmatpush1.msra.mxu0 %v269
    %2430 = vmatprep.subr.mxu0 0.0
    %2431 = vmatpush2.msra.mxu0 0.0
    %2432 = vmatprep.subr.mxu0 0.0
    %2433 = vmatpush2.msra.mxu0 0.0
    %2434 = vmatprep.subr.mxu0 0.0
    %2435 = vmatpush2.msra.mxu0 0.0
    %2436 = vmatprep.subr.mxu0 0.0
    %2437 = vmatpush2.msra.mxu0 0.0
    %2438 = vmatprep.subr.mxu0 0.0
    %2439 = vmatpush2.msra.mxu0 0.0
    %2440 = vmatprep.subr.mxu0 0.0
    %2441 = vmatpush2.msra.mxu0 0.0
    %2442 = vmatprep.subr.mxu0 0.0
    %2443 = vmatpush2.msra.mxu0 0.0
    %2444 = vmatprep.subr.mxu0 0.0
    %2445 = vmatpush2.msra.mxu0 0.0
    %2446 = vmatprep.subr.mxu0 0.0
    %2447 = vmatpush2.msra.mxu0 0.0
    %2448 = vmatprep.subr.mxu0 0.0
    %2449 = vmatpush2.msra.mxu0 0.0
    %2450 = vmatprep.subr.mxu0 0.0
    %2451 = vmatpush2.msra.mxu0 0.0
    %2452 = vmatprep.subr.mxu0 0.0
    %2453 = vmatpush2.msra.mxu0 0.0
    %2454 = vmatprep.subr.mxu0 0.0
    %2455 = vmatpush2.msra.mxu0 0.0
    %2456 = vmatprep.subr.mxu0 0.0
    %2457 = vmatpush2.msra.mxu0 0.0
    %2458 = vmatprep.subr.mxu0 0.0
    %2459 = vmatpush2.msra.mxu0 0.0
    %2460 = vmatprep.subr.mxu0 0.0
    %2461 = vmatpush2.msra.mxu0 0.0
    %2462 = vmatprep.mubr.f32.mxu0 0.0
    %2463 = vmatmul.mubr.f32.gmra.mxu0 %v2396
    %v2464 = vpop.f32.mrf.mxu0
    %v2465 = vadd.f32 0.0, %v2464
    %v2466 = vpop.f32.mrf.mxu0
    %2467 = vdwg.mxu0
    %v2469 = vsel %vm557, %v2246, 0
    %2471 = vmatprep.subr.mxu0 0.0
    %2472 = vmatpush1.msra.mxu0 0.0
    %2473 = vmatprep.subr.mxu0 0.0
    %2474 = vmatpush1.msra.mxu0 0.0
    %2475 = vmatprep.subr.mxu0 0.0
    %2476 = vmatpush1.msra.mxu0 0.0
    %2477 = vmatprep.subr.mxu0 0.0
    %2478 = vmatpush1.msra.mxu0 0.0
    %2479 = vmatprep.subr.mxu0 0.0
    %2480 = vmatpush1.msra.mxu0 0.0
    %2481 = vmatprep.subr.mxu0 0.0
    %2482 = vmatpush1.msra.mxu0 0.0
    %2483 = vmatprep.subr.mxu0 0.0
    %2484 = vmatpush1.msra.mxu0 0.0
    %2485 = vmatprep.subr.mxu0 0.0
    %2486 = vmatpush1.msra.mxu0 0.0
    %2487 = vmatprep.subr.mxu0 0.0
    %2488 = vmatpush1.msra.mxu0 0.0
    %2489 = vmatprep.subr.mxu0 0.0
    %2490 = vmatpush1.msra.mxu0 0.0
    %2491 = vmatprep.subr.mxu0 0.0
    %2492 = vmatpush1.msra.mxu0 0.0
    %2493 = vmatprep.subr.mxu0 0.0
    %2494 = vmatpush1.msra.mxu0 0.0
    %2495 = vmatprep.subr.mxu0 0.0
    %2496 = vmatpush1.msra.mxu0 0.0
    %2497 = vmatprep.subr.mxu0 0.0
    %2498 = vmatpush1.msra.mxu0 0.0
    %2499 = vmatprep.subr.mxu0 0.0
    %2500 = vmatpush1.msra.mxu0 0.0
    %2501 = vmatprep.subr.mxu0 0.0
    %2502 = vmatpush1.msra.mxu0 %v270
    %2503 = vmatprep.subr.mxu0 0.0
    %2504 = vmatpush2.msra.mxu0 0.0
    %2505 = vmatprep.subr.mxu0 0.0
    %2506 = vmatpush2.msra.mxu0 0.0
    %2507 = vmatprep.subr.mxu0 0.0
    %2508 = vmatpush2.msra.mxu0 0.0
    %2509 = vmatprep.subr.mxu0 0.0
    %2510 = vmatpush2.msra.mxu0 0.0
    %2511 = vmatprep.subr.mxu0 0.0
    %2512 = vmatpush2.msra.mxu0 0.0
    %2513 = vmatprep.subr.mxu0 0.0
    %2514 = vmatpush2.msra.mxu0 0.0
    %2515 = vmatprep.subr.mxu0 0.0
    %2516 = vmatpush2.msra.mxu0 0.0
    %2517 = vmatprep.subr.mxu0 0.0
    %2518 = vmatpush2.msra.mxu0 0.0
    %2519 = vmatprep.subr.mxu0 0.0
    %2520 = vmatpush2.msra.mxu0 0.0
    %2521 = vmatprep.subr.mxu0 0.0
    %2522 = vmatpush2.msra.mxu0 0.0
    %2523 = vmatprep.subr.mxu0 0.0
    %2524 = vmatpush2.msra.mxu0 0.0
    %2525 = vmatprep.subr.mxu0 0.0
    %2526 = vmatpush2.msra.mxu0 0.0
    %2527 = vmatprep.subr.mxu0 0.0
    %2528 = vmatpush2.msra.mxu0 0.0
    %2529 = vmatprep.subr.mxu0 0.0
    %2530 = vmatpush2.msra.mxu0 0.0
    %2531 = vmatprep.subr.mxu0 0.0
    %2532 = vmatpush2.msra.mxu0 0.0
    %2533 = vmatprep.subr.mxu0 0.0
    %2534 = vmatpush2.msra.mxu0 0.0
    %2535 = vmatprep.mubr.f32.mxu0 0.0
    %2536 = vmatmul.mubr.f32.gmra.mxu0 %v2469
    %v2537 = vpop.f32.mrf.mxu0
    %v2538 = vadd.f32 0.0, %v2537
    %v2539 = vpop.f32.mrf.mxu0
    %2540 = vdwg.mxu0
    %v2542 = vsel %vm557, %v2319, 0
    %2544 = vmatprep.subr.mxu0 0.0
    %2545 = vmatpush1.msra.mxu0 0.0
    %2546 = vmatprep.subr.mxu0 0.0
    %2547 = vmatpush1.msra.mxu0 0.0
    %2548 = vmatprep.subr.mxu0 0.0
    %2549 = vmatpush1.msra.mxu0 0.0
    %2550 = vmatprep.subr.mxu0 0.0
    %2551 = vmatpush1.msra.mxu0 0.0
    %2552 = vmatprep.subr.mxu0 0.0
    %2553 = vmatpush1.msra.mxu0 0.0
    %2554 = vmatprep.subr.mxu0 0.0
    %2555 = vmatpush1.msra.mxu0 0.0
    %2556 = vmatprep.subr.mxu0 0.0
    %2557 = vmatpush1.msra.mxu0 0.0
    %2558 = vmatprep.subr.mxu0 0.0
    %2559 = vmatpush1.msra.mxu0 0.0
    %2560 = vmatprep.subr.mxu0 0.0
    %2561 = vmatpush1.msra.mxu0 0.0
    %2562 = vmatprep.subr.mxu0 0.0
    %2563 = vmatpush1.msra.mxu0 0.0
    %2564 = vmatprep.subr.mxu0 0.0
    %2565 = vmatpush1.msra.mxu0 0.0
    %2566 = vmatprep.subr.mxu0 0.0
    %2567 = vmatpush1.msra.mxu0 0.0
    %2568 = vmatprep.subr.mxu0 0.0
    %2569 = vmatpush1.msra.mxu0 0.0
    %2570 = vmatprep.subr.mxu0 0.0
    %2571 = vmatpush1.msra.mxu0 0.0
    %2572 = vmatprep.subr.mxu0 0.0
    %2573 = vmatpush1.msra.mxu0 0.0
    %2574 = vmatprep.subr.mxu0 0.0
    %2575 = vmatpush1.msra.mxu0 %v271
    %2576 = vmatprep.subr.mxu0 0.0
    %2577 = vmatpush2.msra.mxu0 0.0
    %2578 = vmatprep.subr.mxu0 0.0
    %2579 = vmatpush2.msra.mxu0 0.0
    %2580 = vmatprep.subr.mxu0 0.0
    %2581 = vmatpush2.msra.mxu0 0.0
    %2582 = vmatprep.subr.mxu0 0.0
    %2583 = vmatpush2.msra.mxu0 0.0
    %2584 = vmatprep.subr.mxu0 0.0
    %2585 = vmatpush2.msra.mxu0 0.0
    %2586 = vmatprep.subr.mxu0 0.0
    %2587 = vmatpush2.msra.mxu0 0.0
    %2588 = vmatprep.subr.mxu0 0.0
    %2589 = vmatpush2.msra.mxu0 0.0
    %2590 = vmatprep.subr.mxu0 0.0
    %2591 = vmatpush2.msra.mxu0 0.0
    %2592 = vmatprep.subr.mxu0 0.0
    %2593 = vmatpush2.msra.mxu0 0.0
    %2594 = vmatprep.subr.mxu0 0.0
    %2595 = vmatpush2.msra.mxu0 0.0
    %2596 = vmatprep.subr.mxu0 0.0
    %2597 = vmatpush2.msra.mxu0 0.0
    %2598 = vmatprep.subr.mxu0 0.0
    %2599 = vmatpush2.msra.mxu0 0.0
    %2600 = vmatprep.subr.mxu0 0.0
    %2601 = vmatpush2.msra.mxu0 0.0
    %2602 = vmatprep.subr.mxu0 0.0
    %2603 = vmatpush2.msra.mxu0 0.0
    %2604 = vmatprep.subr.mxu0 0.0
    %2605 = vmatpush2.msra.mxu0 0.0
    %2606 = vmatprep.subr.mxu0 0.0
    %2607 = vmatpush2.msra.mxu0 0.0
    %2608 = vmatprep.mubr.f32.mxu0 0.0
    %2609 = vmatmul.mubr.f32.gmra.mxu0 %v2542
    %v2610 = vpop.f32.mrf.mxu0
    %v2611 = vadd.f32 0.0, %v2610
    %v2612 = vpop.f32.mrf.mxu0
    %2613 = vdwg.mxu0
    %v2615 = vsel %vm557, %v2392, 0
    %2617 = vmatprep.subr.mxu0 0.0
    %2618 = vmatpush1.msra.mxu0 0.0
    %2619 = vmatprep.subr.mxu0 0.0
    %2620 = vmatpush1.msra.mxu0 0.0
    %2621 = vmatprep.subr.mxu0 0.0
    %2622 = vmatpush1.msra.mxu0 0.0
    %2623 = vmatprep.subr.mxu0 0.0
    %2624 = vmatpush1.msra.mxu0 0.0
    %2625 = vmatprep.subr.mxu0 0.0
    %2626 = vmatpush1.msra.mxu0 0.0
    %2627 = vmatprep.subr.mxu0 0.0
    %2628 = vmatpush1.msra.mxu0 0.0
    %2629 = vmatprep.subr.mxu0 0.0
    %2630 = vmatpush1.msra.mxu0 0.0
    %2631 = vmatprep.subr.mxu0 0.0
    %2632 = vmatpush1.msra.mxu0 0.0
    %2633 = vmatprep.subr.mxu0 0.0
    %2634 = vmatpush1.msra.mxu0 0.0
    %2635 = vmatprep.subr.mxu0 0.0
    %2636 = vmatpush1.msra.mxu0 0.0
    %2637 = vmatprep.subr.mxu0 0.0
    %2638 = vmatpush1.msra.mxu0 0.0
    %2639 = vmatprep.subr.mxu0 0.0
    %2640 = vmatpush1.msra.mxu0 0.0
    %2641 = vmatprep.subr.mxu0 0.0
    %2642 = vmatpush1.msra.mxu0 0.0
    %2643 = vmatprep.subr.mxu0 0.0
    %2644 = vmatpush1.msra.mxu0 0.0
    %2645 = vmatprep.subr.mxu0 0.0
    %2646 = vmatpush1.msra.mxu0 0.0
    %2647 = vmatprep.subr.mxu0 0.0
    %2648 = vmatpush1.msra.mxu0 %v272
    %2649 = vmatprep.subr.mxu0 0.0
    %2650 = vmatpush2.msra.mxu0 0.0
    %2651 = vmatprep.subr.mxu0 0.0
    %2652 = vmatpush2.msra.mxu0 0.0
    %2653 = vmatprep.subr.mxu0 0.0
    %2654 = vmatpush2.msra.mxu0 0.0
    %2655 = vmatprep.subr.mxu0 0.0
    %2656 = vmatpush2.msra.mxu0 0.0
    %2657 = vmatprep.subr.mxu0 0.0
    %2658 = vmatpush2.msra.mxu0 0.0
    %2659 = vmatprep.subr.mxu0 0.0
    %2660 = vmatpush2.msra.mxu0 0.0
    %2661 = vmatprep.subr.mxu0 0.0
    %2662 = vmatpush2.msra.mxu0 0.0
    %2663 = vmatprep.subr.mxu0 0.0
    %2664 = vmatpush2.msra.mxu0 0.0
    %2665 = vmatprep.subr.mxu0 0.0
    %2666 = vmatpush2.msra.mxu0 0.0
    %2667 = vmatprep.subr.mxu0 0.0
    %2668 = vmatpush2.msra.mxu0 0.0
    %2669 = vmatprep.subr.mxu0 0.0
    %2670 = vmatpush2.msra.mxu0 0.0
    %2671 = vmatprep.subr.mxu0 0.0
    %2672 = vmatpush2.msra.mxu0 0.0
    %2673 = vmatprep.subr.mxu0 0.0
    %2674 = vmatpush2.msra.mxu0 0.0
    %2675 = vmatprep.subr.mxu0 0.0
    %2676 = vmatpush2.msra.mxu0 0.0
    %2677 = vmatprep.subr.mxu0 0.0
    %2678 = vmatpush2.msra.mxu0 0.0
    %2679 = vmatprep.subr.mxu0 0.0
    %2680 = vmatpush2.msra.mxu0 0.0
    %2681 = vmatprep.mubr.f32.mxu0 0.0
    %2682 = vmatmul.mubr.f32.gmra.mxu0 %v2615
    %v2683 = vpop.f32.mrf.mxu0
    %v2684 = vadd.f32 0.0, %v2683
    %v2685 = vpop.f32.mrf.mxu0
    %2686 = vdwg.mxu0
    %v2687 = vadd.f32 %v2465, %v2538
    %v2688 = vadd.f32 %v2687, %v2611
    %v2689 = vadd.f32 %v2688, %v2684
    %v2690 = vadd.f32 %v45, %v1483
    %v2691 = vadd.f32 %v46, %v2689
    %v2692 = vld [vmem:[%s1 + $0x2] sm:$0x1]
    %v2693 = vlaneseq
    %v2694 = vshrl.u32 %v2693, 7
    %v2695 = vsub.s32 0, %v2694
    %v2696 = vrot.slane %v2692, %v2695
    %v2697 = vadd.f32 %v2690, %v2696
    %v2698 = vadd.f32 %v2691, %v2696
    %v2699 = vld [vmem:[%s1 + $0x3] sm:$0x1]
    %v2700 = vld [vmem:[%s1 + $0x4] sm:$0x1]
    %v2701 = vsel %vm49, %v2697, 0.0
    %2702 = vadd.xlane.f32.xlu0 %v2701
    %v2703 = vpop.xlane.xlu0 %2702
    %v2704 = vsel %vm49, %v2698, 0.0
    %2705 = vadd.xlane.f32.xlu0 %v2704
    %v2706 = vpop.xlane.xlu0 %2705
    %v2707 = vmul.f32 %v2703, %v56
    %v2708 = vmul.f32 %v2706, %v56
    %v2709 = vsub.f32 %v2697, %v2707
    %v2710 = vsub.f32 %v2698, %v2708
    %v2711 = vmul.f32 %v2709, %v2709
    %v2712 = vmul.f32 %v2710, %v2710
    %v2713 = vsel %vm49, %v2711, 0.0
    %2714 = vadd.xlane.f32.xlu0 %v2713
    %v2715 = vpop.xlane.xlu0 %2714
    %v2716 = vsel %vm49, %v2712, 0.0
    %2717 = vadd.xlane.f32.xlu0 %v2716
    %v2718 = vpop.xlane.xlu0 %2717
    %v2719 = vmul.f32 %v2715, %v56
    %v2720 = vmul.f32 %v2718, %v56
    %v2721 = vadd.f32 %v2719, 1e-05
    %v2722 = vadd.f32 %v2720, 1e-05
    %v2723 = vrsqrt.pop %v2721
    %v2724 = vrsqrt.pop %v2722
    %v2725 = vmul.f32 %v2709, %v2723
    %v2726 = vmul.f32 %v2710, %v2724
    %v2727 = vlaneseq
    %v2728 = vshrl.u32 %v2727, 7
    %v2729 = vsub.s32 0, %v2728
    %v2730 = vrot.slane %v2699, %v2729
    %v2731 = vmul.f32 %v2725, %v2730
    %v2732 = vmul.f32 %v2726, %v2730
    %v2733 = vlaneseq
    %v2734 = vshrl.u32 %v2733, 7
    %v2735 = vsub.s32 0, %v2734
    %v2736 = vrot.slane %v2700, %v2735
    %v2737 = vadd.f32 %v2731, %v2736
    %v2738 = vadd.f32 %v2732, %v2736
    %v2739 = vld [vmem:[%s7] sm:$0xff]
    %v2740 = vld [vmem:[%s7 + $0x8] sm:$0xff]
    %v2741 = vld [vmem:[%s7 + $0x10] sm:$0xff]
    %v2742 = vld [vmem:[%s7 + $0x18] sm:$0xff]
    %v2743 = vld [vmem:[%s7 + $0x20] sm:$0xff]
    %v2744 = vld [vmem:[%s7 + $0x28] sm:$0xff]
    %v2745 = vld [vmem:[%s7 + $0x30] sm:$0xff]
    %v2746 = vld [vmem:[%s7 + $0x38] sm:$0xff]
    %v2747 = vld [vmem:[%s8] sm:$0x3]
    %v2749 = vlaneseq
    %v2750 = vshrl.u32 %v2749, 7
    %v2751 = vsub.s32 0, %v2750
    %v2752 = vrot.slane %v2747, %v2751
    %v2753 = vlaneseq
    %v2754 = vshrl.u32 %v2753, 7
    %v2755 = vsub.s32 1, %v2754
    %v2756 = vrot.slane %v2747, %v2755
    %v2760 = vsel %vm49, %v2737, 0
    %v2763 = vsel %vm49, %v2738, 0
    %2765 = vmatprep.subr.mxu0 0.0
    %2766 = vmatpush1.msra.mxu0 0.0
    %2767 = vmatprep.subr.mxu0 0.0
    %2768 = vmatpush1.msra.mxu0 0.0
    %2769 = vmatprep.subr.mxu0 0.0
    %2770 = vmatpush1.msra.mxu0 0.0
    %2771 = vmatprep.subr.mxu0 0.0
    %2772 = vmatpush1.msra.mxu0 0.0
    %2773 = vmatprep.subr.mxu0 0.0
    %2774 = vmatpush1.msra.mxu0 0.0
    %2775 = vmatprep.subr.mxu0 0.0
    %2776 = vmatpush1.msra.mxu0 0.0
    %2777 = vmatprep.subr.mxu0 0.0
    %2778 = vmatpush1.msra.mxu0 0.0
    %2779 = vmatprep.subr.mxu0 0.0
    %2780 = vmatpush1.msra.mxu0 0.0
    %2781 = vmatprep.subr.mxu0 0.0
    %2782 = vmatpush1.msra.mxu0 0.0
    %2783 = vmatprep.subr.mxu0 0.0
    %2784 = vmatpush1.msra.mxu0 0.0
    %2785 = vmatprep.subr.mxu0 0.0
    %2786 = vmatpush1.msra.mxu0 0.0
    %2787 = vmatprep.subr.mxu0 0.0
    %2788 = vmatpush1.msra.mxu0 0.0
    %2789 = vmatprep.subr.mxu0 %v2746
    %2790 = vmatpush1.msra.mxu0 %v2745
    %2791 = vmatprep.subr.mxu0 %v2744
    %2792 = vmatpush1.msra.mxu0 %v2743
    %2793 = vmatprep.subr.mxu0 %v2742
    %2794 = vmatpush1.msra.mxu0 %v2741
    %2795 = vmatprep.subr.mxu0 %v2740
    %2796 = vmatpush1.msra.mxu0 %v2739
    %2797 = vmatprep.subr.mxu0 0.0
    %2798 = vmatpush2.msra.mxu0 0.0
    %2799 = vmatprep.subr.mxu0 0.0
    %2800 = vmatpush2.msra.mxu0 0.0
    %2801 = vmatprep.subr.mxu0 0.0
    %2802 = vmatpush2.msra.mxu0 0.0
    %2803 = vmatprep.subr.mxu0 0.0
    %2804 = vmatpush2.msra.mxu0 0.0
    %2805 = vmatprep.subr.mxu0 0.0
    %2806 = vmatpush2.msra.mxu0 0.0
    %2807 = vmatprep.subr.mxu0 0.0
    %2808 = vmatpush2.msra.mxu0 0.0
    %2809 = vmatprep.subr.mxu0 0.0
    %2810 = vmatpush2.msra.mxu0 0.0
    %2811 = vmatprep.subr.mxu0 0.0
    %2812 = vmatpush2.msra.mxu0 0.0
    %2813 = vmatprep.subr.mxu0 0.0
    %2814 = vmatpush2.msra.mxu0 0.0
    %2815 = vmatprep.subr.mxu0 0.0
    %2816 = vmatpush2.msra.mxu0 0.0
    %2817 = vmatprep.subr.mxu0 0.0
    %2818 = vmatpush2.msra.mxu0 0.0
    %2819 = vmatprep.subr.mxu0 0.0
    %2820 = vmatpush2.msra.mxu0 0.0
    %2821 = vmatprep.subr.mxu0 0.0
    %2822 = vmatpush2.msra.mxu0 0.0
    %2823 = vmatprep.subr.mxu0 0.0
    %2824 = vmatpush2.msra.mxu0 0.0
    %2825 = vmatprep.subr.mxu0 0.0
    %2826 = vmatpush2.msra.mxu0 0.0
    %2827 = vmatprep.subr.mxu0 0.0
    %2828 = vmatpush2.msra.mxu0 0.0
    %2829 = vmatprep.mubr.f32.mxu0 0.0
    %2830 = vmatmul.mubr.f32.gmra.mxu0 %v2760
    %v2831 = vpop.f32.mrf.mxu0
    %v2832 = vadd.f32 %v2752, %v2831
    %v2833 = vpop.f32.mrf.mxu0
    %v2834 = vadd.f32 %v2756, %v2833
    %2835 = vmatprep.mubr.f32.mxu0 0.0
    %2836 = vmatmul.mubr.f32.gmra.mxu0 %v2763
    %v2837 = vpop.f32.mrf.mxu0
    %v2838 = vadd.f32 %v2752, %v2837
    %v2839 = vpop.f32.mrf.mxu0
    %v2840 = vadd.f32 %v2756, %v2839
    %2841 = vdwg.mxu0
    %v2842 = vmul.f32 %v2834, 0.5
    %v2843 = vmul.f32 %v2840, 0.5
    %v2844 = vmul.f32 %v2834, 0.70710677
    %v2845 = vmul.f32 %v2840, 0.70710677
    %v2846 = vand.u32 2147483647, %v2844
    %v2847 = vand.u32 2147483647, %v2845
    %v2848 = vmul.f32 %v2846, 0.3275911
    %v2849 = vmul.f32 %v2847, 0.3275911
    %v2850 = vadd.f32 %v2848, 1.0
    %v2851 = vadd.f32 %v2849, 1.0
    %v2852 = vrcp.pop %v2850
    %v2853 = vmul.f32 1.0, %v2852
    %v2854 = vrcp.pop %v2851
    %v2855 = vmul.f32 1.0, %v2854
    %v2856 = vmul.f32 %v2853, 1.0614054
    %v2857 = vmul.f32 %v2855, 1.0614054
    %v2858 = vadd.f32 %v2856, -1.4531521
    %v2859 = vadd.f32 %v2857, -1.4531521
    %v2860 = vmul.f32 %v2858, %v2853
    %v2861 = vmul.f32 %v2859, %v2855
    %v2862 = vadd.f32 %v2860, 1.4214138
    %v2863 = vadd.f32 %v2861, 1.4214138
    %v2864 = vmul.f32 %v2862, %v2853
    %v2865 = vmul.f32 %v2863, %v2855
    %v2866 = vadd.f32 %v2864, -0.28449672
    %v2867 = vadd.f32 %v2865, -0.28449672
    %v2868 = vmul.f32 %v2866, %v2853
    %v2869 = vmul.f32 %v2867, %v2855
    %v2870 = vadd.f32 %v2868, 0.2548296
    %v2871 = vadd.f32 %v2869, 0.2548296
    %v2872 = vmul.f32 %v2870, %v2853
    %v2873 = vmul.f32 %v2871, %v2855
    %v2874 = vsub.f32 0.0, %v2846
    %v2875 = vsub.f32 0.0, %v2847
    %v2876 = vmul.f32 %v2874, %v2846
    %v2877 = vmul.f32 %v2875, %v2847
    %v2878 = vmul.f32 %v2876, 1.442695
    %v2879 = vpow.pop %v2878
    %v2880 = vmul.f32 %v2877, 1.442695
    %v2881 = vpow.pop %v2880
    %v2882 = vmul.f32 %v2872, %v2879
    %v2883 = vmul.f32 %v2873, %v2881
    %v2884 = vsub.f32 1.0, %v2882
    %v2885 = vsub.f32 1.0, %v2883
    %vm2886 = vcmp.lt.f32.partialorder %v2844, 0.0
    %vm2887 = vcmp.lt.f32.partialorder %v2845, 0.0
    %v2888 = vsub.f32 0.0, %v2884
    %v2889 = vsub.f32 0.0, %v2885
    %v2890 = vsel %vm2886, %v2888, %v2884
    %v2891 = vsel %vm2887, %v2889, %v2885
    %v2892 = vadd.f32 %v2890, 1.0
    %v2893 = vadd.f32 %v2891, 1.0
    %v2894 = vmul.f32 %v2842, %v2892
    %v2895 = vmul.f32 %v2843, %v2893
    %v2896 = vmul.f32 %v2832, %v2894
    %v2897 = vmul.f32 %v2838, %v2895
    %v2898 = vld [vmem:[%s9] sm:$0xff]
    %v2899 = vld [vmem:[%s9 + $0x8] sm:$0xff]
    %v2900 = vld [vmem:[%s9 + $0x10] sm:$0xff]
    %v2901 = vld [vmem:[%s9 + $0x18] sm:$0xff]
    %v2902 = vld [vmem:[%s9 + $0x20] sm:$0xff]
    %v2903 = vld [vmem:[%s9 + $0x28] sm:$0xff]
    %v2904 = vld [vmem:[%s9 + $0x30] sm:$0xff]
    %v2905 = vld [vmem:[%s9 + $0x38] sm:$0xff]
    %v2906 = vld [vmem:[%s9 + $0x40] sm:$0xff]
    %v2907 = vld [vmem:[%s9 + $0x48] sm:$0xff]
    %v2908 = vld [vmem:[%s9 + $0x50] sm:$0xff]
    %v2909 = vld [vmem:[%s9 + $0x58] sm:$0xff]
    %v2910 = vld [vmem:[%s9 + $0x60] sm:$0xff]
    %v2911 = vld [vmem:[%s9 + $0x68] sm:$0xff]
    %v2912 = vld [vmem:[%s9 + $0x70] sm:$0xff]
    %v2913 = vld [vmem:[%s9 + $0x78] sm:$0xff]
    %2914 = vmatprep.subr.mxu0 0.0
    %2915 = vmatpush1.msra.mxu0 %v2913
    %2916 = vmatprep.subr.mxu0 0.0
    %2917 = vmatpush1.msra.mxu0 %v2912
    %2918 = vmatprep.subr.mxu0 0.0
    %2919 = vmatpush1.msra.mxu0 %v2911
    %2920 = vmatprep.subr.mxu0 0.0
    %2921 = vmatpush1.msra.mxu0 %v2910
    %2922 = vmatprep.subr.mxu0 0.0
    %2923 = vmatpush1.msra.mxu0 %v2909
    %2924 = vmatprep.subr.mxu0 0.0
    %2925 = vmatpush1.msra.mxu0 %v2908
    %2926 = vmatprep.subr.mxu0 0.0
    %2927 = vmatpush1.msra.mxu0 %v2907
    %2928 = vmatprep.subr.mxu0 0.0
    %2929 = vmatpush1.msra.mxu0 %v2906
    %2930 = vmatprep.subr.mxu0 0.0
    %2931 = vmatpush1.msra.mxu0 %v2905
    %2932 = vmatprep.subr.mxu0 0.0
    %2933 = vmatpush1.msra.mxu0 %v2904
    %2934 = vmatprep.subr.mxu0 0.0
    %2935 = vmatpush1.msra.mxu0 %v2903
    %2936 = vmatprep.subr.mxu0 0.0
    %2937 = vmatpush1.msra.mxu0 %v2902
    %2938 = vmatprep.subr.mxu0 0.0
    %2939 = vmatpush1.msra.mxu0 %v2901
    %2940 = vmatprep.subr.mxu0 0.0
    %2941 = vmatpush1.msra.mxu0 %v2900
    %2942 = vmatprep.subr.mxu0 0.0
    %2943 = vmatpush1.msra.mxu0 %v2899
    %2944 = vmatprep.subr.mxu0 0.0
    %2945 = vmatpush1.msra.mxu0 %v2898
    %2946 = vmatprep.subr.mxu0 0.0
    %2947 = vmatpush2.msra.mxu0 0.0
    %2948 = vmatprep.subr.mxu0 0.0
    %2949 = vmatpush2.msra.mxu0 0.0
    %2950 = vmatprep.subr.mxu0 0.0
    %2951 = vmatpush2.msra.mxu0 0.0
    %2952 = vmatprep.subr.mxu0 0.0
    %2953 = vmatpush2.msra.mxu0 0.0
    %2954 = vmatprep.subr.mxu0 0.0
    %2955 = vmatpush2.msra.mxu0 0.0
    %2956 = vmatprep.subr.mxu0 0.0
    %2957 = vmatpush2.msra.mxu0 0.0
    %2958 = vmatprep.subr.mxu0 0.0
    %2959 = vmatpush2.msra.mxu0 0.0
    %2960 = vmatprep.subr.mxu0 0.0
    %2961 = vmatpush2.msra.mxu0 0.0
    %2962 = vmatprep.subr.mxu0 0.0
    %2963 = vmatpush2.msra.mxu0 0.0
    %2964 = vmatprep.subr.mxu0 0.0
    %2965 = vmatpush2.msra.mxu0 0.0
    %2966 = vmatprep.subr.mxu0 0.0
    %2967 = vmatpush2.msra.mxu0 0.0
    %2968 = vmatprep.subr.mxu0 0.0
    %2969 = vmatpush2.msra.mxu0 0.0
    %2970 = vmatprep.subr.mxu0 0.0
    %2971 = vmatpush2.msra.mxu0 0.0
    %2972 = vmatprep.subr.mxu0 0.0
    %2973 = vmatpush2.msra.mxu0 0.0
    %2974 = vmatprep.subr.mxu0 0.0
    %2975 = vmatpush2.msra.mxu0 0.0
    %2976 = vmatprep.subr.mxu0 0.0
    %2977 = vmatpush2.msra.mxu0 0.0
    %2978 = vmatprep.mubr.f32.mxu0 0.0
    %2979 = vmatmul.mubr.f32.gmra.mxu0 %v2896
    %v2980 = vpop.f32.mrf.mxu0
    %v2981 = vadd.f32 0.0, %v2980
    %v2982 = vpop.f32.mrf.mxu0
    %2983 = vmatprep.mubr.f32.mxu0 0.0
    %2984 = vmatmul.mubr.f32.gmra.mxu0 %v2897
    %v2985 = vpop.f32.mrf.mxu0
    %v2986 = vadd.f32 0.0, %v2985
    %v2987 = vpop.f32.mrf.mxu0
    %2988 = vdwg.mxu0
    %v2989 = vadd.f32 %v2697, %v2981
    %v2990 = vadd.f32 %v2698, %v2986
    %v2991 = vld [vmem:[%s1 + $0x5] sm:$0x1]
    %v2992 = vlaneseq
    %v2993 = vshrl.u32 %v2992, 7
    %v2994 = vsub.s32 0, %v2993
    %v2995 = vrot.slane %v2991, %v2994
    %v2996 = vadd.f32 %v2989, %v2995
    %v2997 = vadd.f32 %v2990, %v2995
    %s2998 = scalar_lea.vmem %s1, 8
    %v2999 = vld [vmem:[%s2998] sm:$0x1]
    %v3000 = vld [vmem:[%s2998 + $0x1] sm:$0x1]
    %v3001 = vsel %vm49, %v2996, 0.0
    %3002 = vadd.xlane.f32.xlu0 %v3001
    %v3003 = vpop.xlane.xlu0 %3002
    %v3004 = vsel %vm49, %v2997, 0.0
    %3005 = vadd.xlane.f32.xlu0 %v3004
    %v3006 = vpop.xlane.xlu0 %3005
    %v3007 = vmul.f32 %v3003, %v56
    %v3008 = vmul.f32 %v3006, %v56
    %v3009 = vsub.f32 %v2996, %v3007
    %v3010 = vsub.f32 %v2997, %v3008
    %v3011 = vmul.f32 %v3009, %v3009
    %v3012 = vmul.f32 %v3010, %v3010
    %v3013 = vsel %vm49, %v3011, 0.0
    %3014 = vadd.xlane.f32.xlu0 %v3013
    %v3015 = vpop.xlane.xlu0 %3014
    %v3016 = vsel %vm49, %v3012, 0.0
    %3017 = vadd.xlane.f32.xlu0 %v3016
    %v3018 = vpop.xlane.xlu0 %3017
    %v3019 = vmul.f32 %v3015, %v56
    %v3020 = vmul.f32 %v3018, %v56
    %v3021 = vadd.f32 %v3019, 1e-05
    %v3022 = vadd.f32 %v3020, 1e-05
    %v3023 = vrsqrt.pop %v3021
    %v3024 = vrsqrt.pop %v3022
    %v3025 = vmul.f32 %v3009, %v3023
    %v3026 = vmul.f32 %v3010, %v3024
    %v3027 = vlaneseq
    %v3028 = vshrl.u32 %v3027, 7
    %v3029 = vsub.s32 0, %v3028
    %v3030 = vrot.slane %v2999, %v3029
    %v3031 = vmul.f32 %v3025, %v3030
    %v3032 = vmul.f32 %v3026, %v3030
    %v3033 = vlaneseq
    %v3034 = vshrl.u32 %v3033, 7
    %v3035 = vsub.s32 0, %v3034
    %v3036 = vrot.slane %v3000, %v3035
    %v3037 = vadd.f32 %v3031, %v3036
    %v3038 = vadd.f32 %v3032, %v3036
    %s3039 = scalar_lea.vmem %s3, 32
    %v3040 = vld [vmem:[%s3039] sm:$0xff]
    %v3041 = vld [vmem:[%s3039 + $0x8] sm:$0xff]
    %v3042 = vld [vmem:[%s3039 + $0x10] sm:$0xff]
    %v3043 = vld [vmem:[%s3039 + $0x18] sm:$0xff]
    %v3045 = vsel %vm49, %v3037, 0
    %v3048 = vsel %vm49, %v3038, 0
    %3050 = vmatprep.subr.mxu0 0.0
    %3051 = vmatpush1.msra.mxu0 0.0
    %3052 = vmatprep.subr.mxu0 0.0
    %3053 = vmatpush1.msra.mxu0 0.0
    %3054 = vmatprep.subr.mxu0 0.0
    %3055 = vmatpush1.msra.mxu0 0.0
    %3056 = vmatprep.subr.mxu0 0.0
    %3057 = vmatpush1.msra.mxu0 0.0
    %3058 = vmatprep.subr.mxu0 0.0
    %3059 = vmatpush1.msra.mxu0 0.0
    %3060 = vmatprep.subr.mxu0 0.0
    %3061 = vmatpush1.msra.mxu0 0.0
    %3062 = vmatprep.subr.mxu0 0.0
    %3063 = vmatpush1.msra.mxu0 0.0
    %3064 = vmatprep.subr.mxu0 0.0
    %3065 = vmatpush1.msra.mxu0 0.0
    %3066 = vmatprep.subr.mxu0 0.0
    %3067 = vmatpush1.msra.mxu0 0.0
    %3068 = vmatprep.subr.mxu0 0.0
    %3069 = vmatpush1.msra.mxu0 0.0
    %3070 = vmatprep.subr.mxu0 0.0
    %3071 = vmatpush1.msra.mxu0 0.0
    %3072 = vmatprep.subr.mxu0 0.0
    %3073 = vmatpush1.msra.mxu0 0.0
    %3074 = vmatprep.subr.mxu0 0.0
    %3075 = vmatpush1.msra.mxu0 %v3043
    %3076 = vmatprep.subr.mxu0 0.0
    %3077 = vmatpush1.msra.mxu0 %v3042
    %3078 = vmatprep.subr.mxu0 0.0
    %3079 = vmatpush1.msra.mxu0 %v3041
    %3080 = vmatprep.subr.mxu0 0.0
    %3081 = vmatpush1.msra.mxu0 %v3040
    %3082 = vmatprep.subr.mxu0 0.0
    %3083 = vmatpush2.msra.mxu0 0.0
    %3084 = vmatprep.subr.mxu0 0.0
    %3085 = vmatpush2.msra.mxu0 0.0
    %3086 = vmatprep.subr.mxu0 0.0
    %3087 = vmatpush2.msra.mxu0 0.0
    %3088 = vmatprep.subr.mxu0 0.0
    %3089 = vmatpush2.msra.mxu0 0.0
    %3090 = vmatprep.subr.mxu0 0.0
    %3091 = vmatpush2.msra.mxu0 0.0
    %3092 = vmatprep.subr.mxu0 0.0
    %3093 = vmatpush2.msra.mxu0 0.0
    %3094 = vmatprep.subr.mxu0 0.0
    %3095 = vmatpush2.msra.mxu0 0.0
    %3096 = vmatprep.subr.mxu0 0.0
    %3097 = vmatpush2.msra.mxu0 0.0
    %3098 = vmatprep.subr.mxu0 0.0
    %3099 = vmatpush2.msra.mxu0 0.0
    %3100 = vmatprep.subr.mxu0 0.0
    %3101 = vmatpush2.msra.mxu0 0.0
    %3102 = vmatprep.subr.mxu0 0.0
    %3103 = vmatpush2.msra.mxu0 0.0
    %3104 = vmatprep.subr.mxu0 0.0
    %3105 = vmatpush2.msra.mxu0 0.0
    %3106 = vmatprep.subr.mxu0 0.0
    %3107 = vmatpush2.msra.mxu0 0.0
    %3108 = vmatprep.subr.mxu0 0.0
    %3109 = vmatpush2.msra.mxu0 0.0
    %3110 = vmatprep.subr.mxu0 0.0
    %3111 = vmatpush2.msra.mxu0 0.0
    %3112 = vmatprep.subr.mxu0 0.0
    %3113 = vmatpush2.msra.mxu0 0.0
    %3114 = vmatprep.mubr.f32.mxu0 0.0
    %3115 = vmatmul.mubr.f32.gmra.mxu0 %v3045
    %v3116 = vpop.f32.mrf.mxu0
    %v3117 = vadd.f32 0.0, %v3116
    %v3118 = vpop.f32.mrf.mxu0
    %3119 = vmatprep.mubr.f32.mxu0 0.0
    %3120 = vmatmul.mubr.f32.gmra.mxu0 %v3048
    %v3121 = vpop.f32.mrf.mxu0
    %v3122 = vadd.f32 0.0, %v3121
    %v3123 = vpop.f32.mrf.mxu0
    %3124 = vdwg.mxu0
    %s3125 = scalar_lea.vmem %s4, 32
    %v3126 = vld [vmem:[%s3125] sm:$0xff]
    %v3127 = vld [vmem:[%s3125 + $0x8] sm:$0xff]
    %v3128 = vld [vmem:[%s3125 + $0x10] sm:$0xff]
    %v3129 = vld [vmem:[%s3125 + $0x18] sm:$0xff]
    %3130 = vmatprep.subr.mxu0 0.0
    %3131 = vmatpush1.msra.mxu0 0.0
    %3132 = vmatprep.subr.mxu0 0.0
    %3133 = vmatpush1.msra.mxu0 0.0
    %3134 = vmatprep.subr.mxu0 0.0
    %3135 = vmatpush1.msra.mxu0 0.0
    %3136 = vmatprep.subr.mxu0 0.0
    %3137 = vmatpush1.msra.mxu0 0.0
    %3138 = vmatprep.subr.mxu0 0.0
    %3139 = vmatpush1.msra.mxu0 0.0
    %3140 = vmatprep.subr.mxu0 0.0
    %3141 = vmatpush1.msra.mxu0 0.0
    %3142 = vmatprep.subr.mxu0 0.0
    %3143 = vmatpush1.msra.mxu0 0.0
    %3144 = vmatprep.subr.mxu0 0.0
    %3145 = vmatpush1.msra.mxu0 0.0
    %3146 = vmatprep.subr.mxu0 0.0
    %3147 = vmatpush1.msra.mxu0 0.0
    %3148 = vmatprep.subr.mxu0 0.0
    %3149 = vmatpush1.msra.mxu0 0.0
    %3150 = vmatprep.subr.mxu0 0.0
    %3151 = vmatpush1.msra.mxu0 0.0
    %3152 = vmatprep.subr.mxu0 0.0
    %3153 = vmatpush1.msra.mxu0 0.0
    %3154 = vmatprep.subr.mxu0 0.0
    %3155 = vmatpush1.msra.mxu0 %v3129
    %3156 = vmatprep.subr.mxu0 0.0
    %3157 = vmatpush1.msra.mxu0 %v3128
    %3158 = vmatprep.subr.mxu0 0.0
    %3159 = vmatpush1.msra.mxu0 %v3127
    %3160 = vmatprep.subr.mxu0 0.0
    %3161 = vmatpush1.msra.mxu0 %v3126
    %3162 = vmatprep.subr.mxu0 0.0
    %3163 = vmatpush2.msra.mxu0 0.0
    %3164 = vmatprep.subr.mxu0 0.0
    %3165 = vmatpush2.msra.mxu0 0.0
    %3166 = vmatprep.subr.mxu0 0.0
    %3167 = vmatpush2.msra.mxu0 0.0
    %3168 = vmatprep.subr.mxu0 0.0
    %3169 = vmatpush2.msra.mxu0 0.0
    %3170 = vmatprep.subr.mxu0 0.0
    %3171 = vmatpush2.msra.mxu0 0.0
    %3172 = vmatprep.subr.mxu0 0.0
    %3173 = vmatpush2.msra.mxu0 0.0
    %3174 = vmatprep.subr.mxu0 0.0
    %3175 = vmatpush2.msra.mxu0 0.0
    %3176 = vmatprep.subr.mxu0 0.0
    %3177 = vmatpush2.msra.mxu0 0.0
    %3178 = vmatprep.subr.mxu0 0.0
    %3179 = vmatpush2.msra.mxu0 0.0
    %3180 = vmatprep.subr.mxu0 0.0
    %3181 = vmatpush2.msra.mxu0 0.0
    %3182 = vmatprep.subr.mxu0 0.0
    %3183 = vmatpush2.msra.mxu0 0.0
    %3184 = vmatprep.subr.mxu0 0.0
    %3185 = vmatpush2.msra.mxu0 0.0
    %3186 = vmatprep.subr.mxu0 0.0
    %3187 = vmatpush2.msra.mxu0 0.0
    %3188 = vmatprep.subr.mxu0 0.0
    %3189 = vmatpush2.msra.mxu0 0.0
    %3190 = vmatprep.subr.mxu0 0.0
    %3191 = vmatpush2.msra.mxu0 0.0
    %3192 = vmatprep.subr.mxu0 0.0
    %3193 = vmatpush2.msra.mxu0 0.0
    %3194 = vmatprep.mubr.f32.mxu0 0.0
    %3195 = vmatmul.mubr.f32.gmra.mxu0 %v3045
    %v3196 = vpop.f32.mrf.mxu0
    %v3197 = vadd.f32 0.0, %v3196
    %v3198 = vpop.f32.mrf.mxu0
    %3199 = vmatprep.mubr.f32.mxu0 0.0
    %3200 = vmatmul.mubr.f32.gmra.mxu0 %v3048
    %v3201 = vpop.f32.mrf.mxu0
    %v3202 = vadd.f32 0.0, %v3201
    %v3203 = vpop.f32.mrf.mxu0
    %3204 = vdwg.mxu0
    %s3205 = scalar_lea.vmem %s2, 128
    %v3206 = vld [vmem:[%s3205] sm:$0xff]
    %v3207 = vld [vmem:[%s3205 + $0x8] sm:$0xff]
    %v3208 = vld [vmem:[%s3205 + $0x10] sm:$0xff]
    %v3209 = vld [vmem:[%s3205 + $0x18] sm:$0xff]
    %v3210 = vld [vmem:[%s3205 + $0x20] sm:$0xff]
    %v3211 = vld [vmem:[%s3205 + $0x28] sm:$0xff]
    %v3212 = vld [vmem:[%s3205 + $0x30] sm:$0xff]
    %v3213 = vld [vmem:[%s3205 + $0x38] sm:$0xff]
    %v3214 = vld [vmem:[%s3205 + $0x40] sm:$0xff]
    %v3215 = vld [vmem:[%s3205 + $0x48] sm:$0xff]
    %v3216 = vld [vmem:[%s3205 + $0x50] sm:$0xff]
    %v3217 = vld [vmem:[%s3205 + $0x58] sm:$0xff]
    %v3218 = vld [vmem:[%s3205 + $0x60] sm:$0xff]
    %v3219 = vld [vmem:[%s3205 + $0x68] sm:$0xff]
    %v3220 = vld [vmem:[%s3205 + $0x70] sm:$0xff]
    %v3221 = vld [vmem:[%s3205 + $0x78] sm:$0xff]
    %s3222 = scalar_lea.vmem %s5, 32
    %v3223 = vld [vmem:[%s3222] sm:$0xff]
    %v3224 = vld [vmem:[%s3222 + $0x8] sm:$0xff]
    %v3225 = vld [vmem:[%s3222 + $0x10] sm:$0xff]
    %v3226 = vld [vmem:[%s3222 + $0x18] sm:$0xff]
    %s3227 = scalar_lea.vmem %s6, 32
    %v3228 = vld [vmem:[%s3227] sm:$0xff]
    %v3229 = vld [vmem:[%s3227 + $0x8] sm:$0xff]
    %v3230 = vld [vmem:[%s3227 + $0x10] sm:$0xff]
    %v3231 = vld [vmem:[%s3227 + $0x18] sm:$0xff]
    %3232 = vmatprep.subr.mxu0 0.0
    %3233 = vmatpush1.msra.mxu0 0.0
    %3234 = vmatprep.subr.mxu0 0.0
    %3235 = vmatpush1.msra.mxu0 0.0
    %3236 = vmatprep.subr.mxu0 0.0
    %3237 = vmatpush1.msra.mxu0 0.0
    %3238 = vmatprep.subr.mxu0 0.0
    %3239 = vmatpush1.msra.mxu0 0.0
    %3240 = vmatprep.subr.mxu0 0.0
    %3241 = vmatpush1.msra.mxu0 0.0
    %3242 = vmatprep.subr.mxu0 0.0
    %3243 = vmatpush1.msra.mxu0 0.0
    %3244 = vmatprep.subr.mxu0 0.0
    %3245 = vmatpush1.msra.mxu0 0.0
    %3246 = vmatprep.subr.mxu0 0.0
    %3247 = vmatpush1.msra.mxu0 0.0
    %3248 = vmatprep.subr.mxu0 0.0
    %3249 = vmatpush1.msra.mxu0 0.0
    %3250 = vmatprep.subr.mxu0 0.0
    %3251 = vmatpush1.msra.mxu0 0.0
    %3252 = vmatprep.subr.mxu0 0.0
    %3253 = vmatpush1.msra.mxu0 0.0
    %3254 = vmatprep.subr.mxu0 0.0
    %3255 = vmatpush1.msra.mxu0 0.0
    %3256 = vmatprep.subr.mxu0 0.0
    %3257 = vmatpush1.msra.mxu0 %v3209
    %3258 = vmatprep.subr.mxu0 0.0
    %3259 = vmatpush1.msra.mxu0 %v3208
    %3260 = vmatprep.subr.mxu0 0.0
    %3261 = vmatpush1.msra.mxu0 %v3207
    %3262 = vmatprep.subr.mxu0 0.0
    %3263 = vmatpush1.msra.mxu0 %v3206
    %3264 = vmatprep.subr.mxu0 0.0
    %3265 = vmatpush2.msra.mxu0 0.0
    %3266 = vmatprep.subr.mxu0 0.0
    %3267 = vmatpush2.msra.mxu0 0.0
    %3268 = vmatprep.subr.mxu0 0.0
    %3269 = vmatpush2.msra.mxu0 0.0
    %3270 = vmatprep.subr.mxu0 0.0
    %3271 = vmatpush2.msra.mxu0 0.0
    %3272 = vmatprep.subr.mxu0 0.0
    %3273 = vmatpush2.msra.mxu0 0.0
    %3274 = vmatprep.subr.mxu0 0.0
    %3275 = vmatpush2.msra.mxu0 0.0
    %3276 = vmatprep.subr.mxu0 0.0
    %3277 = vmatpush2.msra.mxu0 0.0
    %3278 = vmatprep.subr.mxu0 0.0
    %3279 = vmatpush2.msra.mxu0 0.0
    %3280 = vmatprep.subr.mxu0 0.0
    %3281 = vmatpush2.msra.mxu0 0.0
    %3282 = vmatprep.subr.mxu0 0.0
    %3283 = vmatpush2.msra.mxu0 0.0
    %3284 = vmatprep.subr.mxu0 0.0
    %3285 = vmatpush2.msra.mxu0 0.0
    %3286 = vmatprep.subr.mxu0 0.0
    %3287 = vmatpush2.msra.mxu0 0.0
    %3288 = vmatprep.subr.mxu0 0.0
    %3289 = vmatpush2.msra.mxu0 0.0
    %3290 = vmatprep.subr.mxu0 0.0
    %3291 = vmatpush2.msra.mxu0 0.0
    %3292 = vmatprep.subr.mxu0 0.0
    %3293 = vmatpush2.msra.mxu0 0.0
    %3294 = vmatprep.subr.mxu0 0.0
    %3295 = vmatpush2.msra.mxu0 0.0
    %3296 = vmatprep.mubr.f32.mxu0 0.0
    %3297 = vmatmul.mubr.f32.gmra.mxu0 %v3045
    %v3298 = vpop.f32.mrf.mxu0
    %v3299 = vadd.f32 0.0, %v3298
    %v3300 = vpop.f32.mrf.mxu0
    %3301 = vdwg.mxu0
    %3302 = vmatprep.subr.mxu0 0.0
    %3303 = vmatpush1.msra.mxu0 0.0
    %3304 = vmatprep.subr.mxu0 0.0
    %3305 = vmatpush1.msra.mxu0 0.0
    %3306 = vmatprep.subr.mxu0 0.0
    %3307 = vmatpush1.msra.mxu0 0.0
    %3308 = vmatprep.subr.mxu0 0.0
    %3309 = vmatpush1.msra.mxu0 0.0
    %3310 = vmatprep.subr.mxu0 0.0
    %3311 = vmatpush1.msra.mxu0 0.0
    %3312 = vmatprep.subr.mxu0 0.0
    %3313 = vmatpush1.msra.mxu0 0.0
    %3314 = vmatprep.subr.mxu0 0.0
    %3315 = vmatpush1.msra.mxu0 0.0
    %3316 = vmatprep.subr.mxu0 0.0
    %3317 = vmatpush1.msra.mxu0 0.0
    %3318 = vmatprep.subr.mxu0 0.0
    %3319 = vmatpush1.msra.mxu0 0.0
    %3320 = vmatprep.subr.mxu0 0.0
    %3321 = vmatpush1.msra.mxu0 0.0
    %3322 = vmatprep.subr.mxu0 0.0
    %3323 = vmatpush1.msra.mxu0 0.0
    %3324 = vmatprep.subr.mxu0 0.0
    %3325 = vmatpush1.msra.mxu0 0.0
    %3326 = vmatprep.subr.mxu0 0.0
    %3327 = vmatpush1.msra.mxu0 %v3213
    %3328 = vmatprep.subr.mxu0 0.0
    %3329 = vmatpush1.msra.mxu0 %v3212
    %3330 = vmatprep.subr.mxu0 0.0
    %3331 = vmatpush1.msra.mxu0 %v3211
    %3332 = vmatprep.subr.mxu0 0.0
    %3333 = vmatpush1.msra.mxu0 %v3210
    %3334 = vmatprep.subr.mxu0 0.0
    %3335 = vmatpush2.msra.mxu0 0.0
    %3336 = vmatprep.subr.mxu0 0.0
    %3337 = vmatpush2.msra.mxu0 0.0
    %3338 = vmatprep.subr.mxu0 0.0
    %3339 = vmatpush2.msra.mxu0 0.0
    %3340 = vmatprep.subr.mxu0 0.0
    %3341 = vmatpush2.msra.mxu0 0.0
    %3342 = vmatprep.subr.mxu0 0.0
    %3343 = vmatpush2.msra.mxu0 0.0
    %3344 = vmatprep.subr.mxu0 0.0
    %3345 = vmatpush2.msra.mxu0 0.0
    %3346 = vmatprep.subr.mxu0 0.0
    %3347 = vmatpush2.msra.mxu0 0.0
    %3348 = vmatprep.subr.mxu0 0.0
    %3349 = vmatpush2.msra.mxu0 0.0
    %3350 = vmatprep.subr.mxu0 0.0
    %3351 = vmatpush2.msra.mxu0 0.0
    %3352 = vmatprep.subr.mxu0 0.0
    %3353 = vmatpush2.msra.mxu0 0.0
    %3354 = vmatprep.subr.mxu0 0.0
    %3355 = vmatpush2.msra.mxu0 0.0
    %3356 = vmatprep.subr.mxu0 0.0
    %3357 = vmatpush2.msra.mxu0 0.0
    %3358 = vmatprep.subr.mxu0 0.0
    %3359 = vmatpush2.msra.mxu0 0.0
    %3360 = vmatprep.subr.mxu0 0.0
    %3361 = vmatpush2.msra.mxu0 0.0
    %3362 = vmatprep.subr.mxu0 0.0
    %3363 = vmatpush2.msra.mxu0 0.0
    %3364 = vmatprep.subr.mxu0 0.0
    %3365 = vmatpush2.msra.mxu0 0.0
    %3366 = vmatprep.mubr.f32.mxu0 0.0
    %3367 = vmatmul.mubr.f32.gmra.mxu0 %v3045
    %v3368 = vpop.f32.mrf.mxu0
    %v3369 = vadd.f32 0.0, %v3368
    %v3370 = vpop.f32.mrf.mxu0
    %3371 = vdwg.mxu0
    %3372 = vmatprep.subr.mxu0 0.0
    %3373 = vmatpush1.msra.mxu0 0.0
    %3374 = vmatprep.subr.mxu0 0.0
    %3375 = vmatpush1.msra.mxu0 0.0
    %3376 = vmatprep.subr.mxu0 0.0
    %3377 = vmatpush1.msra.mxu0 0.0
    %3378 = vmatprep.subr.mxu0 0.0
    %3379 = vmatpush1.msra.mxu0 0.0
    %3380 = vmatprep.subr.mxu0 0.0
    %3381 = vmatpush1.msra.mxu0 0.0
    %3382 = vmatprep.subr.mxu0 0.0
    %3383 = vmatpush1.msra.mxu0 0.0
    %3384 = vmatprep.subr.mxu0 0.0
    %3385 = vmatpush1.msra.mxu0 0.0
    %3386 = vmatprep.subr.mxu0 0.0
    %3387 = vmatpush1.msra.mxu0 0.0
    %3388 = vmatprep.subr.mxu0 0.0
    %3389 = vmatpush1.msra.mxu0 0.0
    %3390 = vmatprep.subr.mxu0 0.0
    %3391 = vmatpush1.msra.mxu0 0.0
    %3392 = vmatprep.subr.mxu0 0.0
    %3393 = vmatpush1.msra.mxu0 0.0
    %3394 = vmatprep.subr.mxu0 0.0
    %3395 = vmatpush1.msra.mxu0 0.0
    %3396 = vmatprep.subr.mxu0 0.0
    %3397 = vmatpush1.msra.mxu0 %v3217
    %3398 = vmatprep.subr.mxu0 0.0
    %3399 = vmatpush1.msra.mxu0 %v3216
    %3400 = vmatprep.subr.mxu0 0.0
    %3401 = vmatpush1.msra.mxu0 %v3215
    %3402 = vmatprep.subr.mxu0 0.0
    %3403 = vmatpush1.msra.mxu0 %v3214
    %3404 = vmatprep.subr.mxu0 0.0
    %3405 = vmatpush2.msra.mxu0 0.0
    %3406 = vmatprep.subr.mxu0 0.0
    %3407 = vmatpush2.msra.mxu0 0.0
    %3408 = vmatprep.subr.mxu0 0.0
    %3409 = vmatpush2.msra.mxu0 0.0
    %3410 = vmatprep.subr.mxu0 0.0
    %3411 = vmatpush2.msra.mxu0 0.0
    %3412 = vmatprep.subr.mxu0 0.0
    %3413 = vmatpush2.msra.mxu0 0.0
    %3414 = vmatprep.subr.mxu0 0.0
    %3415 = vmatpush2.msra.mxu0 0.0
    %3416 = vmatprep.subr.mxu0 0.0
    %3417 = vmatpush2.msra.mxu0 0.0
    %3418 = vmatprep.subr.mxu0 0.0
    %3419 = vmatpush2.msra.mxu0 0.0
    %3420 = vmatprep.subr.mxu0 0.0
    %3421 = vmatpush2.msra.mxu0 0.0
    %3422 = vmatprep.subr.mxu0 0.0
    %3423 = vmatpush2.msra.mxu0 0.0
    %3424 = vmatprep.subr.mxu0 0.0
    %3425 = vmatpush2.msra.mxu0 0.0
    %3426 = vmatprep.subr.mxu0 0.0
    %3427 = vmatpush2.msra.mxu0 0.0
    %3428 = vmatprep.subr.mxu0 0.0
    %3429 = vmatpush2.msra.mxu0 0.0
    %3430 = vmatprep.subr.mxu0 0.0
    %3431 = vmatpush2.msra.mxu0 0.0
    %3432 = vmatprep.subr.mxu0 0.0
    %3433 = vmatpush2.msra.mxu0 0.0
    %3434 = vmatprep.subr.mxu0 0.0
    %3435 = vmatpush2.msra.mxu0 0.0
    %3436 = vmatprep.mubr.f32.mxu0 0.0
    %3437 = vmatmul.mubr.f32.gmra.mxu0 %v3045
    %v3438 = vpop.f32.mrf.mxu0
    %v3439 = vadd.f32 0.0, %v3438
    %v3440 = vpop.f32.mrf.mxu0
    %3441 = vdwg.mxu0
    %3442 = vmatprep.subr.mxu0 0.0
    %3443 = vmatpush1.msra.mxu0 0.0
    %3444 = vmatprep.subr.mxu0 0.0
    %3445 = vmatpush1.msra.mxu0 0.0
    %3446 = vmatprep.subr.mxu0 0.0
    %3447 = vmatpush1.msra.mxu0 0.0
    %3448 = vmatprep.subr.mxu0 0.0
    %3449 = vmatpush1.msra.mxu0 0.0
    %3450 = vmatprep.subr.mxu0 0.0
    %3451 = vmatpush1.msra.mxu0 0.0
    %3452 = vmatprep.subr.mxu0 0.0
    %3453 = vmatpush1.msra.mxu0 0.0
    %3454 = vmatprep.subr.mxu0 0.0
    %3455 = vmatpush1.msra.mxu0 0.0
    %3456 = vmatprep.subr.mxu0 0.0
    %3457 = vmatpush1.msra.mxu0 0.0
    %3458 = vmatprep.subr.mxu0 0.0
    %3459 = vmatpush1.msra.mxu0 0.0
    %3460 = vmatprep.subr.mxu0 0.0
    %3461 = vmatpush1.msra.mxu0 0.0
    %3462 = vmatprep.subr.mxu0 0.0
    %3463 = vmatpush1.msra.mxu0 0.0
    %3464 = vmatprep.subr.mxu0 0.0
    %3465 = vmatpush1.msra.mxu0 0.0
    %3466 = vmatprep.subr.mxu0 0.0
    %3467 = vmatpush1.msra.mxu0 %v3221
    %3468 = vmatprep.subr.mxu0 0.0
    %3469 = vmatpush1.msra.mxu0 %v3220
    %3470 = vmatprep.subr.mxu0 0.0
    %3471 = vmatpush1.msra.mxu0 %v3219
    %3472 = vmatprep.subr.mxu0 0.0
    %3473 = vmatpush1.msra.mxu0 %v3218
    %3474 = vmatprep.subr.mxu0 0.0
    %3475 = vmatpush2.msra.mxu0 0.0
    %3476 = vmatprep.subr.mxu0 0.0
    %3477 = vmatpush2.msra.mxu0 0.0
    %3478 = vmatprep.subr.mxu0 0.0
    %3479 = vmatpush2.msra.mxu0 0.0
    %3480 = vmatprep.subr.mxu0 0.0
    %3481 = vmatpush2.msra.mxu0 0.0
    %3482 = vmatprep.subr.mxu0 0.0
    %3483 = vmatpush2.msra.mxu0 0.0
    %3484 = vmatprep.subr.mxu0 0.0
    %3485 = vmatpush2.msra.mxu0 0.0
    %3486 = vmatprep.subr.mxu0 0.0
    %3487 = vmatpush2.msra.mxu0 0.0
    %3488 = vmatprep.subr.mxu0 0.0
    %3489 = vmatpush2.msra.mxu0 0.0
    %3490 = vmatprep.subr.mxu0 0.0
    %3491 = vmatpush2.msra.mxu0 0.0
    %3492 = vmatprep.subr.mxu0 0.0
    %3493 = vmatpush2.msra.mxu0 0.0
    %3494 = vmatprep.subr.mxu0 0.0
    %3495 = vmatpush2.msra.mxu0 0.0
    %3496 = vmatprep.subr.mxu0 0.0
    %3497 = vmatpush2.msra.mxu0 0.0
    %3498 = vmatprep.subr.mxu0 0.0
    %3499 = vmatpush2.msra.mxu0 0.0
    %3500 = vmatprep.subr.mxu0 0.0
    %3501 = vmatpush2.msra.mxu0 0.0
    %3502 = vmatprep.subr.mxu0 0.0
    %3503 = vmatpush2.msra.mxu0 0.0
    %3504 = vmatprep.subr.mxu0 0.0
    %3505 = vmatpush2.msra.mxu0 0.0
    %3506 = vmatprep.mubr.f32.mxu0 0.0
    %3507 = vmatmul.mubr.f32.gmra.mxu0 %v3045
    %v3508 = vpop.f32.mrf.mxu0
    %v3509 = vadd.f32 0.0, %v3508
    %v3510 = vpop.f32.mrf.mxu0
    %3511 = vdwg.mxu0
    %v3513 = vsel %vm557, %v3299, 0
    %v3516 = vsel %vm557, %v3117, 0
    %3518 = vmatprep.subr.mxu0 0.0
    %3519 = vmatpush1.xpose.msra.mxu0 0.0
    %3520 = vmatprep.subr.mxu0 0.0
    %3521 = vmatpush1.xpose.msra.mxu0 0.0
    %3522 = vmatprep.subr.mxu0 0.0
    %3523 = vmatpush1.xpose.msra.mxu0 0.0
    %3524 = vmatprep.subr.mxu0 0.0
    %3525 = vmatpush1.xpose.msra.mxu0 0.0
    %3526 = vmatprep.subr.mxu0 0.0
    %3527 = vmatpush1.xpose.msra.mxu0 0.0
    %3528 = vmatprep.subr.mxu0 0.0
    %3529 = vmatpush1.xpose.msra.mxu0 0.0
    %3530 = vmatprep.subr.mxu0 0.0
    %3531 = vmatpush1.xpose.msra.mxu0 0.0
    %3532 = vmatprep.subr.mxu0 0.0
    %3533 = vmatpush1.xpose.msra.mxu0 0.0
    %3534 = vmatprep.subr.mxu0 0.0
    %3535 = vmatpush1.xpose.msra.mxu0 0.0
    %3536 = vmatprep.subr.mxu0 0.0
    %3537 = vmatpush1.xpose.msra.mxu0 0.0
    %3538 = vmatprep.subr.mxu0 0.0
    %3539 = vmatpush1.xpose.msra.mxu0 0.0
    %3540 = vmatprep.subr.mxu0 0.0
    %3541 = vmatpush1.xpose.msra.mxu0 0.0
    %3542 = vmatprep.subr.mxu0 0.0
    %3543 = vmatpush1.xpose.msra.mxu0 0.0
    %3544 = vmatprep.subr.mxu0 0.0
    %3545 = vmatpush1.xpose.msra.mxu0 0.0
    %3546 = vmatprep.subr.mxu0 0.0
    %3547 = vmatpush1.xpose.msra.mxu0 0.0
    %3548 = vmatprep.subr.mxu0 0.0
    %3549 = vmatpush1.xpose.msra.mxu0 %v3516
    %3550 = vmatprep.subr.mxu0 0.0
    %3551 = vmatpush2.xpose.msra.mxu0 0.0
    %3552 = vmatprep.subr.mxu0 0.0
    %3553 = vmatpush2.xpose.msra.mxu0 0.0
    %3554 = vmatprep.subr.mxu0 0.0
    %3555 = vmatpush2.xpose.msra.mxu0 0.0
    %3556 = vmatprep.subr.mxu0 0.0
    %3557 = vmatpush2.xpose.msra.mxu0 0.0
    %3558 = vmatprep.subr.mxu0 0.0
    %3559 = vmatpush2.xpose.msra.mxu0 0.0
    %3560 = vmatprep.subr.mxu0 0.0
    %3561 = vmatpush2.xpose.msra.mxu0 0.0
    %3562 = vmatprep.subr.mxu0 0.0
    %3563 = vmatpush2.xpose.msra.mxu0 0.0
    %3564 = vmatprep.subr.mxu0 0.0
    %3565 = vmatpush2.xpose.msra.mxu0 0.0
    %3566 = vmatprep.subr.mxu0 0.0
    %3567 = vmatpush2.xpose.msra.mxu0 0.0
    %3568 = vmatprep.subr.mxu0 0.0
    %3569 = vmatpush2.xpose.msra.mxu0 0.0
    %3570 = vmatprep.subr.mxu0 0.0
    %3571 = vmatpush2.xpose.msra.mxu0 0.0
    %3572 = vmatprep.subr.mxu0 0.0
    %3573 = vmatpush2.xpose.msra.mxu0 0.0
    %3574 = vmatprep.subr.mxu0 0.0
    %3575 = vmatpush2.xpose.msra.mxu0 0.0
    %3576 = vmatprep.subr.mxu0 0.0
    %3577 = vmatpush2.xpose.msra.mxu0 0.0
    %3578 = vmatprep.subr.mxu0 0.0
    %3579 = vmatpush2.xpose.msra.mxu0 0.0
    %3580 = vmatprep.subr.mxu0 0.0
    %3581 = vmatpush2.xpose.msra.mxu0 0.0
    %3582 = vmatprep.mubr.f32.mxu0 0.0
    %3583 = vmatmul.mubr.f32.gmra.mxu0 %v3513
    %v3584 = vpop.f32.mrf.mxu0
    %v3585 = vadd.f32 %v3228, %v3584
    %v3586 = vpop.f32.mrf.mxu0
    %3587 = vdwg.mxu0
    %v3589 = vsel %vm557, %v3369, 0
    %3591 = vmatprep.subr.mxu0 0.0
    %3592 = vmatpush1.xpose.msra.mxu0 0.0
    %3593 = vmatprep.subr.mxu0 0.0
    %3594 = vmatpush1.xpose.msra.mxu0 0.0
    %3595 = vmatprep.subr.mxu0 0.0
    %3596 = vmatpush1.xpose.msra.mxu0 0.0
    %3597 = vmatprep.subr.mxu0 0.0
    %3598 = vmatpush1.xpose.msra.mxu0 0.0
    %3599 = vmatprep.subr.mxu0 0.0
    %3600 = vmatpush1.xpose.msra.mxu0 0.0
    %3601 = vmatprep.subr.mxu0 0.0
    %3602 = vmatpush1.xpose.msra.mxu0 0.0
    %3603 = vmatprep.subr.mxu0 0.0
    %3604 = vmatpush1.xpose.msra.mxu0 0.0
    %3605 = vmatprep.subr.mxu0 0.0
    %3606 = vmatpush1.xpose.msra.mxu0 0.0
    %3607 = vmatprep.subr.mxu0 0.0
    %3608 = vmatpush1.xpose.msra.mxu0 0.0
    %3609 = vmatprep.subr.mxu0 0.0
    %3610 = vmatpush1.xpose.msra.mxu0 0.0
    %3611 = vmatprep.subr.mxu0 0.0
    %3612 = vmatpush1.xpose.msra.mxu0 0.0
    %3613 = vmatprep.subr.mxu0 0.0
    %3614 = vmatpush1.xpose.msra.mxu0 0.0
    %3615 = vmatprep.subr.mxu0 0.0
    %3616 = vmatpush1.xpose.msra.mxu0 0.0
    %3617 = vmatprep.subr.mxu0 0.0
    %3618 = vmatpush1.xpose.msra.mxu0 0.0
    %3619 = vmatprep.subr.mxu0 0.0
    %3620 = vmatpush1.xpose.msra.mxu0 0.0
    %3621 = vmatprep.subr.mxu0 0.0
    %3622 = vmatpush1.xpose.msra.mxu0 %v3516
    %3623 = vmatprep.subr.mxu0 0.0
    %3624 = vmatpush2.xpose.msra.mxu0 0.0
    %3625 = vmatprep.subr.mxu0 0.0
    %3626 = vmatpush2.xpose.msra.mxu0 0.0
    %3627 = vmatprep.subr.mxu0 0.0
    %3628 = vmatpush2.xpose.msra.mxu0 0.0
    %3629 = vmatprep.subr.mxu0 0.0
    %3630 = vmatpush2.xpose.msra.mxu0 0.0
    %3631 = vmatprep.subr.mxu0 0.0
    %3632 = vmatpush2.xpose.msra.mxu0 0.0
    %3633 = vmatprep.subr.mxu0 0.0
    %3634 = vmatpush2.xpose.msra.mxu0 0.0
    %3635 = vmatprep.subr.mxu0 0.0
    %3636 = vmatpush2.xpose.msra.mxu0 0.0
    %3637 = vmatprep.subr.mxu0 0.0
    %3638 = vmatpush2.xpose.msra.mxu0 0.0
    %3639 = vmatprep.subr.mxu0 0.0
    %3640 = vmatpush2.xpose.msra.mxu0 0.0
    %3641 = vmatprep.subr.mxu0 0.0
    %3642 = vmatpush2.xpose.msra.mxu0 0.0
    %3643 = vmatprep.subr.mxu0 0.0
    %3644 = vmatpush2.xpose.msra.mxu0 0.0
    %3645 = vmatprep.subr.mxu0 0.0
    %3646 = vmatpush2.xpose.msra.mxu0 0.0
    %3647 = vmatprep.subr.mxu0 0.0
    %3648 = vmatpush2.xpose.msra.mxu0 0.0
    %3649 = vmatprep.subr.mxu0 0.0
    %3650 = vmatpush2.xpose.msra.mxu0 0.0
    %3651 = vmatprep.subr.mxu0 0.0
    %3652 = vmatpush2.xpose.msra.mxu0 0.0
    %3653 = vmatprep.subr.mxu0 0.0
    %3654 = vmatpush2.xpose.msra.mxu0 0.0
    %3655 = vmatprep.mubr.f32.mxu0 0.0
    %3656 = vmatmul.mubr.f32.gmra.mxu0 %v3589
    %v3657 = vpop.f32.mrf.mxu0
    %v3658 = vadd.f32 %v3229, %v3657
    %v3659 = vpop.f32.mrf.mxu0
    %3660 = vdwg.mxu0
    %v3662 = vsel %vm557, %v3439, 0
    %3664 = vmatprep.subr.mxu0 0.0
    %3665 = vmatpush1.xpose.msra.mxu0 0.0
    %3666 = vmatprep.subr.mxu0 0.0
    %3667 = vmatpush1.xpose.msra.mxu0 0.0
    %3668 = vmatprep.subr.mxu0 0.0
    %3669 = vmatpush1.xpose.msra.mxu0 0.0
    %3670 = vmatprep.subr.mxu0 0.0
    %3671 = vmatpush1.xpose.msra.mxu0 0.0
    %3672 = vmatprep.subr.mxu0 0.0
    %3673 = vmatpush1.xpose.msra.mxu0 0.0
    %3674 = vmatprep.subr.mxu0 0.0
    %3675 = vmatpush1.xpose.msra.mxu0 0.0
    %3676 = vmatprep.subr.mxu0 0.0
    %3677 = vmatpush1.xpose.msra.mxu0 0.0
    %3678 = vmatprep.subr.mxu0 0.0
    %3679 = vmatpush1.xpose.msra.mxu0 0.0
    %3680 = vmatprep.subr.mxu0 0.0
    %3681 = vmatpush1.xpose.msra.mxu0 0.0
    %3682 = vmatprep.subr.mxu0 0.0
    %3683 = vmatpush1.xpose.msra.mxu0 0.0
    %3684 = vmatprep.subr.mxu0 0.0
    %3685 = vmatpush1.xpose.msra.mxu0 0.0
    %3686 = vmatprep.subr.mxu0 0.0
    %3687 = vmatpush1.xpose.msra.mxu0 0.0
    %3688 = vmatprep.subr.mxu0 0.0
    %3689 = vmatpush1.xpose.msra.mxu0 0.0
    %3690 = vmatprep.subr.mxu0 0.0
    %3691 = vmatpush1.xpose.msra.mxu0 0.0
    %3692 = vmatprep.subr.mxu0 0.0
    %3693 = vmatpush1.xpose.msra.mxu0 0.0
    %3694 = vmatprep.subr.mxu0 0.0
    %3695 = vmatpush1.xpose.msra.mxu0 %v3516
    %3696 = vmatprep.subr.mxu0 0.0
    %3697 = vmatpush2.xpose.msra.mxu0 0.0
    %3698 = vmatprep.subr.mxu0 0.0
    %3699 = vmatpush2.xpose.msra.mxu0 0.0
    %3700 = vmatprep.subr.mxu0 0.0
    %3701 = vmatpush2.xpose.msra.mxu0 0.0
    %3702 = vmatprep.subr.mxu0 0.0
    %3703 = vmatpush2.xpose.msra.mxu0 0.0
    %3704 = vmatprep.subr.mxu0 0.0
    %3705 = vmatpush2.xpose.msra.mxu0 0.0
    %3706 = vmatprep.subr.mxu0 0.0
    %3707 = vmatpush2.xpose.msra.mxu0 0.0
    %3708 = vmatprep.subr.mxu0 0.0
    %3709 = vmatpush2.xpose.msra.mxu0 0.0
    %3710 = vmatprep.subr.mxu0 0.0
    %3711 = vmatpush2.xpose.msra.mxu0 0.0
    %3712 = vmatprep.subr.mxu0 0.0
    %3713 = vmatpush2.xpose.msra.mxu0 0.0
    %3714 = vmatprep.subr.mxu0 0.0
    %3715 = vmatpush2.xpose.msra.mxu0 0.0
    %3716 = vmatprep.subr.mxu0 0.0
    %3717 = vmatpush2.xpose.msra.mxu0 0.0
    %3718 = vmatprep.subr.mxu0 0.0
    %3719 = vmatpush2.xpose.msra.mxu0 0.0
    %3720 = vmatprep.subr.mxu0 0.0
    %3721 = vmatpush2.xpose.msra.mxu0 0.0
    %3722 = vmatprep.subr.mxu0 0.0
    %3723 = vmatpush2.xpose.msra.mxu0 0.0
    %3724 = vmatprep.subr.mxu0 0.0
    %3725 = vmatpush2.xpose.msra.mxu0 0.0
    %3726 = vmatprep.subr.mxu0 0.0
    %3727 = vmatpush2.xpose.msra.mxu0 0.0
    %3728 = vmatprep.mubr.f32.mxu0 0.0
    %3729 = vmatmul.mubr.f32.gmra.mxu0 %v3662
    %v3730 = vpop.f32.mrf.mxu0
    %v3731 = vadd.f32 %v3230, %v3730
    %v3732 = vpop.f32.mrf.mxu0
    %3733 = vdwg.mxu0
    %v3735 = vsel %vm557, %v3509, 0
    %3737 = vmatprep.subr.mxu0 0.0
    %3738 = vmatpush1.xpose.msra.mxu0 0.0
    %3739 = vmatprep.subr.mxu0 0.0
    %3740 = vmatpush1.xpose.msra.mxu0 0.0
    %3741 = vmatprep.subr.mxu0 0.0
    %3742 = vmatpush1.xpose.msra.mxu0 0.0
    %3743 = vmatprep.subr.mxu0 0.0
    %3744 = vmatpush1.xpose.msra.mxu0 0.0
    %3745 = vmatprep.subr.mxu0 0.0
    %3746 = vmatpush1.xpose.msra.mxu0 0.0
    %3747 = vmatprep.subr.mxu0 0.0
    %3748 = vmatpush1.xpose.msra.mxu0 0.0
    %3749 = vmatprep.subr.mxu0 0.0
    %3750 = vmatpush1.xpose.msra.mxu0 0.0
    %3751 = vmatprep.subr.mxu0 0.0
    %3752 = vmatpush1.xpose.msra.mxu0 0.0
    %3753 = vmatprep.subr.mxu0 0.0
    %3754 = vmatpush1.xpose.msra.mxu0 0.0
    %3755 = vmatprep.subr.mxu0 0.0
    %3756 = vmatpush1.xpose.msra.mxu0 0.0
    %3757 = vmatprep.subr.mxu0 0.0
    %3758 = vmatpush1.xpose.msra.mxu0 0.0
    %3759 = vmatprep.subr.mxu0 0.0
    %3760 = vmatpush1.xpose.msra.mxu0 0.0
    %3761 = vmatprep.subr.mxu0 0.0
    %3762 = vmatpush1.xpose.msra.mxu0 0.0
    %3763 = vmatprep.subr.mxu0 0.0
    %3764 = vmatpush1.xpose.msra.mxu0 0.0
    %3765 = vmatprep.subr.mxu0 0.0
    %3766 = vmatpush1.xpose.msra.mxu0 0.0
    %3767 = vmatprep.subr.mxu0 0.0
    %3768 = vmatpush1.xpose.msra.mxu0 %v3516
    %3769 = vmatprep.subr.mxu0 0.0
    %3770 = vmatpush2.xpose.msra.mxu0 0.0
    %3771 = vmatprep.subr.mxu0 0.0
    %3772 = vmatpush2.xpose.msra.mxu0 0.0
    %3773 = vmatprep.subr.mxu0 0.0
    %3774 = vmatpush2.xpose.msra.mxu0 0.0
    %3775 = vmatprep.subr.mxu0 0.0
    %3776 = vmatpush2.xpose.msra.mxu0 0.0
    %3777 = vmatprep.subr.mxu0 0.0
    %3778 = vmatpush2.xpose.msra.mxu0 0.0
    %3779 = vmatprep.subr.mxu0 0.0
    %3780 = vmatpush2.xpose.msra.mxu0 0.0
    %3781 = vmatprep.subr.mxu0 0.0
    %3782 = vmatpush2.xpose.msra.mxu0 0.0
    %3783 = vmatprep.subr.mxu0 0.0
    %3784 = vmatpush2.xpose.msra.mxu0 0.0
    %3785 = vmatprep.subr.mxu0 0.0
    %3786 = vmatpush2.xpose.msra.mxu0 0.0
    %3787 = vmatprep.subr.mxu0 0.0
    %3788 = vmatpush2.xpose.msra.mxu0 0.0
    %3789 = vmatprep.subr.mxu0 0.0
    %3790 = vmatpush2.xpose.msra.mxu0 0.0
    %3791 = vmatprep.subr.mxu0 0.0
    %3792 = vmatpush2.xpose.msra.mxu0 0.0
    %3793 = vmatprep.subr.mxu0 0.0
    %3794 = vmatpush2.xpose.msra.mxu0 0.0
    %3795 = vmatprep.subr.mxu0 0.0
    %3796 = vmatpush2.xpose.msra.mxu0 0.0
    %3797 = vmatprep.subr.mxu0 0.0
    %3798 = vmatpush2.xpose.msra.mxu0 0.0
    %3799 = vmatprep.subr.mxu0 0.0
    %3800 = vmatpush2.xpose.msra.mxu0 0.0
    %3801 = vmatprep.mubr.f32.mxu0 0.0
    %3802 = vmatmul.mubr.f32.gmra.mxu0 %v3735
    %v3803 = vpop.f32.mrf.mxu0
    %v3804 = vadd.f32 %v3231, %v3803
    %v3805 = vpop.f32.mrf.mxu0
    %3806 = vdwg.mxu0
    %v3807 = vsel %vm557, %v3585, -inf
    %3808 = vmax.xlane.f32.xlu0 %v3807
    %v3809 = vpop.xlane.xlu0 %3808
    %v3810 = vsel %vm557, %v3658, -inf
    %3811 = vmax.xlane.f32.xlu0 %v3810
    %v3812 = vpop.xlane.xlu0 %3811
    %v3813 = vsel %vm557, %v3731, -inf
    %3814 = vmax.xlane.f32.xlu0 %v3813
    %v3815 = vpop.xlane.xlu0 %3814
    %v3816 = vsel %vm557, %v3804, -inf
    %3817 = vmax.xlane.f32.xlu0 %v3816
    %v3818 = vpop.xlane.xlu0 %3817
    %v3819 = vsub.f32 %v3585, %v3809
    %v3820 = vsub.f32 %v3658, %v3812
    %v3821 = vsub.f32 %v3731, %v3815
    %v3822 = vsub.f32 %v3804, %v3818
    %v3823 = vmul.f32 %v3819, 1.442695
    %v3824 = vpow.pop %v3823
    %v3825 = vmul.f32 %v3820, 1.442695
    %v3826 = vpow.pop %v3825
    %v3827 = vmul.f32 %v3821, 1.442695
    %v3828 = vpow.pop %v3827
    %v3829 = vmul.f32 %v3822, 1.442695
    %v3830 = vpow.pop %v3829
    %v3831 = vsel %vm557, %v3824, 0.0
    %3832 = vadd.xlane.f32.xlu0 %v3831
    %v3833 = vpop.xlane.xlu0 %3832
    %v3834 = vsel %vm557, %v3826, 0.0
    %3835 = vadd.xlane.f32.xlu0 %v3834
    %v3836 = vpop.xlane.xlu0 %3835
    %v3837 = vsel %vm557, %v3828, 0.0
    %3838 = vadd.xlane.f32.xlu0 %v3837
    %v3839 = vpop.xlane.xlu0 %3838
    %v3840 = vsel %vm557, %v3830, 0.0
    %3841 = vadd.xlane.f32.xlu0 %v3840
    %v3842 = vpop.xlane.xlu0 %3841
    %v3843 = vrcp.pop %v3833
    %v3844 = vmul.f32 %v3824, %v3843
    %v3845 = vrcp.pop %v3836
    %v3846 = vmul.f32 %v3826, %v3845
    %v3847 = vrcp.pop %v3839
    %v3848 = vmul.f32 %v3828, %v3847
    %v3849 = vrcp.pop %v3842
    %v3850 = vmul.f32 %v3830, %v3849
    %v3852 = vsel %vm557, %v3844, 0
    %3854 = vmatprep.subr.mxu0 0.0
    %3855 = vmatpush1.msra.mxu0 0.0
    %3856 = vmatprep.subr.mxu0 0.0
    %3857 = vmatpush1.msra.mxu0 0.0
    %3858 = vmatprep.subr.mxu0 0.0
    %3859 = vmatpush1.msra.mxu0 0.0
    %3860 = vmatprep.subr.mxu0 0.0
    %3861 = vmatpush1.msra.mxu0 0.0
    %3862 = vmatprep.subr.mxu0 0.0
    %3863 = vmatpush1.msra.mxu0 0.0
    %3864 = vmatprep.subr.mxu0 0.0
    %3865 = vmatpush1.msra.mxu0 0.0
    %3866 = vmatprep.subr.mxu0 0.0
    %3867 = vmatpush1.msra.mxu0 0.0
    %3868 = vmatprep.subr.mxu0 0.0
    %3869 = vmatpush1.msra.mxu0 0.0
    %3870 = vmatprep.subr.mxu0 0.0
    %3871 = vmatpush1.msra.mxu0 0.0
    %3872 = vmatprep.subr.mxu0 0.0
    %3873 = vmatpush1.msra.mxu0 0.0
    %3874 = vmatprep.subr.mxu0 0.0
    %3875 = vmatpush1.msra.mxu0 0.0
    %3876 = vmatprep.subr.mxu0 0.0
    %3877 = vmatpush1.msra.mxu0 0.0
    %3878 = vmatprep.subr.mxu0 0.0
    %3879 = vmatpush1.msra.mxu0 0.0
    %3880 = vmatprep.subr.mxu0 0.0
    %3881 = vmatpush1.msra.mxu0 0.0
    %3882 = vmatprep.subr.mxu0 0.0
    %3883 = vmatpush1.msra.mxu0 0.0
    %3884 = vmatprep.subr.mxu0 0.0
    %3885 = vmatpush1.msra.mxu0 %v3197
    %3886 = vmatprep.subr.mxu0 0.0
    %3887 = vmatpush2.msra.mxu0 0.0
    %3888 = vmatprep.subr.mxu0 0.0
    %3889 = vmatpush2.msra.mxu0 0.0
    %3890 = vmatprep.subr.mxu0 0.0
    %3891 = vmatpush2.msra.mxu0 0.0
    %3892 = vmatprep.subr.mxu0 0.0
    %3893 = vmatpush2.msra.mxu0 0.0
    %3894 = vmatprep.subr.mxu0 0.0
    %3895 = vmatpush2.msra.mxu0 0.0
    %3896 = vmatprep.subr.mxu0 0.0
    %3897 = vmatpush2.msra.mxu0 0.0
    %3898 = vmatprep.subr.mxu0 0.0
    %3899 = vmatpush2.msra.mxu0 0.0
    %3900 = vmatprep.subr.mxu0 0.0
    %3901 = vmatpush2.msra.mxu0 0.0
    %3902 = vmatprep.subr.mxu0 0.0
    %3903 = vmatpush2.msra.mxu0 0.0
    %3904 = vmatprep.subr.mxu0 0.0
    %3905 = vmatpush2.msra.mxu0 0.0
    %3906 = vmatprep.subr.mxu0 0.0
    %3907 = vmatpush2.msra.mxu0 0.0
    %3908 = vmatprep.subr.mxu0 0.0
    %3909 = vmatpush2.msra.mxu0 0.0
    %3910 = vmatprep.subr.mxu0 0.0
    %3911 = vmatpush2.msra.mxu0 0.0
    %3912 = vmatprep.subr.mxu0 0.0
    %3913 = vmatpush2.msra.mxu0 0.0
    %3914 = vmatprep.subr.mxu0 0.0
    %3915 = vmatpush2.msra.mxu0 0.0
    %3916 = vmatprep.subr.mxu0 0.0
    %3917 = vmatpush2.msra.mxu0 0.0
    %3918 = vmatprep.mubr.f32.mxu0 0.0
    %3919 = vmatmul.mubr.f32.gmra.mxu0 %v3852
    %v3920 = vpop.f32.mrf.mxu0
    %v3921 = vadd.f32 0.0, %v3920
    %v3922 = vpop.f32.mrf.mxu0
    %3923 = vdwg.mxu0
    %v3925 = vsel %vm557, %v3846, 0
    %3927 = vmatprep.subr.mxu0 0.0
    %3928 = vmatpush1.msra.mxu0 0.0
    %3929 = vmatprep.subr.mxu0 0.0
    %3930 = vmatpush1.msra.mxu0 0.0
    %3931 = vmatprep.subr.mxu0 0.0
    %3932 = vmatpush1.msra.mxu0 0.0
    %3933 = vmatprep.subr.mxu0 0.0
    %3934 = vmatpush1.msra.mxu0 0.0
    %3935 = vmatprep.subr.mxu0 0.0
    %3936 = vmatpush1.msra.mxu0 0.0
    %3937 = vmatprep.subr.mxu0 0.0
    %3938 = vmatpush1.msra.mxu0 0.0
    %3939 = vmatprep.subr.mxu0 0.0
    %3940 = vmatpush1.msra.mxu0 0.0
    %3941 = vmatprep.subr.mxu0 0.0
    %3942 = vmatpush1.msra.mxu0 0.0
    %3943 = vmatprep.subr.mxu0 0.0
    %3944 = vmatpush1.msra.mxu0 0.0
    %3945 = vmatprep.subr.mxu0 0.0
    %3946 = vmatpush1.msra.mxu0 0.0
    %3947 = vmatprep.subr.mxu0 0.0
    %3948 = vmatpush1.msra.mxu0 0.0
    %3949 = vmatprep.subr.mxu0 0.0
    %3950 = vmatpush1.msra.mxu0 0.0
    %3951 = vmatprep.subr.mxu0 0.0
    %3952 = vmatpush1.msra.mxu0 0.0
    %3953 = vmatprep.subr.mxu0 0.0
    %3954 = vmatpush1.msra.mxu0 0.0
    %3955 = vmatprep.subr.mxu0 0.0
    %3956 = vmatpush1.msra.mxu0 0.0
    %3957 = vmatprep.subr.mxu0 0.0
    %3958 = vmatpush1.msra.mxu0 %v3197
    %3959 = vmatprep.subr.mxu0 0.0
    %3960 = vmatpush2.msra.mxu0 0.0
    %3961 = vmatprep.subr.mxu0 0.0
    %3962 = vmatpush2.msra.mxu0 0.0
    %3963 = vmatprep.subr.mxu0 0.0
    %3964 = vmatpush2.msra.mxu0 0.0
    %3965 = vmatprep.subr.mxu0 0.0
    %3966 = vmatpush2.msra.mxu0 0.0
    %3967 = vmatprep.subr.mxu0 0.0
    %3968 = vmatpush2.msra.mxu0 0.0
    %3969 = vmatprep.subr.mxu0 0.0
    %3970 = vmatpush2.msra.mxu0 0.0
    %3971 = vmatprep.subr.mxu0 0.0
    %3972 = vmatpush2.msra.mxu0 0.0
    %3973 = vmatprep.subr.mxu0 0.0
    %3974 = vmatpush2.msra.mxu0 0.0
    %3975 = vmatprep.subr.mxu0 0.0
    %3976 = vmatpush2.msra.mxu0 0.0
    %3977 = vmatprep.subr.mxu0 0.0
    %3978 = vmatpush2.msra.mxu0 0.0
    %3979 = vmatprep.subr.mxu0 0.0
    %3980 = vmatpush2.msra.mxu0 0.0
    %3981 = vmatprep.subr.mxu0 0.0
    %3982 = vmatpush2.msra.mxu0 0.0
    %3983 = vmatprep.subr.mxu0 0.0
    %3984 = vmatpush2.msra.mxu0 0.0
    %3985 = vmatprep.subr.mxu0 0.0
    %3986 = vmatpush2.msra.mxu0 0.0
    %3987 = vmatprep.subr.mxu0 0.0
    %3988 = vmatpush2.msra.mxu0 0.0
    %3989 = vmatprep.subr.mxu0 0.0
    %3990 = vmatpush2.msra.mxu0 0.0
    %3991 = vmatprep.mubr.f32.mxu0 0.0
    %3992 = vmatmul.mubr.f32.gmra.mxu0 %v3925
    %v3993 = vpop.f32.mrf.mxu0
    %v3994 = vadd.f32 0.0, %v3993
    %v3995 = vpop.f32.mrf.mxu0
    %3996 = vdwg.mxu0
    %v3998 = vsel %vm557, %v3848, 0
    %4000 = vmatprep.subr.mxu0 0.0
    %4001 = vmatpush1.msra.mxu0 0.0
    %4002 = vmatprep.subr.mxu0 0.0
    %4003 = vmatpush1.msra.mxu0 0.0
    %4004 = vmatprep.subr.mxu0 0.0
    %4005 = vmatpush1.msra.mxu0 0.0
    %4006 = vmatprep.subr.mxu0 0.0
    %4007 = vmatpush1.msra.mxu0 0.0
    %4008 = vmatprep.subr.mxu0 0.0
    %4009 = vmatpush1.msra.mxu0 0.0
    %4010 = vmatprep.subr.mxu0 0.0
    %4011 = vmatpush1.msra.mxu0 0.0
    %4012 = vmatprep.subr.mxu0 0.0
    %4013 = vmatpush1.msra.mxu0 0.0
    %4014 = vmatprep.subr.mxu0 0.0
    %4015 = vmatpush1.msra.mxu0 0.0
    %4016 = vmatprep.subr.mxu0 0.0
    %4017 = vmatpush1.msra.mxu0 0.0
    %4018 = vmatprep.subr.mxu0 0.0
    %4019 = vmatpush1.msra.mxu0 0.0
    %4020 = vmatprep.subr.mxu0 0.0
    %4021 = vmatpush1.msra.mxu0 0.0
    %4022 = vmatprep.subr.mxu0 0.0
    %4023 = vmatpush1.msra.mxu0 0.0
    %4024 = vmatprep.subr.mxu0 0.0
    %4025 = vmatpush1.msra.mxu0 0.0
    %4026 = vmatprep.subr.mxu0 0.0
    %4027 = vmatpush1.msra.mxu0 0.0
    %4028 = vmatprep.subr.mxu0 0.0
    %4029 = vmatpush1.msra.mxu0 0.0
    %4030 = vmatprep.subr.mxu0 0.0
    %4031 = vmatpush1.msra.mxu0 %v3197
    %4032 = vmatprep.subr.mxu0 0.0
    %4033 = vmatpush2.msra.mxu0 0.0
    %4034 = vmatprep.subr.mxu0 0.0
    %4035 = vmatpush2.msra.mxu0 0.0
    %4036 = vmatprep.subr.mxu0 0.0
    %4037 = vmatpush2.msra.mxu0 0.0
    %4038 = vmatprep.subr.mxu0 0.0
    %4039 = vmatpush2.msra.mxu0 0.0
    %4040 = vmatprep.subr.mxu0 0.0
    %4041 = vmatpush2.msra.mxu0 0.0
    %4042 = vmatprep.subr.mxu0 0.0
    %4043 = vmatpush2.msra.mxu0 0.0
    %4044 = vmatprep.subr.mxu0 0.0
    %4045 = vmatpush2.msra.mxu0 0.0
    %4046 = vmatprep.subr.mxu0 0.0
    %4047 = vmatpush2.msra.mxu0 0.0
    %4048 = vmatprep.subr.mxu0 0.0
    %4049 = vmatpush2.msra.mxu0 0.0
    %4050 = vmatprep.subr.mxu0 0.0
    %4051 = vmatpush2.msra.mxu0 0.0
    %4052 = vmatprep.subr.mxu0 0.0
    %4053 = vmatpush2.msra.mxu0 0.0
    %4054 = vmatprep.subr.mxu0 0.0
    %4055 = vmatpush2.msra.mxu0 0.0
    %4056 = vmatprep.subr.mxu0 0.0
    %4057 = vmatpush2.msra.mxu0 0.0
    %4058 = vmatprep.subr.mxu0 0.0
    %4059 = vmatpush2.msra.mxu0 0.0
    %4060 = vmatprep.subr.mxu0 0.0
    %4061 = vmatpush2.msra.mxu0 0.0
    %4062 = vmatprep.subr.mxu0 0.0
    %4063 = vmatpush2.msra.mxu0 0.0
    %4064 = vmatprep.mubr.f32.mxu0 0.0
    %4065 = vmatmul.mubr.f32.gmra.mxu0 %v3998
    %v4066 = vpop.f32.mrf.mxu0
    %v4067 = vadd.f32 0.0, %v4066
    %v4068 = vpop.f32.mrf.mxu0
    %4069 = vdwg.mxu0
    %v4071 = vsel %vm557, %v3850, 0
    %4073 = vmatprep.subr.mxu0 0.0
    %4074 = vmatpush1.msra.mxu0 0.0
    %4075 = vmatprep.subr.mxu0 0.0
    %4076 = vmatpush1.msra.mxu0 0.0
    %4077 = vmatprep.subr.mxu0 0.0
    %4078 = vmatpush1.msra.mxu0 0.0
    %4079 = vmatprep.subr.mxu0 0.0
    %4080 = vmatpush1.msra.mxu0 0.0
    %4081 = vmatprep.subr.mxu0 0.0
    %4082 = vmatpush1.msra.mxu0 0.0
    %4083 = vmatprep.subr.mxu0 0.0
    %4084 = vmatpush1.msra.mxu0 0.0
    %4085 = vmatprep.subr.mxu0 0.0
    %4086 = vmatpush1.msra.mxu0 0.0
    %4087 = vmatprep.subr.mxu0 0.0
    %4088 = vmatpush1.msra.mxu0 0.0
    %4089 = vmatprep.subr.mxu0 0.0
    %4090 = vmatpush1.msra.mxu0 0.0
    %4091 = vmatprep.subr.mxu0 0.0
    %4092 = vmatpush1.msra.mxu0 0.0
    %4093 = vmatprep.subr.mxu0 0.0
    %4094 = vmatpush1.msra.mxu0 0.0
    %4095 = vmatprep.subr.mxu0 0.0
    %4096 = vmatpush1.msra.mxu0 0.0
    %4097 = vmatprep.subr.mxu0 0.0
    %4098 = vmatpush1.msra.mxu0 0.0
    %4099 = vmatprep.subr.mxu0 0.0
    %4100 = vmatpush1.msra.mxu0 0.0
    %4101 = vmatprep.subr.mxu0 0.0
    %4102 = vmatpush1.msra.mxu0 0.0
    %4103 = vmatprep.subr.mxu0 0.0
    %4104 = vmatpush1.msra.mxu0 %v3197
    %4105 = vmatprep.subr.mxu0 0.0
    %4106 = vmatpush2.msra.mxu0 0.0
    %4107 = vmatprep.subr.mxu0 0.0
    %4108 = vmatpush2.msra.mxu0 0.0
    %4109 = vmatprep.subr.mxu0 0.0
    %4110 = vmatpush2.msra.mxu0 0.0
    %4111 = vmatprep.subr.mxu0 0.0
    %4112 = vmatpush2.msra.mxu0 0.0
    %4113 = vmatprep.subr.mxu0 0.0
    %4114 = vmatpush2.msra.mxu0 0.0
    %4115 = vmatprep.subr.mxu0 0.0
    %4116 = vmatpush2.msra.mxu0 0.0
    %4117 = vmatprep.subr.mxu0 0.0
    %4118 = vmatpush2.msra.mxu0 0.0
    %4119 = vmatprep.subr.mxu0 0.0
    %4120 = vmatpush2.msra.mxu0 0.0
    %4121 = vmatprep.subr.mxu0 0.0
    %4122 = vmatpush2.msra.mxu0 0.0
    %4123 = vmatprep.subr.mxu0 0.0
    %4124 = vmatpush2.msra.mxu0 0.0
    %4125 = vmatprep.subr.mxu0 0.0
    %4126 = vmatpush2.msra.mxu0 0.0
    %4127 = vmatprep.subr.mxu0 0.0
    %4128 = vmatpush2.msra.mxu0 0.0
    %4129 = vmatprep.subr.mxu0 0.0
    %4130 = vmatpush2.msra.mxu0 0.0
    %4131 = vmatprep.subr.mxu0 0.0
    %4132 = vmatpush2.msra.mxu0 0.0
    %4133 = vmatprep.subr.mxu0 0.0
    %4134 = vmatpush2.msra.mxu0 0.0
    %4135 = vmatprep.subr.mxu0 0.0
    %4136 = vmatpush2.msra.mxu0 0.0
    %4137 = vmatprep.mubr.f32.mxu0 0.0
    %4138 = vmatmul.mubr.f32.gmra.mxu0 %v4071
    %v4139 = vpop.f32.mrf.mxu0
    %v4140 = vadd.f32 0.0, %v4139
    %v4141 = vpop.f32.mrf.mxu0
    %4142 = vdwg.mxu0
    %v4144 = vsel %vm557, %v3921, 0
    %4146 = vmatprep.subr.mxu0 0.0
    %4147 = vmatpush1.msra.mxu0 0.0
    %4148 = vmatprep.subr.mxu0 0.0
    %4149 = vmatpush1.msra.mxu0 0.0
    %4150 = vmatprep.subr.mxu0 0.0
    %4151 = vmatpush1.msra.mxu0 0.0
    %4152 = vmatprep.subr.mxu0 0.0
    %4153 = vmatpush1.msra.mxu0 0.0
    %4154 = vmatprep.subr.mxu0 0.0
    %4155 = vmatpush1.msra.mxu0 0.0
    %4156 = vmatprep.subr.mxu0 0.0
    %4157 = vmatpush1.msra.mxu0 0.0
    %4158 = vmatprep.subr.mxu0 0.0
    %4159 = vmatpush1.msra.mxu0 0.0
    %4160 = vmatprep.subr.mxu0 0.0
    %4161 = vmatpush1.msra.mxu0 0.0
    %4162 = vmatprep.subr.mxu0 0.0
    %4163 = vmatpush1.msra.mxu0 0.0
    %4164 = vmatprep.subr.mxu0 0.0
    %4165 = vmatpush1.msra.mxu0 0.0
    %4166 = vmatprep.subr.mxu0 0.0
    %4167 = vmatpush1.msra.mxu0 0.0
    %4168 = vmatprep.subr.mxu0 0.0
    %4169 = vmatpush1.msra.mxu0 0.0
    %4170 = vmatprep.subr.mxu0 0.0
    %4171 = vmatpush1.msra.mxu0 0.0
    %4172 = vmatprep.subr.mxu0 0.0
    %4173 = vmatpush1.msra.mxu0 0.0
    %4174 = vmatprep.subr.mxu0 0.0
    %4175 = vmatpush1.msra.mxu0 0.0
    %4176 = vmatprep.subr.mxu0 0.0
    %4177 = vmatpush1.msra.mxu0 %v3223
    %4178 = vmatprep.subr.mxu0 0.0
    %4179 = vmatpush2.msra.mxu0 0.0
    %4180 = vmatprep.subr.mxu0 0.0
    %4181 = vmatpush2.msra.mxu0 0.0
    %4182 = vmatprep.subr.mxu0 0.0
    %4183 = vmatpush2.msra.mxu0 0.0
    %4184 = vmatprep.subr.mxu0 0.0
    %4185 = vmatpush2.msra.mxu0 0.0
    %4186 = vmatprep.subr.mxu0 0.0
    %4187 = vmatpush2.msra.mxu0 0.0
    %4188 = vmatprep.subr.mxu0 0.0
    %4189 = vmatpush2.msra.mxu0 0.0
    %4190 = vmatprep.subr.mxu0 0.0
    %4191 = vmatpush2.msra.mxu0 0.0
    %4192 = vmatprep.subr.mxu0 0.0
    %4193 = vmatpush2.msra.mxu0 0.0
    %4194 = vmatprep.subr.mxu0 0.0
    %4195 = vmatpush2.msra.mxu0 0.0
    %4196 = vmatprep.subr.mxu0 0.0
    %4197 = vmatpush2.msra.mxu0 0.0
    %4198 = vmatprep.subr.mxu0 0.0
    %4199 = vmatpush2.msra.mxu0 0.0
    %4200 = vmatprep.subr.mxu0 0.0
    %4201 = vmatpush2.msra.mxu0 0.0
    %4202 = vmatprep.subr.mxu0 0.0
    %4203 = vmatpush2.msra.mxu0 0.0
    %4204 = vmatprep.subr.mxu0 0.0
    %4205 = vmatpush2.msra.mxu0 0.0
    %4206 = vmatprep.subr.mxu0 0.0
    %4207 = vmatpush2.msra.mxu0 0.0
    %4208 = vmatprep.subr.mxu0 0.0
    %4209 = vmatpush2.msra.mxu0 0.0
    %4210 = vmatprep.mubr.f32.mxu0 0.0
    %4211 = vmatmul.mubr.f32.gmra.mxu0 %v4144
    %v4212 = vpop.f32.mrf.mxu0
    %v4213 = vadd.f32 0.0, %v4212
    %v4214 = vpop.f32.mrf.mxu0
    %4215 = vdwg.mxu0
    %v4217 = vsel %vm557, %v3994, 0
    %4219 = vmatprep.subr.mxu0 0.0
    %4220 = vmatpush1.msra.mxu0 0.0
    %4221 = vmatprep.subr.mxu0 0.0
    %4222 = vmatpush1.msra.mxu0 0.0
    %4223 = vmatprep.subr.mxu0 0.0
    %4224 = vmatpush1.msra.mxu0 0.0
    %4225 = vmatprep.subr.mxu0 0.0
    %4226 = vmatpush1.msra.mxu0 0.0
    %4227 = vmatprep.subr.mxu0 0.0
    %4228 = vmatpush1.msra.mxu0 0.0
    %4229 = vmatprep.subr.mxu0 0.0
    %4230 = vmatpush1.msra.mxu0 0.0
    %4231 = vmatprep.subr.mxu0 0.0
    %4232 = vmatpush1.msra.mxu0 0.0
    %4233 = vmatprep.subr.mxu0 0.0
    %4234 = vmatpush1.msra.mxu0 0.0
    %4235 = vmatprep.subr.mxu0 0.0
    %4236 = vmatpush1.msra.mxu0 0.0
    %4237 = vmatprep.subr.mxu0 0.0
    %4238 = vmatpush1.msra.mxu0 0.0
    %4239 = vmatprep.subr.mxu0 0.0
    %4240 = vmatpush1.msra.mxu0 0.0
    %4241 = vmatprep.subr.mxu0 0.0
    %4242 = vmatpush1.msra.mxu0 0.0
    %4243 = vmatprep.subr.mxu0 0.0
    %4244 = vmatpush1.msra.mxu0 0.0
    %4245 = vmatprep.subr.mxu0 0.0
    %4246 = vmatpush1.msra.mxu0 0.0
    %4247 = vmatprep.subr.mxu0 0.0
    %4248 = vmatpush1.msra.mxu0 0.0
    %4249 = vmatprep.subr.mxu0 0.0
    %4250 = vmatpush1.msra.mxu0 %v3224
    %4251 = vmatprep.subr.mxu0 0.0
    %4252 = vmatpush2.msra.mxu0 0.0
    %4253 = vmatprep.subr.mxu0 0.0
    %4254 = vmatpush2.msra.mxu0 0.0
    %4255 = vmatprep.subr.mxu0 0.0
    %4256 = vmatpush2.msra.mxu0 0.0
    %4257 = vmatprep.subr.mxu0 0.0
    %4258 = vmatpush2.msra.mxu0 0.0
    %4259 = vmatprep.subr.mxu0 0.0
    %4260 = vmatpush2.msra.mxu0 0.0
    %4261 = vmatprep.subr.mxu0 0.0
    %4262 = vmatpush2.msra.mxu0 0.0
    %4263 = vmatprep.subr.mxu0 0.0
    %4264 = vmatpush2.msra.mxu0 0.0
    %4265 = vmatprep.subr.mxu0 0.0
    %4266 = vmatpush2.msra.mxu0 0.0
    %4267 = vmatprep.subr.mxu0 0.0
    %4268 = vmatpush2.msra.mxu0 0.0
    %4269 = vmatprep.subr.mxu0 0.0
    %4270 = vmatpush2.msra.mxu0 0.0
    %4271 = vmatprep.subr.mxu0 0.0
    %4272 = vmatpush2.msra.mxu0 0.0
    %4273 = vmatprep.subr.mxu0 0.0
    %4274 = vmatpush2.msra.mxu0 0.0
    %4275 = vmatprep.subr.mxu0 0.0
    %4276 = vmatpush2.msra.mxu0 0.0
    %4277 = vmatprep.subr.mxu0 0.0
    %4278 = vmatpush2.msra.mxu0 0.0
    %4279 = vmatprep.subr.mxu0 0.0
    %4280 = vmatpush2.msra.mxu0 0.0
    %4281 = vmatprep.subr.mxu0 0.0
    %4282 = vmatpush2.msra.mxu0 0.0
    %4283 = vmatprep.mubr.f32.mxu0 0.0
    %4284 = vmatmul.mubr.f32.gmra.mxu0 %v4217
    %v4285 = vpop.f32.mrf.mxu0
    %v4286 = vadd.f32 0.0, %v4285
    %v4287 = vpop.f32.mrf.mxu0
    %4288 = vdwg.mxu0
    %v4290 = vsel %vm557, %v4067, 0
    %4292 = vmatprep.subr.mxu0 0.0
    %4293 = vmatpush1.msra.mxu0 0.0
    %4294 = vmatprep.subr.mxu0 0.0
    %4295 = vmatpush1.msra.mxu0 0.0
    %4296 = vmatprep.subr.mxu0 0.0
    %4297 = vmatpush1.msra.mxu0 0.0
    %4298 = vmatprep.subr.mxu0 0.0
    %4299 = vmatpush1.msra.mxu0 0.0
    %4300 = vmatprep.subr.mxu0 0.0
    %4301 = vmatpush1.msra.mxu0 0.0
    %4302 = vmatprep.subr.mxu0 0.0
    %4303 = vmatpush1.msra.mxu0 0.0
    %4304 = vmatprep.subr.mxu0 0.0
    %4305 = vmatpush1.msra.mxu0 0.0
    %4306 = vmatprep.subr.mxu0 0.0
    %4307 = vmatpush1.msra.mxu0 0.0
    %4308 = vmatprep.subr.mxu0 0.0
    %4309 = vmatpush1.msra.mxu0 0.0
    %4310 = vmatprep.subr.mxu0 0.0
    %4311 = vmatpush1.msra.mxu0 0.0
    %4312 = vmatprep.subr.mxu0 0.0
    %4313 = vmatpush1.msra.mxu0 0.0
    %4314 = vmatprep.subr.mxu0 0.0
    %4315 = vmatpush1.msra.mxu0 0.0
    %4316 = vmatprep.subr.mxu0 0.0
    %4317 = vmatpush1.msra.mxu0 0.0
    %4318 = vmatprep.subr.mxu0 0.0
    %4319 = vmatpush1.msra.mxu0 0.0
    %4320 = vmatprep.subr.mxu0 0.0
    %4321 = vmatpush1.msra.mxu0 0.0
    %4322 = vmatprep.subr.mxu0 0.0
    %4323 = vmatpush1.msra.mxu0 %v3225
    %4324 = vmatprep.subr.mxu0 0.0
    %4325 = vmatpush2.msra.mxu0 0.0
    %4326 = vmatprep.subr.mxu0 0.0
    %4327 = vmatpush2.msra.mxu0 0.0
    %4328 = vmatprep.subr.mxu0 0.0
    %4329 = vmatpush2.msra.mxu0 0.0
    %4330 = vmatprep.subr.mxu0 0.0
    %4331 = vmatpush2.msra.mxu0 0.0
    %4332 = vmatprep.subr.mxu0 0.0
    %4333 = vmatpush2.msra.mxu0 0.0
    %4334 = vmatprep.subr.mxu0 0.0
    %4335 = vmatpush2.msra.mxu0 0.0
    %4336 = vmatprep.subr.mxu0 0.0
    %4337 = vmatpush2.msra.mxu0 0.0
    %4338 = vmatprep.subr.mxu0 0.0
    %4339 = vmatpush2.msra.mxu0 0.0
    %4340 = vmatprep.subr.mxu0 0.0
    %4341 = vmatpush2.msra.mxu0 0.0
    %4342 = vmatprep.subr.mxu0 0.0
    %4343 = vmatpush2.msra.mxu0 0.0
    %4344 = vmatprep.subr.mxu0 0.0
    %4345 = vmatpush2.msra.mxu0 0.0
    %4346 = vmatprep.subr.mxu0 0.0
    %4347 = vmatpush2.msra.mxu0 0.0
    %4348 = vmatprep.subr.mxu0 0.0
    %4349 = vmatpush2.msra.mxu0 0.0
    %4350 = vmatprep.subr.mxu0 0.0
    %4351 = vmatpush2.msra.mxu0 0.0
    %4352 = vmatprep.subr.mxu0 0.0
    %4353 = vmatpush2.msra.mxu0 0.0
    %4354 = vmatprep.subr.mxu0 0.0
    %4355 = vmatpush2.msra.mxu0 0.0
    %4356 = vmatprep.mubr.f32.mxu0 0.0
    %4357 = vmatmul.mubr.f32.gmra.mxu0 %v4290
    %v4358 = vpop.f32.mrf.mxu0
    %v4359 = vadd.f32 0.0, %v4358
    %v4360 = vpop.f32.mrf.mxu0
    %4361 = vdwg.mxu0
    %v4363 = vsel %vm557, %v4140, 0
    %4365 = vmatprep.subr.mxu0 0.0
    %4366 = vmatpush1.msra.mxu0 0.0
    %4367 = vmatprep.subr.mxu0 0.0
    %4368 = vmatpush1.msra.mxu0 0.0
    %4369 = vmatprep.subr.mxu0 0.0
    %4370 = vmatpush1.msra.mxu0 0.0
    %4371 = vmatprep.subr.mxu0 0.0
    %4372 = vmatpush1.msra.mxu0 0.0
    %4373 = vmatprep.subr.mxu0 0.0
    %4374 = vmatpush1.msra.mxu0 0.0
    %4375 = vmatprep.subr.mxu0 0.0
    %4376 = vmatpush1.msra.mxu0 0.0
    %4377 = vmatprep.subr.mxu0 0.0
    %4378 = vmatpush1.msra.mxu0 0.0
    %4379 = vmatprep.subr.mxu0 0.0
    %4380 = vmatpush1.msra.mxu0 0.0
    %4381 = vmatprep.subr.mxu0 0.0
    %4382 = vmatpush1.msra.mxu0 0.0
    %4383 = vmatprep.subr.mxu0 0.0
    %4384 = vmatpush1.msra.mxu0 0.0
    %4385 = vmatprep.subr.mxu0 0.0
    %4386 = vmatpush1.msra.mxu0 0.0
    %4387 = vmatprep.subr.mxu0 0.0
    %4388 = vmatpush1.msra.mxu0 0.0
    %4389 = vmatprep.subr.mxu0 0.0
    %4390 = vmatpush1.msra.mxu0 0.0
    %4391 = vmatprep.subr.mxu0 0.0
    %4392 = vmatpush1.msra.mxu0 0.0
    %4393 = vmatprep.subr.mxu0 0.0
    %4394 = vmatpush1.msra.mxu0 0.0
    %4395 = vmatprep.subr.mxu0 0.0
    %4396 = vmatpush1.msra.mxu0 %v3226
    %4397 = vmatprep.subr.mxu0 0.0
    %4398 = vmatpush2.msra.mxu0 0.0
    %4399 = vmatprep.subr.mxu0 0.0
    %4400 = vmatpush2.msra.mxu0 0.0
    %4401 = vmatprep.subr.mxu0 0.0
    %4402 = vmatpush2.msra.mxu0 0.0
    %4403 = vmatprep.subr.mxu0 0.0
    %4404 = vmatpush2.msra.mxu0 0.0
    %4405 = vmatprep.subr.mxu0 0.0
    %4406 = vmatpush2.msra.mxu0 0.0
    %4407 = vmatprep.subr.mxu0 0.0
    %4408 = vmatpush2.msra.mxu0 0.0
    %4409 = vmatprep.subr.mxu0 0.0
    %4410 = vmatpush2.msra.mxu0 0.0
    %4411 = vmatprep.subr.mxu0 0.0
    %4412 = vmatpush2.msra.mxu0 0.0
    %4413 = vmatprep.subr.mxu0 0.0
    %4414 = vmatpush2.msra.mxu0 0.0
    %4415 = vmatprep.subr.mxu0 0.0
    %4416 = vmatpush2.msra.mxu0 0.0
    %4417 = vmatprep.subr.mxu0 0.0
    %4418 = vmatpush2.msra.mxu0 0.0
    %4419 = vmatprep.subr.mxu0 0.0
    %4420 = vmatpush2.msra.mxu0 0.0
    %4421 = vmatprep.subr.mxu0 0.0
    %4422 = vmatpush2.msra.mxu0 0.0
    %4423 = vmatprep.subr.mxu0 0.0
    %4424 = vmatpush2.msra.mxu0 0.0
    %4425 = vmatprep.subr.mxu0 0.0
    %4426 = vmatpush2.msra.mxu0 0.0
    %4427 = vmatprep.subr.mxu0 0.0
    %4428 = vmatpush2.msra.mxu0 0.0
    %4429 = vmatprep.mubr.f32.mxu0 0.0
    %4430 = vmatmul.mubr.f32.gmra.mxu0 %v4363
    %v4431 = vpop.f32.mrf.mxu0
    %v4432 = vadd.f32 0.0, %v4431
    %v4433 = vpop.f32.mrf.mxu0
    %4434 = vdwg.mxu0
    %v4435 = vadd.f32 %v4213, %v4286
    %v4436 = vadd.f32 %v4435, %v4359
    %v4437 = vadd.f32 %v4436, %v4432
    %4438 = vmatprep.subr.mxu0 0.0
    %4439 = vmatpush1.msra.mxu0 0.0
    %4440 = vmatprep.subr.mxu0 0.0
    %4441 = vmatpush1.msra.mxu0 0.0
    %4442 = vmatprep.subr.mxu0 0.0
    %4443 = vmatpush1.msra.mxu0 0.0
    %4444 = vmatprep.subr.mxu0 0.0
    %4445 = vmatpush1.msra.mxu0 0.0
    %4446 = vmatprep.subr.mxu0 0.0
    %4447 = vmatpush1.msra.mxu0 0.0
    %4448 = vmatprep.subr.mxu0 0.0
    %4449 = vmatpush1.msra.mxu0 0.0
    %4450 = vmatprep.subr.mxu0 0.0
    %4451 = vmatpush1.msra.mxu0 0.0
    %4452 = vmatprep.subr.mxu0 0.0
    %4453 = vmatpush1.msra.mxu0 0.0
    %4454 = vmatprep.subr.mxu0 0.0
    %4455 = vmatpush1.msra.mxu0 0.0
    %4456 = vmatprep.subr.mxu0 0.0
    %4457 = vmatpush1.msra.mxu0 0.0
    %4458 = vmatprep.subr.mxu0 0.0
    %4459 = vmatpush1.msra.mxu0 0.0
    %4460 = vmatprep.subr.mxu0 0.0
    %4461 = vmatpush1.msra.mxu0 0.0
    %4462 = vmatprep.subr.mxu0 0.0
    %4463 = vmatpush1.msra.mxu0 %v3209
    %4464 = vmatprep.subr.mxu0 0.0
    %4465 = vmatpush1.msra.mxu0 %v3208
    %4466 = vmatprep.subr.mxu0 0.0
    %4467 = vmatpush1.msra.mxu0 %v3207
    %4468 = vmatprep.subr.mxu0 0.0
    %4469 = vmatpush1.msra.mxu0 %v3206
    %4470 = vmatprep.subr.mxu0 0.0
    %4471 = vmatpush2.msra.mxu0 0.0
    %4472 = vmatprep.subr.mxu0 0.0
    %4473 = vmatpush2.msra.mxu0 0.0
    %4474 = vmatprep.subr.mxu0 0.0
    %4475 = vmatpush2.msra.mxu0 0.0
    %4476 = vmatprep.subr.mxu0 0.0
    %4477 = vmatpush2.msra.mxu0 0.0
    %4478 = vmatprep.subr.mxu0 0.0
    %4479 = vmatpush2.msra.mxu0 0.0
    %4480 = vmatprep.subr.mxu0 0.0
    %4481 = vmatpush2.msra.mxu0 0.0
    %4482 = vmatprep.subr.mxu0 0.0
    %4483 = vmatpush2.msra.mxu0 0.0
    %4484 = vmatprep.subr.mxu0 0.0
    %4485 = vmatpush2.msra.mxu0 0.0
    %4486 = vmatprep.subr.mxu0 0.0
    %4487 = vmatpush2.msra.mxu0 0.0
    %4488 = vmatprep.subr.mxu0 0.0
    %4489 = vmatpush2.msra.mxu0 0.0
    %4490 = vmatprep.subr.mxu0 0.0
    %4491 = vmatpush2.msra.mxu0 0.0
    %4492 = vmatprep.subr.mxu0 0.0
    %4493 = vmatpush2.msra.mxu0 0.0
    %4494 = vmatprep.subr.mxu0 0.0
    %4495 = vmatpush2.msra.mxu0 0.0
    %4496 = vmatprep.subr.mxu0 0.0
    %4497 = vmatpush2.msra.mxu0 0.0
    %4498 = vmatprep.subr.mxu0 0.0
    %4499 = vmatpush2.msra.mxu0 0.0
    %4500 = vmatprep.subr.mxu0 0.0
    %4501 = vmatpush2.msra.mxu0 0.0
    %4502 = vmatprep.mubr.f32.mxu0 0.0
    %4503 = vmatmul.mubr.f32.gmra.mxu0 %v3048
    %v4504 = vpop.f32.mrf.mxu0
    %v4505 = vadd.f32 0.0, %v4504
    %v4506 = vpop.f32.mrf.mxu0
    %4507 = vdwg.mxu0
    %4508 = vmatprep.subr.mxu0 0.0
    %4509 = vmatpush1.msra.mxu0 0.0
    %4510 = vmatprep.subr.mxu0 0.0
    %4511 = vmatpush1.msra.mxu0 0.0
    %4512 = vmatprep.subr.mxu0 0.0
    %4513 = vmatpush1.msra.mxu0 0.0
    %4514 = vmatprep.subr.mxu0 0.0
    %4515 = vmatpush1.msra.mxu0 0.0
    %4516 = vmatprep.subr.mxu0 0.0
    %4517 = vmatpush1.msra.mxu0 0.0
    %4518 = vmatprep.subr.mxu0 0.0
    %4519 = vmatpush1.msra.mxu0 0.0
    %4520 = vmatprep.subr.mxu0 0.0
    %4521 = vmatpush1.msra.mxu0 0.0
    %4522 = vmatprep.subr.mxu0 0.0
    %4523 = vmatpush1.msra.mxu0 0.0
    %4524 = vmatprep.subr.mxu0 0.0
    %4525 = vmatpush1.msra.mxu0 0.0
    %4526 = vmatprep.subr.mxu0 0.0
    %4527 = vmatpush1.msra.mxu0 0.0
    %4528 = vmatprep.subr.mxu0 0.0
    %4529 = vmatpush1.msra.mxu0 0.0
    %4530 = vmatprep.subr.mxu0 0.0
    %4531 = vmatpush1.msra.mxu0 0.0
    %4532 = vmatprep.subr.mxu0 0.0
    %4533 = vmatpush1.msra.mxu0 %v3213
    %4534 = vmatprep.subr.mxu0 0.0
    %4535 = vmatpush1.msra.mxu0 %v3212
    %4536 = vmatprep.subr.mxu0 0.0
    %4537 = vmatpush1.msra.mxu0 %v3211
    %4538 = vmatprep.subr.mxu0 0.0
    %4539 = vmatpush1.msra.mxu0 %v3210
    %4540 = vmatprep.subr.mxu0 0.0
    %4541 = vmatpush2.msra.mxu0 0.0
    %4542 = vmatprep.subr.mxu0 0.0
    %4543 = vmatpush2.msra.mxu0 0.0
    %4544 = vmatprep.subr.mxu0 0.0
    %4545 = vmatpush2.msra.mxu0 0.0
    %4546 = vmatprep.subr.mxu0 0.0
    %4547 = vmatpush2.msra.mxu0 0.0
    %4548 = vmatprep.subr.mxu0 0.0
    %4549 = vmatpush2.msra.mxu0 0.0
    %4550 = vmatprep.subr.mxu0 0.0
    %4551 = vmatpush2.msra.mxu0 0.0
    %4552 = vmatprep.subr.mxu0 0.0
    %4553 = vmatpush2.msra.mxu0 0.0
    %4554 = vmatprep.subr.mxu0 0.0
    %4555 = vmatpush2.msra.mxu0 0.0
    %4556 = vmatprep.subr.mxu0 0.0
    %4557 = vmatpush2.msra.mxu0 0.0
    %4558 = vmatprep.subr.mxu0 0.0
    %4559 = vmatpush2.msra.mxu0 0.0
    %4560 = vmatprep.subr.mxu0 0.0
    %4561 = vmatpush2.msra.mxu0 0.0
    %4562 = vmatprep.subr.mxu0 0.0
    %4563 = vmatpush2.msra.mxu0 0.0
    %4564 = vmatprep.subr.mxu0 0.0
    %4565 = vmatpush2.msra.mxu0 0.0
    %4566 = vmatprep.subr.mxu0 0.0
    %4567 = vmatpush2.msra.mxu0 0.0
    %4568 = vmatprep.subr.mxu0 0.0
    %4569 = vmatpush2.msra.mxu0 0.0
    %4570 = vmatprep.subr.mxu0 0.0
    %4571 = vmatpush2.msra.mxu0 0.0
    %4572 = vmatprep.mubr.f32.mxu0 0.0
    %4573 = vmatmul.mubr.f32.gmra.mxu0 %v3048
    %v4574 = vpop.f32.mrf.mxu0
    %v4575 = vadd.f32 0.0, %v4574
    %v4576 = vpop.f32.mrf.mxu0
    %4577 = vdwg.mxu0
    %4578 = vmatprep.subr.mxu0 0.0
    %4579 = vmatpush1.msra.mxu0 0.0
    %4580 = vmatprep.subr.mxu0 0.0
    %4581 = vmatpush1.msra.mxu0 0.0
    %4582 = vmatprep.subr.mxu0 0.0
    %4583 = vmatpush1.msra.mxu0 0.0
    %4584 = vmatprep.subr.mxu0 0.0
    %4585 = vmatpush1.msra.mxu0 0.0
    %4586 = vmatprep.subr.mxu0 0.0
    %4587 = vmatpush1.msra.mxu0 0.0
    %4588 = vmatprep.subr.mxu0 0.0
    %4589 = vmatpush1.msra.mxu0 0.0
    %4590 = vmatprep.subr.mxu0 0.0
    %4591 = vmatpush1.msra.mxu0 0.0
    %4592 = vmatprep.subr.mxu0 0.0
    %4593 = vmatpush1.msra.mxu0 0.0
    %4594 = vmatprep.subr.mxu0 0.0
    %4595 = vmatpush1.msra.mxu0 0.0
    %4596 = vmatprep.subr.mxu0 0.0
    %4597 = vmatpush1.msra.mxu0 0.0
    %4598 = vmatprep.subr.mxu0 0.0
    %4599 = vmatpush1.msra.mxu0 0.0
    %4600 = vmatprep.subr.mxu0 0.0
    %4601 = vmatpush1.msra.mxu0 0.0
    %4602 = vmatprep.subr.mxu0 0.0
    %4603 = vmatpush1.msra.mxu0 %v3217
    %4604 = vmatprep.subr.mxu0 0.0
    %4605 = vmatpush1.msra.mxu0 %v3216
    %4606 = vmatprep.subr.mxu0 0.0
    %4607 = vmatpush1.msra.mxu0 %v3215
    %4608 = vmatprep.subr.mxu0 0.0
    %4609 = vmatpush1.msra.mxu0 %v3214
    %4610 = vmatprep.subr.mxu0 0.0
    %4611 = vmatpush2.msra.mxu0 0.0
    %4612 = vmatprep.subr.mxu0 0.0
    %4613 = vmatpush2.msra.mxu0 0.0
    %4614 = vmatprep.subr.mxu0 0.0
    %4615 = vmatpush2.msra.mxu0 0.0
    %4616 = vmatprep.subr.mxu0 0.0
    %4617 = vmatpush2.msra.mxu0 0.0
    %4618 = vmatprep.subr.mxu0 0.0
    %4619 = vmatpush2.msra.mxu0 0.0
    %4620 = vmatprep.subr.mxu0 0.0
    %4621 = vmatpush2.msra.mxu0 0.0
    %4622 = vmatprep.subr.mxu0 0.0
    %4623 = vmatpush2.msra.mxu0 0.0
    %4624 = vmatprep.subr.mxu0 0.0
    %4625 = vmatpush2.msra.mxu0 0.0
    %4626 = vmatprep.subr.mxu0 0.0
    %4627 = vmatpush2.msra.mxu0 0.0
    %4628 = vmatprep.subr.mxu0 0.0
    %4629 = vmatpush2.msra.mxu0 0.0
    %4630 = vmatprep.subr.mxu0 0.0
    %4631 = vmatpush2.msra.mxu0 0.0
    %4632 = vmatprep.subr.mxu0 0.0
    %4633 = vmatpush2.msra.mxu0 0.0
    %4634 = vmatprep.subr.mxu0 0.0
    %4635 = vmatpush2.msra.mxu0 0.0
    %4636 = vmatprep.subr.mxu0 0.0
    %4637 = vmatpush2.msra.mxu0 0.0
    %4638 = vmatprep.subr.mxu0 0.0
    %4639 = vmatpush2.msra.mxu0 0.0
    %4640 = vmatprep.subr.mxu0 0.0
    %4641 = vmatpush2.msra.mxu0 0.0
    %4642 = vmatprep.mubr.f32.mxu0 0.0
    %4643 = vmatmul.mubr.f32.gmra.mxu0 %v3048
    %v4644 = vpop.f32.mrf.mxu0
    %v4645 = vadd.f32 0.0, %v4644
    %v4646 = vpop.f32.mrf.mxu0
    %4647 = vdwg.mxu0
    %4648 = vmatprep.subr.mxu0 0.0
    %4649 = vmatpush1.msra.mxu0 0.0
    %4650 = vmatprep.subr.mxu0 0.0
    %4651 = vmatpush1.msra.mxu0 0.0
    %4652 = vmatprep.subr.mxu0 0.0
    %4653 = vmatpush1.msra.mxu0 0.0
    %4654 = vmatprep.subr.mxu0 0.0
    %4655 = vmatpush1.msra.mxu0 0.0
    %4656 = vmatprep.subr.mxu0 0.0
    %4657 = vmatpush1.msra.mxu0 0.0
    %4658 = vmatprep.subr.mxu0 0.0
    %4659 = vmatpush1.msra.mxu0 0.0
    %4660 = vmatprep.subr.mxu0 0.0
    %4661 = vmatpush1.msra.mxu0 0.0
    %4662 = vmatprep.subr.mxu0 0.0
    %4663 = vmatpush1.msra.mxu0 0.0
    %4664 = vmatprep.subr.mxu0 0.0
    %4665 = vmatpush1.msra.mxu0 0.0
    %4666 = vmatprep.subr.mxu0 0.0
    %4667 = vmatpush1.msra.mxu0 0.0
    %4668 = vmatprep.subr.mxu0 0.0
    %4669 = vmatpush1.msra.mxu0 0.0
    %4670 = vmatprep.subr.mxu0 0.0
    %4671 = vmatpush1.msra.mxu0 0.0
    %4672 = vmatprep.subr.mxu0 0.0
    %4673 = vmatpush1.msra.mxu0 %v3221
    %4674 = vmatprep.subr.mxu0 0.0
    %4675 = vmatpush1.msra.mxu0 %v3220
    %4676 = vmatprep.subr.mxu0 0.0
    %4677 = vmatpush1.msra.mxu0 %v3219
    %4678 = vmatprep.subr.mxu0 0.0
    %4679 = vmatpush1.msra.mxu0 %v3218
    %4680 = vmatprep.subr.mxu0 0.0
    %4681 = vmatpush2.msra.mxu0 0.0
    %4682 = vmatprep.subr.mxu0 0.0
    %4683 = vmatpush2.msra.mxu0 0.0
    %4684 = vmatprep.subr.mxu0 0.0
    %4685 = vmatpush2.msra.mxu0 0.0
    %4686 = vmatprep.subr.mxu0 0.0
    %4687 = vmatpush2.msra.mxu0 0.0
    %4688 = vmatprep.subr.mxu0 0.0
    %4689 = vmatpush2.msra.mxu0 0.0
    %4690 = vmatprep.subr.mxu0 0.0
    %4691 = vmatpush2.msra.mxu0 0.0
    %4692 = vmatprep.subr.mxu0 0.0
    %4693 = vmatpush2.msra.mxu0 0.0
    %4694 = vmatprep.subr.mxu0 0.0
    %4695 = vmatpush2.msra.mxu0 0.0
    %4696 = vmatprep.subr.mxu0 0.0
    %4697 = vmatpush2.msra.mxu0 0.0
    %4698 = vmatprep.subr.mxu0 0.0
    %4699 = vmatpush2.msra.mxu0 0.0
    %4700 = vmatprep.subr.mxu0 0.0
    %4701 = vmatpush2.msra.mxu0 0.0
    %4702 = vmatprep.subr.mxu0 0.0
    %4703 = vmatpush2.msra.mxu0 0.0
    %4704 = vmatprep.subr.mxu0 0.0
    %4705 = vmatpush2.msra.mxu0 0.0
    %4706 = vmatprep.subr.mxu0 0.0
    %4707 = vmatpush2.msra.mxu0 0.0
    %4708 = vmatprep.subr.mxu0 0.0
    %4709 = vmatpush2.msra.mxu0 0.0
    %4710 = vmatprep.subr.mxu0 0.0
    %4711 = vmatpush2.msra.mxu0 0.0
    %4712 = vmatprep.mubr.f32.mxu0 0.0
    %4713 = vmatmul.mubr.f32.gmra.mxu0 %v3048
    %v4714 = vpop.f32.mrf.mxu0
    %v4715 = vadd.f32 0.0, %v4714
    %v4716 = vpop.f32.mrf.mxu0
    %4717 = vdwg.mxu0
    %v4719 = vsel %vm557, %v4505, 0
    %v4722 = vsel %vm557, %v3122, 0
    %4724 = vmatprep.subr.mxu0 0.0
    %4725 = vmatpush1.xpose.msra.mxu0 0.0
    %4726 = vmatprep.subr.mxu0 0.0
    %4727 = vmatpush1.xpose.msra.mxu0 0.0
    %4728 = vmatprep.subr.mxu0 0.0
    %4729 = vmatpush1.xpose.msra.mxu0 0.0
    %4730 = vmatprep.subr.mxu0 0.0
    %4731 = vmatpush1.xpose.msra.mxu0 0.0
    %4732 = vmatprep.subr.mxu0 0.0
    %4733 = vmatpush1.xpose.msra.mxu0 0.0
    %4734 = vmatprep.subr.mxu0 0.0
    %4735 = vmatpush1.xpose.msra.mxu0 0.0
    %4736 = vmatprep.subr.mxu0 0.0
    %4737 = vmatpush1.xpose.msra.mxu0 0.0
    %4738 = vmatprep.subr.mxu0 0.0
    %4739 = vmatpush1.xpose.msra.mxu0 0.0
    %4740 = vmatprep.subr.mxu0 0.0
    %4741 = vmatpush1.xpose.msra.mxu0 0.0
    %4742 = vmatprep.subr.mxu0 0.0
    %4743 = vmatpush1.xpose.msra.mxu0 0.0
    %4744 = vmatprep.subr.mxu0 0.0
    %4745 = vmatpush1.xpose.msra.mxu0 0.0
    %4746 = vmatprep.subr.mxu0 0.0
    %4747 = vmatpush1.xpose.msra.mxu0 0.0
    %4748 = vmatprep.subr.mxu0 0.0
    %4749 = vmatpush1.xpose.msra.mxu0 0.0
    %4750 = vmatprep.subr.mxu0 0.0
    %4751 = vmatpush1.xpose.msra.mxu0 0.0
    %4752 = vmatprep.subr.mxu0 0.0
    %4753 = vmatpush1.xpose.msra.mxu0 0.0
    %4754 = vmatprep.subr.mxu0 0.0
    %4755 = vmatpush1.xpose.msra.mxu0 %v4722
    %4756 = vmatprep.subr.mxu0 0.0
    %4757 = vmatpush2.xpose.msra.mxu0 0.0
    %4758 = vmatprep.subr.mxu0 0.0
    %4759 = vmatpush2.xpose.msra.mxu0 0.0
    %4760 = vmatprep.subr.mxu0 0.0
    %4761 = vmatpush2.xpose.msra.mxu0 0.0
    %4762 = vmatprep.subr.mxu0 0.0
    %4763 = vmatpush2.xpose.msra.mxu0 0.0
    %4764 = vmatprep.subr.mxu0 0.0
    %4765 = vmatpush2.xpose.msra.mxu0 0.0
    %4766 = vmatprep.subr.mxu0 0.0
    %4767 = vmatpush2.xpose.msra.mxu0 0.0
    %4768 = vmatprep.subr.mxu0 0.0
    %4769 = vmatpush2.xpose.msra.mxu0 0.0
    %4770 = vmatprep.subr.mxu0 0.0
    %4771 = vmatpush2.xpose.msra.mxu0 0.0
    %4772 = vmatprep.subr.mxu0 0.0
    %4773 = vmatpush2.xpose.msra.mxu0 0.0
    %4774 = vmatprep.subr.mxu0 0.0
    %4775 = vmatpush2.xpose.msra.mxu0 0.0
    %4776 = vmatprep.subr.mxu0 0.0
    %4777 = vmatpush2.xpose.msra.mxu0 0.0
    %4778 = vmatprep.subr.mxu0 0.0
    %4779 = vmatpush2.xpose.msra.mxu0 0.0
    %4780 = vmatprep.subr.mxu0 0.0
    %4781 = vmatpush2.xpose.msra.mxu0 0.0
    %4782 = vmatprep.subr.mxu0 0.0
    %4783 = vmatpush2.xpose.msra.mxu0 0.0
    %4784 = vmatprep.subr.mxu0 0.0
    %4785 = vmatpush2.xpose.msra.mxu0 0.0
    %4786 = vmatprep.subr.mxu0 0.0
    %4787 = vmatpush2.xpose.msra.mxu0 0.0
    %4788 = vmatprep.mubr.f32.mxu0 0.0
    %4789 = vmatmul.mubr.f32.gmra.mxu0 %v4719
    %v4790 = vpop.f32.mrf.mxu0
    %v4791 = vadd.f32 %v3228, %v4790
    %v4792 = vpop.f32.mrf.mxu0
    %4793 = vdwg.mxu0
    %v4795 = vsel %vm557, %v4575, 0
    %4797 = vmatprep.subr.mxu0 0.0
    %4798 = vmatpush1.xpose.msra.mxu0 0.0
    %4799 = vmatprep.subr.mxu0 0.0
    %4800 = vmatpush1.xpose.msra.mxu0 0.0
    %4801 = vmatprep.subr.mxu0 0.0
    %4802 = vmatpush1.xpose.msra.mxu0 0.0
    %4803 = vmatprep.subr.mxu0 0.0
    %4804 = vmatpush1.xpose.msra.mxu0 0.0
    %4805 = vmatprep.subr.mxu0 0.0
    %4806 = vmatpush1.xpose.msra.mxu0 0.0
    %4807 = vmatprep.subr.mxu0 0.0
    %4808 = vmatpush1.xpose.msra.mxu0 0.0
    %4809 = vmatprep.subr.mxu0 0.0
    %4810 = vmatpush1.xpose.msra.mxu0 0.0
    %4811 = vmatprep.subr.mxu0 0.0
    %4812 = vmatpush1.xpose.msra.mxu0 0.0
    %4813 = vmatprep.subr.mxu0 0.0
    %4814 = vmatpush1.xpose.msra.mxu0 0.0
    %4815 = vmatprep.subr.mxu0 0.0
    %4816 = vmatpush1.xpose.msra.mxu0 0.0
    %4817 = vmatprep.subr.mxu0 0.0
    %4818 = vmatpush1.xpose.msra.mxu0 0.0
    %4819 = vmatprep.subr.mxu0 0.0
    %4820 = vmatpush1.xpose.msra.mxu0 0.0
    %4821 = vmatprep.subr.mxu0 0.0
    %4822 = vmatpush1.xpose.msra.mxu0 0.0
    %4823 = vmatprep.subr.mxu0 0.0
    %4824 = vmatpush1.xpose.msra.mxu0 0.0
    %4825 = vmatprep.subr.mxu0 0.0
    %4826 = vmatpush1.xpose.msra.mxu0 0.0
    %4827 = vmatprep.subr.mxu0 0.0
    %4828 = vmatpush1.xpose.msra.mxu0 %v4722
    %4829 = vmatprep.subr.mxu0 0.0
    %4830 = vmatpush2.xpose.msra.mxu0 0.0
    %4831 = vmatprep.subr.mxu0 0.0
    %4832 = vmatpush2.xpose.msra.mxu0 0.0
    %4833 = vmatprep.subr.mxu0 0.0
    %4834 = vmatpush2.xpose.msra.mxu0 0.0
    %4835 = vmatprep.subr.mxu0 0.0
    %4836 = vmatpush2.xpose.msra.mxu0 0.0
    %4837 = vmatprep.subr.mxu0 0.0
    %4838 = vmatpush2.xpose.msra.mxu0 0.0
    %4839 = vmatprep.subr.mxu0 0.0
    %4840 = vmatpush2.xpose.msra.mxu0 0.0
    %4841 = vmatprep.subr.mxu0 0.0
    %4842 = vmatpush2.xpose.msra.mxu0 0.0
    %4843 = vmatprep.subr.mxu0 0.0
    %4844 = vmatpush2.xpose.msra.mxu0 0.0
    %4845 = vmatprep.subr.mxu0 0.0
    %4846 = vmatpush2.xpose.msra.mxu0 0.0
    %4847 = vmatprep.subr.mxu0 0.0
    %4848 = vmatpush2.xpose.msra.mxu0 0.0
    %4849 = vmatprep.subr.mxu0 0.0
    %4850 = vmatpush2.xpose.msra.mxu0 0.0
    %4851 = vmatprep.subr.mxu0 0.0
    %4852 = vmatpush2.xpose.msra.mxu0 0.0
    %4853 = vmatprep.subr.mxu0 0.0
    %4854 = vmatpush2.xpose.msra.mxu0 0.0
    %4855 = vmatprep.subr.mxu0 0.0
    %4856 = vmatpush2.xpose.msra.mxu0 0.0
    %4857 = vmatprep.subr.mxu0 0.0
    %4858 = vmatpush2.xpose.msra.mxu0 0.0
    %4859 = vmatprep.subr.mxu0 0.0
    %4860 = vmatpush2.xpose.msra.mxu0 0.0
    %4861 = vmatprep.mubr.f32.mxu0 0.0
    %4862 = vmatmul.mubr.f32.gmra.mxu0 %v4795
    %v4863 = vpop.f32.mrf.mxu0
    %v4864 = vadd.f32 %v3229, %v4863
    %v4865 = vpop.f32.mrf.mxu0
    %4866 = vdwg.mxu0
    %v4868 = vsel %vm557, %v4645, 0
    %4870 = vmatprep.subr.mxu0 0.0
    %4871 = vmatpush1.xpose.msra.mxu0 0.0
    %4872 = vmatprep.subr.mxu0 0.0
    %4873 = vmatpush1.xpose.msra.mxu0 0.0
    %4874 = vmatprep.subr.mxu0 0.0
    %4875 = vmatpush1.xpose.msra.mxu0 0.0
    %4876 = vmatprep.subr.mxu0 0.0
    %4877 = vmatpush1.xpose.msra.mxu0 0.0
    %4878 = vmatprep.subr.mxu0 0.0
    %4879 = vmatpush1.xpose.msra.mxu0 0.0
    %4880 = vmatprep.subr.mxu0 0.0
    %4881 = vmatpush1.xpose.msra.mxu0 0.0
    %4882 = vmatprep.subr.mxu0 0.0
    %4883 = vmatpush1.xpose.msra.mxu0 0.0
    %4884 = vmatprep.subr.mxu0 0.0
    %4885 = vmatpush1.xpose.msra.mxu0 0.0
    %4886 = vmatprep.subr.mxu0 0.0
    %4887 = vmatpush1.xpose.msra.mxu0 0.0
    %4888 = vmatprep.subr.mxu0 0.0
    %4889 = vmatpush1.xpose.msra.mxu0 0.0
    %4890 = vmatprep.subr.mxu0 0.0
    %4891 = vmatpush1.xpose.msra.mxu0 0.0
    %4892 = vmatprep.subr.mxu0 0.0
    %4893 = vmatpush1.xpose.msra.mxu0 0.0
    %4894 = vmatprep.subr.mxu0 0.0
    %4895 = vmatpush1.xpose.msra.mxu0 0.0
    %4896 = vmatprep.subr.mxu0 0.0
    %4897 = vmatpush1.xpose.msra.mxu0 0.0
    %4898 = vmatprep.subr.mxu0 0.0
    %4899 = vmatpush1.xpose.msra.mxu0 0.0
    %4900 = vmatprep.subr.mxu0 0.0
    %4901 = vmatpush1.xpose.msra.mxu0 %v4722
    %4902 = vmatprep.subr.mxu0 0.0
    %4903 = vmatpush2.xpose.msra.mxu0 0.0
    %4904 = vmatprep.subr.mxu0 0.0
    %4905 = vmatpush2.xpose.msra.mxu0 0.0
    %4906 = vmatprep.subr.mxu0 0.0
    %4907 = vmatpush2.xpose.msra.mxu0 0.0
    %4908 = vmatprep.subr.mxu0 0.0
    %4909 = vmatpush2.xpose.msra.mxu0 0.0
    %4910 = vmatprep.subr.mxu0 0.0
    %4911 = vmatpush2.xpose.msra.mxu0 0.0
    %4912 = vmatprep.subr.mxu0 0.0
    %4913 = vmatpush2.xpose.msra.mxu0 0.0
    %4914 = vmatprep.subr.mxu0 0.0
    %4915 = vmatpush2.xpose.msra.mxu0 0.0
    %4916 = vmatprep.subr.mxu0 0.0
    %4917 = vmatpush2.xpose.msra.mxu0 0.0
    %4918 = vmatprep.subr.mxu0 0.0
    %4919 = vmatpush2.xpose.msra.mxu0 0.0
    %4920 = vmatprep.subr.mxu0 0.0
    %4921 = vmatpush2.xpose.msra.mxu0 0.0
    %4922 = vmatprep.subr.mxu0 0.0
    %4923 = vmatpush2.xpose.msra.mxu0 0.0
    %4924 = vmatprep.subr.mxu0 0.0
    %4925 = vmatpush2.xpose.msra.mxu0 0.0
    %4926 = vmatprep.subr.mxu0 0.0
    %4927 = vmatpush2.xpose.msra.mxu0 0.0
    %4928 = vmatprep.subr.mxu0 0.0
    %4929 = vmatpush2.xpose.msra.mxu0 0.0
    %4930 = vmatprep.subr.mxu0 0.0
    %4931 = vmatpush2.xpose.msra.mxu0 0.0
    %4932 = vmatprep.subr.mxu0 0.0
    %4933 = vmatpush2.xpose.msra.mxu0 0.0
    %4934 = vmatprep.mubr.f32.mxu0 0.0
    %4935 = vmatmul.mubr.f32.gmra.mxu0 %v4868
    %v4936 = vpop.f32.mrf.mxu0
    %v4937 = vadd.f32 %v3230, %v4936
    %v4938 = vpop.f32.mrf.mxu0
    %4939 = vdwg.mxu0
    %v4941 = vsel %vm557, %v4715, 0
    %4943 = vmatprep.subr.mxu0 0.0
    %4944 = vmatpush1.xpose.msra.mxu0 0.0
    %4945 = vmatprep.subr.mxu0 0.0
    %4946 = vmatpush1.xpose.msra.mxu0 0.0
    %4947 = vmatprep.subr.mxu0 0.0
    %4948 = vmatpush1.xpose.msra.mxu0 0.0
    %4949 = vmatprep.subr.mxu0 0.0
    %4950 = vmatpush1.xpose.msra.mxu0 0.0
    %4951 = vmatprep.subr.mxu0 0.0
    %4952 = vmatpush1.xpose.msra.mxu0 0.0
    %4953 = vmatprep.subr.mxu0 0.0
    %4954 = vmatpush1.xpose.msra.mxu0 0.0
    %4955 = vmatprep.subr.mxu0 0.0
    %4956 = vmatpush1.xpose.msra.mxu0 0.0
    %4957 = vmatprep.subr.mxu0 0.0
    %4958 = vmatpush1.xpose.msra.mxu0 0.0
    %4959 = vmatprep.subr.mxu0 0.0
    %4960 = vmatpush1.xpose.msra.mxu0 0.0
    %4961 = vmatprep.subr.mxu0 0.0
    %4962 = vmatpush1.xpose.msra.mxu0 0.0
    %4963 = vmatprep.subr.mxu0 0.0
    %4964 = vmatpush1.xpose.msra.mxu0 0.0
    %4965 = vmatprep.subr.mxu0 0.0
    %4966 = vmatpush1.xpose.msra.mxu0 0.0
    %4967 = vmatprep.subr.mxu0 0.0
    %4968 = vmatpush1.xpose.msra.mxu0 0.0
    %4969 = vmatprep.subr.mxu0 0.0
    %4970 = vmatpush1.xpose.msra.mxu0 0.0
    %4971 = vmatprep.subr.mxu0 0.0
    %4972 = vmatpush1.xpose.msra.mxu0 0.0
    %4973 = vmatprep.subr.mxu0 0.0
    %4974 = vmatpush1.xpose.msra.mxu0 %v4722
    %4975 = vmatprep.subr.mxu0 0.0
    %4976 = vmatpush2.xpose.msra.mxu0 0.0
    %4977 = vmatprep.subr.mxu0 0.0
    %4978 = vmatpush2.xpose.msra.mxu0 0.0
    %4979 = vmatprep.subr.mxu0 0.0
    %4980 = vmatpush2.xpose.msra.mxu0 0.0
    %4981 = vmatprep.subr.mxu0 0.0
    %4982 = vmatpush2.xpose.msra.mxu0 0.0
    %4983 = vmatprep.subr.mxu0 0.0
    %4984 = vmatpush2.xpose.msra.mxu0 0.0
    %4985 = vmatprep.subr.mxu0 0.0
    %4986 = vmatpush2.xpose.msra.mxu0 0.0
    %4987 = vmatprep.subr.mxu0 0.0
    %4988 = vmatpush2.xpose.msra.mxu0 0.0
    %4989 = vmatprep.subr.mxu0 0.0
    %4990 = vmatpush2.xpose.msra.mxu0 0.0
    %4991 = vmatprep.subr.mxu0 0.0
    %4992 = vmatpush2.xpose.msra.mxu0 0.0
    %4993 = vmatprep.subr.mxu0 0.0
    %4994 = vmatpush2.xpose.msra.mxu0 0.0
    %4995 = vmatprep.subr.mxu0 0.0
    %4996 = vmatpush2.xpose.msra.mxu0 0.0
    %4997 = vmatprep.subr.mxu0 0.0
    %4998 = vmatpush2.xpose.msra.mxu0 0.0
    %4999 = vmatprep.subr.mxu0 0.0
    %5000 = vmatpush2.xpose.msra.mxu0 0.0
    %5001 = vmatprep.subr.mxu0 0.0
    %5002 = vmatpush2.xpose.msra.mxu0 0.0
    %5003 = vmatprep.subr.mxu0 0.0
    %5004 = vmatpush2.xpose.msra.mxu0 0.0
    %5005 = vmatprep.subr.mxu0 0.0
    %5006 = vmatpush2.xpose.msra.mxu0 0.0
    %5007 = vmatprep.mubr.f32.mxu0 0.0
    %5008 = vmatmul.mubr.f32.gmra.mxu0 %v4941
    %v5009 = vpop.f32.mrf.mxu0
    %v5010 = vadd.f32 %v3231, %v5009
    %v5011 = vpop.f32.mrf.mxu0
    %5012 = vdwg.mxu0
    %v5013 = vsel %vm557, %v4791, -inf
    %5014 = vmax.xlane.f32.xlu0 %v5013
    %v5015 = vpop.xlane.xlu0 %5014
    %v5016 = vsel %vm557, %v4864, -inf
    %5017 = vmax.xlane.f32.xlu0 %v5016
    %v5018 = vpop.xlane.xlu0 %5017
    %v5019 = vsel %vm557, %v4937, -inf
    %5020 = vmax.xlane.f32.xlu0 %v5019
    %v5021 = vpop.xlane.xlu0 %5020
    %v5022 = vsel %vm557, %v5010, -inf
    %5023 = vmax.xlane.f32.xlu0 %v5022
    %v5024 = vpop.xlane.xlu0 %5023
    %v5025 = vsub.f32 %v4791, %v5015
    %v5026 = vsub.f32 %v4864, %v5018
    %v5027 = vsub.f32 %v4937, %v5021
    %v5028 = vsub.f32 %v5010, %v5024
    %v5029 = vmul.f32 %v5025, 1.442695
    %v5030 = vpow.pop %v5029
    %v5031 = vmul.f32 %v5026, 1.442695
    %v5032 = vpow.pop %v5031
    %v5033 = vmul.f32 %v5027, 1.442695
    %v5034 = vpow.pop %v5033
    %v5035 = vmul.f32 %v5028, 1.442695
    %v5036 = vpow.pop %v5035
    %v5037 = vsel %vm557, %v5030, 0.0
    %5038 = vadd.xlane.f32.xlu0 %v5037
    %v5039 = vpop.xlane.xlu0 %5038
    %v5040 = vsel %vm557, %v5032, 0.0
    %5041 = vadd.xlane.f32.xlu0 %v5040
    %v5042 = vpop.xlane.xlu0 %5041
    %v5043 = vsel %vm557, %v5034, 0.0
    %5044 = vadd.xlane.f32.xlu0 %v5043
    %v5045 = vpop.xlane.xlu0 %5044
    %v5046 = vsel %vm557, %v5036, 0.0
    %5047 = vadd.xlane.f32.xlu0 %v5046
    %v5048 = vpop.xlane.xlu0 %5047
    %v5049 = vrcp.pop %v5039
    %v5050 = vmul.f32 %v5030, %v5049
    %v5051 = vrcp.pop %v5042
    %v5052 = vmul.f32 %v5032, %v5051
    %v5053 = vrcp.pop %v5045
    %v5054 = vmul.f32 %v5034, %v5053
    %v5055 = vrcp.pop %v5048
    %v5056 = vmul.f32 %v5036, %v5055
    %v5058 = vsel %vm557, %v5050, 0
    %5060 = vmatprep.subr.mxu0 0.0
    %5061 = vmatpush1.msra.mxu0 0.0
    %5062 = vmatprep.subr.mxu0 0.0
    %5063 = vmatpush1.msra.mxu0 0.0
    %5064 = vmatprep.subr.mxu0 0.0
    %5065 = vmatpush1.msra.mxu0 0.0
    %5066 = vmatprep.subr.mxu0 0.0
    %5067 = vmatpush1.msra.mxu0 0.0
    %5068 = vmatprep.subr.mxu0 0.0
    %5069 = vmatpush1.msra.mxu0 0.0
    %5070 = vmatprep.subr.mxu0 0.0
    %5071 = vmatpush1.msra.mxu0 0.0
    %5072 = vmatprep.subr.mxu0 0.0
    %5073 = vmatpush1.msra.mxu0 0.0
    %5074 = vmatprep.subr.mxu0 0.0
    %5075 = vmatpush1.msra.mxu0 0.0
    %5076 = vmatprep.subr.mxu0 0.0
    %5077 = vmatpush1.msra.mxu0 0.0
    %5078 = vmatprep.subr.mxu0 0.0
    %5079 = vmatpush1.msra.mxu0 0.0
    %5080 = vmatprep.subr.mxu0 0.0
    %5081 = vmatpush1.msra.mxu0 0.0
    %5082 = vmatprep.subr.mxu0 0.0
    %5083 = vmatpush1.msra.mxu0 0.0
    %5084 = vmatprep.subr.mxu0 0.0
    %5085 = vmatpush1.msra.mxu0 0.0
    %5086 = vmatprep.subr.mxu0 0.0
    %5087 = vmatpush1.msra.mxu0 0.0
    %5088 = vmatprep.subr.mxu0 0.0
    %5089 = vmatpush1.msra.mxu0 0.0
    %5090 = vmatprep.subr.mxu0 0.0
    %5091 = vmatpush1.msra.mxu0 %v3202
    %5092 = vmatprep.subr.mxu0 0.0
    %5093 = vmatpush2.msra.mxu0 0.0
    %5094 = vmatprep.subr.mxu0 0.0
    %5095 = vmatpush2.msra.mxu0 0.0
    %5096 = vmatprep.subr.mxu0 0.0
    %5097 = vmatpush2.msra.mxu0 0.0
    %5098 = vmatprep.subr.mxu0 0.0
    %5099 = vmatpush2.msra.mxu0 0.0
    %5100 = vmatprep.subr.mxu0 0.0
    %5101 = vmatpush2.msra.mxu0 0.0
    %5102 = vmatprep.subr.mxu0 0.0
    %5103 = vmatpush2.msra.mxu0 0.0
    %5104 = vmatprep.subr.mxu0 0.0
    %5105 = vmatpush2.msra.mxu0 0.0
    %5106 = vmatprep.subr.mxu0 0.0
    %5107 = vmatpush2.msra.mxu0 0.0
    %5108 = vmatprep.subr.mxu0 0.0
    %5109 = vmatpush2.msra.mxu0 0.0
    %5110 = vmatprep.subr.mxu0 0.0
    %5111 = vmatpush2.msra.mxu0 0.0
    %5112 = vmatprep.subr.mxu0 0.0
    %5113 = vmatpush2.msra.mxu0 0.0
    %5114 = vmatprep.subr.mxu0 0.0
    %5115 = vmatpush2.msra.mxu0 0.0
    %5116 = vmatprep.subr.mxu0 0.0
    %5117 = vmatpush2.msra.mxu0 0.0
    %5118 = vmatprep.subr.mxu0 0.0
    %5119 = vmatpush2.msra.mxu0 0.0
    %5120 = vmatprep.subr.mxu0 0.0
    %5121 = vmatpush2.msra.mxu0 0.0
    %5122 = vmatprep.subr.mxu0 0.0
    %5123 = vmatpush2.msra.mxu0 0.0
    %5124 = vmatprep.mubr.f32.mxu0 0.0
    %5125 = vmatmul.mubr.f32.gmra.mxu0 %v5058
    %v5126 = vpop.f32.mrf.mxu0
    %v5127 = vadd.f32 0.0, %v5126
    %v5128 = vpop.f32.mrf.mxu0
    %5129 = vdwg.mxu0
    %v5131 = vsel %vm557, %v5052, 0
    %5133 = vmatprep.subr.mxu0 0.0
    %5134 = vmatpush1.msra.mxu0 0.0
    %5135 = vmatprep.subr.mxu0 0.0
    %5136 = vmatpush1.msra.mxu0 0.0
    %5137 = vmatprep.subr.mxu0 0.0
    %5138 = vmatpush1.msra.mxu0 0.0
    %5139 = vmatprep.subr.mxu0 0.0
    %5140 = vmatpush1.msra.mxu0 0.0
    %5141 = vmatprep.subr.mxu0 0.0
    %5142 = vmatpush1.msra.mxu0 0.0
    %5143 = vmatprep.subr.mxu0 0.0
    %5144 = vmatpush1.msra.mxu0 0.0
    %5145 = vmatprep.subr.mxu0 0.0
    %5146 = vmatpush1.msra.mxu0 0.0
    %5147 = vmatprep.subr.mxu0 0.0
    %5148 = vmatpush1.msra.mxu0 0.0
    %5149 = vmatprep.subr.mxu0 0.0
    %5150 = vmatpush1.msra.mxu0 0.0
    %5151 = vmatprep.subr.mxu0 0.0
    %5152 = vmatpush1.msra.mxu0 0.0
    %5153 = vmatprep.subr.mxu0 0.0
    %5154 = vmatpush1.msra.mxu0 0.0
    %5155 = vmatprep.subr.mxu0 0.0
    %5156 = vmatpush1.msra.mxu0 0.0
    %5157 = vmatprep.subr.mxu0 0.0
    %5158 = vmatpush1.msra.mxu0 0.0
    %5159 = vmatprep.subr.mxu0 0.0
    %5160 = vmatpush1.msra.mxu0 0.0
    %5161 = vmatprep.subr.mxu0 0.0
    %5162 = vmatpush1.msra.mxu0 0.0
    %5163 = vmatprep.subr.mxu0 0.0
    %5164 = vmatpush1.msra.mxu0 %v3202
    %5165 = vmatprep.subr.mxu0 0.0
    %5166 = vmatpush2.msra.mxu0 0.0
    %5167 = vmatprep.subr.mxu0 0.0
    %5168 = vmatpush2.msra.mxu0 0.0
    %5169 = vmatprep.subr.mxu0 0.0
    %5170 = vmatpush2.msra.mxu0 0.0
    %5171 = vmatprep.subr.mxu0 0.0
    %5172 = vmatpush2.msra.mxu0 0.0
    %5173 = vmatprep.subr.mxu0 0.0
    %5174 = vmatpush2.msra.mxu0 0.0
    %5175 = vmatprep.subr.mxu0 0.0
    %5176 = vmatpush2.msra.mxu0 0.0
    %5177 = vmatprep.subr.mxu0 0.0
    %5178 = vmatpush2.msra.mxu0 0.0
    %5179 = vmatprep.subr.mxu0 0.0
    %5180 = vmatpush2.msra.mxu0 0.0
    %5181 = vmatprep.subr.mxu0 0.0
    %5182 = vmatpush2.msra.mxu0 0.0
    %5183 = vmatprep.subr.mxu0 0.0
    %5184 = vmatpush2.msra.mxu0 0.0
    %5185 = vmatprep.subr.mxu0 0.0
    %5186 = vmatpush2.msra.mxu0 0.0
    %5187 = vmatprep.subr.mxu0 0.0
    %5188 = vmatpush2.msra.mxu0 0.0
    %5189 = vmatprep.subr.mxu0 0.0
    %5190 = vmatpush2.msra.mxu0 0.0
    %5191 = vmatprep.subr.mxu0 0.0
    %5192 = vmatpush2.msra.mxu0 0.0
    %5193 = vmatprep.subr.mxu0 0.0
    %5194 = vmatpush2.msra.mxu0 0.0
    %5195 = vmatprep.subr.mxu0 0.0
    %5196 = vmatpush2.msra.mxu0 0.0
    %5197 = vmatprep.mubr.f32.mxu0 0.0
    %5198 = vmatmul.mubr.f32.gmra.mxu0 %v5131
    %v5199 = vpop.f32.mrf.mxu0
    %v5200 = vadd.f32 0.0, %v5199
    %v5201 = vpop.f32.mrf.mxu0
    %5202 = vdwg.mxu0
    %v5204 = vsel %vm557, %v5054, 0
    %5206 = vmatprep.subr.mxu0 0.0
    %5207 = vmatpush1.msra.mxu0 0.0
    %5208 = vmatprep.subr.mxu0 0.0
    %5209 = vmatpush1.msra.mxu0 0.0
    %5210 = vmatprep.subr.mxu0 0.0
    %5211 = vmatpush1.msra.mxu0 0.0
    %5212 = vmatprep.subr.mxu0 0.0
    %5213 = vmatpush1.msra.mxu0 0.0
    %5214 = vmatprep.subr.mxu0 0.0
    %5215 = vmatpush1.msra.mxu0 0.0
    %5216 = vmatprep.subr.mxu0 0.0
    %5217 = vmatpush1.msra.mxu0 0.0
    %5218 = vmatprep.subr.mxu0 0.0
    %5219 = vmatpush1.msra.mxu0 0.0
    %5220 = vmatprep.subr.mxu0 0.0
    %5221 = vmatpush1.msra.mxu0 0.0
    %5222 = vmatprep.subr.mxu0 0.0
    %5223 = vmatpush1.msra.mxu0 0.0
    %5224 = vmatprep.subr.mxu0 0.0
    %5225 = vmatpush1.msra.mxu0 0.0
    %5226 = vmatprep.subr.mxu0 0.0
    %5227 = vmatpush1.msra.mxu0 0.0
    %5228 = vmatprep.subr.mxu0 0.0
    %5229 = vmatpush1.msra.mxu0 0.0
    %5230 = vmatprep.subr.mxu0 0.0
    %5231 = vmatpush1.msra.mxu0 0.0
    %5232 = vmatprep.subr.mxu0 0.0
    %5233 = vmatpush1.msra.mxu0 0.0
    %5234 = vmatprep.subr.mxu0 0.0
    %5235 = vmatpush1.msra.mxu0 0.0
    %5236 = vmatprep.subr.mxu0 0.0
    %5237 = vmatpush1.msra.mxu0 %v3202
    %5238 = vmatprep.subr.mxu0 0.0
    %5239 = vmatpush2.msra.mxu0 0.0
    %5240 = vmatprep.subr.mxu0 0.0
    %5241 = vmatpush2.msra.mxu0 0.0
    %5242 = vmatprep.subr.mxu0 0.0
    %5243 = vmatpush2.msra.mxu0 0.0
    %5244 = vmatprep.subr.mxu0 0.0
    %5245 = vmatpush2.msra.mxu0 0.0
    %5246 = vmatprep.subr.mxu0 0.0
    %5247 = vmatpush2.msra.mxu0 0.0
    %5248 = vmatprep.subr.mxu0 0.0
    %5249 = vmatpush2.msra.mxu0 0.0
    %5250 = vmatprep.subr.mxu0 0.0
    %5251 = vmatpush2.msra.mxu0 0.0
    %5252 = vmatprep.subr.mxu0 0.0
    %5253 = vmatpush2.msra.mxu0 0.0
    %5254 = vmatprep.subr.mxu0 0.0
    %5255 = vmatpush2.msra.mxu0 0.0
    %5256 = vmatprep.subr.mxu0 0.0
    %5257 = vmatpush2.msra.mxu0 0.0
    %5258 = vmatprep.subr.mxu0 0.0
    %5259 = vmatpush2.msra.mxu0 0.0
    %5260 = vmatprep.subr.mxu0 0.0
    %5261 = vmatpush2.msra.mxu0 0.0
    %5262 = vmatprep.subr.mxu0 0.0
    %5263 = vmatpush2.msra.mxu0 0.0
    %5264 = vmatprep.subr.mxu0 0.0
    %5265 = vmatpush2.msra.mxu0 0.0
    %5266 = vmatprep.subr.mxu0 0.0
    %5267 = vmatpush2.msra.mxu0 0.0
    %5268 = vmatprep.subr.mxu0 0.0
    %5269 = vmatpush2.msra.mxu0 0.0
    %5270 = vmatprep.mubr.f32.mxu0 0.0
    %5271 = vmatmul.mubr.f32.gmra.mxu0 %v5204
    %v5272 = vpop.f32.mrf.mxu0
    %v5273 = vadd.f32 0.0, %v5272
    %v5274 = vpop.f32.mrf.mxu0
    %5275 = vdwg.mxu0
    %v5277 = vsel %vm557, %v5056, 0
    %5279 = vmatprep.subr.mxu0 0.0
    %5280 = vmatpush1.msra.mxu0 0.0
    %5281 = vmatprep.subr.mxu0 0.0
    %5282 = vmatpush1.msra.mxu0 0.0
    %5283 = vmatprep.subr.mxu0 0.0
    %5284 = vmatpush1.msra.mxu0 0.0
    %5285 = vmatprep.subr.mxu0 0.0
    %5286 = vmatpush1.msra.mxu0 0.0
    %5287 = vmatprep.subr.mxu0 0.0
    %5288 = vmatpush1.msra.mxu0 0.0
    %5289 = vmatprep.subr.mxu0 0.0
    %5290 = vmatpush1.msra.mxu0 0.0
    %5291 = vmatprep.subr.mxu0 0.0
    %5292 = vmatpush1.msra.mxu0 0.0
    %5293 = vmatprep.subr.mxu0 0.0
    %5294 = vmatpush1.msra.mxu0 0.0
    %5295 = vmatprep.subr.mxu0 0.0
    %5296 = vmatpush1.msra.mxu0 0.0
    %5297 = vmatprep.subr.mxu0 0.0
    %5298 = vmatpush1.msra.mxu0 0.0
    %5299 = vmatprep.subr.mxu0 0.0
    %5300 = vmatpush1.msra.mxu0 0.0
    %5301 = vmatprep.subr.mxu0 0.0
    %5302 = vmatpush1.msra.mxu0 0.0
    %5303 = vmatprep.subr.mxu0 0.0
    %5304 = vmatpush1.msra.mxu0 0.0
    %5305 = vmatprep.subr.mxu0 0.0
    %5306 = vmatpush1.msra.mxu0 0.0
    %5307 = vmatprep.subr.mxu0 0.0
    %5308 = vmatpush1.msra.mxu0 0.0
    %5309 = vmatprep.subr.mxu0 0.0
    %5310 = vmatpush1.msra.mxu0 %v3202
    %5311 = vmatprep.subr.mxu0 0.0
    %5312 = vmatpush2.msra.mxu0 0.0
    %5313 = vmatprep.subr.mxu0 0.0
    %5314 = vmatpush2.msra.mxu0 0.0
    %5315 = vmatprep.subr.mxu0 0.0
    %5316 = vmatpush2.msra.mxu0 0.0
    %5317 = vmatprep.subr.mxu0 0.0
    %5318 = vmatpush2.msra.mxu0 0.0
    %5319 = vmatprep.subr.mxu0 0.0
    %5320 = vmatpush2.msra.mxu0 0.0
    %5321 = vmatprep.subr.mxu0 0.0
    %5322 = vmatpush2.msra.mxu0 0.0
    %5323 = vmatprep.subr.mxu0 0.0
    %5324 = vmatpush2.msra.mxu0 0.0
    %5325 = vmatprep.subr.mxu0 0.0
    %5326 = vmatpush2.msra.mxu0 0.0
    %5327 = vmatprep.subr.mxu0 0.0
    %5328 = vmatpush2.msra.mxu0 0.0
    %5329 = vmatprep.subr.mxu0 0.0
    %5330 = vmatpush2.msra.mxu0 0.0
    %5331 = vmatprep.subr.mxu0 0.0
    %5332 = vmatpush2.msra.mxu0 0.0
    %5333 = vmatprep.subr.mxu0 0.0
    %5334 = vmatpush2.msra.mxu0 0.0
    %5335 = vmatprep.subr.mxu0 0.0
    %5336 = vmatpush2.msra.mxu0 0.0
    %5337 = vmatprep.subr.mxu0 0.0
    %5338 = vmatpush2.msra.mxu0 0.0
    %5339 = vmatprep.subr.mxu0 0.0
    %5340 = vmatpush2.msra.mxu0 0.0
    %5341 = vmatprep.subr.mxu0 0.0
    %5342 = vmatpush2.msra.mxu0 0.0
    %5343 = vmatprep.mubr.f32.mxu0 0.0
    %5344 = vmatmul.mubr.f32.gmra.mxu0 %v5277
    %v5345 = vpop.f32.mrf.mxu0
    %v5346 = vadd.f32 0.0, %v5345
    %v5347 = vpop.f32.mrf.mxu0
    %5348 = vdwg.mxu0
    %v5350 = vsel %vm557, %v5127, 0
    %5352 = vmatprep.subr.mxu0 0.0
    %5353 = vmatpush1.msra.mxu0 0.0
    %5354 = vmatprep.subr.mxu0 0.0
    %5355 = vmatpush1.msra.mxu0 0.0
    %5356 = vmatprep.subr.mxu0 0.0
    %5357 = vmatpush1.msra.mxu0 0.0
    %5358 = vmatprep.subr.mxu0 0.0
    %5359 = vmatpush1.msra.mxu0 0.0
    %5360 = vmatprep.subr.mxu0 0.0
    %5361 = vmatpush1.msra.mxu0 0.0
    %5362 = vmatprep.subr.mxu0 0.0
    %5363 = vmatpush1.msra.mxu0 0.0
    %5364 = vmatprep.subr.mxu0 0.0
    %5365 = vmatpush1.msra.mxu0 0.0
    %5366 = vmatprep.subr.mxu0 0.0
    %5367 = vmatpush1.msra.mxu0 0.0
    %5368 = vmatprep.subr.mxu0 0.0
    %5369 = vmatpush1.msra.mxu0 0.0
    %5370 = vmatprep.subr.mxu0 0.0
    %5371 = vmatpush1.msra.mxu0 0.0
    %5372 = vmatprep.subr.mxu0 0.0
    %5373 = vmatpush1.msra.mxu0 0.0
    %5374 = vmatprep.subr.mxu0 0.0
    %5375 = vmatpush1.msra.mxu0 0.0
    %5376 = vmatprep.subr.mxu0 0.0
    %5377 = vmatpush1.msra.mxu0 0.0
    %5378 = vmatprep.subr.mxu0 0.0
    %5379 = vmatpush1.msra.mxu0 0.0
    %5380 = vmatprep.subr.mxu0 0.0
    %5381 = vmatpush1.msra.mxu0 0.0
    %5382 = vmatprep.subr.mxu0 0.0
    %5383 = vmatpush1.msra.mxu0 %v3223
    %5384 = vmatprep.subr.mxu0 0.0
    %5385 = vmatpush2.msra.mxu0 0.0
    %5386 = vmatprep.subr.mxu0 0.0
    %5387 = vmatpush2.msra.mxu0 0.0
    %5388 = vmatprep.subr.mxu0 0.0
    %5389 = vmatpush2.msra.mxu0 0.0
    %5390 = vmatprep.subr.mxu0 0.0
    %5391 = vmatpush2.msra.mxu0 0.0
    %5392 = vmatprep.subr.mxu0 0.0
    %5393 = vmatpush2.msra.mxu0 0.0
    %5394 = vmatprep.subr.mxu0 0.0
    %5395 = vmatpush2.msra.mxu0 0.0
    %5396 = vmatprep.subr.mxu0 0.0
    %5397 = vmatpush2.msra.mxu0 0.0
    %5398 = vmatprep.subr.mxu0 0.0
    %5399 = vmatpush2.msra.mxu0 0.0
    %5400 = vmatprep.subr.mxu0 0.0
    %5401 = vmatpush2.msra.mxu0 0.0
    %5402 = vmatprep.subr.mxu0 0.0
    %5403 = vmatpush2.msra.mxu0 0.0
    %5404 = vmatprep.subr.mxu0 0.0
    %5405 = vmatpush2.msra.mxu0 0.0
    %5406 = vmatprep.subr.mxu0 0.0
    %5407 = vmatpush2.msra.mxu0 0.0
    %5408 = vmatprep.subr.mxu0 0.0
    %5409 = vmatpush2.msra.mxu0 0.0
    %5410 = vmatprep.subr.mxu0 0.0
    %5411 = vmatpush2.msra.mxu0 0.0
    %5412 = vmatprep.subr.mxu0 0.0
    %5413 = vmatpush2.msra.mxu0 0.0
    %5414 = vmatprep.subr.mxu0 0.0
    %5415 = vmatpush2.msra.mxu0 0.0
    %5416 = vmatprep.mubr.f32.mxu0 0.0
    %5417 = vmatmul.mubr.f32.gmra.mxu0 %v5350
    %v5418 = vpop.f32.mrf.mxu0
    %v5419 = vadd.f32 0.0, %v5418
    %v5420 = vpop.f32.mrf.mxu0
    %5421 = vdwg.mxu0
    %v5423 = vsel %vm557, %v5200, 0
    %5425 = vmatprep.subr.mxu0 0.0
    %5426 = vmatpush1.msra.mxu0 0.0
    %5427 = vmatprep.subr.mxu0 0.0
    %5428 = vmatpush1.msra.mxu0 0.0
    %5429 = vmatprep.subr.mxu0 0.0
    %5430 = vmatpush1.msra.mxu0 0.0
    %5431 = vmatprep.subr.mxu0 0.0
    %5432 = vmatpush1.msra.mxu0 0.0
    %5433 = vmatprep.subr.mxu0 0.0
    %5434 = vmatpush1.msra.mxu0 0.0
    %5435 = vmatprep.subr.mxu0 0.0
    %5436 = vmatpush1.msra.mxu0 0.0
    %5437 = vmatprep.subr.mxu0 0.0
    %5438 = vmatpush1.msra.mxu0 0.0
    %5439 = vmatprep.subr.mxu0 0.0
    %5440 = vmatpush1.msra.mxu0 0.0
    %5441 = vmatprep.subr.mxu0 0.0
    %5442 = vmatpush1.msra.mxu0 0.0
    %5443 = vmatprep.subr.mxu0 0.0
    %5444 = vmatpush1.msra.mxu0 0.0
    %5445 = vmatprep.subr.mxu0 0.0
    %5446 = vmatpush1.msra.mxu0 0.0
    %5447 = vmatprep.subr.mxu0 0.0
    %5448 = vmatpush1.msra.mxu0 0.0
    %5449 = vmatprep.subr.mxu0 0.0
    %5450 = vmatpush1.msra.mxu0 0.0
    %5451 = vmatprep.subr.mxu0 0.0
    %5452 = vmatpush1.msra.mxu0 0.0
    %5453 = vmatprep.subr.mxu0 0.0
    %5454 = vmatpush1.msra.mxu0 0.0
    %5455 = vmatprep.subr.mxu0 0.0
    %5456 = vmatpush1.msra.mxu0 %v3224
    %5457 = vmatprep.subr.mxu0 0.0
    %5458 = vmatpush2.msra.mxu0 0.0
    %5459 = vmatprep.subr.mxu0 0.0
    %5460 = vmatpush2.msra.mxu0 0.0
    %5461 = vmatprep.subr.mxu0 0.0
    %5462 = vmatpush2.msra.mxu0 0.0
    %5463 = vmatprep.subr.mxu0 0.0
    %5464 = vmatpush2.msra.mxu0 0.0
    %5465 = vmatprep.subr.mxu0 0.0
    %5466 = vmatpush2.msra.mxu0 0.0
    %5467 = vmatprep.subr.mxu0 0.0
    %5468 = vmatpush2.msra.mxu0 0.0
    %5469 = vmatprep.subr.mxu0 0.0
    %5470 = vmatpush2.msra.mxu0 0.0
    %5471 = vmatprep.subr.mxu0 0.0
    %5472 = vmatpush2.msra.mxu0 0.0
    %5473 = vmatprep.subr.mxu0 0.0
    %5474 = vmatpush2.msra.mxu0 0.0
    %5475 = vmatprep.subr.mxu0 0.0
    %5476 = vmatpush2.msra.mxu0 0.0
    %5477 = vmatprep.subr.mxu0 0.0
    %5478 = vmatpush2.msra.mxu0 0.0
    %5479 = vmatprep.subr.mxu0 0.0
    %5480 = vmatpush2.msra.mxu0 0.0
    %5481 = vmatprep.subr.mxu0 0.0
    %5482 = vmatpush2.msra.mxu0 0.0
    %5483 = vmatprep.subr.mxu0 0.0
    %5484 = vmatpush2.msra.mxu0 0.0
    %5485 = vmatprep.subr.mxu0 0.0
    %5486 = vmatpush2.msra.mxu0 0.0
    %5487 = vmatprep.subr.mxu0 0.0
    %5488 = vmatpush2.msra.mxu0 0.0
    %5489 = vmatprep.mubr.f32.mxu0 0.0
    %5490 = vmatmul.mubr.f32.gmra.mxu0 %v5423
    %v5491 = vpop.f32.mrf.mxu0
    %v5492 = vadd.f32 0.0, %v5491
    %v5493 = vpop.f32.mrf.mxu0
    %5494 = vdwg.mxu0
    %v5496 = vsel %vm557, %v5273, 0
    %5498 = vmatprep.subr.mxu0 0.0
    %5499 = vmatpush1.msra.mxu0 0.0
    %5500 = vmatprep.subr.mxu0 0.0
    %5501 = vmatpush1.msra.mxu0 0.0
    %5502 = vmatprep.subr.mxu0 0.0
    %5503 = vmatpush1.msra.mxu0 0.0
    %5504 = vmatprep.subr.mxu0 0.0
    %5505 = vmatpush1.msra.mxu0 0.0
    %5506 = vmatprep.subr.mxu0 0.0
    %5507 = vmatpush1.msra.mxu0 0.0
    %5508 = vmatprep.subr.mxu0 0.0
    %5509 = vmatpush1.msra.mxu0 0.0
    %5510 = vmatprep.subr.mxu0 0.0
    %5511 = vmatpush1.msra.mxu0 0.0
    %5512 = vmatprep.subr.mxu0 0.0
    %5513 = vmatpush1.msra.mxu0 0.0
    %5514 = vmatprep.subr.mxu0 0.0
    %5515 = vmatpush1.msra.mxu0 0.0
    %5516 = vmatprep.subr.mxu0 0.0
    %5517 = vmatpush1.msra.mxu0 0.0
    %5518 = vmatprep.subr.mxu0 0.0
    %5519 = vmatpush1.msra.mxu0 0.0
    %5520 = vmatprep.subr.mxu0 0.0
    %5521 = vmatpush1.msra.mxu0 0.0
    %5522 = vmatprep.subr.mxu0 0.0
    %5523 = vmatpush1.msra.mxu0 0.0
    %5524 = vmatprep.subr.mxu0 0.0
    %5525 = vmatpush1.msra.mxu0 0.0
    %5526 = vmatprep.subr.mxu0 0.0
    %5527 = vmatpush1.msra.mxu0 0.0
    %5528 = vmatprep.subr.mxu0 0.0
    %5529 = vmatpush1.msra.mxu0 %v3225
    %5530 = vmatprep.subr.mxu0 0.0
    %5531 = vmatpush2.msra.mxu0 0.0
    %5532 = vmatprep.subr.mxu0 0.0
    %5533 = vmatpush2.msra.mxu0 0.0
    %5534 = vmatprep.subr.mxu0 0.0
    %5535 = vmatpush2.msra.mxu0 0.0
    %5536 = vmatprep.subr.mxu0 0.0
    %5537 = vmatpush2.msra.mxu0 0.0
    %5538 = vmatprep.subr.mxu0 0.0
    %5539 = vmatpush2.msra.mxu0 0.0
    %5540 = vmatprep.subr.mxu0 0.0
    %5541 = vmatpush2.msra.mxu0 0.0
    %5542 = vmatprep.subr.mxu0 0.0
    %5543 = vmatpush2.msra.mxu0 0.0
    %5544 = vmatprep.subr.mxu0 0.0
    %5545 = vmatpush2.msra.mxu0 0.0
    %5546 = vmatprep.subr.mxu0 0.0
    %5547 = vmatpush2.msra.mxu0 0.0
    %5548 = vmatprep.subr.mxu0 0.0
    %5549 = vmatpush2.msra.mxu0 0.0
    %5550 = vmatprep.subr.mxu0 0.0
    %5551 = vmatpush2.msra.mxu0 0.0
    %5552 = vmatprep.subr.mxu0 0.0
    %5553 = vmatpush2.msra.mxu0 0.0
    %5554 = vmatprep.subr.mxu0 0.0
    %5555 = vmatpush2.msra.mxu0 0.0
    %5556 = vmatprep.subr.mxu0 0.0
    %5557 = vmatpush2.msra.mxu0 0.0
    %5558 = vmatprep.subr.mxu0 0.0
    %5559 = vmatpush2.msra.mxu0 0.0
    %5560 = vmatprep.subr.mxu0 0.0
    %5561 = vmatpush2.msra.mxu0 0.0
    %5562 = vmatprep.mubr.f32.mxu0 0.0
    %5563 = vmatmul.mubr.f32.gmra.mxu0 %v5496
    %v5564 = vpop.f32.mrf.mxu0
    %v5565 = vadd.f32 0.0, %v5564
    %v5566 = vpop.f32.mrf.mxu0
    %5567 = vdwg.mxu0
    %v5569 = vsel %vm557, %v5346, 0
    %5571 = vmatprep.subr.mxu0 0.0
    %5572 = vmatpush1.msra.mxu0 0.0
    %5573 = vmatprep.subr.mxu0 0.0
    %5574 = vmatpush1.msra.mxu0 0.0
    %5575 = vmatprep.subr.mxu0 0.0
    %5576 = vmatpush1.msra.mxu0 0.0
    %5577 = vmatprep.subr.mxu0 0.0
    %5578 = vmatpush1.msra.mxu0 0.0
    %5579 = vmatprep.subr.mxu0 0.0
    %5580 = vmatpush1.msra.mxu0 0.0
    %5581 = vmatprep.subr.mxu0 0.0
    %5582 = vmatpush1.msra.mxu0 0.0
    %5583 = vmatprep.subr.mxu0 0.0
    %5584 = vmatpush1.msra.mxu0 0.0
    %5585 = vmatprep.subr.mxu0 0.0
    %5586 = vmatpush1.msra.mxu0 0.0
    %5587 = vmatprep.subr.mxu0 0.0
    %5588 = vmatpush1.msra.mxu0 0.0
    %5589 = vmatprep.subr.mxu0 0.0
    %5590 = vmatpush1.msra.mxu0 0.0
    %5591 = vmatprep.subr.mxu0 0.0
    %5592 = vmatpush1.msra.mxu0 0.0
    %5593 = vmatprep.subr.mxu0 0.0
    %5594 = vmatpush1.msra.mxu0 0.0
    %5595 = vmatprep.subr.mxu0 0.0
    %5596 = vmatpush1.msra.mxu0 0.0
    %5597 = vmatprep.subr.mxu0 0.0
    %5598 = vmatpush1.msra.mxu0 0.0
    %5599 = vmatprep.subr.mxu0 0.0
    %5600 = vmatpush1.msra.mxu0 0.0
    %5601 = vmatprep.subr.mxu0 0.0
    %5602 = vmatpush1.msra.mxu0 %v3226
    %5603 = vmatprep.subr.mxu0 0.0
    %5604 = vmatpush2.msra.mxu0 0.0
    %5605 = vmatprep.subr.mxu0 0.0
    %5606 = vmatpush2.msra.mxu0 0.0
    %5607 = vmatprep.subr.mxu0 0.0
    %5608 = vmatpush2.msra.mxu0 0.0
    %5609 = vmatprep.subr.mxu0 0.0
    %5610 = vmatpush2.msra.mxu0 0.0
    %5611 = vmatprep.subr.mxu0 0.0
    %5612 = vmatpush2.msra.mxu0 0.0
    %5613 = vmatprep.subr.mxu0 0.0
    %5614 = vmatpush2.msra.mxu0 0.0
    %5615 = vmatprep.subr.mxu0 0.0
    %5616 = vmatpush2.msra.mxu0 0.0
    %5617 = vmatprep.subr.mxu0 0.0
    %5618 = vmatpush2.msra.mxu0 0.0
    %5619 = vmatprep.subr.mxu0 0.0
    %5620 = vmatpush2.msra.mxu0 0.0
    %5621 = vmatprep.subr.mxu0 0.0
    %5622 = vmatpush2.msra.mxu0 0.0
    %5623 = vmatprep.subr.mxu0 0.0
    %5624 = vmatpush2.msra.mxu0 0.0
    %5625 = vmatprep.subr.mxu0 0.0
    %5626 = vmatpush2.msra.mxu0 0.0
    %5627 = vmatprep.subr.mxu0 0.0
    %5628 = vmatpush2.msra.mxu0 0.0
    %5629 = vmatprep.subr.mxu0 0.0
    %5630 = vmatpush2.msra.mxu0 0.0
    %5631 = vmatprep.subr.mxu0 0.0
    %5632 = vmatpush2.msra.mxu0 0.0
    %5633 = vmatprep.subr.mxu0 0.0
    %5634 = vmatpush2.msra.mxu0 0.0
    %5635 = vmatprep.mubr.f32.mxu0 0.0
    %5636 = vmatmul.mubr.f32.gmra.mxu0 %v5569
    %v5637 = vpop.f32.mrf.mxu0
    %v5638 = vadd.f32 0.0, %v5637
    %v5639 = vpop.f32.mrf.mxu0
    %5640 = vdwg.mxu0
    %v5641 = vadd.f32 %v5419, %v5492
    %v5642 = vadd.f32 %v5641, %v5565
    %v5643 = vadd.f32 %v5642, %v5638
    %v5644 = vadd.f32 %v2996, %v4437
    %v5645 = vadd.f32 %v2997, %v5643
    %v5646 = vld [vmem:[%s2998 + $0x2] sm:$0x1]
    %v5647 = vlaneseq
    %v5648 = vshrl.u32 %v5647, 7
    %v5649 = vsub.s32 0, %v5648
    %v5650 = vrot.slane %v5646, %v5649
    %v5651 = vadd.f32 %v5644, %v5650
    %v5652 = vadd.f32 %v5645, %v5650
    %v5653 = vld [vmem:[%s2998 + $0x3] sm:$0x1]
    %v5654 = vld [vmem:[%s2998 + $0x4] sm:$0x1]
    %v5655 = vsel %vm49, %v5651, 0.0
    %5656 = vadd.xlane.f32.xlu0 %v5655
    %v5657 = vpop.xlane.xlu0 %5656
    %v5658 = vsel %vm49, %v5652, 0.0
    %5659 = vadd.xlane.f32.xlu0 %v5658
    %v5660 = vpop.xlane.xlu0 %5659
    %v5661 = vmul.f32 %v5657, %v56
    %v5662 = vmul.f32 %v5660, %v56
    %v5663 = vsub.f32 %v5651, %v5661
    %v5664 = vsub.f32 %v5652, %v5662
    %v5665 = vmul.f32 %v5663, %v5663
    %v5666 = vmul.f32 %v5664, %v5664
    %v5667 = vsel %vm49, %v5665, 0.0
    %5668 = vadd.xlane.f32.xlu0 %v5667
    %v5669 = vpop.xlane.xlu0 %5668
    %v5670 = vsel %vm49, %v5666, 0.0
    %5671 = vadd.xlane.f32.xlu0 %v5670
    %v5672 = vpop.xlane.xlu0 %5671
    %v5673 = vmul.f32 %v5669, %v56
    %v5674 = vmul.f32 %v5672, %v56
    %v5675 = vadd.f32 %v5673, 1e-05
    %v5676 = vadd.f32 %v5674, 1e-05
    %v5677 = vrsqrt.pop %v5675
    %v5678 = vrsqrt.pop %v5676
    %v5679 = vmul.f32 %v5663, %v5677
    %v5680 = vmul.f32 %v5664, %v5678
    %v5681 = vlaneseq
    %v5682 = vshrl.u32 %v5681, 7
    %v5683 = vsub.s32 0, %v5682
    %v5684 = vrot.slane %v5653, %v5683
    %v5685 = vmul.f32 %v5679, %v5684
    %v5686 = vmul.f32 %v5680, %v5684
    %v5687 = vlaneseq
    %v5688 = vshrl.u32 %v5687, 7
    %v5689 = vsub.s32 0, %v5688
    %v5690 = vrot.slane %v5654, %v5689
    %v5691 = vadd.f32 %v5685, %v5690
    %v5692 = vadd.f32 %v5686, %v5690
    %s5693 = scalar_lea.vmem %s7, 64
    %v5694 = vld [vmem:[%s5693] sm:$0xff]
    %v5695 = vld [vmem:[%s5693 + $0x8] sm:$0xff]
    %v5696 = vld [vmem:[%s5693 + $0x10] sm:$0xff]
    %v5697 = vld [vmem:[%s5693 + $0x18] sm:$0xff]
    %v5698 = vld [vmem:[%s5693 + $0x20] sm:$0xff]
    %v5699 = vld [vmem:[%s5693 + $0x28] sm:$0xff]
    %v5700 = vld [vmem:[%s5693 + $0x30] sm:$0xff]
    %v5701 = vld [vmem:[%s5693 + $0x38] sm:$0xff]
    %s5702 = scalar_lea.vmem %s8, 2
    %v5703 = vld [vmem:[%s5702] sm:$0x3]
    %v5705 = vlaneseq
    %v5706 = vshrl.u32 %v5705, 7
    %v5707 = vsub.s32 0, %v5706
    %v5708 = vrot.slane %v5703, %v5707
    %v5709 = vlaneseq
    %v5710 = vshrl.u32 %v5709, 7
    %v5711 = vsub.s32 1, %v5710
    %v5712 = vrot.slane %v5703, %v5711
    %v5716 = vsel %vm49, %v5691, 0
    %v5719 = vsel %vm49, %v5692, 0
    %5721 = vmatprep.subr.mxu0 0.0
    %5722 = vmatpush1.msra.mxu0 0.0
    %5723 = vmatprep.subr.mxu0 0.0
    %5724 = vmatpush1.msra.mxu0 0.0
    %5725 = vmatprep.subr.mxu0 0.0
    %5726 = vmatpush1.msra.mxu0 0.0
    %5727 = vmatprep.subr.mxu0 0.0
    %5728 = vmatpush1.msra.mxu0 0.0
    %5729 = vmatprep.subr.mxu0 0.0
    %5730 = vmatpush1.msra.mxu0 0.0
    %5731 = vmatprep.subr.mxu0 0.0
    %5732 = vmatpush1.msra.mxu0 0.0
    %5733 = vmatprep.subr.mxu0 0.0
    %5734 = vmatpush1.msra.mxu0 0.0
    %5735 = vmatprep.subr.mxu0 0.0
    %5736 = vmatpush1.msra.mxu0 0.0
    %5737 = vmatprep.subr.mxu0 0.0
    %5738 = vmatpush1.msra.mxu0 0.0
    %5739 = vmatprep.subr.mxu0 0.0
    %5740 = vmatpush1.msra.mxu0 0.0
    %5741 = vmatprep.subr.mxu0 0.0
    %5742 = vmatpush1.msra.mxu0 0.0
    %5743 = vmatprep.subr.mxu0 0.0
    %5744 = vmatpush1.msra.mxu0 0.0
    %5745 = vmatprep.subr.mxu0 %v5701
    %5746 = vmatpush1.msra.mxu0 %v5700
    %5747 = vmatprep.subr.mxu0 %v5699
    %5748 = vmatpush1.msra.mxu0 %v5698
    %5749 = vmatprep.subr.mxu0 %v5697
    %5750 = vmatpush1.msra.mxu0 %v5696
    %5751 = vmatprep.subr.mxu0 %v5695
    %5752 = vmatpush1.msra.mxu0 %v5694
    %5753 = vmatprep.subr.mxu0 0.0
    %5754 = vmatpush2.msra.mxu0 0.0
    %5755 = vmatprep.subr.mxu0 0.0
    %5756 = vmatpush2.msra.mxu0 0.0
    %5757 = vmatprep.subr.mxu0 0.0
    %5758 = vmatpush2.msra.mxu0 0.0
    %5759 = vmatprep.subr.mxu0 0.0
    %5760 = vmatpush2.msra.mxu0 0.0
    %5761 = vmatprep.subr.mxu0 0.0
    %5762 = vmatpush2.msra.mxu0 0.0
    %5763 = vmatprep.subr.mxu0 0.0
    %5764 = vmatpush2.msra.mxu0 0.0
    %5765 = vmatprep.subr.mxu0 0.0
    %5766 = vmatpush2.msra.mxu0 0.0
    %5767 = vmatprep.subr.mxu0 0.0
    %5768 = vmatpush2.msra.mxu0 0.0
    %5769 = vmatprep.subr.mxu0 0.0
    %5770 = vmatpush2.msra.mxu0 0.0
    %5771 = vmatprep.subr.mxu0 0.0
    %5772 = vmatpush2.msra.mxu0 0.0
    %5773 = vmatprep.subr.mxu0 0.0
    %5774 = vmatpush2.msra.mxu0 0.0
    %5775 = vmatprep.subr.mxu0 0.0
    %5776 = vmatpush2.msra.mxu0 0.0
    %5777 = vmatprep.subr.mxu0 0.0
    %5778 = vmatpush2.msra.mxu0 0.0
    %5779 = vmatprep.subr.mxu0 0.0
    %5780 = vmatpush2.msra.mxu0 0.0
    %5781 = vmatprep.subr.mxu0 0.0
    %5782 = vmatpush2.msra.mxu0 0.0
    %5783 = vmatprep.subr.mxu0 0.0
    %5784 = vmatpush2.msra.mxu0 0.0
    %5785 = vmatprep.mubr.f32.mxu0 0.0
    %5786 = vmatmul.mubr.f32.gmra.mxu0 %v5716
    %v5787 = vpop.f32.mrf.mxu0
    %v5788 = vadd.f32 %v5708, %v5787
    %v5789 = vpop.f32.mrf.mxu0
    %v5790 = vadd.f32 %v5712, %v5789
    %5791 = vmatprep.mubr.f32.mxu0 0.0
    %5792 = vmatmul.mubr.f32.gmra.mxu0 %v5719
    %v5793 = vpop.f32.mrf.mxu0
    %v5794 = vadd.f32 %v5708, %v5793
    %v5795 = vpop.f32.mrf.mxu0
    %v5796 = vadd.f32 %v5712, %v5795
    %5797 = vdwg.mxu0
    %v5798 = vmul.f32 %v5790, 0.5
    %v5799 = vmul.f32 %v5796, 0.5
    %v5800 = vmul.f32 %v5790, 0.70710677
    %v5801 = vmul.f32 %v5796, 0.70710677
    %v5802 = vand.u32 2147483647, %v5800
    %v5803 = vand.u32 2147483647, %v5801
    %v5804 = vmul.f32 %v5802, 0.3275911
    %v5805 = vmul.f32 %v5803, 0.3275911
    %v5806 = vadd.f32 %v5804, 1.0
    %v5807 = vadd.f32 %v5805, 1.0
    %v5808 = vrcp.pop %v5806
    %v5809 = vmul.f32 1.0, %v5808
    %v5810 = vrcp.pop %v5807
    %v5811 = vmul.f32 1.0, %v5810
    %v5812 = vmul.f32 %v5809, 1.0614054
    %v5813 = vmul.f32 %v5811, 1.0614054
    %v5814 = vadd.f32 %v5812, -1.4531521
    %v5815 = vadd.f32 %v5813, -1.4531521
    %v5816 = vmul.f32 %v5814, %v5809
    %v5817 = vmul.f32 %v5815, %v5811
    %v5818 = vadd.f32 %v5816, 1.4214138
    %v5819 = vadd.f32 %v5817, 1.4214138
    %v5820 = vmul.f32 %v5818, %v5809
    %v5821 = vmul.f32 %v5819, %v5811
    %v5822 = vadd.f32 %v5820, -0.28449672
    %v5823 = vadd.f32 %v5821, -0.28449672
    %v5824 = vmul.f32 %v5822, %v5809
    %v5825 = vmul.f32 %v5823, %v5811
    %v5826 = vadd.f32 %v5824, 0.2548296
    %v5827 = vadd.f32 %v5825, 0.2548296
    %v5828 = vmul.f32 %v5826, %v5809
    %v5829 = vmul.f32 %v5827, %v5811
    %v5830 = vsub.f32 0.0, %v5802
    %v5831 = vsub.f32 0.0, %v5803
    %v5832 = vmul.f32 %v5830, %v5802
    %v5833 = vmul.f32 %v5831, %v5803
    %v5834 = vmul.f32 %v5832, 1.442695
    %v5835 = vpow.pop %v5834
    %v5836 = vmul.f32 %v5833, 1.442695
    %v5837 = vpow.pop %v5836
    %v5838 = vmul.f32 %v5828, %v5835
    %v5839 = vmul.f32 %v5829, %v5837
    %v5840 = vsub.f32 1.0, %v5838
    %v5841 = vsub.f32 1.0, %v5839
    %vm5842 = vcmp.lt.f32.partialorder %v5800, 0.0
    %vm5843 = vcmp.lt.f32.partialorder %v5801, 0.0
    %v5844 = vsub.f32 0.0, %v5840
    %v5845 = vsub.f32 0.0, %v5841
    %v5846 = vsel %vm5842, %v5844, %v5840
    %v5847 = vsel %vm5843, %v5845, %v5841
    %v5848 = vadd.f32 %v5846, 1.0
    %v5849 = vadd.f32 %v5847, 1.0
    %v5850 = vmul.f32 %v5798, %v5848
    %v5851 = vmul.f32 %v5799, %v5849
    %v5852 = vmul.f32 %v5788, %v5850
    %v5853 = vmul.f32 %v5794, %v5851
    %s5854 = scalar_lea.vmem %s9, 128
    %v5855 = vld [vmem:[%s5854] sm:$0xff]
    %v5856 = vld [vmem:[%s5854 + $0x8] sm:$0xff]
    %v5857 = vld [vmem:[%s5854 + $0x10] sm:$0xff]
    %v5858 = vld [vmem:[%s5854 + $0x18] sm:$0xff]
    %v5859 = vld [vmem:[%s5854 + $0x20] sm:$0xff]
    %v5860 = vld [vmem:[%s5854 + $0x28] sm:$0xff]
    %v5861 = vld [vmem:[%s5854 + $0x30] sm:$0xff]
    %v5862 = vld [vmem:[%s5854 + $0x38] sm:$0xff]
    %v5863 = vld [vmem:[%s5854 + $0x40] sm:$0xff]
    %v5864 = vld [vmem:[%s5854 + $0x48] sm:$0xff]
    %v5865 = vld [vmem:[%s5854 + $0x50] sm:$0xff]
    %v5866 = vld [vmem:[%s5854 + $0x58] sm:$0xff]
    %v5867 = vld [vmem:[%s5854 + $0x60] sm:$0xff]
    %v5868 = vld [vmem:[%s5854 + $0x68] sm:$0xff]
    %v5869 = vld [vmem:[%s5854 + $0x70] sm:$0xff]
    %v5870 = vld [vmem:[%s5854 + $0x78] sm:$0xff]
    %5871 = vmatprep.subr.mxu0 0.0
    %5872 = vmatpush1.msra.mxu0 %v5870
    %5873 = vmatprep.subr.mxu0 0.0
    %5874 = vmatpush1.msra.mxu0 %v5869
    %5875 = vmatprep.subr.mxu0 0.0
    %5876 = vmatpush1.msra.mxu0 %v5868
    %5877 = vmatprep.subr.mxu0 0.0
    %5878 = vmatpush1.msra.mxu0 %v5867
    %5879 = vmatprep.subr.mxu0 0.0
    %5880 = vmatpush1.msra.mxu0 %v5866
    %5881 = vmatprep.subr.mxu0 0.0
    %5882 = vmatpush1.msra.mxu0 %v5865
    %5883 = vmatprep.subr.mxu0 0.0
    %5884 = vmatpush1.msra.mxu0 %v5864
    %5885 = vmatprep.subr.mxu0 0.0
    %5886 = vmatpush1.msra.mxu0 %v5863
    %5887 = vmatprep.subr.mxu0 0.0
    %5888 = vmatpush1.msra.mxu0 %v5862
    %5889 = vmatprep.subr.mxu0 0.0
    %5890 = vmatpush1.msra.mxu0 %v5861
    %5891 = vmatprep.subr.mxu0 0.0
    %5892 = vmatpush1.msra.mxu0 %v5860
    %5893 = vmatprep.subr.mxu0 0.0
    %5894 = vmatpush1.msra.mxu0 %v5859
    %5895 = vmatprep.subr.mxu0 0.0
    %5896 = vmatpush1.msra.mxu0 %v5858
    %5897 = vmatprep.subr.mxu0 0.0
    %5898 = vmatpush1.msra.mxu0 %v5857
    %5899 = vmatprep.subr.mxu0 0.0
    %5900 = vmatpush1.msra.mxu0 %v5856
    %5901 = vmatprep.subr.mxu0 0.0
    %5902 = vmatpush1.msra.mxu0 %v5855
    %5903 = vmatprep.subr.mxu0 0.0
    %5904 = vmatpush2.msra.mxu0 0.0
    %5905 = vmatprep.subr.mxu0 0.0
    %5906 = vmatpush2.msra.mxu0 0.0
    %5907 = vmatprep.subr.mxu0 0.0
    %5908 = vmatpush2.msra.mxu0 0.0
    %5909 = vmatprep.subr.mxu0 0.0
    %5910 = vmatpush2.msra.mxu0 0.0
    %5911 = vmatprep.subr.mxu0 0.0
    %5912 = vmatpush2.msra.mxu0 0.0
    %5913 = vmatprep.subr.mxu0 0.0
    %5914 = vmatpush2.msra.mxu0 0.0
    %5915 = vmatprep.subr.mxu0 0.0
    %5916 = vmatpush2.msra.mxu0 0.0
    %5917 = vmatprep.subr.mxu0 0.0
    %5918 = vmatpush2.msra.mxu0 0.0
    %5919 = vmatprep.subr.mxu0 0.0
    %5920 = vmatpush2.msra.mxu0 0.0
    %5921 = vmatprep.subr.mxu0 0.0
    %5922 = vmatpush2.msra.mxu0 0.0
    %5923 = vmatprep.subr.mxu0 0.0
    %5924 = vmatpush2.msra.mxu0 0.0
    %5925 = vmatprep.subr.mxu0 0.0
    %5926 = vmatpush2.msra.mxu0 0.0
    %5927 = vmatprep.subr.mxu0 0.0
    %5928 = vmatpush2.msra.mxu0 0.0
    %5929 = vmatprep.subr.mxu0 0.0
    %5930 = vmatpush2.msra.mxu0 0.0
    %5931 = vmatprep.subr.mxu0 0.0
    %5932 = vmatpush2.msra.mxu0 0.0
    %5933 = vmatprep.subr.mxu0 0.0
    %5934 = vmatpush2.msra.mxu0 0.0
    %5935 = vmatprep.mubr.f32.mxu0 0.0
    %5936 = vmatmul.mubr.f32.gmra.mxu0 %v5852
    %v5937 = vpop.f32.mrf.mxu0
    %v5938 = vadd.f32 0.0, %v5937
    %v5939 = vpop.f32.mrf.mxu0
    %5940 = vmatprep.mubr.f32.mxu0 0.0
    %5941 = vmatmul.mubr.f32.gmra.mxu0 %v5853
    %v5942 = vpop.f32.mrf.mxu0
    %v5943 = vadd.f32 0.0, %v5942
    %v5944 = vpop.f32.mrf.mxu0
    %5945 = vdwg.mxu0
    %v5946 = vadd.f32 %v5651, %v5938
    %v5947 = vadd.f32 %v5652, %v5943
    %v5948 = vld [vmem:[%s2998 + $0x5] sm:$0x1]
    %v5949 = vlaneseq
    %v5950 = vshrl.u32 %v5949, 7
    %v5951 = vsub.s32 0, %v5950
    %v5952 = vrot.slane %v5948, %v5951
    %v5953 = vadd.f32 %v5946, %v5952
    %v5954 = vadd.f32 %v5947, %v5952
    %v5955 = vld [vmem:[%s10] sm:$0x1]
    %v5956 = vld [vmem:[%s10 + $0x1] sm:$0x1]
    %v5957 = vsel %vm49, %v5953, 0.0
    %5958 = vadd.xlane.f32.xlu0 %v5957
    %v5959 = vpop.xlane.xlu0 %5958
    %v5960 = vsel %vm49, %v5954, 0.0
    %5961 = vadd.xlane.f32.xlu0 %v5960
    %v5962 = vpop.xlane.xlu0 %5961
    %v5963 = vmul.f32 %v5959, %v56
    %v5964 = vmul.f32 %v5962, %v56
    %v5965 = vsub.f32 %v5953, %v5963
    %v5966 = vsub.f32 %v5954, %v5964
    %v5967 = vmul.f32 %v5965, %v5965
    %v5968 = vmul.f32 %v5966, %v5966
    %v5969 = vsel %vm49, %v5967, 0.0
    %5970 = vadd.xlane.f32.xlu0 %v5969
    %v5971 = vpop.xlane.xlu0 %5970
    %v5972 = vsel %vm49, %v5968, 0.0
    %5973 = vadd.xlane.f32.xlu0 %v5972
    %v5974 = vpop.xlane.xlu0 %5973
    %v5975 = vmul.f32 %v5971, %v56
    %v5976 = vmul.f32 %v5974, %v56
    %v5977 = vadd.f32 %v5975, 1e-05
    %v5978 = vadd.f32 %v5976, 1e-05
    %v5979 = vrsqrt.pop %v5977
    %v5980 = vrsqrt.pop %v5978
    %v5981 = vmul.f32 %v5965, %v5979
    %v5982 = vmul.f32 %v5966, %v5980
    %v5983 = vlaneseq
    %v5984 = vshrl.u32 %v5983, 7
    %v5985 = vsub.s32 0, %v5984
    %v5986 = vrot.slane %v5955, %v5985
    %v5987 = vmul.f32 %v5981, %v5986
    %v5988 = vmul.f32 %v5982, %v5986
    %v5989 = vlaneseq
    %v5990 = vshrl.u32 %v5989, 7
    %v5991 = vsub.s32 0, %v5990
    %v5992 = vrot.slane %v5956, %v5991
    %v5993 = vadd.f32 %v5987, %v5992
    %v5994 = vadd.f32 %v5988, %v5992
    %v5995 = vld [vmem:[%s11] sm:$0xff]
    %v5996 = vld [vmem:[%s11 + $0x8] sm:$0xff]
    %v5997 = vld [vmem:[%s11 + $0x10] sm:$0xff]
    %v5998 = vld [vmem:[%s11 + $0x18] sm:$0xff]
    %v5999 = vld [vmem:[%s11 + $0x20] sm:$0xff]
    %v6000 = vld [vmem:[%s11 + $0x28] sm:$0xff]
    %v6001 = vld [vmem:[%s11 + $0x30] sm:$0xff]
    %v6002 = vld [vmem:[%s11 + $0x38] sm:$0xff]
    %v6003 = vld [vmem:[%s12] sm:$0x3]
    %v6005 = vlaneseq
    %v6006 = vshrl.u32 %v6005, 7
    %v6007 = vsub.s32 0, %v6006
    %v6008 = vrot.slane %v6003, %v6007
    %v6009 = vlaneseq
    %v6010 = vshrl.u32 %v6009, 7
    %v6011 = vsub.s32 1, %v6010
    %v6012 = vrot.slane %v6003, %v6011
    %v6016 = vsel %vm49, %v5993, 0
    %v6019 = vsel %vm49, %v5994, 0
    %6021 = vmatprep.subr.mxu0 0.0
    %6022 = vmatpush1.msra.mxu0 0.0
    %6023 = vmatprep.subr.mxu0 0.0
    %6024 = vmatpush1.msra.mxu0 0.0
    %6025 = vmatprep.subr.mxu0 0.0
    %6026 = vmatpush1.msra.mxu0 0.0
    %6027 = vmatprep.subr.mxu0 0.0
    %6028 = vmatpush1.msra.mxu0 0.0
    %6029 = vmatprep.subr.mxu0 0.0
    %6030 = vmatpush1.msra.mxu0 0.0
    %6031 = vmatprep.subr.mxu0 0.0
    %6032 = vmatpush1.msra.mxu0 0.0
    %6033 = vmatprep.subr.mxu0 0.0
    %6034 = vmatpush1.msra.mxu0 0.0
    %6035 = vmatprep.subr.mxu0 0.0
    %6036 = vmatpush1.msra.mxu0 0.0
    %6037 = vmatprep.subr.mxu0 0.0
    %6038 = vmatpush1.msra.mxu0 0.0
    %6039 = vmatprep.subr.mxu0 0.0
    %6040 = vmatpush1.msra.mxu0 0.0
    %6041 = vmatprep.subr.mxu0 0.0
    %6042 = vmatpush1.msra.mxu0 0.0
    %6043 = vmatprep.subr.mxu0 0.0
    %6044 = vmatpush1.msra.mxu0 0.0
    %6045 = vmatprep.subr.mxu0 %v6002
    %6046 = vmatpush1.msra.mxu0 %v6001
    %6047 = vmatprep.subr.mxu0 %v6000
    %6048 = vmatpush1.msra.mxu0 %v5999
    %6049 = vmatprep.subr.mxu0 %v5998
    %6050 = vmatpush1.msra.mxu0 %v5997
    %6051 = vmatprep.subr.mxu0 %v5996
    %6052 = vmatpush1.msra.mxu0 %v5995
    %6053 = vmatprep.subr.mxu0 0.0
    %6054 = vmatpush2.msra.mxu0 0.0
    %6055 = vmatprep.subr.mxu0 0.0
    %6056 = vmatpush2.msra.mxu0 0.0
    %6057 = vmatprep.subr.mxu0 0.0
    %6058 = vmatpush2.msra.mxu0 0.0
    %6059 = vmatprep.subr.mxu0 0.0
    %6060 = vmatpush2.msra.mxu0 0.0
    %6061 = vmatprep.subr.mxu0 0.0
    %6062 = vmatpush2.msra.mxu0 0.0
    %6063 = vmatprep.subr.mxu0 0.0
    %6064 = vmatpush2.msra.mxu0 0.0
    %6065 = vmatprep.subr.mxu0 0.0
    %6066 = vmatpush2.msra.mxu0 0.0
    %6067 = vmatprep.subr.mxu0 0.0
    %6068 = vmatpush2.msra.mxu0 0.0
    %6069 = vmatprep.subr.mxu0 0.0
    %6070 = vmatpush2.msra.mxu0 0.0
    %6071 = vmatprep.subr.mxu0 0.0
    %6072 = vmatpush2.msra.mxu0 0.0
    %6073 = vmatprep.subr.mxu0 0.0
    %6074 = vmatpush2.msra.mxu0 0.0
    %6075 = vmatprep.subr.mxu0 0.0
    %6076 = vmatpush2.msra.mxu0 0.0
    %6077 = vmatprep.subr.mxu0 0.0
    %6078 = vmatpush2.msra.mxu0 0.0
    %6079 = vmatprep.subr.mxu0 0.0
    %6080 = vmatpush2.msra.mxu0 0.0
    %6081 = vmatprep.subr.mxu0 0.0
    %6082 = vmatpush2.msra.mxu0 0.0
    %6083 = vmatprep.subr.mxu0 0.0
    %6084 = vmatpush2.msra.mxu0 0.0
    %6085 = vmatprep.mubr.f32.mxu0 0.0
    %6086 = vmatmul.mubr.f32.gmra.mxu0 %v6016
    %v6087 = vpop.f32.mrf.mxu0
    %v6088 = vadd.f32 %v6008, %v6087
    %v6089 = vpop.f32.mrf.mxu0
    %v6090 = vadd.f32 %v6012, %v6089
    %6091 = vmatprep.mubr.f32.mxu0 0.0
    %6092 = vmatmul.mubr.f32.gmra.mxu0 %v6019
    %v6093 = vpop.f32.mrf.mxu0
    %v6094 = vadd.f32 %v6008, %v6093
    %v6095 = vpop.f32.mrf.mxu0
    %v6096 = vadd.f32 %v6012, %v6095
    %6097 = vdwg.mxu0
    %6098 = vst [vmem:[#allocation2] sm:$0xff] %v6088
    %6099 = vst [vmem:[#allocation2 + $0x8] sm:$0xff] %v6090
    %6100 = vst [vmem:[#allocation2 + $0x10] sm:$0xff] %v6094
    %6101 = vst [vmem:[#allocation2 + $0x18] sm:$0xff] %v6096
    // Predicated region
    $region54: #{tpu_custom_call.1} parent=1 // pred_check
      _
    $region55: #{tpu_custom_call.1} parent=1 // pred_check_branch
      %6103 = sbr.rel (0) target = $region57
    $region56: #{tpu_custom_call.1} parent=1 // pred_region
      %s6105 = ssub.s32 512, 512
      %6106 = vsyncadd [#allocation3], %s6105
      %s6107 = sshll.u32 [#allocation2], 4
      %s6108 = int_to_ptr.vmem [resolvable:$true] %s6107
      %6113 = dma.vmem_to_hbm [thread:$0]  %s6108, 512, %s13, [#allocation3], 256, 256, 16
    $region57: #{tpu_custom_call.1} parent=1 // pred_fallthru
      _
    // Predicated region
    $region58: #{tpu_custom_call.1} parent=1 // pred_check
      _
    $region59: #{tpu_custom_call.1} parent=1 // pred_check_branch
      %6115 = sbr.rel (0) target = $region61
    $region60: #{tpu_custom_call.1} parent=1 // pred_region
      %6116 = dma.done [#allocation3], 512
    $region61: #{tpu_custom_call.1} parent=1 // pred_fallthru
      _
    %6117 = vsyncpa [#allocation3], 1

</llo_original>
